<compile_context>
chip_gen: v7x
topology: tpu7x:2x2x1
jax: 0.10.0
libtpu: 0.0.40
codegen_flags: <defaults>
</compile_context>

<pallas_src>
import functools

import jax
import jax.numpy as jnp
from jax.experimental import pallas as pl
from jax.experimental.pallas import tpu as pltpu


# ----------------------------------------------------------------------------
# Small helpers
# ----------------------------------------------------------------------------
def _vmem_capacity_bytes():
    """Best-effort physical VMEM query; conservative (v7x-sized) fallback."""
    try:
        info = pltpu.get_tpu_info()
        cap = getattr(info, "vmem_capacity_bytes", None)
        if cap:
            return int(cap)
    except Exception:
        pass
    return 64 * 1024 * 1024


def _const_block_spec(shape, index_map):
    """Single-buffered BlockSpec for grid-invariant (weight) operands."""
    if hasattr(pl, "Buffered"):
        try:
            return pl.BlockSpec(shape, index_map, pipeline_mode=pl.Buffered(1))
        except TypeError:
            pass
    return pl.BlockSpec(shape, index_map)


def _pick_row_tile(H, cands):
    for t in cands:
        if H % t == 0 and t % 8 == 0:
            return t
    return H


def _pick_main_tile(H, W, cands):
    for t in cands:
        if H % t == 0 and (t * W) % 128 == 0:
            return t
    return H


# ----------------------------------------------------------------------------
# Pallas kernel 1: row-tiled pooled reductions + conv1h/conv1s logits
# grid = (N, NH, NPR): batch (parallel) x H-half (parallel) x row tiles (arbitrary)
# ----------------------------------------------------------------------------
def reduce_kernel(x_ref, w1ht_ref, w1s_ref, p1_ref, p2_ref, y3_ref, y4_ref,
                  *, C, H, W):
    i = pl.program_id(2)
    x = x_ref[0].astype(jnp.float32)                     # (C, THR, W)

    # --- per-row outputs (this tile owns its rows) ---------------------------
    # avg_pool_x, written lane-dense as (THR, C): small XLU transpose in-kernel.
    p1_ref[0, 0] = (jnp.sum(x, axis=2) * (1.0 / W)).T

    cmax = jnp.max(x, axis=0)                            # channel max  (THR, W)
    cmean = jnp.sum(x, axis=0) * (1.0 / C)               # channel mean (THR, W)
    w1ht = w1ht_ref[...]                                 # (THR, 2): [:,0]=max, [:,1]=mean
    w1s = w1s_ref[...]                                   # (2, W)
    # conv1s: (1,W) kernel — the W contraction completes inside the tile.
    y4_ref[0] = jnp.sum(w1s[0:1, :] * cmax + w1s[1:2, :] * cmean,
                        axis=1, keepdims=True)           # (THR, 1)

    # --- cross-row accumulators (resident output blocks per (n, half)) -------
    # NOTE: the inner grid axis MUST stay 'arbitrary' for this accumulation.
    @pl.when(i == 0)
    def _init():
        p2_ref[...] = jnp.zeros_like(p2_ref)
        y3_ref[...] = jnp.zeros_like(y3_ref)

    p2_ref[0, 0] += jnp.sum(x, axis=1) * (1.0 / H)       # avg_pool_y partial (C, W)
    # conv1h: (H,1) kernel — accumulate partial row sums across tiles.
    y3_ref[0, 0] += jnp.sum(w1ht[:, 0:1] * cmax + w1ht[:, 1:2] * cmean,
                            axis=0, keepdims=True)       # (1, W)


# ----------------------------------------------------------------------------
# Pallas kernel 2: fused gating + conv111/conv222 + 3x3 convout on a row tile
# grid = (N, NT): both axes parallel.
# ----------------------------------------------------------------------------
def main_kernel(x_ref, top_ref, bot_ref, g3_ref, g4_ref, weff_ref, w222_ref,
                woutc_ref, woutp_ref, out_ref, *, W, TH):
    L = TH * W
    bf16 = jnp.bfloat16
    i = pl.program_id(1)
    last = pl.num_programs(1) - 1

    # Halo'd f32 row tile.  Halo rows come straight from x via clamped
    # BlockSpecs; zeroing them at the image boundary reproduces the 3x3 conv's
    # zero padding without row masks.
    top = top_ref[0] * jnp.where(i > 0, 1.0, 0.0)        # (C, W)
    bot = bot_ref[0] * jnp.where(i < last, 1.0, 0.0)     # (C, W)
    xh32 = jnp.concatenate([top, x_ref[0], bot], axis=1)  # (C, P) f32

    g3 = g3_ref[0]                                       # (1, P) per-column gate
    g4 = g4_ref[0, 0]                                    # (1, P) per-row gate (halo'd)
    xh = xh32.astype(bf16)
    xg3 = (xh32 * g3).astype(bf16)
    xg4 = (xh32 * g4).astype(bf16)

    # 1x1 convs.  conv111: per-channel gates folded into weff.  conv222: the
    # per-pixel gates commute with the channel contraction, so they are
    # pre-applied to x and the two halves form one pure dot chain.  No (6C,P)
    # f32 intermediate is ever materialized.
    yac = jnp.dot(weff_ref[0], xh,
                  preferred_element_type=jnp.float32).astype(bf16)        # (2C, P)
    yap = (jnp.dot(w222_ref[0], xg3, preferred_element_type=jnp.float32)
           + jnp.dot(w222_ref[1], xg4,
                     preferred_element_type=jnp.float32)).astype(bf16)    # (2C, P)

    # convout (3x3) as 18 (C,2C)@(2C,L) matmuls.  Per column-shift, the 6 taps
    # are a pure `acc = acc + dot(...)` chain (keeps the accumulator in the MXU
    # result buffer on v7x).  The column shift is applied to the small (C, L)
    # chain OUTPUT: one roll + one masked add per side — no rolled operands.
    def tap_chain(dj):
        acc = jnp.dot(woutc_ref[dj], yac[:, 0:L],
                      preferred_element_type=jnp.float32)
        acc = acc + jnp.dot(woutp_ref[dj], yap[:, 0:L],
                            preferred_element_type=jnp.float32)
        for di in (1, 2):
            a = di * W
            t = di * 3 + dj
            acc = acc + jnp.dot(woutc_ref[t], yac[:, a:a + L],
                                preferred_element_type=jnp.float32)
            acc = acc + jnp.dot(woutp_ref[t], yap[:, a:a + L],
                                preferred_element_type=jnp.float32)
        return acc

    col = jax.lax.broadcasted_iota(jnp.int32, (1, L), 1) % W
    out = tap_chain(1)                                                     # dx=1 (center)
    out = out + jnp.where(col > 0,
                          pltpu.roll(tap_chain(0), shift=1, axis=1), 0.0)  # dx=0 (left)
    out = out + jnp.where(col < W - 1,
                          pltpu.roll(tap_chain(2), shift=L - 1, axis=1), 0.0)  # dx=2
    out_ref[0] = out.astype(out_ref.dtype)


# ----------------------------------------------------------------------------
# Forward wrapper
# ----------------------------------------------------------------------------
def cdam2_forward(x, p):
    N, C, H, W = x.shape
    f32, bf16 = jnp.float32, jnp.bfloat16
    K = p['w1'].shape[-1]
    pad = (K - 1) // 2

    # Generation-dependent VMEM budget and main-kernel row-tile size.
    vmem_cap = _vmem_capacity_bytes()
    if vmem_cap >= 96 * 1024 * 1024:        # v5e / v6e (128 MiB physical)
        vmem_limit = 100 * 1024 * 1024
        th_pref = 16
    else:                                   # v7x-sized (64 MiB) or unknown
        vmem_limit = 48 * 1024 * 1024
        th_pref = 8
    cparams = dict(vmem_limit_bytes=vmem_limit)

    THR = _pick_row_tile(H, (32, 16, 8))            # reduce-kernel row tile
    TH = _pick_main_tile(H, W, (th_pref, 8))        # main-kernel row tile
    NT = H // TH
    NTR = H // THR
    NH = 2 if (NTR >= 2 and NTR % 2 == 0) else 1    # H-half split (v7x 2 TCs)
    NPR = NTR // NH
    L = TH * W
    P = (TH + 2) * W

    # ---- Pallas kernel 1: reductions + conv1h/conv1s logits ----------------
    w1h_t = p['w1h'].T                               # (H, 2)
    p1_tiles, p2h, y3h, y4l = pl.pallas_call(
        functools.partial(reduce_kernel, C=C, H=H, W=W),
        out_shape=(jax.ShapeDtypeStruct((N, NTR, THR, C), f32),  # avg_pool_x (lane-dense)
                   jax.ShapeDtypeStruct((N, NH, C, W), f32),     # avg_pool_y partials
                   jax.ShapeDtypeStruct((N, NH, 1, W), f32),     # conv1h logit partials
                   jax.ShapeDtypeStruct((N, H, 1), f32)),        # conv1s logit
        grid_spec=pltpu.PrefetchScalarGridSpec(
            num_scalar_prefetch=0, grid=(N, NH, NPR),
            in_specs=[
                pl.BlockSpec((1, C, THR, W), lambda n, h, i: (n, 0, h * NPR + i, 0)),
                pl.BlockSpec((THR, 2), lambda n, h, i: (h * NPR + i, 0)),
                pl.BlockSpec((2, W), lambda n, h, i: (0, 0)),
            ],
            out_specs=[
                pl.BlockSpec((1, 1, THR, C), lambda n, h, i: (n, h * NPR + i, 0, 0)),
                pl.BlockSpec((1, 1, C, W), lambda n, h, i: (n, h, 0, 0)),
                pl.BlockSpec((1, 1, 1, W), lambda n, h, i: (n, h, 0, 0)),
                pl.BlockSpec((1, THR, 1), lambda n, h, i: (n, h * NPR + i, 0)),
            ]),
        compiler_params=pltpu.CompilerParams(
            dimension_semantics=("parallel", "parallel", "arbitrary"), **cparams),
    )(x, w1h_t, p['w1s'])

    p2 = jnp.sum(p2h, axis=1)                        # (N, C, W)
    y3l = jnp.sum(y3h, axis=1)                       # (N, 1, W)
    p1t = p1_tiles.reshape(N, H, C)                  # (N, H, C), no transpose needed

    # ---- glue: tiny Conv1d gate chains (negligible FLOPs) ------------------
    def conv1d_ncl(v, w):
        return jax.lax.conv_general_dilated(
            v, w, window_strides=(1,), padding=[(pad, pad)],
            dimension_numbers=('NCH', 'OIH', 'NCH'))

    g1 = jax.nn.sigmoid(conv1d_ncl(jax.nn.relu(conv1d_ncl(p1t, p['w1'])),
                                   p['w11']))[:, 0, :]                 # (N, C)
    g2 = jax.nn.sigmoid(conv1d_ncl(jax.nn.relu(
        conv1d_ncl(jnp.transpose(p2, (0, 2, 1)), p['w2'])),
        p['w22']))[:, 0, :]                                            # (N, C)

    # ---- weight plumbing ----------------------------------------------------
    w111a, w111b = p['w111'][:, :C], p['w111'][:, C:]
    w_eff = (w111a[None] * g1[:, None, :] +
             w111b[None] * g2[:, None, :]).astype(bf16)                # (N, 2C, C)
    w222s = jnp.stack([p['w222'][:, :C], p['w222'][:, C:]],
                      axis=0).astype(bf16)                             # (2, 2C, C)
    wout_t = jnp.transpose(p['wout'], (2, 3, 0, 1)).reshape(9, C, 4 * C)
    wout_c = wout_t[:, :, :2 * C].astype(bf16)                         # (9, C, 2C)
    wout_p = wout_t[:, :, 2 * C:].astype(bf16)                         # (9, C, 2C)

    # ---- per-pixel gates, flattened per row tile (with the 1-row halo) -----
    g3flat = jnp.tile(jax.nn.sigmoid(y3l), (1, 1, TH + 2))             # (N, 1, P)
    g4vec = jax.nn.sigmoid(y4l)[:, :, 0]                               # (N, H)
    g4pad = jnp.pad(g4vec, ((0, 0), (1, 1)))                           # (N, H+2)
    g4win = jnp.stack([g4pad[:, i * TH:i * TH + TH + 2] for i in range(NT)],
                      axis=1)                                          # (N, NT, TH+2)
    g4flat = jnp.broadcast_to(g4win[..., None],
                              (N, NT, TH + 2, W)).reshape(N, NT, 1, P)

    x_flat = x.reshape(N, C, H * W)

    # ---- Pallas kernel 2: fused gating + 1x1 convs + 3x3 convout -----------
    out_flat = pl.pallas_call(
        functools.partial(main_kernel, W=W, TH=TH),
        out_shape=jax.ShapeDtypeStruct((N, C, H * W), f32),
        grid_spec=pltpu.PrefetchScalarGridSpec(
            num_scalar_prefetch=0, grid=(N, NT),
            in_specs=[
                # main row tile
                pl.BlockSpec((1, C, L), lambda n, i: (n, 0, i)),
                # halo rows straight from x (clamped; zeroed in-kernel at edges)
                pl.BlockSpec((1, C, W),
                             lambda n, i: (n, 0, jnp.maximum(i * TH - 1, 0))),
                pl.BlockSpec((1, C, W),
                             lambda n, i: (n, 0, jnp.minimum((i + 1) * TH, H - 1))),
                pl.BlockSpec((1, 1, P), lambda n, i: (n, 0, 0)),
                pl.BlockSpec((1, 1, 1, P), lambda n, i: (n, i, 0, 0)),
                pl.BlockSpec((1, 2 * C, C), lambda n, i: (n, 0, 0)),
                # grid-invariant weights: single-buffered
                _const_block_spec((2, 2 * C, C), lambda n, i: (0, 0, 0)),
                _const_block_spec((9, C, 2 * C), lambda n, i: (0, 0, 0)),
                _const_block_spec((9, C, 2 * C), lambda n, i: (0, 0, 0)),
            ],
            out_specs=pl.BlockSpec((1, C, L), lambda n, i: (n, 0, i))),
        compiler_params=pltpu.CompilerParams(
            dimension_semantics=("parallel", "parallel"), **cparams),
    )(x_flat, x_flat, x_flat, g3flat, g4flat, w_eff, w222s, wout_c, wout_p)

    return out_flat.reshape(N, C, H, W)


# ----------------------------------------------------------------------------
# Pure-JAX reference (mirrors the PyTorch forward exactly) for validation
# ----------------------------------------------------------------------------
def reference_forward(x, p):
    N, C, H, W = x.shape
    K = p['w1'].shape[-1]
    pad = (K - 1) // 2

    def conv1d_ncl(v, w):
        return jax.lax.conv_general_dilated(
            v, w, window_strides=(1,), padding=[(pad, pad)],
            dimension_numbers=('NCH', 'OIH', 'NCH'))

    p1 = jnp.mean(x, axis=3)                                       # (N,C,H)
    y1 = jax.nn.sigmoid(jnp.transpose(
        conv1d_ncl(jax.nn.relu(conv1d_ncl(jnp.transpose(p1, (0, 2, 1)),
                                          p['w1'])), p['w11']),
        (0, 2, 1)))[..., None]                                     # (N,C,1,1)
    p2 = jnp.mean(x, axis=2)                                       # (N,C,W)
    y2 = jax.nn.sigmoid(jnp.transpose(
        conv1d_ncl(jax.nn.relu(conv1d_ncl(jnp.transpose(p2, (0, 2, 1)),
                                          p['w2'])), p['w22']),
        (0, 2, 1)))[..., None]                                     # (N,C,1,1)
    yac = jnp.einsum('oc,nchw->nohw', p['w111'],
                     jnp.concatenate([x * y1, x * y2], axis=1))

    cmax = jnp.max(x, axis=1, keepdims=True)
    cmean = jnp.mean(x, axis=1, keepdims=True)
    avg_out = jnp.concatenate([cmax, cmean], axis=1)               # (N,2,H,W)
    y3 = jax.nn.sigmoid(jnp.einsum('ci,ncij->nj', p['w1h'],
                                   avg_out))[:, None, None, :]     # (N,1,1,W)
    y4 = jax.nn.sigmoid(jnp.einsum('cj,ncij->ni', p['w1s'],
                                   avg_out))[:, None, :, None]     # (N,1,H,1)
    yap = jnp.einsum('oc,nchw->nohw', p['w222'],
                     jnp.concatenate([x * y3, x * y4], axis=1))

    catf = jnp.concatenate([yac, yap], axis=1)                     # (N,4C,H,W)
    out = jax.lax.conv_general_dilated(
        catf, p['wout'], (1, 1), [(1, 1), (1, 1)],
        dimension_numbers=('NCHW', 'OIHW', 'NCHW'))
    return out


# ----------------------------------------------------------------------------
# Deterministic parameter init (shapes follow the module's __init__)
# ----------------------------------------------------------------------------
def init_params(key, C, H, W, K):
    ks = jax.random.split(key, 9)
    f32 = jnp.float32
    return dict(
        w1=jax.random.normal(ks[0], (1, H, K), f32) * (H * K) ** -0.5,      # conv1
        w2=jax.random.normal(ks[1], (1, W, K), f32) * (W * K) ** -0.5,      # conv2
        w11=jax.random.normal(ks[2], (1, 1, K), f32) * K ** -0.5,           # conv11
        w22=jax.random.normal(ks[3], (1, 1, K), f32) * K ** -0.5,           # conv22
        w111=jax.random.normal(ks[4], (2 * C, 2 * C), f32) * (2 * C) ** -0.5,   # conv111
        w222=jax.random.normal(ks[5], (2 * C, 2 * C), f32) * (2 * C) ** -0.5,   # conv222
        w1h=jax.random.normal(ks[6], (2, H), f32) * (2 * H) ** -0.5,        # conv1h (H,1)
        w1s=jax.random.normal(ks[7], (2, W), f32) * (2 * W) ** -0.5,        # conv1s (1,W)
        wout=jax.random.normal(ks[8], (C, 4 * C, 3, 3), f32) * (36 * C) ** -0.5,  # convout
    )


if __name__ == "__main__":
    # Scaled-down demo of the module (PyTorch hard-codes C=320, H=W=256).
    # W=128 keeps the flattened row tiles lane-aligned; H=128 exercises the
    # halo path, the half-split reduction and the cross-tile accumulation.
    N, C, H, W, K = 2, 16, 128, 128, 9
    key = jax.random.PRNGKey(0)
    kx, kp = jax.random.split(key)
    x = jax.random.normal(kx, (N, C, H, W), jnp.float32)
    params = init_params(kp, C, H, W, K)

    out = jax.jit(cdam2_forward)(x, params)
    out = jax.block_until_ready(out)

    ref = reference_forward(x, params)
    err = float(jnp.max(jnp.abs(out - ref)))
    assert out.shape == (N, C, H, W), out.shape
    # Matmul operands run in bfloat16 (f32 accumulation) -> looser tolerance.
    assert err < 5e-2, f"max abs error {err}"
    print("KERNEL_OK")
</pallas_src>

<mosaic_0001>
module attributes {stable_mosaic.version = 11 : i64} {
  func.func @reduce_kernel(%arg0: i32, %arg1: i32, %arg2: i32, %arg3: memref<1x16x32x128xf32, #tpu.memory_space<vmem>>, %arg4: memref<32x2xf32, #tpu.memory_space<vmem>>, %arg5: memref<2x128xf32, #tpu.memory_space<vmem>>, %arg6: memref<1x1x32x16xf32, #tpu.memory_space<vmem>>, %arg7: memref<1x1x16x128xf32, #tpu.memory_space<vmem>>, %arg8: memref<1x1x1x128xf32, #tpu.memory_space<vmem>>, %arg9: memref<1x32x1xf32, #tpu.memory_space<vmem>>) attributes {dimension_semantics = [#tpu.dimension_semantics<parallel>, #tpu.dimension_semantics<parallel>, #tpu.dimension_semantics<arbitrary>], iteration_bounds = array<i64: 2, 2, 2>, scalar_prefetch = 0 : i64, scratch_operands = 0 : i64, tpu.core_type = #tpu.core_type<tc>, window_params = [{transform_indices = @transform_0, window_bounds = array<i64: 1, 16, 32, 128>}, {transform_indices = @transform_1, window_bounds = array<i64: 32, 2>}, {pipeline_mode = #tpu.pipeline_mode<synchronous>, transform_indices = @transform_2, window_bounds = array<i64: 2, 128>}, {transform_indices = @transform_3, window_bounds = array<i64: 1, 1, 32, 16>}, {transform_indices = @transform_4, window_bounds = array<i64: 1, 1, 16, 128>}, {transform_indices = @transform_5, window_bounds = array<i64: 1, 1, 1, 128>}, {transform_indices = @transform_6, window_bounds = array<i64: 1, 32, 1>}]} {
    %c0 = arith.constant 0 : index
    %c0_0 = arith.constant 0 : index
    %c0_1 = arith.constant 0 : index
    %c0_2 = arith.constant 0 : index
    %0 = vector.load %arg3[%c0, %c0_0, %c0_1, %c0_2] : memref<1x16x32x128xf32, #tpu.memory_space<vmem>>, vector<1x16x32x128xf32>
    %1 = vector.shape_cast %0 : vector<1x16x32x128xf32> to vector<16x32x128xf32>
    %cst = arith.constant dense<0.000000e+00> : vector<16x32xf32>
    %2 = vector.multi_reduction <add>, %1, %cst [2] : vector<16x32x128xf32> to vector<16x32xf32>
    %cst_3 = arith.constant 7.812500e-03 : f32
    %3 = vector.broadcast %cst_3 : f32 to vector<16x32xf32>
    %4 = arith.mulf %2, %3 : vector<16x32xf32>
    %5 = tpu.transpose %4, [1, 0] : vector<16x32xf32> -> vector<32x16xf32>
    %c0_4 = arith.constant 0 : index
    %c0_5 = arith.constant 0 : index
    %c0_6 = arith.constant 0 : index
    %c0_7 = arith.constant 0 : index
    %6 = vector.load %arg6[%c0_4, %c0_5, %c0_6, %c0_7] : memref<1x1x32x16xf32, #tpu.memory_space<vmem>>, vector<1x1x32x16xf32>
    %7 = vector.shape_cast %6 : vector<1x1x32x16xf32> to vector<32x16xf32>
    %8 = vector.shape_cast %5 : vector<32x16xf32> to vector<1x1x32x16xf32>
    tpu.vector_store %arg6[%c0_4, %c0_5, %c0_6, %c0_7], %8 {strides = array<i32>} : memref<1x1x32x16xf32, #tpu.memory_space<vmem>>, vector<1x1x32x16xf32>,
    %cst_8 = arith.constant dense<0xFF800000> : vector<32x128xf32>
    %9 = vector.multi_reduction <maximumf>, %1, %cst_8 [0] : vector<16x32x128xf32> to vector<32x128xf32>
    %cst_9 = arith.constant dense<0.000000e+00> : vector<32x128xf32>
    %10 = vector.multi_reduction <add>, %1, %cst_9 [0] : vector<16x32x128xf32> to vector<32x128xf32>
    %cst_10 = arith.constant 6.250000e-02 : f32
    %11 = vector.broadcast %cst_10 : f32 to vector<32x128xf32>
    %12 = arith.mulf %10, %11 : vector<32x128xf32>
    %c0_11 = arith.constant 0 : index
    %c0_12 = arith.constant 0 : index
    %13 = vector.load %arg4[%c0_11, %c0_12] : memref<32x2xf32, #tpu.memory_space<vmem>>, vector<32x2xf32>
    %c0_13 = arith.constant 0 : index
    %c0_14 = arith.constant 0 : index
    %14 = vector.load %arg5[%c0_13, %c0_14] : memref<2x128xf32, #tpu.memory_space<vmem>>, vector<2x128xf32>
    %15 = vector.extract_strided_slice %14 {offsets = [0, 0], sizes = [1, 128], strides = [1, 1]} : vector<2x128xf32> to vector<1x128xf32>
    %16 = vector.broadcast %15 : vector<1x128xf32> to vector<32x128xf32>
    %17 = arith.mulf %16, %9 : vector<32x128xf32>
    %18 = vector.extract_strided_slice %14 {offsets = [1, 0], sizes = [1, 128], strides = [1, 1]} : vector<2x128xf32> to vector<1x128xf32>
    %19 = vector.broadcast %18 : vector<1x128xf32> to vector<32x128xf32>
    %20 = arith.mulf %19, %12 : vector<32x128xf32>
    %21 = arith.addf %17, %20 : vector<32x128xf32>
    %cst_15 = arith.constant dense<0.000000e+00> : vector<32xf32>
    %22 = vector.multi_reduction <add>, %21, %cst_15 [1] : vector<32x128xf32> to vector<32xf32>
    %23 = vector.shape_cast %22 : vector<32xf32> to vector<32x1xf32>
    %c0_16 = arith.constant 0 : index
    %c0_17 = arith.constant 0 : index
    %c0_18 = arith.constant 0 : index
    %24 = vector.load %arg9[%c0_16, %c0_17, %c0_18] : memref<1x32x1xf32, #tpu.memory_space<vmem>>, vector<1x32x1xf32>
    %25 = vector.shape_cast %24 : vector<1x32x1xf32> to vector<32x1xf32>
    %26 = vector.shape_cast %23 : vector<32x1xf32> to vector<1x32x1xf32>
    tpu.vector_store %arg9[%c0_16, %c0_17, %c0_18], %26 {strides = array<i32>} : memref<1x32x1xf32, #tpu.memory_space<vmem>>, vector<1x32x1xf32>,
    %c0_i32 = arith.constant 0 : i32
    %27 = arith.cmpi eq, %arg2, %c0_i32 : i32
    %28 = arith.extui %27 : i1 to i32
    %c0_i32_19 = arith.constant 0 : i32
    %29 = arith.cmpi ne, %28, %c0_i32_19 : i32
    scf.if %29 {
      %cst_39 = arith.constant 0.000000e+00 : f32
      %54 = vector.broadcast %cst_39 : f32 to vector<1x1x16x128xf32>
      %c0_40 = arith.constant 0 : index
      %c0_41 = arith.constant 0 : index
      %c0_42 = arith.constant 0 : index
      %c0_43 = arith.constant 0 : index
      %55 = vector.load %arg7[%c0_40, %c0_41, %c0_42, %c0_43] : memref<1x1x16x128xf32, #tpu.memory_space<vmem>>, vector<1x1x16x128xf32>
      tpu.vector_store %arg7[%c0_40, %c0_41, %c0_42, %c0_43], %54 {strides = array<i32>} : memref<1x1x16x128xf32, #tpu.memory_space<vmem>>, vector<1x1x16x128xf32>,
      %cst_44 = arith.constant 0.000000e+00 : f32
      %56 = vector.broadcast %cst_44 : f32 to vector<1x1x1x128xf32>
      %c0_45 = arith.constant 0 : index
      %c0_46 = arith.constant 0 : index
      %c0_47 = arith.constant 0 : index
      %c0_48 = arith.constant 0 : index
      %57 = vector.load %arg8[%c0_45, %c0_46, %c0_47, %c0_48] : memref<1x1x1x128xf32, #tpu.memory_space<vmem>>, vector<1x1x1x128xf32>
      tpu.vector_store %arg8[%c0_45, %c0_46, %c0_47, %c0_48], %56 {strides = array<i32>} : memref<1x1x1x128xf32, #tpu.memory_space<vmem>>, vector<1x1x1x128xf32>,
    } else {
    }
    %c0_20 = arith.constant 0 : index
    %c0_21 = arith.constant 0 : index
    %c0_22 = arith.constant 0 : index
    %c0_23 = arith.constant 0 : index
    %30 = vector.load %arg7[%c0_20, %c0_21, %c0_22, %c0_23] : memref<1x1x16x128xf32, #tpu.memory_space<vmem>>, vector<1x1x16x128xf32>
    %31 = vector.shape_cast %30 : vector<1x1x16x128xf32> to vector<16x128xf32>
    %cst_24 = arith.constant dense<0.000000e+00> : vector<16x128xf32>
    %32 = vector.multi_reduction <add>, %1, %cst_24 [1] : vector<16x32x128xf32> to vector<16x128xf32>
    %cst_25 = arith.constant 7.812500e-03 : f32
    %33 = vector.broadcast %cst_25 : f32 to vector<16x128xf32>
    %34 = arith.mulf %32, %33 : vector<16x128xf32>
    %35 = arith.addf %31, %34 : vector<16x128xf32>
    %c0_26 = arith.constant 0 : index
    %c0_27 = arith.constant 0 : index
    %c0_28 = arith.constant 0 : index
    %c0_29 = arith.constant 0 : index
    %36 = vector.load %arg7[%c0_26, %c0_27, %c0_28, %c0_29] : memref<1x1x16x128xf32, #tpu.memory_space<vmem>>, vector<1x1x16x128xf32>
    %37 = vector.shape_cast %36 : vector<1x1x16x128xf32> to vector<16x128xf32>
    %38 = vector.shape_cast %35 : vector<16x128xf32> to vector<1x1x16x128xf32>
    tpu.vector_store %arg7[%c0_26, %c0_27, %c0_28, %c0_29], %38 {strides = array<i32>} : memref<1x1x16x128xf32, #tpu.memory_space<vmem>>, vector<1x1x16x128xf32>,
    %c0_30 = arith.constant 0 : index
    %c0_31 = arith.constant 0 : index
    %c0_32 = arith.constant 0 : index
    %c0_33 = arith.constant 0 : index
    %39 = vector.load %arg8[%c0_30, %c0_31, %c0_32, %c0_33] : memref<1x1x1x128xf32, #tpu.memory_space<vmem>>, vector<1x1x1x128xf32>
    %40 = vector.shape_cast %39 : vector<1x1x1x128xf32> to vector<1x128xf32>
    %41 = vector.extract_strided_slice %13 {offsets = [0, 0], sizes = [32, 1], strides = [1, 1]} : vector<32x2xf32> to vector<32x1xf32>
    %42 = vector.broadcast %41 : vector<32x1xf32> to vector<32x128xf32>
    %43 = arith.mulf %42, %9 : vector<32x128xf32>
    %44 = vector.extract_strided_slice %13 {offsets = [0, 1], sizes = [32, 1], strides = [1, 1]} : vector<32x2xf32> to vector<32x1xf32>
    %45 = vector.broadcast %44 : vector<32x1xf32> to vector<32x128xf32>
    %46 = arith.mulf %45, %12 : vector<32x128xf32>
    %47 = arith.addf %43, %46 : vector<32x128xf32>
    %cst_34 = arith.constant dense<0.000000e+00> : vector<128xf32>
    %48 = vector.multi_reduction <add>, %47, %cst_34 [0] : vector<32x128xf32> to vector<128xf32>
    %49 = vector.shape_cast %48 : vector<128xf32> to vector<1x128xf32>
    %50 = arith.addf %40, %49 : vector<1x128xf32>
    %c0_35 = arith.constant 0 : index
    %c0_36 = arith.constant 0 : index
    %c0_37 = arith.constant 0 : index
    %c0_38 = arith.constant 0 : index
    %51 = vector.load %arg8[%c0_35, %c0_36, %c0_37, %c0_38] : memref<1x1x1x128xf32, #tpu.memory_space<vmem>>, vector<1x1x1x128xf32>
    %52 = vector.shape_cast %51 : vector<1x1x1x128xf32> to vector<1x128xf32>
    %53 = vector.shape_cast %50 : vector<1x128xf32> to vector<1x1x1x128xf32>
    tpu.vector_store %arg8[%c0_35, %c0_36, %c0_37, %c0_38], %53 {strides = array<i32>} : memref<1x1x1x128xf32, #tpu.memory_space<vmem>>, vector<1x1x1x128xf32>,
    return
  }
  func.func @transform_0(%arg0: i32, %arg1: i32, %arg2: i32) -> (i32, i32, i32, i32) {
    %c2_i32 = arith.constant 2 : i32
    %0 = arith.muli %arg1, %c2_i32 : i32
    %1 = arith.addi %0, %arg2 : i32
    %c0_i32 = arith.constant 0 : i32
    %c0_i32_0 = arith.constant 0 : i32
    %c0_i32_1 = arith.constant 0 : i32
    return %arg0, %c0_i32, %1, %c0_i32_0 : i32, i32, i32, i32
  }
  func.func @transform_1(%arg0: i32, %arg1: i32, %arg2: i32) -> (i32, i32) {
    %c2_i32 = arith.constant 2 : i32
    %0 = arith.muli %arg1, %c2_i32 : i32
    %1 = arith.addi %0, %arg2 : i32
    %c0_i32 = arith.constant 0 : i32
    %c0_i32_0 = arith.constant 0 : i32
    return %1, %c0_i32 : i32, i32
  }
  func.func @transform_2(%arg0: i32, %arg1: i32, %arg2: i32) -> (i32, i32) {
    %c0_i32 = arith.constant 0 : i32
    %c0_i32_0 = arith.constant 0 : i32
    %c0_i32_1 = arith.constant 0 : i32
    return %c0_i32, %c0_i32_0 : i32, i32
  }
  func.func @transform_3(%arg0: i32, %arg1: i32, %arg2: i32) -> (i32, i32, i32, i32) {
    %c2_i32 = arith.constant 2 : i32
    %0 = arith.muli %arg1, %c2_i32 : i32
    %1 = arith.addi %0, %arg2 : i32
    %c0_i32 = arith.constant 0 : i32
    %c0_i32_0 = arith.constant 0 : i32
    %c0_i32_1 = arith.constant 0 : i32
    return %arg0, %1, %c0_i32, %c0_i32_0 : i32, i32, i32, i32
  }
  func.func @transform_4(%arg0: i32, %arg1: i32, %arg2: i32) -> (i32, i32, i32, i32) {
    %c0_i32 = arith.constant 0 : i32
    %c0_i32_0 = arith.constant 0 : i32
    %c0_i32_1 = arith.constant 0 : i32
    return %arg0, %arg1, %c0_i32, %c0_i32_0 : i32, i32, i32, i32
  }
  func.func @transform_5(%arg0: i32, %arg1: i32, %arg2: i32) -> (i32, i32, i32, i32) {
    %c0_i32 = arith.constant 0 : i32
    %c0_i32_0 = arith.constant 0 : i32
    %c0_i32_1 = arith.constant 0 : i32
    return %arg0, %arg1, %c0_i32, %c0_i32_0 : i32, i32, i32, i32
  }
  func.func @transform_6(%arg0: i32, %arg1: i32, %arg2: i32) -> (i32, i32, i32) {
    %c2_i32 = arith.constant 2 : i32
    %0 = arith.muli %arg1, %c2_i32 : i32
    %1 = arith.addi %0, %arg2 : i32
    %c0_i32 = arith.constant 0 : i32
    %c0_i32_0 = arith.constant 0 : i32
    return %arg0, %1, %c0_i32 : i32, i32, i32
  }
}

module attributes {stable_mosaic.version = 11 : i64} {
  func.func @main_kernel(%arg0: i32, %arg1: i32, %arg2: memref<1x16x1024xf32, #tpu.memory_space<vmem>>, %arg3: memref<1x16x128xf32, #tpu.memory_space<vmem>>, %arg4: memref<1x16x128xf32, #tpu.memory_space<vmem>>, %arg5: memref<1x1x1280xf32, #tpu.memory_space<vmem>>, %arg6: memref<1x1x1x1280xf32, #tpu.memory_space<vmem>>, %arg7: memref<1x32x16xbf16, #tpu.memory_space<vmem>>, %arg8: memref<2x32x16xbf16, #tpu.memory_space<vmem>>, %arg9: memref<9x16x32xbf16, #tpu.memory_space<vmem>>, %arg10: memref<9x16x32xbf16, #tpu.memory_space<vmem>>, %arg11: memref<1x16x1024xf32, #tpu.memory_space<vmem>>) attributes {dimension_semantics = [#tpu.dimension_semantics<parallel>, #tpu.dimension_semantics<parallel>], iteration_bounds = array<i64: 2, 16>, scalar_prefetch = 0 : i64, scratch_operands = 0 : i64, tpu.core_type = #tpu.core_type<tc>, window_params = [{transform_indices = @transform_0, window_bounds = array<i64: 1, 16, 1024>}, {transform_indices = @transform_1, window_bounds = array<i64: 1, 16, 128>}, {transform_indices = @transform_2, window_bounds = array<i64: 1, 16, 128>}, {transform_indices = @transform_3, window_bounds = array<i64: 1, 1, 1280>}, {transform_indices = @transform_4, window_bounds = array<i64: 1, 1, 1, 1280>}, {transform_indices = @transform_5, window_bounds = array<i64: 1, 32, 16>}, {pipeline_mode = #tpu.pipeline_mode<synchronous>, transform_indices = @transform_6, window_bounds = array<i64: 2, 32, 16>}, {pipeline_mode = #tpu.pipeline_mode<synchronous>, transform_indices = @transform_7, window_bounds = array<i64: 9, 16, 32>}, {pipeline_mode = #tpu.pipeline_mode<synchronous>, transform_indices = @transform_8, window_bounds = array<i64: 9, 16, 32>}, {transform_indices = @transform_9, window_bounds = array<i64: 1, 16, 1024>}]} {
    %c0 = arith.constant 0 : index
    %c0_0 = arith.constant 0 : index
    %c0_1 = arith.constant 0 : index
    %0 = vector.load %arg3[%c0, %c0_0, %c0_1] : memref<1x16x128xf32, #tpu.memory_space<vmem>>, vector<1x16x128xf32>
    %1 = vector.shape_cast %0 : vector<1x16x128xf32> to vector<16x128xf32>
    %c0_i32 = arith.constant 0 : i32
    %2 = arith.cmpi sgt, %arg1, %c0_i32 : i32
    %cst = arith.constant 1.000000e+00 : f32
    %cst_2 = arith.constant 0.000000e+00 : f32
    %3 = arith.select %2, %cst, %cst_2 : f32
    %4 = vector.broadcast %3 : f32 to vector<16x128xf32>
    %5 = arith.mulf %1, %4 : vector<16x128xf32>
    %c0_3 = arith.constant 0 : index
    %c0_4 = arith.constant 0 : index
    %c0_5 = arith.constant 0 : index
    %6 = vector.load %arg4[%c0_3, %c0_4, %c0_5] : memref<1x16x128xf32, #tpu.memory_space<vmem>>, vector<1x16x128xf32>
    %7 = vector.shape_cast %6 : vector<1x16x128xf32> to vector<16x128xf32>
    %c15_i32 = arith.constant 15 : i32
    %8 = arith.cmpi slt, %arg1, %c15_i32 : i32
    %cst_6 = arith.constant 1.000000e+00 : f32
    %cst_7 = arith.constant 0.000000e+00 : f32
    %9 = arith.select %8, %cst_6, %cst_7 : f32
    %10 = vector.broadcast %9 : f32 to vector<16x128xf32>
    %11 = arith.mulf %7, %10 : vector<16x128xf32>
    %c0_8 = arith.constant 0 : index
    %c0_9 = arith.constant 0 : index
    %c0_10 = arith.constant 0 : index
    %12 = vector.load %arg2[%c0_8, %c0_9, %c0_10] : memref<1x16x1024xf32, #tpu.memory_space<vmem>>, vector<1x16x1024xf32>
    %13 = vector.shape_cast %12 : vector<1x16x1024xf32> to vector<16x1024xf32>
    %14 = tpu.concatenate %5, %13, %11 in 1 : vector<16x128xf32>, vector<16x1024xf32>, vector<16x128xf32> -> vector<16x1280xf32>
    %c0_11 = arith.constant 0 : index
    %c0_12 = arith.constant 0 : index
    %c0_13 = arith.constant 0 : index
    %15 = vector.load %arg5[%c0_11, %c0_12, %c0_13] : memref<1x1x1280xf32, #tpu.memory_space<vmem>>, vector<1x1x1280xf32>
    %16 = vector.shape_cast %15 : vector<1x1x1280xf32> to vector<1x1280xf32>
    %c0_14 = arith.constant 0 : index
    %c0_15 = arith.constant 0 : index
    %c0_16 = arith.constant 0 : index
    %c0_17 = arith.constant 0 : index
    %17 = vector.load %arg6[%c0_14, %c0_15, %c0_16, %c0_17] : memref<1x1x1x1280xf32, #tpu.memory_space<vmem>>, vector<1x1x1x1280xf32>
    %18 = vector.shape_cast %17 : vector<1x1x1x1280xf32> to vector<1x1280xf32>
    %19 = arith.truncf %14 : vector<16x1280xf32> to vector<16x1280xbf16>
    %20 = vector.broadcast %16 : vector<1x1280xf32> to vector<16x1280xf32>
    %21 = arith.mulf %14, %20 : vector<16x1280xf32>
    %22 = arith.truncf %21 : vector<16x1280xf32> to vector<16x1280xbf16>
    %23 = vector.broadcast %18 : vector<1x1280xf32> to vector<16x1280xf32>
    %24 = arith.mulf %14, %23 : vector<16x1280xf32>
    %25 = arith.truncf %24 : vector<16x1280xf32> to vector<16x1280xbf16>
    %c0_18 = arith.constant 0 : index
    %c0_19 = arith.constant 0 : index
    %c0_20 = arith.constant 0 : index
    %26 = vector.load %arg7[%c0_18, %c0_19, %c0_20] : memref<1x32x16xbf16, #tpu.memory_space<vmem>>, vector<1x32x16xbf16>
    %27 = vector.shape_cast %26 : vector<1x32x16xbf16> to vector<32x16xbf16>
    %cst_21 = arith.constant dense<0.000000e+00> : vector<32x1280xf32>
    %28 = tpu.matmul %27, %19, %cst_21 {dimension_numbers = #tpu.dot_dimension_numbers<[1], [0], [0], [1], [0, 0, 1, 1], [], []>} : vector<32x16xbf16>, vector<16x1280xbf16>, vector<32x1280xf32> -> vector<32x1280xf32>
    %29 = arith.truncf %28 : vector<32x1280xf32> to vector<32x1280xbf16>
    %c0_22 = arith.constant 0 : index
    %c0_23 = arith.constant 0 : index
    %c0_24 = arith.constant 0 : index
    %30 = vector.load %arg8[%c0_22, %c0_23, %c0_24] : memref<2x32x16xbf16, #tpu.memory_space<vmem>>, vector<1x32x16xbf16>
    %31 = vector.shape_cast %30 : vector<1x32x16xbf16> to vector<32x16xbf16>
    %cst_25 = arith.constant dense<0.000000e+00> : vector<32x1280xf32>
    %32 = tpu.matmul %31, %22, %cst_25 {dimension_numbers = #tpu.dot_dimension_numbers<[1], [0], [0], [1], [0, 0, 1, 1], [], []>} : vector<32x16xbf16>, vector<16x1280xbf16>, vector<32x1280xf32> -> vector<32x1280xf32>
    %c1 = arith.constant 1 : index
    %c0_26 = arith.constant 0 : index
    %c0_27 = arith.constant 0 : index
    %33 = vector.load %arg8[%c1, %c0_26, %c0_27] : memref<2x32x16xbf16, #tpu.memory_space<vmem>>, vector<1x32x16xbf16>
    %34 = vector.shape_cast %33 : vector<1x32x16xbf16> to vector<32x16xbf16>
    %cst_28 = arith.constant dense<0.000000e+00> : vector<32x1280xf32>
    %35 = tpu.matmul %34, %25, %cst_28 {dimension_numbers = #tpu.dot_dimension_numbers<[1], [0], [0], [1], [0, 0, 1, 1], [], []>} : vector<32x16xbf16>, vector<16x1280xbf16>, vector<32x1280xf32> -> vector<32x1280xf32>
    %36 = arith.addf %32, %35 : vector<32x1280xf32>
    %37 = arith.truncf %36 : vector<32x1280xf32> to vector<32x1280xbf16>
    %38 = tpu.iota {dimensions = array<i32: 1>} : vector<1x1024xi32>
    %c128_i32 = arith.constant 128 : i32
    %c0_i32_29 = arith.constant 0 : i32
    %39 = arith.cmpi eq, %c128_i32, %c0_i32_29 : i32
    %c1_i32 = arith.constant 1 : i32
    %40 = arith.select %39, %c1_i32, %c128_i32 : i32
    %41 = vector.broadcast %40 : i32 to vector<1x1024xi32>
    %42 = arith.remsi %38, %41 : vector<1x1024xi32>
    %c0_i32_30 = arith.constant 0 : i32
    %43 = vector.broadcast %c0_i32_30 : i32 to vector<1x1024xi32>
    %44 = arith.cmpi ne, %42, %43 : vector<1x1024xi32>
    %c0_i32_31 = arith.constant 0 : i32
    %45 = vector.broadcast %c0_i32_31 : i32 to vector<1x1024xi32>
    %46 = arith.cmpi slt, %42, %45 : vector<1x1024xi32>
    %c0_i32_32 = arith.constant 0 : i32
    %47 = arith.cmpi slt, %40, %c0_i32_32 : i32
    %48 = vector.broadcast %47 : i1 to vector<1x1024xi1>
    %49 = vector.broadcast %48 : vector<1x1024xi1> to vector<1x1024xi1>
    %50 = arith.xori %46, %49 : vector<1x1024xi1>
    %51 = arith.andi %50, %44 : vector<1x1024xi1>
    %52 = vector.broadcast %40 : i32 to vector<1x1024xi32>
    %53 = arith.addi %42, %52 : vector<1x1024xi32>
    %54 = arith.select %51, %53, %42 : vector<1x1024xi1>, vector<1x1024xi32>
    %c1_33 = arith.constant 1 : index
    %c0_34 = arith.constant 0 : index
    %c0_35 = arith.constant 0 : index
    %55 = vector.load %arg9[%c1_33, %c0_34, %c0_35] : memref<9x16x32xbf16, #tpu.memory_space<vmem>>, vector<1x16x32xbf16>
    %56 = vector.shape_cast %55 : vector<1x16x32xbf16> to vector<16x32xbf16>
    %57 = vector.extract_strided_slice %29 {offsets = [0, 0], sizes = [32, 1024], strides = [1, 1]} : vector<32x1280xbf16> to vector<32x1024xbf16>
    %cst_36 = arith.constant dense<0.000000e+00> : vector<16x1024xf32>
    %58 = tpu.matmul %56, %57, %cst_36 {dimension_numbers = #tpu.dot_dimension_numbers<[1], [0], [0], [1], [0, 0, 1, 1], [], []>} : vector<16x32xbf16>, vector<32x1024xbf16>, vector<16x1024xf32> -> vector<16x1024xf32>
    %c1_37 = arith.constant 1 : index
    %c0_38 = arith.constant 0 : index
    %c0_39 = arith.constant 0 : index
    %59 = vector.load %arg10[%c1_37, %c0_38, %c0_39] : memref<9x16x32xbf16, #tpu.memory_space<vmem>>, vector<1x16x32xbf16>
    %60 = vector.shape_cast %59 : vector<1x16x32xbf16> to vector<16x32xbf16>
    %61 = vector.extract_strided_slice %37 {offsets = [0, 0], sizes = [32, 1024], strides = [1, 1]} : vector<32x1280xbf16> to vector<32x1024xbf16>
    %cst_40 = arith.constant dense<0.000000e+00> : vector<16x1024xf32>
    %62 = tpu.matmul %60, %61, %cst_40 {dimension_numbers = #tpu.dot_dimension_numbers<[1], [0], [0], [1], [0, 0, 1, 1], [], []>} : vector<16x32xbf16>, vector<32x1024xbf16>, vector<16x1024xf32> -> vector<16x1024xf32>
    %63 = arith.addf %58, %62 : vector<16x1024xf32>
    %c4 = arith.constant 4 : index
    %c0_41 = arith.constant 0 : index
    %c0_42 = arith.constant 0 : index
    %64 = vector.load %arg9[%c4, %c0_41, %c0_42] : memref<9x16x32xbf16, #tpu.memory_space<vmem>>, vector<1x16x32xbf16>
    %65 = vector.shape_cast %64 : vector<1x16x32xbf16> to vector<16x32xbf16>
    %66 = vector.extract_strided_slice %29 {offsets = [0, 128], sizes = [32, 1024], strides = [1, 1]} : vector<32x1280xbf16> to vector<32x1024xbf16>
    %cst_43 = arith.constant dense<0.000000e+00> : vector<16x1024xf32>
    %67 = tpu.matmul %65, %66, %cst_43 {dimension_numbers = #tpu.dot_dimension_numbers<[1], [0], [0], [1], [0, 0, 1, 1], [], []>} : vector<16x32xbf16>, vector<32x1024xbf16>, vector<16x1024xf32> -> vector<16x1024xf32>
    %68 = arith.addf %63, %67 : vector<16x1024xf32>
    %c4_44 = arith.constant 4 : index
    %c0_45 = arith.constant 0 : index
    %c0_46 = arith.constant 0 : index
    %69 = vector.load %arg10[%c4_44, %c0_45, %c0_46] : memref<9x16x32xbf16, #tpu.memory_space<vmem>>, vector<1x16x32xbf16>
    %70 = vector.shape_cast %69 : vector<1x16x32xbf16> to vector<16x32xbf16>
    %71 = vector.extract_strided_slice %37 {offsets = [0, 128], sizes = [32, 1024], strides = [1, 1]} : vector<32x1280xbf16> to vector<32x1024xbf16>
    %cst_47 = arith.constant dense<0.000000e+00> : vector<16x1024xf32>
    %72 = tpu.matmul %70, %71, %cst_47 {dimension_numbers = #tpu.dot_dimension_numbers<[1], [0], [0], [1], [0, 0, 1, 1], [], []>} : vector<16x32xbf16>, vector<32x1024xbf16>, vector<16x1024xf32> -> vector<16x1024xf32>
    %73 = arith.addf %68, %72 : vector<16x1024xf32>
    %c7 = arith.constant 7 : index
    %c0_48 = arith.constant 0 : index
    %c0_49 = arith.constant 0 : index
    %74 = vector.load %arg9[%c7, %c0_48, %c0_49] : memref<9x16x32xbf16, #tpu.memory_space<vmem>>, vector<1x16x32xbf16>
    %75 = vector.shape_cast %74 : vector<1x16x32xbf16> to vector<16x32xbf16>
    %76 = vector.extract_strided_slice %29 {offsets = [0, 256], sizes = [32, 1024], strides = [1, 1]} : vector<32x1280xbf16> to vector<32x1024xbf16>
    %cst_50 = arith.constant dense<0.000000e+00> : vector<16x1024xf32>
    %77 = tpu.matmul %75, %76, %cst_50 {dimension_numbers = #tpu.dot_dimension_numbers<[1], [0], [0], [1], [0, 0, 1, 1], [], []>} : vector<16x32xbf16>, vector<32x1024xbf16>, vector<16x1024xf32> -> vector<16x1024xf32>
    %78 = arith.addf %73, %77 : vector<16x1024xf32>
    %c7_51 = arith.constant 7 : index
    %c0_52 = arith.constant 0 : index
    %c0_53 = arith.constant 0 : index
    %79 = vector.load %arg10[%c7_51, %c0_52, %c0_53] : memref<9x16x32xbf16, #tpu.memory_space<vmem>>, vector<1x16x32xbf16>
    %80 = vector.shape_cast %79 : vector<1x16x32xbf16> to vector<16x32xbf16>
    %81 = vector.extract_strided_slice %37 {offsets = [0, 256], sizes = [32, 1024], strides = [1, 1]} : vector<32x1280xbf16> to vector<32x1024xbf16>
    %cst_54 = arith.constant dense<0.000000e+00> : vector<16x1024xf32>
    %82 = tpu.matmul %80, %81, %cst_54 {dimension_numbers = #tpu.dot_dimension_numbers<[1], [0], [0], [1], [0, 0, 1, 1], [], []>} : vector<16x32xbf16>, vector<32x1024xbf16>, vector<16x1024xf32> -> vector<16x1024xf32>
    %83 = arith.addf %78, %82 : vector<16x1024xf32>
    %c0_i32_55 = arith.constant 0 : i32
    %84 = vector.broadcast %c0_i32_55 : i32 to vector<1x1024xi32>
    %85 = arith.cmpi sgt, %54, %84 : vector<1x1024xi32>
    %c0_56 = arith.constant 0 : index
    %c0_57 = arith.constant 0 : index
    %c0_58 = arith.constant 0 : index
    %86 = vector.load %arg9[%c0_56, %c0_57, %c0_58] : memref<9x16x32xbf16, #tpu.memory_space<vmem>>, vector<1x16x32xbf16>
    %87 = vector.shape_cast %86 : vector<1x16x32xbf16> to vector<16x32xbf16>
    %88 = vector.extract_strided_slice %29 {offsets = [0, 0], sizes = [32, 1024], strides = [1, 1]} : vector<32x1280xbf16> to vector<32x1024xbf16>
    %cst_59 = arith.constant dense<0.000000e+00> : vector<16x1024xf32>
    %89 = tpu.matmul %87, %88, %cst_59 {dimension_numbers = #tpu.dot_dimension_numbers<[1], [0], [0], [1], [0, 0, 1, 1], [], []>} : vector<16x32xbf16>, vector<32x1024xbf16>, vector<16x1024xf32> -> vector<16x1024xf32>
    %c0_60 = arith.constant 0 : index
    %c0_61 = arith.constant 0 : index
    %c0_62 = arith.constant 0 : index
    %90 = vector.load %arg10[%c0_60, %c0_61, %c0_62] : memref<9x16x32xbf16, #tpu.memory_space<vmem>>, vector<1x16x32xbf16>
    %91 = vector.shape_cast %90 : vector<1x16x32xbf16> to vector<16x32xbf16>
    %92 = vector.extract_strided_slice %37 {offsets = [0, 0], sizes = [32, 1024], strides = [1, 1]} : vector<32x1280xbf16> to vector<32x1024xbf16>
    %cst_63 = arith.constant dense<0.000000e+00> : vector<16x1024xf32>
    %93 = tpu.matmul %91, %92, %cst_63 {dimension_numbers = #tpu.dot_dimension_numbers<[1], [0], [0], [1], [0, 0, 1, 1], [], []>} : vector<16x32xbf16>, vector<32x1024xbf16>, vector<16x1024xf32> -> vector<16x1024xf32>
    %94 = arith.addf %89, %93 : vector<16x1024xf32>
    %c3 = arith.constant 3 : index
    %c0_64 = arith.constant 0 : index
    %c0_65 = arith.constant 0 : index
    %95 = vector.load %arg9[%c3, %c0_64, %c0_65] : memref<9x16x32xbf16, #tpu.memory_space<vmem>>, vector<1x16x32xbf16>
    %96 = vector.shape_cast %95 : vector<1x16x32xbf16> to vector<16x32xbf16>
    %97 = vector.extract_strided_slice %29 {offsets = [0, 128], sizes = [32, 1024], strides = [1, 1]} : vector<32x1280xbf16> to vector<32x1024xbf16>
    %cst_66 = arith.constant dense<0.000000e+00> : vector<16x1024xf32>
    %98 = tpu.matmul %96, %97, %cst_66 {dimension_numbers = #tpu.dot_dimension_numbers<[1], [0], [0], [1], [0, 0, 1, 1], [], []>} : vector<16x32xbf16>, vector<32x1024xbf16>, vector<16x1024xf32> -> vector<16x1024xf32>
    %99 = arith.addf %94, %98 : vector<16x1024xf32>
    %c3_67 = arith.constant 3 : index
    %c0_68 = arith.constant 0 : index
    %c0_69 = arith.constant 0 : index
    %100 = vector.load %arg10[%c3_67, %c0_68, %c0_69] : memref<9x16x32xbf16, #tpu.memory_space<vmem>>, vector<1x16x32xbf16>
    %101 = vector.shape_cast %100 : vector<1x16x32xbf16> to vector<16x32xbf16>
    %102 = vector.extract_strided_slice %37 {offsets = [0, 128], sizes = [32, 1024], strides = [1, 1]} : vector<32x1280xbf16> to vector<32x1024xbf16>
    %cst_70 = arith.constant dense<0.000000e+00> : vector<16x1024xf32>
    %103 = tpu.matmul %101, %102, %cst_70 {dimension_numbers = #tpu.dot_dimension_numbers<[1], [0], [0], [1], [0, 0, 1, 1], [], []>} : vector<16x32xbf16>, vector<32x1024xbf16>, vector<16x1024xf32> -> vector<16x1024xf32>
    %104 = arith.addf %99, %103 : vector<16x1024xf32>
    %c6 = arith.constant 6 : index
    %c0_71 = arith.constant 0 : index
    %c0_72 = arith.constant 0 : index
    %105 = vector.load %arg9[%c6, %c0_71, %c0_72] : memref<9x16x32xbf16, #tpu.memory_space<vmem>>, vector<1x16x32xbf16>
    %106 = vector.shape_cast %105 : vector<1x16x32xbf16> to vector<16x32xbf16>
    %107 = vector.extract_strided_slice %29 {offsets = [0, 256], sizes = [32, 1024], strides = [1, 1]} : vector<32x1280xbf16> to vector<32x1024xbf16>
    %cst_73 = arith.constant dense<0.000000e+00> : vector<16x1024xf32>
    %108 = tpu.matmul %106, %107, %cst_73 {dimension_numbers = #tpu.dot_dimension_numbers<[1], [0], [0], [1], [0, 0, 1, 1], [], []>} : vector<16x32xbf16>, vector<32x1024xbf16>, vector<16x1024xf32> -> vector<16x1024xf32>
    %109 = arith.addf %104, %108 : vector<16x1024xf32>
    %c6_74 = arith.constant 6 : index
    %c0_75 = arith.constant 0 : index
    %c0_76 = arith.constant 0 : index
    %110 = vector.load %arg10[%c6_74, %c0_75, %c0_76] : memref<9x16x32xbf16, #tpu.memory_space<vmem>>, vector<1x16x32xbf16>
    %111 = vector.shape_cast %110 : vector<1x16x32xbf16> to vector<16x32xbf16>
    %112 = vector.extract_strided_slice %37 {offsets = [0, 256], sizes = [32, 1024], strides = [1, 1]} : vector<32x1280xbf16> to vector<32x1024xbf16>
    %cst_77 = arith.constant dense<0.000000e+00> : vector<16x1024xf32>
    %113 = tpu.matmul %111, %112, %cst_77 {dimension_numbers = #tpu.dot_dimension_numbers<[1], [0], [0], [1], [0, 0, 1, 1], [], []>} : vector<16x32xbf16>, vector<32x1024xbf16>, vector<16x1024xf32> -> vector<16x1024xf32>
    %114 = arith.addf %109, %113 : vector<16x1024xf32>
    %c1_i32_78 = arith.constant 1 : i32
    %115 = tpu.dynamic_rotate %114 by %c1_i32_78 dim 1 : vector<16x1024xf32>, i32 -> vector<16x1024xf32>
    %cst_79 = arith.constant 0.000000e+00 : f32
    %116 = vector.shape_cast %85 : vector<1x1024xi1> to vector<1x1024xi1>
    %117 = vector.broadcast %116 : vector<1x1024xi1> to vector<16x1024xi1>
    %118 = vector.broadcast %cst_79 : f32 to vector<16x1024xf32>
    %119 = arith.select %117, %115, %118 : vector<16x1024xi1>, vector<16x1024xf32>
    %120 = arith.addf %83, %119 : vector<16x1024xf32>
    %c127_i32 = arith.constant 127 : i32
    %121 = vector.broadcast %c127_i32 : i32 to vector<1x1024xi32>
    %122 = arith.cmpi slt, %54, %121 : vector<1x1024xi32>
    %c2 = arith.constant 2 : index
    %c0_80 = arith.constant 0 : index
    %c0_81 = arith.constant 0 : index
    %123 = vector.load %arg9[%c2, %c0_80, %c0_81] : memref<9x16x32xbf16, #tpu.memory_space<vmem>>, vector<1x16x32xbf16>
    %124 = vector.shape_cast %123 : vector<1x16x32xbf16> to vector<16x32xbf16>
    %125 = vector.extract_strided_slice %29 {offsets = [0, 0], sizes = [32, 1024], strides = [1, 1]} : vector<32x1280xbf16> to vector<32x1024xbf16>
    %cst_82 = arith.constant dense<0.000000e+00> : vector<16x1024xf32>
    %126 = tpu.matmul %124, %125, %cst_82 {dimension_numbers = #tpu.dot_dimension_numbers<[1], [0], [0], [1], [0, 0, 1, 1], [], []>} : vector<16x32xbf16>, vector<32x1024xbf16>, vector<16x1024xf32> -> vector<16x1024xf32>
    %c2_83 = arith.constant 2 : index
    %c0_84 = arith.constant 0 : index
    %c0_85 = arith.constant 0 : index
    %127 = vector.load %arg10[%c2_83, %c0_84, %c0_85] : memref<9x16x32xbf16, #tpu.memory_space<vmem>>, vector<1x16x32xbf16>
    %128 = vector.shape_cast %127 : vector<1x16x32xbf16> to vector<16x32xbf16>
    %129 = vector.extract_strided_slice %37 {offsets = [0, 0], sizes = [32, 1024], strides = [1, 1]} : vector<32x1280xbf16> to vector<32x1024xbf16>
    %cst_86 = arith.constant dense<0.000000e+00> : vector<16x1024xf32>
    %130 = tpu.matmul %128, %129, %cst_86 {dimension_numbers = #tpu.dot_dimension_numbers<[1], [0], [0], [1], [0, 0, 1, 1], [], []>} : vector<16x32xbf16>, vector<32x1024xbf16>, vector<16x1024xf32> -> vector<16x1024xf32>
    %131 = arith.addf %126, %130 : vector<16x1024xf32>
    %c5 = arith.constant 5 : index
    %c0_87 = arith.constant 0 : index
    %c0_88 = arith.constant 0 : index
    %132 = vector.load %arg9[%c5, %c0_87, %c0_88] : memref<9x16x32xbf16, #tpu.memory_space<vmem>>, vector<1x16x32xbf16>
    %133 = vector.shape_cast %132 : vector<1x16x32xbf16> to vector<16x32xbf16>
    %134 = vector.extract_strided_slice %29 {offsets = [0, 128], sizes = [32, 1024], strides = [1, 1]} : vector<32x1280xbf16> to vector<32x1024xbf16>
    %cst_89 = arith.constant dense<0.000000e+00> : vector<16x1024xf32>
    %135 = tpu.matmul %133, %134, %cst_89 {dimension_numbers = #tpu.dot_dimension_numbers<[1], [0], [0], [1], [0, 0, 1, 1], [], []>} : vector<16x32xbf16>, vector<32x1024xbf16>, vector<16x1024xf32> -> vector<16x1024xf32>
    %136 = arith.addf %131, %135 : vector<16x1024xf32>
    %c5_90 = arith.constant 5 : index
    %c0_91 = arith.constant 0 : index
    %c0_92 = arith.constant 0 : index
    %137 = vector.load %arg10[%c5_90, %c0_91, %c0_92] : memref<9x16x32xbf16, #tpu.memory_space<vmem>>, vector<1x16x32xbf16>
    %138 = vector.shape_cast %137 : vector<1x16x32xbf16> to vector<16x32xbf16>
    %139 = vector.extract_strided_slice %37 {offsets = [0, 128], sizes = [32, 1024], strides = [1, 1]} : vector<32x1280xbf16> to vector<32x1024xbf16>
    %cst_93 = arith.constant dense<0.000000e+00> : vector<16x1024xf32>
    %140 = tpu.matmul %138, %139, %cst_93 {dimension_numbers = #tpu.dot_dimension_numbers<[1], [0], [0], [1], [0, 0, 1, 1], [], []>} : vector<16x32xbf16>, vector<32x1024xbf16>, vector<16x1024xf32> -> vector<16x1024xf32>
    %141 = arith.addf %136, %140 : vector<16x1024xf32>
    %c8 = arith.constant 8 : index
    %c0_94 = arith.constant 0 : index
    %c0_95 = arith.constant 0 : index
    %142 = vector.load %arg9[%c8, %c0_94, %c0_95] : memref<9x16x32xbf16, #tpu.memory_space<vmem>>, vector<1x16x32xbf16>
    %143 = vector.shape_cast %142 : vector<1x16x32xbf16> to vector<16x32xbf16>
    %144 = vector.extract_strided_slice %29 {offsets = [0, 256], sizes = [32, 1024], strides = [1, 1]} : vector<32x1280xbf16> to vector<32x1024xbf16>
    %cst_96 = arith.constant dense<0.000000e+00> : vector<16x1024xf32>
    %145 = tpu.matmul %143, %144, %cst_96 {dimension_numbers = #tpu.dot_dimension_numbers<[1], [0], [0], [1], [0, 0, 1, 1], [], []>} : vector<16x32xbf16>, vector<32x1024xbf16>, vector<16x1024xf32> -> vector<16x1024xf32>
    %146 = arith.addf %141, %145 : vector<16x1024xf32>
    %c8_97 = arith.constant 8 : index
    %c0_98 = arith.constant 0 : index
    %c0_99 = arith.constant 0 : index
    %147 = vector.load %arg10[%c8_97, %c0_98, %c0_99] : memref<9x16x32xbf16, #tpu.memory_space<vmem>>, vector<1x16x32xbf16>
    %148 = vector.shape_cast %147 : vector<1x16x32xbf16> to vector<16x32xbf16>
    %149 = vector.extract_strided_slice %37 {offsets = [0, 256], sizes = [32, 1024], strides = [1, 1]} : vector<32x1280xbf16> to vector<32x1024xbf16>
    %cst_100 = arith.constant dense<0.000000e+00> : vector<16x1024xf32>
    %150 = tpu.matmul %148, %149, %cst_100 {dimension_numbers = #tpu.dot_dimension_numbers<[1], [0], [0], [1], [0, 0, 1, 1], [], []>} : vector<16x32xbf16>, vector<32x1024xbf16>, vector<16x1024xf32> -> vector<16x1024xf32>
    %151 = arith.addf %146, %150 : vector<16x1024xf32>
    %c1023_i32 = arith.constant 1023 : i32
    %152 = tpu.dynamic_rotate %151 by %c1023_i32 dim 1 : vector<16x1024xf32>, i32 -> vector<16x1024xf32>
    %cst_101 = arith.constant 0.000000e+00 : f32
    %153 = vector.shape_cast %122 : vector<1x1024xi1> to vector<1x1024xi1>
    %154 = vector.broadcast %153 : vector<1x1024xi1> to vector<16x1024xi1>
    %155 = vector.broadcast %cst_101 : f32 to vector<16x1024xf32>
    %156 = arith.select %154, %152, %155 : vector<16x1024xi1>, vector<16x1024xf32>
    %157 = arith.addf %120, %156 : vector<16x1024xf32>
    %c0_102 = arith.constant 0 : index
    %c0_103 = arith.constant 0 : index
    %c0_104 = arith.constant 0 : index
    %158 = vector.load %arg11[%c0_102, %c0_103, %c0_104] : memref<1x16x1024xf32, #tpu.memory_space<vmem>>, vector<1x16x1024xf32>
    %159 = vector.shape_cast %158 : vector<1x16x1024xf32> to vector<16x1024xf32>
    %160 = vector.shape_cast %157 : vector<16x1024xf32> to vector<1x16x1024xf32>
    tpu.vector_store %arg11[%c0_102, %c0_103, %c0_104], %160 {strides = array<i32>} : memref<1x16x1024xf32, #tpu.memory_space<vmem>>, vector<1x16x1024xf32>,
    return
  }
  func.func @transform_0(%arg0: i32, %arg1: i32) -> (i32, i32, i32) {
    %c0_i32 = arith.constant 0 : i32
    %c0_i32_0 = arith.constant 0 : i32
    return %arg0, %c0_i32, %arg1 : i32, i32, i32
  }
  func.func @transform_1(%arg0: i32, %arg1: i32) -> (i32, i32, i32) {
    %c8_i32 = arith.constant 8 : i32
    %0 = arith.muli %arg1, %c8_i32 : i32
    %c1_i32 = arith.constant 1 : i32
    %1 = arith.subi %0, %c1_i32 : i32
    %c0_i32 = arith.constant 0 : i32
    %2 = arith.maxsi %1, %c0_i32 : i32
    %c0_i32_0 = arith.constant 0 : i32
    %c0_i32_1 = arith.constant 0 : i32
    return %arg0, %c0_i32_0, %2 : i32, i32, i32
  }
  func.func @transform_2(%arg0: i32, %arg1: i32) -> (i32, i32, i32) {
    %c1_i32 = arith.constant 1 : i32
    %0 = arith.addi %arg1, %c1_i32 : i32
    %c8_i32 = arith.constant 8 : i32
    %1 = arith.muli %0, %c8_i32 : i32
    %c127_i32 = arith.constant 127 : i32
    %2 = arith.minsi %1, %c127_i32 : i32
    %c0_i32 = arith.constant 0 : i32
    %c0_i32_0 = arith.constant 0 : i32
    return %arg0, %c0_i32, %2 : i32, i32, i32
  }
  func.func @transform_3(%arg0: i32, %arg1: i32) -> (i32, i32, i32) {
    %c0_i32 = arith.constant 0 : i32
    %c0_i32_0 = arith.constant 0 : i32
    %c0_i32_1 = arith.constant 0 : i32
    return %arg0, %c0_i32, %c0_i32_0 : i32, i32, i32
  }
  func.func @transform_4(%arg0: i32, %arg1: i32) -> (i32, i32, i32, i32) {
    %c0_i32 = arith.constant 0 : i32
    %c0_i32_0 = arith.constant 0 : i32
    %c0_i32_1 = arith.constant 0 : i32
    return %arg0, %arg1, %c0_i32, %c0_i32_0 : i32, i32, i32, i32
  }
  func.func @transform_5(%arg0: i32, %arg1: i32) -> (i32, i32, i32) {
    %c0_i32 = arith.constant 0 : i32
    %c0_i32_0 = arith.constant 0 : i32
    %c0_i32_1 = arith.constant 0 : i32
    return %arg0, %c0_i32, %c0_i32_0 : i32, i32, i32
  }
  func.func @transform_6(%arg0: i32, %arg1: i32) -> (i32, i32, i32) {
    %c0_i32 = arith.constant 0 : i32
    %c0_i32_0 = arith.constant 0 : i32
    %c0_i32_1 = arith.constant 0 : i32
    %c0_i32_2 = arith.constant 0 : i32
    return %c0_i32, %c0_i32_0, %c0_i32_1 : i32, i32, i32
  }
  func.func @transform_7(%arg0: i32, %arg1: i32) -> (i32, i32, i32) {
    %c0_i32 = arith.constant 0 : i32
    %c0_i32_0 = arith.constant 0 : i32
    %c0_i32_1 = arith.constant 0 : i32
    %c0_i32_2 = arith.constant 0 : i32
    return %c0_i32, %c0_i32_0, %c0_i32_1 : i32, i32, i32
  }
  func.func @transform_8(%arg0: i32, %arg1: i32) -> (i32, i32, i32) {
    %c0_i32 = arith.constant 0 : i32
    %c0_i32_0 = arith.constant 0 : i32
    %c0_i32_1 = arith.constant 0 : i32
    %c0_i32_2 = arith.constant 0 : i32
    return %c0_i32, %c0_i32_0, %c0_i32_1 : i32, i32, i32
  }
  func.func @transform_9(%arg0: i32, %arg1: i32) -> (i32, i32, i32) {
    %c0_i32 = arith.constant 0 : i32
    %c0_i32_0 = arith.constant 0 : i32
    return %arg0, %c0_i32, %arg1 : i32, i32, i32
  }
}

</mosaic_0001>

<llo_original>
// kernel: cdam2_forward.2
$region0: #{cdam2_forward.2}
  #allocation0 [shape = 'u32[]', space=smem, size = 0x4, offset = 0x4, fixed_abs, tag = 'smem constant byte address 0x4 - core index']
  #allocation1 [shape = 'u32[144,128]{1,0:T(1,128)}', space=vmem, size = 0x12000, scoped, tag = 'internal scratch']
  #allocation6 [shape = 's32[]', space=sflag, size = 0x4, offset = 0, fixed_abs, tag = 'sflag constant byte address 0x0 - dummy sync flag']
  %s0 = inlined_call_operand.hbm [shape: f32[2,16,128,128], index: 0, kind: input, shape index: {}]
  %s1 = inlined_call_operand.vmem [shape: f32[128,2], index: 1, kind: input, shape index: {}]
  %s2 = inlined_call_operand.hbm [shape: f32[2,128], index: 2, kind: input, shape index: {}]
  %s3 = inlined_call_operand.vmem [shape: f32[2,4,32,16], index: 3, kind: output, shape index: {0}]
  %s4 = inlined_call_operand.vmem [shape: f32[2,2,16,128], index: 4, kind: output, shape index: {1}]
  %s5 = inlined_call_operand.vmem [shape: f32[2,2,1,128], index: 5, kind: output, shape index: {2}]
  %s6 = inlined_call_operand.vmem [shape: f32[2,128,1], index: 6, kind: output, shape index: {3}]
  %7 = xla_tuple %s3, %s4, %s5, %s6
  %s8 = sld [smem:[#allocation0]]
  $region81: #{cdam2_forward.2} parent=0
    _
  %s10 = ssub.s32 1, %s8
  %s11 = scalar_select 0, %s10, %s8
  $region1: #{cdam2_forward.2} parent=0
    #allocation2 [shape = 'u8[524288]{0}', space=vmem, size = 0x80000, scoped, tag = 'input window, operand 0']
    #allocation3 [shape = 's32[2]{0}', space=sflag, size = 0x8, scoped, tag = 'scoped memory for cdam2_forward.2']
    #allocation4 [shape = 'u8[1024]{0}', space=vmem, size = 0x400, scoped, tag = 'input window, operand 2, single buffered']
    #allocation5 [shape = 's32[1]{0}', space=sflag, size = 0x4, scoped, tag = 'scoped memory for cdam2_forward.2']
    %12 = vsyncpa [#allocation3], 0
    %s13 = scalar_lea.sflag [#allocation3], 1
    %14 = vsyncpa %s13, 0
    %15 = vsyncpa [#allocation5], 0
    loop: start=0, step=1, limit=10
    $region2: #{cdam2_forward.2} parent=1 // loop_pre_header
      _
    $region3: #{cdam2_forward.2} parent=1 // loop_header
      %s17 = sphi 0, %s21
      %p18 = scmp.ge.s32.totalorder %s17, 10
      %s24 = sphi 0, %s43
      %s25 = sphi 0, %s39
      %s26 = sphi 0, %s35
      %s27 = sphi 0, %s24
      %s28 = sphi 0, %s25
      %s29 = sphi 0, %s26
      %s30 = sphi 0, %s27
      %s31 = sphi 0, %s28
      %s32 = sphi 0, %s29
      %s52 = sphi 0, %s54
      %s55 = sphi 0, %s52
      %s56 = sphi 0, %s55
      %s72 = sphi 0, %s56
      %s82 = sphi 0, %s84
      %s85 = sphi 0, %s82
      %s86 = sphi 0, %s85
      %s102 = sphi 0, %s86
      %s106 = sphi 0, %s106
      %s108 = sphi 0, %s106
      %s109 = sphi 0, %s108
      %s123 = sphi 0, %s109
      %s135 = sphi 0, %s137
      %s138 = sphi 0, %s135
      %s139 = sphi 0, %s138
      %s155 = sphi 0, %s139
      %s163 = sphi 0, %s165
      %s166 = sphi 0, %s163
      %s167 = sphi 0, %s166
      %s183 = sphi 0, %s167
      %s191 = sphi 0, %s193
      %s194 = sphi 0, %s191
      %s195 = sphi 0, %s194
      %s211 = sphi 0, %s195
      %s223 = sphi 0, %s225
      %s226 = sphi 0, %s223
      %s227 = sphi 0, %s226
      %s243 = sphi 0, %s227
    $region4: #{cdam2_forward.2} parent=1 // loop_header_branch
      %20 = sbr.rel (%p18) target = $region8
    $region5: #{cdam2_forward.2} parent=1 // loop_body
      %s22 = ssub.s32 %s17, 1
      %s23 = ssub.s32 %s17, 2
      %s33 = sadd.s32 1, %s26
      %p34 = scmp.ge.s32.totalorder %s33, 2
      %s35 = scalar_select %p34, 0, %s33
      %s36 = sadd.s32 1, %s25
      %s37 = scalar_select %p34, %s36, %s25
      %p38 = scmp.ge.s32.totalorder %s37, 2
      %s39 = scalar_select %p38, 0, %s37
      %s40 = sadd.s32 1, %s24
      %s41 = scalar_select %p38, %s40, %s24
      %p42 = scmp.ge.s32.totalorder %s41, 2
      %s43 = scalar_select %p42, 0, %s41
      %s44 = smul.u32 %s25, 2
      %s45 = sadd.s32 %s44, %s26
      %s46 = smul.u32 %s39, 2
      %s47 = sadd.s32 %s46, %s35
      %s48 = ssub.s32 %s24, %s43
      %s49 = ssub.s32 %s45, %s47
      %s50 = sor.u32 %s48, %s49
      %p51 = scmp.eq.s32.totalorder %s50, 0
      %s53 = sadd.s32 %s52, 1
      %s54 = scalar_select %p51, %s52, %s53
      %p57 = pneg %p51
      %p58 = scmp.eq.s32.totalorder %s17, 7
      %p59 = por %p57, %p58
      %p60 = scmp.ne.s32.totalorder %s52, %s55
      %p61 = scmp.eq.s32.totalorder %s17, 0
      %p62 = por %p60, %p61
      %p63 = scmp.ne.s32.totalorder %s52, %s55
      %p64 = scmp.eq.s32.totalorder %s22, 7
      %p65 = por %p63, %p64
      %p66 = scmp.ne.s32.totalorder %s55, %s56
      %p67 = scmp.eq.s32.totalorder %s22, 0
      %p68 = por %p66, %p67
      %p69 = scmp.ne.s32.totalorder %s55, %s56
      %p70 = scmp.eq.s32.totalorder %s23, 7
      %p71 = por %p69, %p70
      %p73 = scmp.ne.s32.totalorder %s56, %s72
      %p74 = scmp.eq.s32.totalorder %s23, 0
      %p75 = por %p73, %p74
      %s76 = smul.u32 %s25, 2
      %s77 = sadd.s32 %s76, %s26
      %s78 = smul.u32 %s39, 2
      %s79 = sadd.s32 %s78, %s35
      %s80 = ssub.s32 %s77, %s79
      %p81 = scmp.eq.s32.totalorder %s80, 0
      %s83 = sadd.s32 %s82, 1
      %s84 = scalar_select %p81, %s82, %s83
      %p87 = pneg %p81
      %p88 = scmp.eq.s32.totalorder %s17, 7
      %p89 = por %p87, %p88
      %p90 = scmp.ne.s32.totalorder %s82, %s85
      %p91 = scmp.eq.s32.totalorder %s17, 0
      %p92 = por %p90, %p91
      %p93 = scmp.ne.s32.totalorder %s82, %s85
      %p94 = scmp.eq.s32.totalorder %s22, 7
      %p95 = por %p93, %p94
      %p96 = scmp.ne.s32.totalorder %s85, %s86
      %p97 = scmp.eq.s32.totalorder %s22, 0
      %p98 = por %p96, %p97
      %p99 = scmp.ne.s32.totalorder %s85, %s86
      %p100 = scmp.eq.s32.totalorder %s23, 7
      %p101 = por %p99, %p100
      %p103 = scmp.ne.s32.totalorder %s86, %s102
      %p104 = scmp.eq.s32.totalorder %s23, 0
      %p105 = por %p103, %p104
      %s107 = sadd.s32 %s106, 1
      %p110 = scmp.eq.s32.totalorder %s17, 7
      %p111 = scmp.ne.s32.totalorder %s106, %s108
      %p112 = scmp.eq.s32.totalorder %s17, 0
      %p113 = por %p111, %p112
      %p114 = scmp.ne.s32.totalorder %s106, %s108
      %p115 = scmp.eq.s32.totalorder %s22, 7
      %p116 = por %p114, %p115
      %p117 = scmp.ne.s32.totalorder %s108, %s109
      %p118 = scmp.eq.s32.totalorder %s22, 0
      %p119 = por %p117, %p118
      %p120 = scmp.ne.s32.totalorder %s108, %s109
      %p121 = scmp.eq.s32.totalorder %s23, 7
      %p122 = por %p120, %p121
      %p124 = scmp.ne.s32.totalorder %s109, %s123
      %p125 = scmp.eq.s32.totalorder %s23, 0
      %p126 = por %p124, %p125
      %s127 = smul.u32 %s25, 2
      %s128 = sadd.s32 %s127, %s26
      %s129 = smul.u32 %s39, 2
      %s130 = sadd.s32 %s129, %s35
      %s131 = ssub.s32 %s24, %s43
      %s132 = ssub.s32 %s128, %s130
      %s133 = sor.u32 %s131, %s132
      %p134 = scmp.eq.s32.totalorder %s133, 0
      %s136 = sadd.s32 %s135, 1
      %s137 = scalar_select %p134, %s135, %s136
      %p140 = pneg %p134
      %p141 = scmp.eq.s32.totalorder %s17, 7
      %p142 = por %p140, %p141
      %p143 = scmp.ne.s32.totalorder %s135, %s138
      %p144 = scmp.eq.s32.totalorder %s17, 0
      %p145 = por %p143, %p144
      %p146 = scmp.ne.s32.totalorder %s135, %s138
      %p147 = scmp.eq.s32.totalorder %s22, 7
      %p148 = por %p146, %p147
      %p149 = scmp.ne.s32.totalorder %s138, %s139
      %p150 = scmp.eq.s32.totalorder %s22, 0
      %p151 = por %p149, %p150
      %p152 = scmp.ne.s32.totalorder %s138, %s139
      %p153 = scmp.eq.s32.totalorder %s23, 7
      %p154 = por %p152, %p153
      %p156 = scmp.ne.s32.totalorder %s139, %s155
      %p157 = scmp.eq.s32.totalorder %s23, 0
      %p158 = por %p156, %p157
      %s159 = ssub.s32 %s24, %s43
      %s160 = ssub.s32 %s25, %s39
      %s161 = sor.u32 %s159, %s160
      %p162 = scmp.eq.s32.totalorder %s161, 0
      %s164 = sadd.s32 %s163, 1
      %s165 = scalar_select %p162, %s163, %s164
      %p168 = pneg %p162
      %p169 = scmp.eq.s32.totalorder %s17, 7
      %p170 = por %p168, %p169
      %p171 = scmp.ne.s32.totalorder %s163, %s166
      %p172 = scmp.eq.s32.totalorder %s17, 0
      %p173 = por %p171, %p172
      %p174 = scmp.ne.s32.totalorder %s163, %s166
      %p175 = scmp.eq.s32.totalorder %s22, 7
      %p176 = por %p174, %p175
      %p177 = scmp.ne.s32.totalorder %s166, %s167
      %p178 = scmp.eq.s32.totalorder %s22, 0
      %p179 = por %p177, %p178
      %p180 = scmp.ne.s32.totalorder %s166, %s167
      %p181 = scmp.eq.s32.totalorder %s23, 7
      %p182 = por %p180, %p181
      %p184 = scmp.ne.s32.totalorder %s167, %s183
      %p185 = scmp.eq.s32.totalorder %s23, 0
      %p186 = por %p184, %p185
      %s187 = ssub.s32 %s24, %s43
      %s188 = ssub.s32 %s25, %s39
      %s189 = sor.u32 %s187, %s188
      %p190 = scmp.eq.s32.totalorder %s189, 0
      %s192 = sadd.s32 %s191, 1
      %s193 = scalar_select %p190, %s191, %s192
      %p196 = pneg %p190
      %p197 = scmp.eq.s32.totalorder %s17, 7
      %p198 = por %p196, %p197
      %p199 = scmp.ne.s32.totalorder %s191, %s194
      %p200 = scmp.eq.s32.totalorder %s17, 0
      %p201 = por %p199, %p200
      %p202 = scmp.ne.s32.totalorder %s191, %s194
      %p203 = scmp.eq.s32.totalorder %s22, 7
      %p204 = por %p202, %p203
      %p205 = scmp.ne.s32.totalorder %s194, %s195
      %p206 = scmp.eq.s32.totalorder %s22, 0
      %p207 = por %p205, %p206
      %p208 = scmp.ne.s32.totalorder %s194, %s195
      %p209 = scmp.eq.s32.totalorder %s23, 7
      %p210 = por %p208, %p209
      %p212 = scmp.ne.s32.totalorder %s195, %s211
      %p213 = scmp.eq.s32.totalorder %s23, 0
      %p214 = por %p212, %p213
      %s215 = smul.u32 %s25, 2
      %s216 = sadd.s32 %s215, %s26
      %s217 = smul.u32 %s39, 2
      %s218 = sadd.s32 %s217, %s35
      %s219 = ssub.s32 %s24, %s43
      %s220 = ssub.s32 %s216, %s218
      %s221 = sor.u32 %s219, %s220
      %p222 = scmp.eq.s32.totalorder %s221, 0
      %s224 = sadd.s32 %s223, 1
      %s225 = scalar_select %p222, %s223, %s224
      %p228 = pneg %p222
      %p229 = scmp.eq.s32.totalorder %s17, 7
      %p230 = por %p228, %p229
      %p231 = scmp.ne.s32.totalorder %s223, %s226
      %p232 = scmp.eq.s32.totalorder %s17, 0
      %p233 = por %p231, %p232
      %p234 = scmp.ne.s32.totalorder %s223, %s226
      %p235 = scmp.eq.s32.totalorder %s22, 7
      %p236 = por %p234, %p235
      %p237 = scmp.ne.s32.totalorder %s226, %s227
      %p238 = scmp.eq.s32.totalorder %s22, 0
      %p239 = por %p237, %p238
      %p240 = scmp.ne.s32.totalorder %s226, %s227
      %p241 = scmp.eq.s32.totalorder %s23, 7
      %p242 = por %p240, %p241
      %p244 = scmp.ne.s32.totalorder %s227, %s243
      %p245 = scmp.eq.s32.totalorder %s23, 0
      %p246 = por %p244, %p245
      %p247 = scmp.le.s32.totalorder 1, %s17
      %p248 = scmp.lt.s32.totalorder %s17, 9
      %p249 = pnand %p247, %p248
      %p250 = pneg %p249
      // Predicated region
      $region9: #{cdam2_forward.2} parent=5 // pred_check
        _
      $region10: #{cdam2_forward.2} parent=5 // pred_check_branch
        %252 = sbr.rel (%p249) target = $region12
      $region11: #{cdam2_forward.2} parent=5 // pred_region
        %s253 = ssub.s32 %s17, 1
        // Predicated region
        $region13: #{cdam2_forward.2} parent=11 // pred_check
          %p254 = pneg %p119
        $region14: #{cdam2_forward.2} parent=11 // pred_check_branch
          %256 = sbr.rel (%p254) target = $region16
        $region15: #{cdam2_forward.2} parent=11 // pred_region
          %s258 = ssub.s32 32, 32
          %259 = vsyncadd [#allocation5], %s258
          %s261 = sshll.u32 [#allocation4], 4
          %s262 = int_to_ptr.vmem [resolvable:$true] %s261
          %264 = dma.hbm_to_vmem [thread:$0]  %s2, 32, %s262, [#allocation5]
        $region16: #{cdam2_forward.2} parent=11 // pred_fallthru
          _
      $region12: #{cdam2_forward.2} parent=5 // pred_fallthru
        _
      %p265 = scmp.lt.s32.totalorder %s17, 8
      // Predicated region
      $region17: #{cdam2_forward.2} parent=5 // pred_check
        %p266 = pneg %p265
      $region18: #{cdam2_forward.2} parent=5 // pred_check_branch
        %268 = sbr.rel (%p266) target = $region20
      $region19: #{cdam2_forward.2} parent=5 // pred_region
        // Predicated region
        $region21: #{cdam2_forward.2} parent=19 // pred_check
          %p269 = pneg %p62
        $region22: #{cdam2_forward.2} parent=19 // pred_check_branch
          %271 = sbr.rel (%p269) target = $region24
        $region23: #{cdam2_forward.2} parent=19 // pred_region
          #allocation7 [shape = 'u32[6]{0}', space=smem, size = 0x18, scoped, tag = 'DMA stride descriptor']
          %s272 = sand.u32 %s52, 1
          %s273 = scalar_lea.sflag [#allocation3], %s272
          %s274 = sand.u32 %s52, 1
          %s275 = smul.addr %s274, 512
          %s276 = scalar_lea.vmem [#allocation2], %s275
          %s277 = smul.u32 %s25, 2
          %s278 = sadd.s32 %s277, %s26
          %s279 = smul.u32 4, %s278
          %s281 = ssub.s32 8192, 8192
          %282 = vsyncadd %s273, %s281
          %s283 = smul.addr %s24, 256
          %s284 = sadd.s32 %s279, %s283
          %s285 = smul.addr %s284, 128
          %s286 = scalar_lea.hbm %s0, %s285
          %s288 = sshll.u32 1, 14
          %s289 = sxor.u32 4294967295, %s288
          %s291 = sld [smem:[#allocation0]]
          %s292 = sadd.s32 2, %s291
          %s294 = sshll.u32 7, 26
          %s295 = sxor.u32 4294967295, %s294
          %s296 = sand.u32 0, %s295
          %s297 = sshll.u32 %s292, 26
          %s298 = sor.u32 %s296, %s297
          %s299 = sshll.u32 %s276, 4
          %s300 = int_to_ptr.vmem [resolvable:$true] %s299
          %306 = sst [smem:[#allocation7]] 2048
          %s307 = scalar_lea.smem [#allocation7], 1
          %308 = sst [smem:[%s307]] 512
          %s309 = scalar_lea.smem [#allocation7], 2
          %310 = sst [smem:[%s309]] 4
          %s311 = scalar_lea.smem [#allocation7], 3
          %312 = sst [smem:[%s311]] 128
          %s313 = scalar_lea.smem [#allocation7], 4
          %314 = sst [smem:[%s313]] 128
          %s315 = scalar_lea.smem [#allocation7], 5
          %316 = sst [smem:[%s315]] 8
          %318 = dma.general %s286, 8192, %s300, %s273, [#allocation6], [#allocation7], %s298, 0
        $region24: #{cdam2_forward.2} parent=19 // pred_fallthru
          _
        // Predicated region
        $region25: #{cdam2_forward.2} parent=19 // pred_check
          %p319 = pneg %p92
        $region26: #{cdam2_forward.2} parent=19 // pred_check_branch
          %321 = sbr.rel (%p319) target = $region28
        $region27: #{cdam2_forward.2} parent=19 // pred_region
          %s322 = smul.u32 %s25, 2
          %s323 = sadd.s32 %s322, %s26
          %s324 = smul.u32 4, %s323
          %p325 = scmp.lt.s32.totalorder %s324, 15
          %s326 = scalar_select %p325, %s324, 15
          %s327 = smul.addr %s326, 8
          %s328 = scalar_lea.vmem %s1, %s327
          %s329 = smul.u32 %s25, 2
          %s330 = sadd.s32 %s329, %s26
          %s331 = smul.u32 4, %s330
        $region28: #{cdam2_forward.2} parent=19 // pred_fallthru
          _
      $region20: #{cdam2_forward.2} parent=5 // pred_fallthru
        _
      %p332 = scmp.le.s32.totalorder 1, %s17
      %p333 = scmp.lt.s32.totalorder %s17, 9
      %p334 = pnand %p332, %p333
      %p335 = pneg %p334
      // Predicated region
      $region29: #{cdam2_forward.2} parent=5 // pred_check
        _
      $region30: #{cdam2_forward.2} parent=5 // pred_check_branch
        %337 = sbr.rel (%p334) target = $region32
      $region31: #{cdam2_forward.2} parent=5 // pred_region
        %s338 = ssub.s32 %s17, 1
        %s339 = sand.u32 %s55, 1
        %s340 = scalar_lea.sflag [#allocation3], %s339
        %s341 = sand.u32 %s55, 1
        %s342 = smul.addr %s341, 512
        %s343 = scalar_lea.vmem [#allocation2], %s342
        // Predicated region
        $region33: #{cdam2_forward.2} parent=31 // pred_check
          %p344 = pneg %p68
        $region34: #{cdam2_forward.2} parent=31 // pred_check_branch
          %346 = sbr.rel (%p344) target = $region36
        $region35: #{cdam2_forward.2} parent=31 // pred_region
          %347 = dma.done %s340, 8192
        $region36: #{cdam2_forward.2} parent=31 // pred_fallthru
          _
        // Predicated region
        $region37: #{cdam2_forward.2} parent=31 // pred_check
          %p348 = pneg %p119
        $region38: #{cdam2_forward.2} parent=31 // pred_check_branch
          %350 = sbr.rel (%p348) target = $region40
        $region39: #{cdam2_forward.2} parent=31 // pred_region
          %351 = dma.done [#allocation5], 32
        $region40: #{cdam2_forward.2} parent=31 // pred_fallthru
          _
        %s352 = sand.u32 %s55, 1
        %s353 = scalar_lea.sflag [#allocation3], %s352
        %s354 = sand.u32 %s55, 1
        %s355 = smul.addr %s354, 512
        %s356 = scalar_lea.vmem [#allocation2], %s355
        %p357 = pneg %p68
        %p358 = pneg %p65
        %s359 = smul.u32 %s28, 2
        %s360 = sadd.s32 %s359, %s29
        %s361 = smul.u32 4, %s360
        %p362 = scmp.lt.s32.totalorder %s361, 15
        %s363 = scalar_select %p362, %s361, 15
        %s364 = smul.addr %s363, 8
        %s365 = scalar_lea.vmem %s1, %s364
        %p366 = pneg %p98
        %p367 = pneg %p95
        %p368 = pneg %p119
        %p369 = pneg %p116
        %p370 = pneg %p151
        %p371 = pneg %p148
        %s372 = smul.u32 %s28, 2
        %s373 = sadd.s32 %s372, %s29
        %p374 = scmp.lt.s32.totalorder %s27, 1
        %s375 = scalar_select %p374, %s27, 1
        %p376 = scmp.lt.s32.totalorder %s373, 3
        %s377 = scalar_select %p376, %s373, 3
        %s378 = smul.addr %s377, 4
        %s379 = smul.addr %s375, 16
        %s380 = sadd.s32 %s378, %s379
        %s381 = smul.addr %s380, 8
        %s382 = scalar_lea.vmem %s3, %s381
        %p383 = pneg %p179
        %p384 = pneg %p176
        %p385 = scmp.lt.s32.totalorder %s27, 1
        %s386 = scalar_select %p385, %s27, 1
        %p387 = scmp.lt.s32.totalorder %s28, 1
        %s388 = scalar_select %p387, %s28, 1
        %s389 = smul.addr %s388, 2
        %s390 = smul.addr %s386, 4
        %s391 = sadd.s32 %s389, %s390
        %s392 = smul.addr %s391, 8
        %s393 = scalar_lea.vmem %s4, %s392
        %p394 = pneg %p207
        %p395 = pneg %p204
        %p396 = scmp.lt.s32.totalorder %s27, 1
        %s397 = scalar_select %p396, %s27, 1
        %p398 = scmp.lt.s32.totalorder %s28, 1
        %s399 = scalar_select %p398, %s28, 1
        %s400 = smul.addr %s397, 2
        %s401 = sadd.s32 %s399, %s400
        %s402 = scalar_lea.vmem %s5, %s401
        %p403 = pneg %p239
        %p404 = pneg %p236
        %s405 = smul.u32 %s28, 2
        %s406 = sadd.s32 %s405, %s29
        %s407 = smul.u32 4, %s406
        %p408 = scmp.lt.s32.totalorder %s27, 1
        %s409 = scalar_select %p408, %s27, 1
        %p410 = scmp.lt.s32.totalorder %s407, 15
        %s411 = scalar_select %p410, %s407, 15
        %s412 = smul.addr %s409, 16
        %s413 = sadd.s32 %s411, %s412
        %s414 = smul.addr %s413, 8
        %s415 = scalar_lea.vmem %s6, %s414
        %s416 = smul.u32 %s28, 2
        %s417 = sadd.s32 %s416, %s29
        %s418 = smul.u32 4, %s417
        %s419 = smul.u32 %s28, 2
        %s420 = sadd.s32 %s419, %s29
        %s421 = smul.u32 4, %s420
        %p422 = scmp.lt.s32.totalorder %s421, 15
        %s423 = scalar_select %p422, %s421, 15
        %s424 = smul.addr %s423, 8
        %s425 = scalar_lea.vmem %s1, %s424
        %s426 = smul.u32 %s28, 2
        %s427 = sadd.s32 %s426, %s29
        %s428 = smul.u32 4, %s427
        %s429 = smul.u32 %s28, 2
        %s430 = sadd.s32 %s429, %s29
        %p431 = scmp.lt.s32.totalorder %s27, 1
        %s432 = scalar_select %p431, %s27, 1
        %p433 = scmp.lt.s32.totalorder %s430, 3
        %s434 = scalar_select %p433, %s430, 3
        %s435 = smul.addr %s434, 4
        %s436 = smul.addr %s432, 16
        %s437 = sadd.s32 %s435, %s436
        %s438 = smul.addr %s437, 8
        %s439 = scalar_lea.vmem %s3, %s438
        %s440 = smul.u32 %s28, 2
        %s441 = sadd.s32 %s440, %s29
        %p442 = scmp.lt.s32.totalorder %s27, 1
        %s443 = scalar_select %p442, %s27, 1
        %p444 = scmp.lt.s32.totalorder %s28, 1
        %s445 = scalar_select %p444, %s28, 1
        %s446 = smul.addr %s445, 2
        %s447 = smul.addr %s443, 4
        %s448 = sadd.s32 %s446, %s447
        %s449 = smul.addr %s448, 8
        %s450 = scalar_lea.vmem %s4, %s449
        %p451 = scmp.lt.s32.totalorder %s27, 1
        %s452 = scalar_select %p451, %s27, 1
        %p453 = scmp.lt.s32.totalorder %s28, 1
        %s454 = scalar_select %p453, %s28, 1
        %s455 = smul.addr %s452, 2
        %s456 = sadd.s32 %s454, %s455
        %s457 = scalar_lea.vmem %s5, %s456
        %s458 = smul.u32 %s28, 2
        %s459 = sadd.s32 %s458, %s29
        %s460 = smul.u32 4, %s459
        %p461 = scmp.lt.s32.totalorder %s27, 1
        %s462 = scalar_select %p461, %s27, 1
        %p463 = scmp.lt.s32.totalorder %s460, 15
        %s464 = scalar_select %p463, %s460, 15
        %s465 = smul.addr %s462, 16
        %s466 = sadd.s32 %s464, %s465
        %s467 = smul.addr %s466, 8
        %s468 = scalar_lea.vmem %s6, %s467
        %s469 = smul.u32 %s28, 2
        %s470 = sadd.s32 %s469, %s29
        %s471 = smul.u32 4, %s470
        %v472 = vld [vmem:[%s343] sm:$0xff]
        %v473 = vld [vmem:[%s343 + $0x8] sm:$0xff]
        %v474 = vld [vmem:[%s343 + $0x10] sm:$0xff]
        %v475 = vld [vmem:[%s343 + $0x18] sm:$0xff]
        %v476 = vld [vmem:[%s343 + $0x20] sm:$0xff]
        %v477 = vld [vmem:[%s343 + $0x28] sm:$0xff]
        %v478 = vld [vmem:[%s343 + $0x30] sm:$0xff]
        %v479 = vld [vmem:[%s343 + $0x38] sm:$0xff]
        %v480 = vld [vmem:[%s343 + $0x40] sm:$0xff]
        %v481 = vld [vmem:[%s343 + $0x48] sm:$0xff]
        %v482 = vld [vmem:[%s343 + $0x50] sm:$0xff]
        %v483 = vld [vmem:[%s343 + $0x58] sm:$0xff]
        %v484 = vld [vmem:[%s343 + $0x60] sm:$0xff]
        %v485 = vld [vmem:[%s343 + $0x68] sm:$0xff]
        %v486 = vld [vmem:[%s343 + $0x70] sm:$0xff]
        %v487 = vld [vmem:[%s343 + $0x78] sm:$0xff]
        %v488 = vld [vmem:[%s343 + $0x80] sm:$0xff]
        %v489 = vld [vmem:[%s343 + $0x88] sm:$0xff]
        %v490 = vld [vmem:[%s343 + $0x90] sm:$0xff]
        %v491 = vld [vmem:[%s343 + $0x98] sm:$0xff]
        %v492 = vld [vmem:[%s343 + $0xa0] sm:$0xff]
        %v493 = vld [vmem:[%s343 + $0xa8] sm:$0xff]
        %v494 = vld [vmem:[%s343 + $0xb0] sm:$0xff]
        %v495 = vld [vmem:[%s343 + $0xb8] sm:$0xff]
        %v496 = vld [vmem:[%s343 + $0xc0] sm:$0xff]
        %v497 = vld [vmem:[%s343 + $0xc8] sm:$0xff]
        %v498 = vld [vmem:[%s343 + $0xd0] sm:$0xff]
        %v499 = vld [vmem:[%s343 + $0xd8] sm:$0xff]
        %v500 = vld [vmem:[%s343 + $0xe0] sm:$0xff]
        %v501 = vld [vmem:[%s343 + $0xe8] sm:$0xff]
        %v502 = vld [vmem:[%s343 + $0xf0] sm:$0xff]
        %v503 = vld [vmem:[%s343 + $0xf8] sm:$0xff]
        %v504 = vld [vmem:[%s343 + $0x100] sm:$0xff]
        %v505 = vld [vmem:[%s343 + $0x108] sm:$0xff]
        %v506 = vld [vmem:[%s343 + $0x110] sm:$0xff]
        %v507 = vld [vmem:[%s343 + $0x118] sm:$0xff]
        %v508 = vld [vmem:[%s343 + $0x120] sm:$0xff]
        %v509 = vld [vmem:[%s343 + $0x128] sm:$0xff]
        %v510 = vld [vmem:[%s343 + $0x130] sm:$0xff]
        %v511 = vld [vmem:[%s343 + $0x138] sm:$0xff]
        %v512 = vld [vmem:[%s343 + $0x140] sm:$0xff]
        %v513 = vld [vmem:[%s343 + $0x148] sm:$0xff]
        %v514 = vld [vmem:[%s343 + $0x150] sm:$0xff]
        %v515 = vld [vmem:[%s343 + $0x158] sm:$0xff]
        %v516 = vld [vmem:[%s343 + $0x160] sm:$0xff]
        %v517 = vld [vmem:[%s343 + $0x168] sm:$0xff]
        %v518 = vld [vmem:[%s343 + $0x170] sm:$0xff]
        %v519 = vld [vmem:[%s343 + $0x178] sm:$0xff]
        %v520 = vld [vmem:[%s343 + $0x180] sm:$0xff]
        %v521 = vld [vmem:[%s343 + $0x188] sm:$0xff]
        %v522 = vld [vmem:[%s343 + $0x190] sm:$0xff]
        %v523 = vld [vmem:[%s343 + $0x198] sm:$0xff]
        %v524 = vld [vmem:[%s343 + $0x1a0] sm:$0xff]
        %v525 = vld [vmem:[%s343 + $0x1a8] sm:$0xff]
        %v526 = vld [vmem:[%s343 + $0x1b0] sm:$0xff]
        %v527 = vld [vmem:[%s343 + $0x1b8] sm:$0xff]
        %v528 = vld [vmem:[%s343 + $0x1c0] sm:$0xff]
        %v529 = vld [vmem:[%s343 + $0x1c8] sm:$0xff]
        %v530 = vld [vmem:[%s343 + $0x1d0] sm:$0xff]
        %v531 = vld [vmem:[%s343 + $0x1d8] sm:$0xff]
        %v532 = vld [vmem:[%s343 + $0x1e0] sm:$0xff]
        %v533 = vld [vmem:[%s343 + $0x1e8] sm:$0xff]
        %v534 = vld [vmem:[%s343 + $0x1f0] sm:$0xff]
        %v535 = vld [vmem:[%s343 + $0x1f8] sm:$0xff]
        %536 = vadd.xlane.f32.xlu0 %v472
        %v537 = vpop.xlane.xlu0 %536
        %538 = vadd.xlane.f32.xlu0 %v473
        %v539 = vpop.xlane.xlu0 %538
        %540 = vadd.xlane.f32.xlu0 %v474
        %v541 = vpop.xlane.xlu0 %540
        %542 = vadd.xlane.f32.xlu0 %v475
        %v543 = vpop.xlane.xlu0 %542
        %544 = vadd.xlane.f32.xlu0 %v476
        %v545 = vpop.xlane.xlu0 %544
        %546 = vadd.xlane.f32.xlu0 %v477
        %v547 = vpop.xlane.xlu0 %546
        %548 = vadd.xlane.f32.xlu0 %v478
        %v549 = vpop.xlane.xlu0 %548
        %550 = vadd.xlane.f32.xlu0 %v479
        %v551 = vpop.xlane.xlu0 %550
        %552 = vadd.xlane.f32.xlu0 %v480
        %v553 = vpop.xlane.xlu0 %552
        %554 = vadd.xlane.f32.xlu0 %v481
        %v555 = vpop.xlane.xlu0 %554
        %556 = vadd.xlane.f32.xlu0 %v482
        %v557 = vpop.xlane.xlu0 %556
        %558 = vadd.xlane.f32.xlu0 %v483
        %v559 = vpop.xlane.xlu0 %558
        %560 = vadd.xlane.f32.xlu0 %v484
        %v561 = vpop.xlane.xlu0 %560
        %562 = vadd.xlane.f32.xlu0 %v485
        %v563 = vpop.xlane.xlu0 %562
        %564 = vadd.xlane.f32.xlu0 %v486
        %v565 = vpop.xlane.xlu0 %564
        %566 = vadd.xlane.f32.xlu0 %v487
        %v567 = vpop.xlane.xlu0 %566
        %568 = vadd.xlane.f32.xlu0 %v488
        %v569 = vpop.xlane.xlu0 %568
        %570 = vadd.xlane.f32.xlu0 %v489
        %v571 = vpop.xlane.xlu0 %570
        %572 = vadd.xlane.f32.xlu0 %v490
        %v573 = vpop.xlane.xlu0 %572
        %574 = vadd.xlane.f32.xlu0 %v491
        %v575 = vpop.xlane.xlu0 %574
        %576 = vadd.xlane.f32.xlu0 %v492
        %v577 = vpop.xlane.xlu0 %576
        %578 = vadd.xlane.f32.xlu0 %v493
        %v579 = vpop.xlane.xlu0 %578
        %580 = vadd.xlane.f32.xlu0 %v494
        %v581 = vpop.xlane.xlu0 %580
        %582 = vadd.xlane.f32.xlu0 %v495
        %v583 = vpop.xlane.xlu0 %582
        %584 = vadd.xlane.f32.xlu0 %v496
        %v585 = vpop.xlane.xlu0 %584
        %586 = vadd.xlane.f32.xlu0 %v497
        %v587 = vpop.xlane.xlu0 %586
        %588 = vadd.xlane.f32.xlu0 %v498
        %v589 = vpop.xlane.xlu0 %588
        %590 = vadd.xlane.f32.xlu0 %v499
        %v591 = vpop.xlane.xlu0 %590
        %592 = vadd.xlane.f32.xlu0 %v500
        %v593 = vpop.xlane.xlu0 %592
        %594 = vadd.xlane.f32.xlu0 %v501
        %v595 = vpop.xlane.xlu0 %594
        %596 = vadd.xlane.f32.xlu0 %v502
        %v597 = vpop.xlane.xlu0 %596
        %598 = vadd.xlane.f32.xlu0 %v503
        %v599 = vpop.xlane.xlu0 %598
        %600 = vadd.xlane.f32.xlu0 %v504
        %v601 = vpop.xlane.xlu0 %600
        %602 = vadd.xlane.f32.xlu0 %v505
        %v603 = vpop.xlane.xlu0 %602
        %604 = vadd.xlane.f32.xlu0 %v506
        %v605 = vpop.xlane.xlu0 %604
        %606 = vadd.xlane.f32.xlu0 %v507
        %v607 = vpop.xlane.xlu0 %606
        %608 = vadd.xlane.f32.xlu0 %v508
        %v609 = vpop.xlane.xlu0 %608
        %610 = vadd.xlane.f32.xlu0 %v509
        %v611 = vpop.xlane.xlu0 %610
        %612 = vadd.xlane.f32.xlu0 %v510
        %v613 = vpop.xlane.xlu0 %612
        %614 = vadd.xlane.f32.xlu0 %v511
        %v615 = vpop.xlane.xlu0 %614
        %616 = vadd.xlane.f32.xlu0 %v512
        %v617 = vpop.xlane.xlu0 %616
        %618 = vadd.xlane.f32.xlu0 %v513
        %v619 = vpop.xlane.xlu0 %618
        %620 = vadd.xlane.f32.xlu0 %v514
        %v621 = vpop.xlane.xlu0 %620
        %622 = vadd.xlane.f32.xlu0 %v515
        %v623 = vpop.xlane.xlu0 %622
        %624 = vadd.xlane.f32.xlu0 %v516
        %v625 = vpop.xlane.xlu0 %624
        %626 = vadd.xlane.f32.xlu0 %v517
        %v627 = vpop.xlane.xlu0 %626
        %628 = vadd.xlane.f32.xlu0 %v518
        %v629 = vpop.xlane.xlu0 %628
        %630 = vadd.xlane.f32.xlu0 %v519
        %v631 = vpop.xlane.xlu0 %630
        %632 = vadd.xlane.f32.xlu0 %v520
        %v633 = vpop.xlane.xlu0 %632
        %634 = vadd.xlane.f32.xlu0 %v521
        %v635 = vpop.xlane.xlu0 %634
        %636 = vadd.xlane.f32.xlu0 %v522
        %v637 = vpop.xlane.xlu0 %636
        %638 = vadd.xlane.f32.xlu0 %v523
        %v639 = vpop.xlane.xlu0 %638
        %640 = vadd.xlane.f32.xlu0 %v524
        %v641 = vpop.xlane.xlu0 %640
        %642 = vadd.xlane.f32.xlu0 %v525
        %v643 = vpop.xlane.xlu0 %642
        %644 = vadd.xlane.f32.xlu0 %v526
        %v645 = vpop.xlane.xlu0 %644
        %646 = vadd.xlane.f32.xlu0 %v527
        %v647 = vpop.xlane.xlu0 %646
        %648 = vadd.xlane.f32.xlu0 %v528
        %v649 = vpop.xlane.xlu0 %648
        %650 = vadd.xlane.f32.xlu0 %v529
        %v651 = vpop.xlane.xlu0 %650
        %652 = vadd.xlane.f32.xlu0 %v530
        %v653 = vpop.xlane.xlu0 %652
        %654 = vadd.xlane.f32.xlu0 %v531
        %v655 = vpop.xlane.xlu0 %654
        %656 = vadd.xlane.f32.xlu0 %v532
        %v657 = vpop.xlane.xlu0 %656
        %658 = vadd.xlane.f32.xlu0 %v533
        %v659 = vpop.xlane.xlu0 %658
        %660 = vadd.xlane.f32.xlu0 %v534
        %v661 = vpop.xlane.xlu0 %660
        %662 = vadd.xlane.f32.xlu0 %v535
        %v663 = vpop.xlane.xlu0 %662
        %v664 = vmul.f32 %v537, 0.0078125
        %v665 = vmul.f32 %v539, 0.0078125
        %v666 = vmul.f32 %v541, 0.0078125
        %v667 = vmul.f32 %v543, 0.0078125
        %v668 = vmul.f32 %v545, 0.0078125
        %v669 = vmul.f32 %v547, 0.0078125
        %v670 = vmul.f32 %v549, 0.0078125
        %v671 = vmul.f32 %v551, 0.0078125
        %v672 = vmul.f32 %v553, 0.0078125
        %v673 = vmul.f32 %v555, 0.0078125
        %v674 = vmul.f32 %v557, 0.0078125
        %v675 = vmul.f32 %v559, 0.0078125
        %v676 = vmul.f32 %v561, 0.0078125
        %v677 = vmul.f32 %v563, 0.0078125
        %v678 = vmul.f32 %v565, 0.0078125
        %v679 = vmul.f32 %v567, 0.0078125
        %v680 = vmul.f32 %v569, 0.0078125
        %v681 = vmul.f32 %v571, 0.0078125
        %v682 = vmul.f32 %v573, 0.0078125
        %v683 = vmul.f32 %v575, 0.0078125
        %v684 = vmul.f32 %v577, 0.0078125
        %v685 = vmul.f32 %v579, 0.0078125
        %v686 = vmul.f32 %v581, 0.0078125
        %v687 = vmul.f32 %v583, 0.0078125
        %v688 = vmul.f32 %v585, 0.0078125
        %v689 = vmul.f32 %v587, 0.0078125
        %v690 = vmul.f32 %v589, 0.0078125
        %v691 = vmul.f32 %v591, 0.0078125
        %v692 = vmul.f32 %v593, 0.0078125
        %v693 = vmul.f32 %v595, 0.0078125
        %v694 = vmul.f32 %v597, 0.0078125
        %v695 = vmul.f32 %v599, 0.0078125
        %v696 = vmul.f32 %v601, 0.0078125
        %v697 = vmul.f32 %v603, 0.0078125
        %v698 = vmul.f32 %v605, 0.0078125
        %v699 = vmul.f32 %v607, 0.0078125
        %v700 = vmul.f32 %v609, 0.0078125
        %v701 = vmul.f32 %v611, 0.0078125
        %v702 = vmul.f32 %v613, 0.0078125
        %v703 = vmul.f32 %v615, 0.0078125
        %v704 = vmul.f32 %v617, 0.0078125
        %v705 = vmul.f32 %v619, 0.0078125
        %v706 = vmul.f32 %v621, 0.0078125
        %v707 = vmul.f32 %v623, 0.0078125
        %v708 = vmul.f32 %v625, 0.0078125
        %v709 = vmul.f32 %v627, 0.0078125
        %v710 = vmul.f32 %v629, 0.0078125
        %v711 = vmul.f32 %v631, 0.0078125
        %v712 = vmul.f32 %v633, 0.0078125
        %v713 = vmul.f32 %v635, 0.0078125
        %v714 = vmul.f32 %v637, 0.0078125
        %v715 = vmul.f32 %v639, 0.0078125
        %v716 = vmul.f32 %v641, 0.0078125
        %v717 = vmul.f32 %v643, 0.0078125
        %v718 = vmul.f32 %v645, 0.0078125
        %v719 = vmul.f32 %v647, 0.0078125
        %v720 = vmul.f32 %v649, 0.0078125
        %v721 = vmul.f32 %v651, 0.0078125
        %v722 = vmul.f32 %v653, 0.0078125
        %v723 = vmul.f32 %v655, 0.0078125
        %v724 = vmul.f32 %v657, 0.0078125
        %v725 = vmul.f32 %v659, 0.0078125
        %v726 = vmul.f32 %v661, 0.0078125
        %v727 = vmul.f32 %v663, 0.0078125
        %v792 = vlaneseq
        %v793 = vand.u32 %v792, 127
        %v794 = vlaneseq
        %v795 = vshrl.u32 %v794, 7
        %v796 = vsub.s32 %v793, %v795
        %v797 = vrot.slane %v664, %v796
        %v798 = vadd.s32 %v793, 4294967288
        %v799 = vlaneseq
        %v800 = vshrl.u32 %v799, 7
        %v801 = vsub.s32 %v798, %v800
        %v802 = vrot.slane %v665, %v801
        %vm803 = vcmask 130112
        %v804 = vsel %vm803, %v802, %v797
        %v805 = vadd.s32 %v793, 4294967280
        %v806 = vlaneseq
        %v807 = vshrl.u32 %v806, 7
        %v808 = vsub.s32 %v805, %v807
        %v809 = vrot.slane %v666, %v808
        %vm810 = vcmask 195712
        %v811 = vsel %vm810, %v809, %v804
        %v812 = vadd.s32 %v793, 4294967272
        %v813 = vlaneseq
        %v814 = vshrl.u32 %v813, 7
        %v815 = vsub.s32 %v812, %v814
        %v816 = vrot.slane %v667, %v815
        %vm817 = vcmask 261312
        %v818 = vsel %vm817, %v816, %v811
        %v819 = vlaneseq
        %v820 = vshrl.u32 %v819, 7
        %v821 = vsub.s32 %v793, %v820
        %v822 = vrot.slane %v668, %v821
        %v823 = vlaneseq
        %v824 = vshrl.u32 %v823, 7
        %v825 = vsub.s32 %v798, %v824
        %v826 = vrot.slane %v669, %v825
        %v827 = vsel %vm803, %v826, %v822
        %v828 = vlaneseq
        %v829 = vshrl.u32 %v828, 7
        %v830 = vsub.s32 %v805, %v829
        %v831 = vrot.slane %v670, %v830
        %v832 = vsel %vm810, %v831, %v827
        %v833 = vlaneseq
        %v834 = vshrl.u32 %v833, 7
        %v835 = vsub.s32 %v812, %v834
        %v836 = vrot.slane %v671, %v835
        %v837 = vsel %vm817, %v836, %v832
        %v838 = vlaneseq
        %v839 = vshrl.u32 %v838, 7
        %v840 = vsub.s32 %v793, %v839
        %v841 = vrot.slane %v672, %v840
        %v842 = vlaneseq
        %v843 = vshrl.u32 %v842, 7
        %v844 = vsub.s32 %v798, %v843
        %v845 = vrot.slane %v673, %v844
        %v846 = vsel %vm803, %v845, %v841
        %v847 = vlaneseq
        %v848 = vshrl.u32 %v847, 7
        %v849 = vsub.s32 %v805, %v848
        %v850 = vrot.slane %v674, %v849
        %v851 = vsel %vm810, %v850, %v846
        %v852 = vlaneseq
        %v853 = vshrl.u32 %v852, 7
        %v854 = vsub.s32 %v812, %v853
        %v855 = vrot.slane %v675, %v854
        %v856 = vsel %vm817, %v855, %v851
        %v857 = vlaneseq
        %v858 = vshrl.u32 %v857, 7
        %v859 = vsub.s32 %v793, %v858
        %v860 = vrot.slane %v676, %v859
        %v861 = vlaneseq
        %v862 = vshrl.u32 %v861, 7
        %v863 = vsub.s32 %v798, %v862
        %v864 = vrot.slane %v677, %v863
        %v865 = vsel %vm803, %v864, %v860
        %v866 = vlaneseq
        %v867 = vshrl.u32 %v866, 7
        %v868 = vsub.s32 %v805, %v867
        %v869 = vrot.slane %v678, %v868
        %v870 = vsel %vm810, %v869, %v865
        %v871 = vlaneseq
        %v872 = vshrl.u32 %v871, 7
        %v873 = vsub.s32 %v812, %v872
        %v874 = vrot.slane %v679, %v873
        %v875 = vsel %vm817, %v874, %v870
        %v876 = vlaneseq
        %v877 = vshrl.u32 %v876, 7
        %v878 = vsub.s32 %v793, %v877
        %v879 = vrot.slane %v680, %v878
        %v880 = vlaneseq
        %v881 = vshrl.u32 %v880, 7
        %v882 = vsub.s32 %v798, %v881
        %v883 = vrot.slane %v681, %v882
        %v884 = vsel %vm803, %v883, %v879
        %v885 = vlaneseq
        %v886 = vshrl.u32 %v885, 7
        %v887 = vsub.s32 %v805, %v886
        %v888 = vrot.slane %v682, %v887
        %v889 = vsel %vm810, %v888, %v884
        %v890 = vlaneseq
        %v891 = vshrl.u32 %v890, 7
        %v892 = vsub.s32 %v812, %v891
        %v893 = vrot.slane %v683, %v892
        %v894 = vsel %vm817, %v893, %v889
        %v895 = vlaneseq
        %v896 = vshrl.u32 %v895, 7
        %v897 = vsub.s32 %v793, %v896
        %v898 = vrot.slane %v684, %v897
        %v899 = vlaneseq
        %v900 = vshrl.u32 %v899, 7
        %v901 = vsub.s32 %v798, %v900
        %v902 = vrot.slane %v685, %v901
        %v903 = vsel %vm803, %v902, %v898
        %v904 = vlaneseq
        %v905 = vshrl.u32 %v904, 7
        %v906 = vsub.s32 %v805, %v905
        %v907 = vrot.slane %v686, %v906
        %v908 = vsel %vm810, %v907, %v903
        %v909 = vlaneseq
        %v910 = vshrl.u32 %v909, 7
        %v911 = vsub.s32 %v812, %v910
        %v912 = vrot.slane %v687, %v911
        %v913 = vsel %vm817, %v912, %v908
        %v914 = vlaneseq
        %v915 = vshrl.u32 %v914, 7
        %v916 = vsub.s32 %v793, %v915
        %v917 = vrot.slane %v688, %v916
        %v918 = vlaneseq
        %v919 = vshrl.u32 %v918, 7
        %v920 = vsub.s32 %v798, %v919
        %v921 = vrot.slane %v689, %v920
        %v922 = vsel %vm803, %v921, %v917
        %v923 = vlaneseq
        %v924 = vshrl.u32 %v923, 7
        %v925 = vsub.s32 %v805, %v924
        %v926 = vrot.slane %v690, %v925
        %v927 = vsel %vm810, %v926, %v922
        %v928 = vlaneseq
        %v929 = vshrl.u32 %v928, 7
        %v930 = vsub.s32 %v812, %v929
        %v931 = vrot.slane %v691, %v930
        %v932 = vsel %vm817, %v931, %v927
        %v933 = vlaneseq
        %v934 = vshrl.u32 %v933, 7
        %v935 = vsub.s32 %v793, %v934
        %v936 = vrot.slane %v692, %v935
        %v937 = vlaneseq
        %v938 = vshrl.u32 %v937, 7
        %v939 = vsub.s32 %v798, %v938
        %v940 = vrot.slane %v693, %v939
        %v941 = vsel %vm803, %v940, %v936
        %v942 = vlaneseq
        %v943 = vshrl.u32 %v942, 7
        %v944 = vsub.s32 %v805, %v943
        %v945 = vrot.slane %v694, %v944
        %v946 = vsel %vm810, %v945, %v941
        %v947 = vlaneseq
        %v948 = vshrl.u32 %v947, 7
        %v949 = vsub.s32 %v812, %v948
        %v950 = vrot.slane %v695, %v949
        %v951 = vsel %vm817, %v950, %v946
        %v952 = vlaneseq
        %v953 = vshrl.u32 %v952, 7
        %v954 = vsub.s32 %v793, %v953
        %v955 = vrot.slane %v696, %v954
        %v956 = vlaneseq
        %v957 = vshrl.u32 %v956, 7
        %v958 = vsub.s32 %v798, %v957
        %v959 = vrot.slane %v697, %v958
        %v960 = vsel %vm803, %v959, %v955
        %v961 = vlaneseq
        %v962 = vshrl.u32 %v961, 7
        %v963 = vsub.s32 %v805, %v962
        %v964 = vrot.slane %v698, %v963
        %v965 = vsel %vm810, %v964, %v960
        %v966 = vlaneseq
        %v967 = vshrl.u32 %v966, 7
        %v968 = vsub.s32 %v812, %v967
        %v969 = vrot.slane %v699, %v968
        %v970 = vsel %vm817, %v969, %v965
        %v971 = vlaneseq
        %v972 = vshrl.u32 %v971, 7
        %v973 = vsub.s32 %v793, %v972
        %v974 = vrot.slane %v700, %v973
        %v975 = vlaneseq
        %v976 = vshrl.u32 %v975, 7
        %v977 = vsub.s32 %v798, %v976
        %v978 = vrot.slane %v701, %v977
        %v979 = vsel %vm803, %v978, %v974
        %v980 = vlaneseq
        %v981 = vshrl.u32 %v980, 7
        %v982 = vsub.s32 %v805, %v981
        %v983 = vrot.slane %v702, %v982
        %v984 = vsel %vm810, %v983, %v979
        %v985 = vlaneseq
        %v986 = vshrl.u32 %v985, 7
        %v987 = vsub.s32 %v812, %v986
        %v988 = vrot.slane %v703, %v987
        %v989 = vsel %vm817, %v988, %v984
        %v990 = vlaneseq
        %v991 = vshrl.u32 %v990, 7
        %v992 = vsub.s32 %v793, %v991
        %v993 = vrot.slane %v704, %v992
        %v994 = vlaneseq
        %v995 = vshrl.u32 %v994, 7
        %v996 = vsub.s32 %v798, %v995
        %v997 = vrot.slane %v705, %v996
        %v998 = vsel %vm803, %v997, %v993
        %v999 = vlaneseq
        %v1000 = vshrl.u32 %v999, 7
        %v1001 = vsub.s32 %v805, %v1000
        %v1002 = vrot.slane %v706, %v1001
        %v1003 = vsel %vm810, %v1002, %v998
        %v1004 = vlaneseq
        %v1005 = vshrl.u32 %v1004, 7
        %v1006 = vsub.s32 %v812, %v1005
        %v1007 = vrot.slane %v707, %v1006
        %v1008 = vsel %vm817, %v1007, %v1003
        %v1009 = vlaneseq
        %v1010 = vshrl.u32 %v1009, 7
        %v1011 = vsub.s32 %v793, %v1010
        %v1012 = vrot.slane %v708, %v1011
        %v1013 = vlaneseq
        %v1014 = vshrl.u32 %v1013, 7
        %v1015 = vsub.s32 %v798, %v1014
        %v1016 = vrot.slane %v709, %v1015
        %v1017 = vsel %vm803, %v1016, %v1012
        %v1018 = vlaneseq
        %v1019 = vshrl.u32 %v1018, 7
        %v1020 = vsub.s32 %v805, %v1019
        %v1021 = vrot.slane %v710, %v1020
        %v1022 = vsel %vm810, %v1021, %v1017
        %v1023 = vlaneseq
        %v1024 = vshrl.u32 %v1023, 7
        %v1025 = vsub.s32 %v812, %v1024
        %v1026 = vrot.slane %v711, %v1025
        %v1027 = vsel %vm817, %v1026, %v1022
        %v1028 = vlaneseq
        %v1029 = vshrl.u32 %v1028, 7
        %v1030 = vsub.s32 %v793, %v1029
        %v1031 = vrot.slane %v712, %v1030
        %v1032 = vlaneseq
        %v1033 = vshrl.u32 %v1032, 7
        %v1034 = vsub.s32 %v798, %v1033
        %v1035 = vrot.slane %v713, %v1034
        %v1036 = vsel %vm803, %v1035, %v1031
        %v1037 = vlaneseq
        %v1038 = vshrl.u32 %v1037, 7
        %v1039 = vsub.s32 %v805, %v1038
        %v1040 = vrot.slane %v714, %v1039
        %v1041 = vsel %vm810, %v1040, %v1036
        %v1042 = vlaneseq
        %v1043 = vshrl.u32 %v1042, 7
        %v1044 = vsub.s32 %v812, %v1043
        %v1045 = vrot.slane %v715, %v1044
        %v1046 = vsel %vm817, %v1045, %v1041
        %v1047 = vlaneseq
        %v1048 = vshrl.u32 %v1047, 7
        %v1049 = vsub.s32 %v793, %v1048
        %v1050 = vrot.slane %v716, %v1049
        %v1051 = vlaneseq
        %v1052 = vshrl.u32 %v1051, 7
        %v1053 = vsub.s32 %v798, %v1052
        %v1054 = vrot.slane %v717, %v1053
        %v1055 = vsel %vm803, %v1054, %v1050
        %v1056 = vlaneseq
        %v1057 = vshrl.u32 %v1056, 7
        %v1058 = vsub.s32 %v805, %v1057
        %v1059 = vrot.slane %v718, %v1058
        %v1060 = vsel %vm810, %v1059, %v1055
        %v1061 = vlaneseq
        %v1062 = vshrl.u32 %v1061, 7
        %v1063 = vsub.s32 %v812, %v1062
        %v1064 = vrot.slane %v719, %v1063
        %v1065 = vsel %vm817, %v1064, %v1060
        %v1066 = vlaneseq
        %v1067 = vshrl.u32 %v1066, 7
        %v1068 = vsub.s32 %v793, %v1067
        %v1069 = vrot.slane %v720, %v1068
        %v1070 = vlaneseq
        %v1071 = vshrl.u32 %v1070, 7
        %v1072 = vsub.s32 %v798, %v1071
        %v1073 = vrot.slane %v721, %v1072
        %v1074 = vsel %vm803, %v1073, %v1069
        %v1075 = vlaneseq
        %v1076 = vshrl.u32 %v1075, 7
        %v1077 = vsub.s32 %v805, %v1076
        %v1078 = vrot.slane %v722, %v1077
        %v1079 = vsel %vm810, %v1078, %v1074
        %v1080 = vlaneseq
        %v1081 = vshrl.u32 %v1080, 7
        %v1082 = vsub.s32 %v812, %v1081
        %v1083 = vrot.slane %v723, %v1082
        %v1084 = vsel %vm817, %v1083, %v1079
        %v1085 = vlaneseq
        %v1086 = vshrl.u32 %v1085, 7
        %v1087 = vsub.s32 %v793, %v1086
        %v1088 = vrot.slane %v724, %v1087
        %v1089 = vlaneseq
        %v1090 = vshrl.u32 %v1089, 7
        %v1091 = vsub.s32 %v798, %v1090
        %v1092 = vrot.slane %v725, %v1091
        %v1093 = vsel %vm803, %v1092, %v1088
        %v1094 = vlaneseq
        %v1095 = vshrl.u32 %v1094, 7
        %v1096 = vsub.s32 %v805, %v1095
        %v1097 = vrot.slane %v726, %v1096
        %v1098 = vsel %vm810, %v1097, %v1093
        %v1099 = vlaneseq
        %v1100 = vshrl.u32 %v1099, 7
        %v1101 = vsub.s32 %v812, %v1100
        %v1102 = vrot.slane %v727, %v1101
        %v1103 = vsel %vm817, %v1102, %v1098
        %vm1104 = vcmask 1041409
        %v1105 = vsel %vm1104, %v837, %v818
        %vm1106 = vcmask 1042434
        %v1107 = vsel %vm1106, %v856, %v1105
        %vm1108 = vcmask 1043459
        %v1109 = vsel %vm1108, %v875, %v1107
        %vm1110 = vcmask 1044484
        %v1111 = vsel %vm1110, %v894, %v1109
        %vm1112 = vcmask 1045509
        %v1113 = vsel %vm1112, %v913, %v1111
        %vm1114 = vcmask 1046534
        %v1115 = vsel %vm1114, %v932, %v1113
        %vm1116 = vcmask 1047559
        %v1117 = vsel %vm1116, %v951, %v1115
        %v1118 = vsel %vm1104, %v989, %v970
        %v1119 = vsel %vm1106, %v1008, %v1118
        %v1120 = vsel %vm1108, %v1027, %v1119
        %v1121 = vsel %vm1110, %v1046, %v1120
        %v1122 = vsel %vm1112, %v1065, %v1121
        %v1123 = vsel %vm1114, %v1084, %v1122
        %v1124 = vsel %vm1116, %v1103, %v1123
        %1127 = vxpose.xlu0.b32.start [1/16] %v1117, 128
        %1128 = vxpose.xlu0.b32.cont [2/16] %v1124, 128
        %1129 = vxpose.xlu0.b32.cont [3/16] 0.0, 128
        %1130 = vxpose.xlu0.b32.cont [4/16] 0.0, 128
        %1131 = vxpose.xlu0.b32.cont [5/16] 0.0, 128
        %1132 = vxpose.xlu0.b32.cont [6/16] 0.0, 128
        %1133 = vxpose.xlu0.b32.cont [7/16] 0.0, 128
        %1134 = vxpose.xlu0.b32.cont [8/16] 0.0, 128
        %1135 = vxpose.xlu0.b32.cont [9/16] 0.0, 128
        %1136 = vxpose.xlu0.b32.cont [10/16] 0.0, 128
        %1137 = vxpose.xlu0.b32.cont [11/16] 0.0, 128
        %1138 = vxpose.xlu0.b32.cont [12/16] 0.0, 128
        %1139 = vxpose.xlu0.b32.cont [13/16] 0.0, 128
        %1140 = vxpose.xlu0.b32.cont [14/16] 0.0, 128
        %1141 = vxpose.xlu0.b32.cont [15/16] 0.0, 128
        %1142 = vxpose.xlu0.b32.end [16/16] 0.0, 128
        %v1143 = vpop.trf.xlu0
        %v1144 = vpop.trf.xlu0
        %v1145 = vpop.trf.xlu0
        %v1146 = vpop.trf.xlu0
        %v1147 = vpop.trf.xlu0
        %v1148 = vpop.trf.xlu0
        %v1149 = vpop.trf.xlu0
        %v1150 = vpop.trf.xlu0
        %v1151 = vpop.trf.xlu0
        %v1152 = vpop.trf.xlu0
        %v1153 = vpop.trf.xlu0
        %v1154 = vpop.trf.xlu0
        %v1155 = vpop.trf.xlu0
        %v1156 = vpop.trf.xlu0
        %v1157 = vpop.trf.xlu0
        %v1158 = vpop.trf.xlu0
        %vm1159 = vcmask 130048
        %1160 = vst.msk [vmem:[%s439] sm:$0xff] %vm1159, %v1143
        %1161 = vst.msk [vmem:[%s439 + $0x8] sm:$0xff] %vm1159, %v1144
        %1162 = vst.msk [vmem:[%s439 + $0x10] sm:$0xff] %vm1159, %v1145
        %1163 = vst.msk [vmem:[%s439 + $0x18] sm:$0xff] %vm1159, %v1146
        %v1164 = vmax.f32 %v472, %v476
        %v1165 = vmax.f32 %v1164, %v480
        %v1166 = vmax.f32 %v1165, %v484
        %v1167 = vmax.f32 %v1166, %v488
        %v1168 = vmax.f32 %v1167, %v492
        %v1169 = vmax.f32 %v1168, %v496
        %v1170 = vmax.f32 %v1169, %v500
        %v1171 = vmax.f32 %v1170, %v504
        %v1172 = vmax.f32 %v1171, %v508
        %v1173 = vmax.f32 %v1172, %v512
        %v1174 = vmax.f32 %v1173, %v516
        %v1175 = vmax.f32 %v1174, %v520
        %v1176 = vmax.f32 %v1175, %v524
        %v1177 = vmax.f32 %v1176, %v528
        %v1178 = vmax.f32 %v1177, %v532
        %v1179 = vmax.f32 %v473, %v477
        %v1180 = vmax.f32 %v1179, %v481
        %v1181 = vmax.f32 %v1180, %v485
        %v1182 = vmax.f32 %v1181, %v489
        %v1183 = vmax.f32 %v1182, %v493
        %v1184 = vmax.f32 %v1183, %v497
        %v1185 = vmax.f32 %v1184, %v501
        %v1186 = vmax.f32 %v1185, %v505
        %v1187 = vmax.f32 %v1186, %v509
        %v1188 = vmax.f32 %v1187, %v513
        %v1189 = vmax.f32 %v1188, %v517
        %v1190 = vmax.f32 %v1189, %v521
        %v1191 = vmax.f32 %v1190, %v525
        %v1192 = vmax.f32 %v1191, %v529
        %v1193 = vmax.f32 %v1192, %v533
        %v1194 = vmax.f32 %v474, %v478
        %v1195 = vmax.f32 %v1194, %v482
        %v1196 = vmax.f32 %v1195, %v486
        %v1197 = vmax.f32 %v1196, %v490
        %v1198 = vmax.f32 %v1197, %v494
        %v1199 = vmax.f32 %v1198, %v498
        %v1200 = vmax.f32 %v1199, %v502
        %v1201 = vmax.f32 %v1200, %v506
        %v1202 = vmax.f32 %v1201, %v510
        %v1203 = vmax.f32 %v1202, %v514
        %v1204 = vmax.f32 %v1203, %v518
        %v1205 = vmax.f32 %v1204, %v522
        %v1206 = vmax.f32 %v1205, %v526
        %v1207 = vmax.f32 %v1206, %v530
        %v1208 = vmax.f32 %v1207, %v534
        %v1209 = vmax.f32 %v475, %v479
        %v1210 = vmax.f32 %v1209, %v483
        %v1211 = vmax.f32 %v1210, %v487
        %v1212 = vmax.f32 %v1211, %v491
        %v1213 = vmax.f32 %v1212, %v495
        %v1214 = vmax.f32 %v1213, %v499
        %v1215 = vmax.f32 %v1214, %v503
        %v1216 = vmax.f32 %v1215, %v507
        %v1217 = vmax.f32 %v1216, %v511
        %v1218 = vmax.f32 %v1217, %v515
        %v1219 = vmax.f32 %v1218, %v519
        %v1220 = vmax.f32 %v1219, %v523
        %v1221 = vmax.f32 %v1220, %v527
        %v1222 = vmax.f32 %v1221, %v531
        %v1223 = vmax.f32 %v1222, %v535
        %v1224 = vadd.f32 %v472, %v476
        %v1225 = vadd.f32 %v1224, %v480
        %v1226 = vadd.f32 %v1225, %v484
        %v1227 = vadd.f32 %v1226, %v488
        %v1228 = vadd.f32 %v1227, %v492
        %v1229 = vadd.f32 %v1228, %v496
        %v1230 = vadd.f32 %v1229, %v500
        %v1231 = vadd.f32 %v1230, %v504
        %v1232 = vadd.f32 %v1231, %v508
        %v1233 = vadd.f32 %v1232, %v512
        %v1234 = vadd.f32 %v1233, %v516
        %v1235 = vadd.f32 %v1234, %v520
        %v1236 = vadd.f32 %v1235, %v524
        %v1237 = vadd.f32 %v1236, %v528
        %v1238 = vadd.f32 %v1237, %v532
        %v1239 = vadd.f32 %v473, %v477
        %v1240 = vadd.f32 %v1239, %v481
        %v1241 = vadd.f32 %v1240, %v485
        %v1242 = vadd.f32 %v1241, %v489
        %v1243 = vadd.f32 %v1242, %v493
        %v1244 = vadd.f32 %v1243, %v497
        %v1245 = vadd.f32 %v1244, %v501
        %v1246 = vadd.f32 %v1245, %v505
        %v1247 = vadd.f32 %v1246, %v509
        %v1248 = vadd.f32 %v1247, %v513
        %v1249 = vadd.f32 %v1248, %v517
        %v1250 = vadd.f32 %v1249, %v521
        %v1251 = vadd.f32 %v1250, %v525
        %v1252 = vadd.f32 %v1251, %v529
        %v1253 = vadd.f32 %v1252, %v533
        %v1254 = vadd.f32 %v474, %v478
        %v1255 = vadd.f32 %v1254, %v482
        %v1256 = vadd.f32 %v1255, %v486
        %v1257 = vadd.f32 %v1256, %v490
        %v1258 = vadd.f32 %v1257, %v494
        %v1259 = vadd.f32 %v1258, %v498
        %v1260 = vadd.f32 %v1259, %v502
        %v1261 = vadd.f32 %v1260, %v506
        %v1262 = vadd.f32 %v1261, %v510
        %v1263 = vadd.f32 %v1262, %v514
        %v1264 = vadd.f32 %v1263, %v518
        %v1265 = vadd.f32 %v1264, %v522
        %v1266 = vadd.f32 %v1265, %v526
        %v1267 = vadd.f32 %v1266, %v530
        %v1268 = vadd.f32 %v1267, %v534
        %v1269 = vadd.f32 %v475, %v479
        %v1270 = vadd.f32 %v1269, %v483
        %v1271 = vadd.f32 %v1270, %v487
        %v1272 = vadd.f32 %v1271, %v491
        %v1273 = vadd.f32 %v1272, %v495
        %v1274 = vadd.f32 %v1273, %v499
        %v1275 = vadd.f32 %v1274, %v503
        %v1276 = vadd.f32 %v1275, %v507
        %v1277 = vadd.f32 %v1276, %v511
        %v1278 = vadd.f32 %v1277, %v515
        %v1279 = vadd.f32 %v1278, %v519
        %v1280 = vadd.f32 %v1279, %v523
        %v1281 = vadd.f32 %v1280, %v527
        %v1282 = vadd.f32 %v1281, %v531
        %v1283 = vadd.f32 %v1282, %v535
        %v1284 = vmul.f32 %v1238, 0.0625
        %v1285 = vmul.f32 %v1253, 0.0625
        %v1286 = vmul.f32 %v1268, 0.0625
        %v1287 = vmul.f32 %v1283, 0.0625
        %v1288 = vld [vmem:[%s425] sm:$0xff]
        %v1289 = vld [vmem:[%s425 + $0x8] sm:$0xff]
        %v1290 = vld [vmem:[%s425 + $0x10] sm:$0xff]
        %v1291 = vld [vmem:[%s425 + $0x18] sm:$0xff]
        %v1292 = vld [vmem:[#allocation4] sm:$0x3]
        %v1293 = vlaneseq
        %v1294 = vshrl.u32 %v1293, 7
        %v1295 = vsub.s32 0, %v1294
        %v1296 = vrot.slane %v1292, %v1295
        %v1297 = vmul.f32 %v1296, %v1178
        %v1298 = vmul.f32 %v1296, %v1193
        %v1299 = vmul.f32 %v1296, %v1208
        %v1300 = vmul.f32 %v1296, %v1223
        %v1301 = vlaneseq
        %v1302 = vshrl.u32 %v1301, 7
        %v1303 = vsub.s32 1, %v1302
        %v1304 = vrot.slane %v1292, %v1303
        %v1305 = vmul.f32 %v1304, %v1284
        %v1306 = vmul.f32 %v1304, %v1285
        %v1307 = vmul.f32 %v1304, %v1286
        %v1308 = vmul.f32 %v1304, %v1287
        %v1309 = vadd.f32 %v1297, %v1305
        %v1310 = vadd.f32 %v1298, %v1306
        %v1311 = vadd.f32 %v1299, %v1307
        %v1312 = vadd.f32 %v1300, %v1308
        %1313 = vadd.xlane.f32.xlu0 %v1309
        %v1314 = vpop.xlane.xlu0 %1313
        %1315 = vadd.xlane.f32.xlu0 %v1310
        %v1316 = vpop.xlane.xlu0 %1315
        %1317 = vadd.xlane.f32.xlu0 %v1311
        %v1318 = vpop.xlane.xlu0 %1317
        %1319 = vadd.xlane.f32.xlu0 %v1312
        %v1320 = vpop.xlane.xlu0 %1319
        %vm1321 = vcmask 7168
        %1322 = vst.msk [vmem:[%s468] sm:$0xff] %vm1321, %v1314
        %1323 = vst.msk [vmem:[%s468 + $0x8] sm:$0xff] %vm1321, %v1316
        %1324 = vst.msk [vmem:[%s468 + $0x10] sm:$0xff] %vm1321, %v1318
        %1325 = vst.msk [vmem:[%s468 + $0x18] sm:$0xff] %vm1321, %v1320
        %p1326 = scmp.eq.s32.totalorder %s29, 0
        // Predicated region
        $region41: #{cdam2_forward.2} parent=31 // pred_check
          %p1327 = pneg %p1326
        $region42: #{cdam2_forward.2} parent=31 // pred_check_branch
          %1329 = sbr.rel (%p1327) target = $region44
        $region43: #{cdam2_forward.2} parent=31 // pred_region
          %1330 = vst [vmem:[%s450] sm:$0xff] 0.0
          %1331 = vst [vmem:[%s450 + $0x8] sm:$0xff] 0.0
          %1332 = vst [vmem:[%s457] sm:$0x1] 0.0
        $region44: #{cdam2_forward.2} parent=31 // pred_fallthru
          _
        %v1333 = vld [vmem:[%s450] sm:$0xff]
        %v1334 = vld [vmem:[%s450 + $0x8] sm:$0xff]
        %v1335 = vadd.f32 %v472, %v473
        %v1336 = vadd.f32 %v1335, %v474
        %v1337 = vadd.f32 %v1336, %v475
        %v1338 = vrot.slane %v1337, 4
        %v1339 = vadd.f32 %v1337, %v1338
        %v1340 = vrot.slane %v1339, 2
        %v1341 = vadd.f32 %v1339, %v1340
        %v1342 = vrot.slane %v1341, 1
        %v1343 = vadd.f32 %v1341, %v1342
        %v1344 = vadd.f32 %v476, %v477
        %v1345 = vadd.f32 %v1344, %v478
        %v1346 = vadd.f32 %v1345, %v479
        %v1347 = vrot.slane %v1346, 4
        %v1348 = vadd.f32 %v1346, %v1347
        %v1349 = vrot.slane %v1348, 2
        %v1350 = vadd.f32 %v1348, %v1349
        %v1351 = vrot.slane %v1350, 1
        %v1352 = vadd.f32 %v1350, %v1351
        %v1353 = vadd.f32 %v480, %v481
        %v1354 = vadd.f32 %v1353, %v482
        %v1355 = vadd.f32 %v1354, %v483
        %v1356 = vrot.slane %v1355, 4
        %v1357 = vadd.f32 %v1355, %v1356
        %v1358 = vrot.slane %v1357, 2
        %v1359 = vadd.f32 %v1357, %v1358
        %v1360 = vrot.slane %v1359, 1
        %v1361 = vadd.f32 %v1359, %v1360
        %v1362 = vadd.f32 %v484, %v485
        %v1363 = vadd.f32 %v1362, %v486
        %v1364 = vadd.f32 %v1363, %v487
        %v1365 = vrot.slane %v1364, 4
        %v1366 = vadd.f32 %v1364, %v1365
        %v1367 = vrot.slane %v1366, 2
        %v1368 = vadd.f32 %v1366, %v1367
        %v1369 = vrot.slane %v1368, 1
        %v1370 = vadd.f32 %v1368, %v1369
        %v1371 = vadd.f32 %v488, %v489
        %v1372 = vadd.f32 %v1371, %v490
        %v1373 = vadd.f32 %v1372, %v491
        %v1374 = vrot.slane %v1373, 4
        %v1375 = vadd.f32 %v1373, %v1374
        %v1376 = vrot.slane %v1375, 2
        %v1377 = vadd.f32 %v1375, %v1376
        %v1378 = vrot.slane %v1377, 1
        %v1379 = vadd.f32 %v1377, %v1378
        %v1380 = vadd.f32 %v492, %v493
        %v1381 = vadd.f32 %v1380, %v494
        %v1382 = vadd.f32 %v1381, %v495
        %v1383 = vrot.slane %v1382, 4
        %v1384 = vadd.f32 %v1382, %v1383
        %v1385 = vrot.slane %v1384, 2
        %v1386 = vadd.f32 %v1384, %v1385
        %v1387 = vrot.slane %v1386, 1
        %v1388 = vadd.f32 %v1386, %v1387
        %v1389 = vadd.f32 %v496, %v497
        %v1390 = vadd.f32 %v1389, %v498
        %v1391 = vadd.f32 %v1390, %v499
        %v1392 = vrot.slane %v1391, 4
        %v1393 = vadd.f32 %v1391, %v1392
        %v1394 = vrot.slane %v1393, 2
        %v1395 = vadd.f32 %v1393, %v1394
        %v1396 = vrot.slane %v1395, 1
        %v1397 = vadd.f32 %v1395, %v1396
        %v1398 = vadd.f32 %v500, %v501
        %v1399 = vadd.f32 %v1398, %v502
        %v1400 = vadd.f32 %v1399, %v503
        %v1401 = vrot.slane %v1400, 4
        %v1402 = vadd.f32 %v1400, %v1401
        %v1403 = vrot.slane %v1402, 2
        %v1404 = vadd.f32 %v1402, %v1403
        %v1405 = vrot.slane %v1404, 1
        %v1406 = vadd.f32 %v1404, %v1405
        %v1407 = vadd.f32 %v504, %v505
        %v1408 = vadd.f32 %v1407, %v506
        %v1409 = vadd.f32 %v1408, %v507
        %v1410 = vrot.slane %v1409, 4
        %v1411 = vadd.f32 %v1409, %v1410
        %v1412 = vrot.slane %v1411, 2
        %v1413 = vadd.f32 %v1411, %v1412
        %v1414 = vrot.slane %v1413, 1
        %v1415 = vadd.f32 %v1413, %v1414
        %v1416 = vadd.f32 %v508, %v509
        %v1417 = vadd.f32 %v1416, %v510
        %v1418 = vadd.f32 %v1417, %v511
        %v1419 = vrot.slane %v1418, 4
        %v1420 = vadd.f32 %v1418, %v1419
        %v1421 = vrot.slane %v1420, 2
        %v1422 = vadd.f32 %v1420, %v1421
        %v1423 = vrot.slane %v1422, 1
        %v1424 = vadd.f32 %v1422, %v1423
        %v1425 = vadd.f32 %v512, %v513
        %v1426 = vadd.f32 %v1425, %v514
        %v1427 = vadd.f32 %v1426, %v515
        %v1428 = vrot.slane %v1427, 4
        %v1429 = vadd.f32 %v1427, %v1428
        %v1430 = vrot.slane %v1429, 2
        %v1431 = vadd.f32 %v1429, %v1430
        %v1432 = vrot.slane %v1431, 1
        %v1433 = vadd.f32 %v1431, %v1432
        %v1434 = vadd.f32 %v516, %v517
        %v1435 = vadd.f32 %v1434, %v518
        %v1436 = vadd.f32 %v1435, %v519
        %v1437 = vrot.slane %v1436, 4
        %v1438 = vadd.f32 %v1436, %v1437
        %v1439 = vrot.slane %v1438, 2
        %v1440 = vadd.f32 %v1438, %v1439
        %v1441 = vrot.slane %v1440, 1
        %v1442 = vadd.f32 %v1440, %v1441
        %v1443 = vadd.f32 %v520, %v521
        %v1444 = vadd.f32 %v1443, %v522
        %v1445 = vadd.f32 %v1444, %v523
        %v1446 = vrot.slane %v1445, 4
        %v1447 = vadd.f32 %v1445, %v1446
        %v1448 = vrot.slane %v1447, 2
        %v1449 = vadd.f32 %v1447, %v1448
        %v1450 = vrot.slane %v1449, 1
        %v1451 = vadd.f32 %v1449, %v1450
        %v1452 = vadd.f32 %v524, %v525
        %v1453 = vadd.f32 %v1452, %v526
        %v1454 = vadd.f32 %v1453, %v527
        %v1455 = vrot.slane %v1454, 4
        %v1456 = vadd.f32 %v1454, %v1455
        %v1457 = vrot.slane %v1456, 2
        %v1458 = vadd.f32 %v1456, %v1457
        %v1459 = vrot.slane %v1458, 1
        %v1460 = vadd.f32 %v1458, %v1459
        %v1461 = vadd.f32 %v528, %v529
        %v1462 = vadd.f32 %v1461, %v530
        %v1463 = vadd.f32 %v1462, %v531
        %v1464 = vrot.slane %v1463, 4
        %v1465 = vadd.f32 %v1463, %v1464
        %v1466 = vrot.slane %v1465, 2
        %v1467 = vadd.f32 %v1465, %v1466
        %v1468 = vrot.slane %v1467, 1
        %v1469 = vadd.f32 %v1467, %v1468
        %v1470 = vadd.f32 %v532, %v533
        %v1471 = vadd.f32 %v1470, %v534
        %v1472 = vadd.f32 %v1471, %v535
        %v1473 = vrot.slane %v1472, 4
        %v1474 = vadd.f32 %v1472, %v1473
        %v1475 = vrot.slane %v1474, 2
        %v1476 = vadd.f32 %v1474, %v1475
        %v1477 = vrot.slane %v1476, 1
        %v1478 = vadd.f32 %v1476, %v1477
        %v1479 = vmul.f32 %v1343, 0.0078125
        %v1480 = vmul.f32 %v1352, 0.0078125
        %v1481 = vmul.f32 %v1361, 0.0078125
        %v1482 = vmul.f32 %v1370, 0.0078125
        %v1483 = vmul.f32 %v1379, 0.0078125
        %v1484 = vmul.f32 %v1388, 0.0078125
        %v1485 = vmul.f32 %v1397, 0.0078125
        %v1486 = vmul.f32 %v1406, 0.0078125
        %v1487 = vmul.f32 %v1415, 0.0078125
        %v1488 = vmul.f32 %v1424, 0.0078125
        %v1489 = vmul.f32 %v1433, 0.0078125
        %v1490 = vmul.f32 %v1442, 0.0078125
        %v1491 = vmul.f32 %v1451, 0.0078125
        %v1492 = vmul.f32 %v1460, 0.0078125
        %v1493 = vmul.f32 %v1469, 0.0078125
        %v1494 = vmul.f32 %v1478, 0.0078125
        %v1511 = vsel %vm1104, %v1480, %v1479
        %v1512 = vsel %vm1106, %v1481, %v1511
        %v1513 = vsel %vm1108, %v1482, %v1512
        %v1514 = vsel %vm1110, %v1483, %v1513
        %v1515 = vsel %vm1112, %v1484, %v1514
        %v1516 = vsel %vm1114, %v1485, %v1515
        %v1517 = vsel %vm1116, %v1486, %v1516
        %v1518 = vsel %vm1104, %v1488, %v1487
        %v1519 = vsel %vm1106, %v1489, %v1518
        %v1520 = vsel %vm1108, %v1490, %v1519
        %v1521 = vsel %vm1110, %v1491, %v1520
        %v1522 = vsel %vm1112, %v1492, %v1521
        %v1523 = vsel %vm1114, %v1493, %v1522
        %v1524 = vsel %vm1116, %v1494, %v1523
        %v1527 = vadd.f32 %v1333, %v1517
        %v1528 = vadd.f32 %v1334, %v1524
        %1529 = vst [vmem:[%s450] sm:$0xff] %v1527
        %1530 = vst [vmem:[%s450 + $0x8] sm:$0xff] %v1528
        %v1531 = vld [vmem:[%s457] sm:$0x1]
        %1533 = vset.pattern.permute.xlu0 0
        %1534 = vperm.xlu0 %1533, %v1288
        %v1535 = vpop.permute.xlu0 %1534
        %1538 = vset.pattern.permute.xlu0 0
        %1539 = vperm.xlu0 %1538, %v1289
        %v1540 = vpop.permute.xlu0 %1539
        %1543 = vset.pattern.permute.xlu0 0
        %1544 = vperm.xlu0 %1543, %v1290
        %v1545 = vpop.permute.xlu0 %1544
        %1548 = vset.pattern.permute.xlu0 0
        %1549 = vperm.xlu0 %1548, %v1291
        %v1550 = vpop.permute.xlu0 %1549
        %v1552 = vmul.f32 %v1535, %v1178
        %v1553 = vmul.f32 %v1540, %v1193
        %v1554 = vmul.f32 %v1545, %v1208
        %v1555 = vmul.f32 %v1550, %v1223
        %1556 = vset.pattern.permute.xlu0 1
        %1557 = vperm.xlu0 %1556, %v1288
        %v1558 = vpop.permute.xlu0 %1557
        %1560 = vset.pattern.permute.xlu0 1
        %1561 = vperm.xlu0 %1560, %v1289
        %v1562 = vpop.permute.xlu0 %1561
        %1564 = vset.pattern.permute.xlu0 1
        %1565 = vperm.xlu0 %1564, %v1290
        %v1566 = vpop.permute.xlu0 %1565
        %1568 = vset.pattern.permute.xlu0 1
        %1569 = vperm.xlu0 %1568, %v1291
        %v1570 = vpop.permute.xlu0 %1569
        %v1572 = vmul.f32 %v1558, %v1284
        %v1573 = vmul.f32 %v1562, %v1285
        %v1574 = vmul.f32 %v1566, %v1286
        %v1575 = vmul.f32 %v1570, %v1287
        %v1576 = vadd.f32 %v1552, %v1572
        %v1577 = vadd.f32 %v1553, %v1573
        %v1578 = vadd.f32 %v1554, %v1574
        %v1579 = vadd.f32 %v1555, %v1575
        %v1580 = vadd.f32 %v1576, %v1577
        %v1581 = vadd.f32 %v1580, %v1578
        %v1582 = vadd.f32 %v1581, %v1579
        %v1583 = vrot.slane %v1582, 4
        %v1584 = vadd.f32 %v1582, %v1583
        %v1585 = vrot.slane %v1584, 2
        %v1586 = vadd.f32 %v1584, %v1585
        %v1587 = vrot.slane %v1586, 1
        %v1588 = vadd.f32 %v1586, %v1587
        %v1589 = vadd.f32 %v1531, %v1588
        %1590 = vst [vmem:[%s457] sm:$0x1] %v1589
        %s1591 = smul.u32 %s28, 2
        %s1592 = sadd.s32 %s1591, %s29
        %p1593 = scmp.lt.s32.totalorder %s27, 1
        %s1594 = scalar_select %p1593, %s27, 1
        %p1595 = scmp.lt.s32.totalorder %s1592, 3
        %s1596 = scalar_select %p1595, %s1592, 3
        %s1597 = smul.addr %s1596, 4
        %s1598 = smul.addr %s1594, 16
        %s1599 = sadd.s32 %s1597, %s1598
        %s1600 = smul.addr %s1599, 8
        %s1601 = scalar_lea.vmem %s3, %s1600
        %p1602 = scmp.lt.s32.totalorder %s27, 1
        %s1603 = scalar_select %p1602, %s27, 1
        %p1604 = scmp.lt.s32.totalorder %s28, 1
        %s1605 = scalar_select %p1604, %s28, 1
        %s1606 = smul.addr %s1605, 2
        %s1607 = smul.addr %s1603, 4
        %s1608 = sadd.s32 %s1606, %s1607
        %s1609 = smul.addr %s1608, 8
        %s1610 = scalar_lea.vmem %s4, %s1609
        %p1611 = scmp.lt.s32.totalorder %s27, 1
        %s1612 = scalar_select %p1611, %s27, 1
        %p1613 = scmp.lt.s32.totalorder %s28, 1
        %s1614 = scalar_select %p1613, %s28, 1
        %s1615 = smul.addr %s1612, 2
        %s1616 = sadd.s32 %s1614, %s1615
        %s1617 = scalar_lea.vmem %s5, %s1616
        %s1618 = smul.u32 %s28, 2
        %s1619 = sadd.s32 %s1618, %s29
        %s1620 = smul.u32 4, %s1619
        %p1621 = scmp.lt.s32.totalorder %s27, 1
        %s1622 = scalar_select %p1621, %s27, 1
        %p1623 = scmp.lt.s32.totalorder %s1620, 15
        %s1624 = scalar_select %p1623, %s1620, 15
        %s1625 = smul.addr %s1622, 16
        %s1626 = sadd.s32 %s1624, %s1625
        %s1627 = smul.addr %s1626, 8
        %s1628 = scalar_lea.vmem %s6, %s1627
        // Predicated region
        $region45: #{cdam2_forward.2} parent=31 // pred_check
          %p1629 = pneg %p148
        $region46: #{cdam2_forward.2} parent=31 // pred_check_branch
          %1631 = sbr.rel (%p1629) target = $region48
        $region47: #{cdam2_forward.2} parent=31 // pred_region
          %s1632 = smul.u32 %s28, 2
          %s1633 = sadd.s32 %s1632, %s29
        $region48: #{cdam2_forward.2} parent=31 // pred_fallthru
          _
        // Predicated region
        $region49: #{cdam2_forward.2} parent=31 // pred_check
          %p1634 = pneg %p176
        $region50: #{cdam2_forward.2} parent=31 // pred_check_branch
          %1636 = sbr.rel (%p1634) target = $region52
        $region51: #{cdam2_forward.2} parent=31 // pred_region
          _
        $region52: #{cdam2_forward.2} parent=31 // pred_fallthru
          _
        // Predicated region
        $region53: #{cdam2_forward.2} parent=31 // pred_check
          %p1637 = pneg %p204
        $region54: #{cdam2_forward.2} parent=31 // pred_check_branch
          %1639 = sbr.rel (%p1637) target = $region56
        $region55: #{cdam2_forward.2} parent=31 // pred_region
          _
        $region56: #{cdam2_forward.2} parent=31 // pred_fallthru
          _
        // Predicated region
        $region57: #{cdam2_forward.2} parent=31 // pred_check
          %p1640 = pneg %p236
        $region58: #{cdam2_forward.2} parent=31 // pred_check_branch
          %1642 = sbr.rel (%p1640) target = $region60
        $region59: #{cdam2_forward.2} parent=31 // pred_region
          %s1643 = smul.u32 %s28, 2
          %s1644 = sadd.s32 %s1643, %s29
          %s1645 = smul.u32 4, %s1644
        $region60: #{cdam2_forward.2} parent=31 // pred_fallthru
          _
      $region32: #{cdam2_forward.2} parent=5 // pred_fallthru
        _
      %p1646 = scmp.le.s32.totalorder 2, %s17
      // Predicated region
      $region61: #{cdam2_forward.2} parent=5 // pred_check
        %p1647 = pneg %p1646
      $region62: #{cdam2_forward.2} parent=5 // pred_check_branch
        %1649 = sbr.rel (%p1647) target = $region64
      $region63: #{cdam2_forward.2} parent=5 // pred_region
        %s1650 = ssub.s32 %s17, 2
        // Predicated region
        $region65: #{cdam2_forward.2} parent=63 // pred_check
          %p1651 = pneg %p154
        $region66: #{cdam2_forward.2} parent=63 // pred_check_branch
          %1653 = sbr.rel (%p1651) target = $region68
        $region67: #{cdam2_forward.2} parent=63 // pred_region
          %s1654 = smul.u32 %s31, 2
          %s1655 = sadd.s32 %s1654, %s32
          %p1656 = scmp.lt.s32.totalorder %s30, 1
          %s1657 = scalar_select %p1656, %s30, 1
          %p1658 = scmp.lt.s32.totalorder %s1655, 3
          %s1659 = scalar_select %p1658, %s1655, 3
          %s1660 = smul.addr %s1659, 4
          %s1661 = smul.addr %s1657, 16
          %s1662 = sadd.s32 %s1660, %s1661
          %s1663 = smul.addr %s1662, 8
          %s1664 = scalar_lea.vmem %s3, %s1663
        $region68: #{cdam2_forward.2} parent=63 // pred_fallthru
          _
        // Predicated region
        $region69: #{cdam2_forward.2} parent=63 // pred_check
          %p1665 = pneg %p182
        $region70: #{cdam2_forward.2} parent=63 // pred_check_branch
          %1667 = sbr.rel (%p1665) target = $region72
        $region71: #{cdam2_forward.2} parent=63 // pred_region
          %p1668 = scmp.lt.s32.totalorder %s30, 1
          %s1669 = scalar_select %p1668, %s30, 1
          %p1670 = scmp.lt.s32.totalorder %s31, 1
          %s1671 = scalar_select %p1670, %s31, 1
          %s1672 = smul.addr %s1671, 2
          %s1673 = smul.addr %s1669, 4
          %s1674 = sadd.s32 %s1672, %s1673
          %s1675 = smul.addr %s1674, 8
          %s1676 = scalar_lea.vmem %s4, %s1675
        $region72: #{cdam2_forward.2} parent=63 // pred_fallthru
          _
        // Predicated region
        $region73: #{cdam2_forward.2} parent=63 // pred_check
          %p1677 = pneg %p210
        $region74: #{cdam2_forward.2} parent=63 // pred_check_branch
          %1679 = sbr.rel (%p1677) target = $region76
        $region75: #{cdam2_forward.2} parent=63 // pred_region
          %p1680 = scmp.lt.s32.totalorder %s30, 1
          %s1681 = scalar_select %p1680, %s30, 1
          %p1682 = scmp.lt.s32.totalorder %s31, 1
          %s1683 = scalar_select %p1682, %s31, 1
          %s1684 = smul.addr %s1681, 2
          %s1685 = sadd.s32 %s1683, %s1684
          %s1686 = scalar_lea.vmem %s5, %s1685
        $region76: #{cdam2_forward.2} parent=63 // pred_fallthru
          _
        // Predicated region
        $region77: #{cdam2_forward.2} parent=63 // pred_check
          %p1687 = pneg %p242
        $region78: #{cdam2_forward.2} parent=63 // pred_check_branch
          %1689 = sbr.rel (%p1687) target = $region80
        $region79: #{cdam2_forward.2} parent=63 // pred_region
          %s1690 = smul.u32 %s31, 2
          %s1691 = sadd.s32 %s1690, %s32
          %s1692 = smul.u32 4, %s1691
          %p1693 = scmp.lt.s32.totalorder %s30, 1
          %s1694 = scalar_select %p1693, %s30, 1
          %p1695 = scmp.lt.s32.totalorder %s1692, 15
          %s1696 = scalar_select %p1695, %s1692, 15
          %s1697 = smul.addr %s1694, 16
          %s1698 = sadd.s32 %s1696, %s1697
          %s1699 = smul.addr %s1698, 8
          %s1700 = scalar_lea.vmem %s6, %s1699
        $region80: #{cdam2_forward.2} parent=63 // pred_fallthru
          _
      $region64: #{cdam2_forward.2} parent=5 // pred_fallthru
        _
    $region6: #{cdam2_forward.2} parent=1 // loop_footer
      %s21 = sadd.s32 1, %s17
    $region7: #{cdam2_forward.2} parent=1 // loop_footer_branch
      %16 = sbr.rel target = $region3
    $region8: #{cdam2_forward.2} parent=1 // loop_exit
      _
    %1701 = vsyncpa [#allocation3], 1
    %s1702 = scalar_lea.sflag [#allocation3], 1
    %1703 = vsyncpa %s1702, 1
    %1704 = vsyncpa [#allocation5], 1

// kernel: cdam2_forward.3
$region0: #{cdam2_forward.3}
  #allocation0 [shape = 'u32[]', space=smem, size = 0x4, offset = 0x4, fixed_abs, tag = 'smem constant byte address 0x4 - core index']
  #allocation1 [shape = 'u32[144,128]{1,0:T(1,128)}', space=vmem, size = 0x12000, scoped, tag = 'internal scratch']
  %s0 = inlined_call_operand.vmem [shape: f32[2,16,16384], index: 0, kind: input, shape index: {}, may-alias: {0,1,2}]
  %s1 = inlined_call_operand.vmem [shape: f32[2,16,16384], index: 1, kind: input, shape index: {}, may-alias: {0,1,2}]
  %s2 = inlined_call_operand.vmem [shape: f32[2,16,16384], index: 2, kind: input, shape index: {}, may-alias: {0,1,2}]
  %s3 = inlined_call_operand.vmem [shape: f32[2,1,1280], index: 3, kind: input, shape index: {}]
  %s4 = inlined_call_operand.vmem [shape: f32[2,16,1,1280], index: 4, kind: input, shape index: {}]
  %s5 = inlined_call_operand.vmem [shape: bf16[2,32,16], index: 5, kind: input, shape index: {}]
  %s6 = inlined_call_operand.vmem [shape: bf16[2,32,16], index: 6, kind: input, shape index: {}]
  %s7 = inlined_call_operand.vmem [shape: bf16[9,16,32], index: 7, kind: input, shape index: {}]
  %s8 = inlined_call_operand.vmem [shape: bf16[9,16,32], index: 8, kind: input, shape index: {}]
  %s9 = inlined_call_operand.vmem [shape: f32[2,16,16384], index: 9, kind: output, shape index: {}]
  %s10 = sld [smem:[#allocation0]]
  $region187: #{cdam2_forward.3} parent=0
    _
  %s12 = ssub.s32 1, %s10
  %s13 = scalar_select 0, %s12, %s10
  $region1: #{cdam2_forward.3} parent=0
    #allocation2 [shape = 'u8[131072]{0}', space=vmem, size = 0x20000, scoped, tag = 'input window, operand 0']
    #allocation3 [shape = 'u8[16384]{0}', space=vmem, size = 0x4000, scoped, tag = 'input window, operand 1']
    #allocation4 [shape = 'u8[16384]{0}', space=vmem, size = 0x4000, scoped, tag = 'input window, operand 2']
    #allocation5 [shape = 'u8[131072]{0}', space=vmem, size = 0x20000, scoped, tag = 'output window, operand 0']
    loop: start=0, step=1, limit=34
    $region2: #{cdam2_forward.3} parent=1 // loop_pre_header
      _
    $region3: #{cdam2_forward.3} parent=1 // loop_header
      %s15 = sphi 0, %s19
      %p16 = scmp.ge.s32.totalorder %s15, 34
      %s22 = sphi 0, %s34
      %s23 = sphi 0, %s30
      %s24 = sphi 0, %s22
      %s25 = sphi 0, %s23
      %s26 = sphi 0, %s24
      %s27 = sphi 0, %s25
      %s39 = sphi 0, %s41
      %s42 = sphi 0, %s39
      %s43 = sphi 0, %s42
      %s59 = sphi 0, %s43
      %s75 = sphi 0, %s77
      %s78 = sphi 0, %s75
      %s79 = sphi 0, %s78
      %s95 = sphi 0, %s79
      %s111 = sphi 0, %s113
      %s114 = sphi 0, %s111
      %s115 = sphi 0, %s114
      %s131 = sphi 0, %s115
      %s137 = sphi 0, %s139
      %s140 = sphi 0, %s137
      %s141 = sphi 0, %s140
      %s157 = sphi 0, %s141
      %s165 = sphi 0, %s167
      %s168 = sphi 0, %s165
      %s169 = sphi 0, %s168
      %s185 = sphi 0, %s169
      %s191 = sphi 0, %s193
      %s194 = sphi 0, %s191
      %s195 = sphi 0, %s194
      %s211 = sphi 0, %s195
      %s215 = sphi 0, %s215
      %s217 = sphi 0, %s215
      %s218 = sphi 0, %s217
      %s232 = sphi 0, %s218
      %s236 = sphi 0, %s236
      %s238 = sphi 0, %s236
      %s239 = sphi 0, %s238
      %s253 = sphi 0, %s239
      %s257 = sphi 0, %s257
      %s259 = sphi 0, %s257
      %s260 = sphi 0, %s259
      %s274 = sphi 0, %s260
      %s282 = sphi 0, %s284
      %s285 = sphi 0, %s282
      %s286 = sphi 0, %s285
      %s302 = sphi 0, %s286
    $region4: #{cdam2_forward.3} parent=1 // loop_header_branch
      %18 = sbr.rel (%p16) target = $region8
    $region5: #{cdam2_forward.3} parent=1 // loop_body
      %s20 = ssub.s32 %s15, 1
      %s21 = ssub.s32 %s15, 2
      %s28 = sadd.s32 1, %s23
      %p29 = scmp.ge.s32.totalorder %s28, 16
      %s30 = scalar_select %p29, 0, %s28
      %s31 = sadd.s32 1, %s22
      %s32 = scalar_select %p29, %s31, %s22
      %p33 = scmp.ge.s32.totalorder %s32, 2
      %s34 = scalar_select %p33, 0, %s32
      %s35 = ssub.s32 %s22, %s34
      %s36 = ssub.s32 %s23, %s30
      %s37 = sor.u32 %s35, %s36
      %p38 = scmp.eq.s32.totalorder %s37, 0
      %s40 = sadd.s32 %s39, 1
      %s41 = scalar_select %p38, %s39, %s40
      %p44 = pneg %p38
      %p45 = scmp.eq.s32.totalorder %s15, 31
      %p46 = por %p44, %p45
      %p47 = scmp.ne.s32.totalorder %s39, %s42
      %p48 = scmp.eq.s32.totalorder %s15, 0
      %p49 = por %p47, %p48
      %p50 = scmp.ne.s32.totalorder %s39, %s42
      %p51 = scmp.eq.s32.totalorder %s20, 31
      %p52 = por %p50, %p51
      %p53 = scmp.ne.s32.totalorder %s42, %s43
      %p54 = scmp.eq.s32.totalorder %s20, 0
      %p55 = por %p53, %p54
      %p56 = scmp.ne.s32.totalorder %s42, %s43
      %p57 = scmp.eq.s32.totalorder %s21, 31
      %p58 = por %p56, %p57
      %p60 = scmp.ne.s32.totalorder %s43, %s59
      %p61 = scmp.eq.s32.totalorder %s21, 0
      %p62 = por %p60, %p61
      %s63 = smul.u32 %s23, 8
      %s64 = ssub.s32 %s63, 1
      %p65 = scmp.gt.s32.totalorder %s64, 0
      %s66 = scalar_select %p65, %s64, 0
      %s67 = smul.u32 %s30, 8
      %s68 = ssub.s32 %s67, 1
      %p69 = scmp.gt.s32.totalorder %s68, 0
      %s70 = scalar_select %p69, %s68, 0
      %s71 = ssub.s32 %s22, %s34
      %s72 = ssub.s32 %s66, %s70
      %s73 = sor.u32 %s71, %s72
      %p74 = scmp.eq.s32.totalorder %s73, 0
      %s76 = sadd.s32 %s75, 1
      %s77 = scalar_select %p74, %s75, %s76
      %p80 = pneg %p74
      %p81 = scmp.eq.s32.totalorder %s15, 31
      %p82 = por %p80, %p81
      %p83 = scmp.ne.s32.totalorder %s75, %s78
      %p84 = scmp.eq.s32.totalorder %s15, 0
      %p85 = por %p83, %p84
      %p86 = scmp.ne.s32.totalorder %s75, %s78
      %p87 = scmp.eq.s32.totalorder %s20, 31
      %p88 = por %p86, %p87
      %p89 = scmp.ne.s32.totalorder %s78, %s79
      %p90 = scmp.eq.s32.totalorder %s20, 0
      %p91 = por %p89, %p90
      %p92 = scmp.ne.s32.totalorder %s78, %s79
      %p93 = scmp.eq.s32.totalorder %s21, 31
      %p94 = por %p92, %p93
      %p96 = scmp.ne.s32.totalorder %s79, %s95
      %p97 = scmp.eq.s32.totalorder %s21, 0
      %p98 = por %p96, %p97
      %s99 = sadd.s32 %s23, 1
      %s100 = smul.u32 %s99, 8
      %p101 = scmp.lt.s32.totalorder %s100, 127
      %s102 = scalar_select %p101, %s100, 127
      %s103 = sadd.s32 %s30, 1
      %s104 = smul.u32 %s103, 8
      %p105 = scmp.lt.s32.totalorder %s104, 127
      %s106 = scalar_select %p105, %s104, 127
      %s107 = ssub.s32 %s22, %s34
      %s108 = ssub.s32 %s102, %s106
      %s109 = sor.u32 %s107, %s108
      %p110 = scmp.eq.s32.totalorder %s109, 0
      %s112 = sadd.s32 %s111, 1
      %s113 = scalar_select %p110, %s111, %s112
      %p116 = pneg %p110
      %p117 = scmp.eq.s32.totalorder %s15, 31
      %p118 = por %p116, %p117
      %p119 = scmp.ne.s32.totalorder %s111, %s114
      %p120 = scmp.eq.s32.totalorder %s15, 0
      %p121 = por %p119, %p120
      %p122 = scmp.ne.s32.totalorder %s111, %s114
      %p123 = scmp.eq.s32.totalorder %s20, 31
      %p124 = por %p122, %p123
      %p125 = scmp.ne.s32.totalorder %s114, %s115
      %p126 = scmp.eq.s32.totalorder %s20, 0
      %p127 = por %p125, %p126
      %p128 = scmp.ne.s32.totalorder %s114, %s115
      %p129 = scmp.eq.s32.totalorder %s21, 31
      %p130 = por %p128, %p129
      %p132 = scmp.ne.s32.totalorder %s115, %s131
      %p133 = scmp.eq.s32.totalorder %s21, 0
      %p134 = por %p132, %p133
      %s135 = ssub.s32 %s22, %s34
      %p136 = scmp.eq.s32.totalorder %s135, 0
      %s138 = sadd.s32 %s137, 1
      %s139 = scalar_select %p136, %s137, %s138
      %p142 = pneg %p136
      %p143 = scmp.eq.s32.totalorder %s15, 31
      %p144 = por %p142, %p143
      %p145 = scmp.ne.s32.totalorder %s137, %s140
      %p146 = scmp.eq.s32.totalorder %s15, 0
      %p147 = por %p145, %p146
      %p148 = scmp.ne.s32.totalorder %s137, %s140
      %p149 = scmp.eq.s32.totalorder %s20, 31
      %p150 = por %p148, %p149
      %p151 = scmp.ne.s32.totalorder %s140, %s141
      %p152 = scmp.eq.s32.totalorder %s20, 0
      %p153 = por %p151, %p152
      %p154 = scmp.ne.s32.totalorder %s140, %s141
      %p155 = scmp.eq.s32.totalorder %s21, 31
      %p156 = por %p154, %p155
      %p158 = scmp.ne.s32.totalorder %s141, %s157
      %p159 = scmp.eq.s32.totalorder %s21, 0
      %p160 = por %p158, %p159
      %s161 = ssub.s32 %s22, %s34
      %s162 = ssub.s32 %s23, %s30
      %s163 = sor.u32 %s161, %s162
      %p164 = scmp.eq.s32.totalorder %s163, 0
      %s166 = sadd.s32 %s165, 1
      %s167 = scalar_select %p164, %s165, %s166
      %p170 = pneg %p164
      %p171 = scmp.eq.s32.totalorder %s15, 31
      %p172 = por %p170, %p171
      %p173 = scmp.ne.s32.totalorder %s165, %s168
      %p174 = scmp.eq.s32.totalorder %s15, 0
      %p175 = por %p173, %p174
      %p176 = scmp.ne.s32.totalorder %s165, %s168
      %p177 = scmp.eq.s32.totalorder %s20, 31
      %p178 = por %p176, %p177
      %p179 = scmp.ne.s32.totalorder %s168, %s169
      %p180 = scmp.eq.s32.totalorder %s20, 0
      %p181 = por %p179, %p180
      %p182 = scmp.ne.s32.totalorder %s168, %s169
      %p183 = scmp.eq.s32.totalorder %s21, 31
      %p184 = por %p182, %p183
      %p186 = scmp.ne.s32.totalorder %s169, %s185
      %p187 = scmp.eq.s32.totalorder %s21, 0
      %p188 = por %p186, %p187
      %s189 = ssub.s32 %s22, %s34
      %p190 = scmp.eq.s32.totalorder %s189, 0
      %s192 = sadd.s32 %s191, 1
      %s193 = scalar_select %p190, %s191, %s192
      %p196 = pneg %p190
      %p197 = scmp.eq.s32.totalorder %s15, 31
      %p198 = por %p196, %p197
      %p199 = scmp.ne.s32.totalorder %s191, %s194
      %p200 = scmp.eq.s32.totalorder %s15, 0
      %p201 = por %p199, %p200
      %p202 = scmp.ne.s32.totalorder %s191, %s194
      %p203 = scmp.eq.s32.totalorder %s20, 31
      %p204 = por %p202, %p203
      %p205 = scmp.ne.s32.totalorder %s194, %s195
      %p206 = scmp.eq.s32.totalorder %s20, 0
      %p207 = por %p205, %p206
      %p208 = scmp.ne.s32.totalorder %s194, %s195
      %p209 = scmp.eq.s32.totalorder %s21, 31
      %p210 = por %p208, %p209
      %p212 = scmp.ne.s32.totalorder %s195, %s211
      %p213 = scmp.eq.s32.totalorder %s21, 0
      %p214 = por %p212, %p213
      %s216 = sadd.s32 %s215, 1
      %p219 = scmp.eq.s32.totalorder %s15, 31
      %p220 = scmp.ne.s32.totalorder %s215, %s217
      %p221 = scmp.eq.s32.totalorder %s15, 0
      %p222 = por %p220, %p221
      %p223 = scmp.ne.s32.totalorder %s215, %s217
      %p224 = scmp.eq.s32.totalorder %s20, 31
      %p225 = por %p223, %p224
      %p226 = scmp.ne.s32.totalorder %s217, %s218
      %p227 = scmp.eq.s32.totalorder %s20, 0
      %p228 = por %p226, %p227
      %p229 = scmp.ne.s32.totalorder %s217, %s218
      %p230 = scmp.eq.s32.totalorder %s21, 31
      %p231 = por %p229, %p230
      %p233 = scmp.ne.s32.totalorder %s218, %s232
      %p234 = scmp.eq.s32.totalorder %s21, 0
      %p235 = por %p233, %p234
      %s237 = sadd.s32 %s236, 1
      %p240 = scmp.eq.s32.totalorder %s15, 31
      %p241 = scmp.ne.s32.totalorder %s236, %s238
      %p242 = scmp.eq.s32.totalorder %s15, 0
      %p243 = por %p241, %p242
      %p244 = scmp.ne.s32.totalorder %s236, %s238
      %p245 = scmp.eq.s32.totalorder %s20, 31
      %p246 = por %p244, %p245
      %p247 = scmp.ne.s32.totalorder %s238, %s239
      %p248 = scmp.eq.s32.totalorder %s20, 0
      %p249 = por %p247, %p248
      %p250 = scmp.ne.s32.totalorder %s238, %s239
      %p251 = scmp.eq.s32.totalorder %s21, 31
      %p252 = por %p250, %p251
      %p254 = scmp.ne.s32.totalorder %s239, %s253
      %p255 = scmp.eq.s32.totalorder %s21, 0
      %p256 = por %p254, %p255
      %s258 = sadd.s32 %s257, 1
      %p261 = scmp.eq.s32.totalorder %s15, 31
      %p262 = scmp.ne.s32.totalorder %s257, %s259
      %p263 = scmp.eq.s32.totalorder %s15, 0
      %p264 = por %p262, %p263
      %p265 = scmp.ne.s32.totalorder %s257, %s259
      %p266 = scmp.eq.s32.totalorder %s20, 31
      %p267 = por %p265, %p266
      %p268 = scmp.ne.s32.totalorder %s259, %s260
      %p269 = scmp.eq.s32.totalorder %s20, 0
      %p270 = por %p268, %p269
      %p271 = scmp.ne.s32.totalorder %s259, %s260
      %p272 = scmp.eq.s32.totalorder %s21, 31
      %p273 = por %p271, %p272
      %p275 = scmp.ne.s32.totalorder %s260, %s274
      %p276 = scmp.eq.s32.totalorder %s21, 0
      %p277 = por %p275, %p276
      %s278 = ssub.s32 %s22, %s34
      %s279 = ssub.s32 %s23, %s30
      %s280 = sor.u32 %s278, %s279
      %p281 = scmp.eq.s32.totalorder %s280, 0
      %s283 = sadd.s32 %s282, 1
      %s284 = scalar_select %p281, %s282, %s283
      %p287 = pneg %p281
      %p288 = scmp.eq.s32.totalorder %s15, 31
      %p289 = por %p287, %p288
      %p290 = scmp.ne.s32.totalorder %s282, %s285
      %p291 = scmp.eq.s32.totalorder %s15, 0
      %p292 = por %p290, %p291
      %p293 = scmp.ne.s32.totalorder %s282, %s285
      %p294 = scmp.eq.s32.totalorder %s20, 31
      %p295 = por %p293, %p294
      %p296 = scmp.ne.s32.totalorder %s285, %s286
      %p297 = scmp.eq.s32.totalorder %s20, 0
      %p298 = por %p296, %p297
      %p299 = scmp.ne.s32.totalorder %s285, %s286
      %p300 = scmp.eq.s32.totalorder %s21, 31
      %p301 = por %p299, %p300
      %p303 = scmp.ne.s32.totalorder %s286, %s302
      %p304 = scmp.eq.s32.totalorder %s21, 0
      %p305 = por %p303, %p304
      %p306 = scmp.le.s32.totalorder 1, %s15
      %p307 = scmp.lt.s32.totalorder %s15, 33
      %p308 = pnand %p306, %p307
      %p309 = pneg %p308
      // Predicated region
      $region9: #{cdam2_forward.3} parent=5 // pred_check
        _
      $region10: #{cdam2_forward.3} parent=5 // pred_check_branch
        %311 = sbr.rel (%p308) target = $region12
      $region11: #{cdam2_forward.3} parent=5 // pred_region
        %s312 = ssub.s32 %s15, 1
        // Predicated region
        $region13: #{cdam2_forward.3} parent=11 // pred_check
          %p313 = pneg %p228
        $region14: #{cdam2_forward.3} parent=11 // pred_check_branch
          %315 = sbr.rel (%p313) target = $region16
        $region15: #{cdam2_forward.3} parent=11 // pred_region
          _
        $region16: #{cdam2_forward.3} parent=11 // pred_fallthru
          _
        // Predicated region
        $region17: #{cdam2_forward.3} parent=11 // pred_check
          %p316 = pneg %p249
        $region18: #{cdam2_forward.3} parent=11 // pred_check_branch
          %318 = sbr.rel (%p316) target = $region20
        $region19: #{cdam2_forward.3} parent=11 // pred_region
          _
        $region20: #{cdam2_forward.3} parent=11 // pred_fallthru
          _
        // Predicated region
        $region21: #{cdam2_forward.3} parent=11 // pred_check
          %p319 = pneg %p270
        $region22: #{cdam2_forward.3} parent=11 // pred_check_branch
          %321 = sbr.rel (%p319) target = $region24
        $region23: #{cdam2_forward.3} parent=11 // pred_region
          _
        $region24: #{cdam2_forward.3} parent=11 // pred_fallthru
          _
      $region12: #{cdam2_forward.3} parent=5 // pred_fallthru
        _
      %p322 = scmp.lt.s32.totalorder %s15, 32
      // Predicated region
      $region25: #{cdam2_forward.3} parent=5 // pred_check
        %p323 = pneg %p322
      $region26: #{cdam2_forward.3} parent=5 // pred_check_branch
        %325 = sbr.rel (%p323) target = $region28
      $region27: #{cdam2_forward.3} parent=5 // pred_region
        // Predicated region
        $region29: #{cdam2_forward.3} parent=27 // pred_check
          %p326 = pneg %p49
        $region30: #{cdam2_forward.3} parent=27 // pred_check_branch
          %328 = sbr.rel (%p326) target = $region32
        $region31: #{cdam2_forward.3} parent=27 // pred_region
          %s329 = sand.u32 %s39, 1
          %s330 = sand.u32 %s39, 1
          %s331 = smul.addr %s330, 128
          %s332 = scalar_lea.vmem [#allocation2], %s331
          %s333 = smul.u32 8, %s23
          %s334 = smul.addr %s22, 256
          %s335 = sadd.s32 %s333, %s334
          %s336 = smul.addr %s335, 8
          %s337 = scalar_lea.vmem %s0, %s336
          // Predicated region
          $region33: #{cdam2_forward.3} parent=31 // pred_check
            _
          $region34: #{cdam2_forward.3} parent=31 // pred_check_branch
            %339 = sbr.rel (0) target = $region36
          $region35: #{cdam2_forward.3} parent=31 // pred_region
            // Predicated region
            $region37: #{cdam2_forward.3} parent=35 // pred_check
              _
            $region38: #{cdam2_forward.3} parent=35 // pred_check_branch
              %341 = sbr.rel (0) target = $region40
            $region39: #{cdam2_forward.3} parent=35 // pred_region
              loop: start=0, step=1, limit=1
              $region41: #{cdam2_forward.3} parent=39 // loop_pre_header
                _
              $region42: #{cdam2_forward.3} parent=39 // loop_header
                %s343 = sphi 0, %s347
                %p344 = scmp.ge.s32.totalorder %s343, 1
                %s348 = sphi %s337, %s337
                %s349 = sphi %s332, %s332
              $region43: #{cdam2_forward.3} parent=39 // loop_header_branch
                %346 = sbr.rel (%p344) target = $region47
              $region44: #{cdam2_forward.3} parent=39 // loop_body
                %v350 = vld [vmem:[%s348] sm:$0xff]
                %351 = vst [vmem:[%s349] sm:$0xff] %v350
                %v352 = vld [vmem:[%s348 + $0x8] sm:$0xff]
                %353 = vst [vmem:[%s349 + $0x8] sm:$0xff] %v352
                %v354 = vld [vmem:[%s348 + $0x10] sm:$0xff]
                %355 = vst [vmem:[%s349 + $0x10] sm:$0xff] %v354
                %v356 = vld [vmem:[%s348 + $0x18] sm:$0xff]
                %357 = vst [vmem:[%s349 + $0x18] sm:$0xff] %v356
                %v358 = vld [vmem:[%s348 + $0x20] sm:$0xff]
                %359 = vst [vmem:[%s349 + $0x20] sm:$0xff] %v358
                %v360 = vld [vmem:[%s348 + $0x28] sm:$0xff]
                %361 = vst [vmem:[%s349 + $0x28] sm:$0xff] %v360
                %v362 = vld [vmem:[%s348 + $0x30] sm:$0xff]
                %363 = vst [vmem:[%s349 + $0x30] sm:$0xff] %v362
                %v364 = vld [vmem:[%s348 + $0x38] sm:$0xff]
                %365 = vst [vmem:[%s349 + $0x38] sm:$0xff] %v364
                %v366 = vld [vmem:[%s348 + $0x400] sm:$0xff]
                %367 = vst [vmem:[%s349 + $0x40] sm:$0xff] %v366
                %v368 = vld [vmem:[%s348 + $0x408] sm:$0xff]
                %369 = vst [vmem:[%s349 + $0x48] sm:$0xff] %v368
                %v370 = vld [vmem:[%s348 + $0x410] sm:$0xff]
                %371 = vst [vmem:[%s349 + $0x50] sm:$0xff] %v370
                %v372 = vld [vmem:[%s348 + $0x418] sm:$0xff]
                %373 = vst [vmem:[%s349 + $0x58] sm:$0xff] %v372
                %v374 = vld [vmem:[%s348 + $0x420] sm:$0xff]
                %375 = vst [vmem:[%s349 + $0x60] sm:$0xff] %v374
                %v376 = vld [vmem:[%s348 + $0x428] sm:$0xff]
                %377 = vst [vmem:[%s349 + $0x68] sm:$0xff] %v376
                %v378 = vld [vmem:[%s348 + $0x430] sm:$0xff]
                %379 = vst [vmem:[%s349 + $0x70] sm:$0xff] %v378
                %v380 = vld [vmem:[%s348 + $0x438] sm:$0xff]
                %381 = vst [vmem:[%s349 + $0x78] sm:$0xff] %v380
              $region45: #{cdam2_forward.3} parent=39 // loop_footer
                %s347 = sadd.s32 1, %s343
              $region46: #{cdam2_forward.3} parent=39 // loop_footer_branch
                %342 = sbr.rel target = $region42
              $region47: #{cdam2_forward.3} parent=39 // loop_exit
                _
            $region40: #{cdam2_forward.3} parent=35 // pred_fallthru
              _
            // Predicated region
            $region48: #{cdam2_forward.3} parent=35 // pred_check
              _
            $region49: #{cdam2_forward.3} parent=35 // pred_check_branch
              %383 = sbr.rel target = $region51
            $region50: #{cdam2_forward.3} parent=35 // pred_region
              _
            $region51: #{cdam2_forward.3} parent=35 // pred_fallthru
              _
          $region36: #{cdam2_forward.3} parent=31 // pred_fallthru
            _
          %384 = vnop
        $region32: #{cdam2_forward.3} parent=27 // pred_fallthru
          _
        // Predicated region
        $region52: #{cdam2_forward.3} parent=27 // pred_check
          %p385 = pneg %p85
        $region53: #{cdam2_forward.3} parent=27 // pred_check_branch
          %387 = sbr.rel (%p385) target = $region55
        $region54: #{cdam2_forward.3} parent=27 // pred_region
          %s388 = sand.u32 %s75, 1
          %s389 = sand.u32 %s75, 1
          %s390 = smul.addr %s389, 16
          %s391 = scalar_lea.vmem [#allocation3], %s390
          %s392 = smul.u32 %s23, 8
          %s393 = ssub.s32 %s392, 1
          %p394 = scmp.gt.s32.totalorder %s393, 0
          %s395 = scalar_select %p394, %s393, 0
          %s396 = smul.addr %s22, 256
          %s397 = sadd.s32 %s395, %s396
          %s398 = smul.addr %s397, 8
          %s399 = scalar_lea.vmem %s1, %s398
          // Predicated region
          $region56: #{cdam2_forward.3} parent=54 // pred_check
            _
          $region57: #{cdam2_forward.3} parent=54 // pred_check_branch
            %401 = sbr.rel (0) target = $region59
          $region58: #{cdam2_forward.3} parent=54 // pred_region
            // Predicated region
            $region60: #{cdam2_forward.3} parent=58 // pred_check
              _
            $region61: #{cdam2_forward.3} parent=58 // pred_check_branch
              %403 = sbr.rel (0) target = $region63
            $region62: #{cdam2_forward.3} parent=58 // pred_region
              // Predicated region
              $region75: #{cdam2_forward.3} parent=62 // pred_check
                _
              $region76: #{cdam2_forward.3} parent=62 // pred_check_branch
                %420 = sbr.rel (0) target = $region78
              $region77: #{cdam2_forward.3} parent=62 // pred_region
                loop: start=0, step=1, limit=1
                $region79: #{cdam2_forward.3} parent=77 // loop_pre_header
                  _
                $region80: #{cdam2_forward.3} parent=77 // loop_header
                  %s422 = sphi 0, %s426
                  %p423 = scmp.ge.s32.totalorder %s422, 1
                  %s427 = sphi %s399, %s399
                  %s428 = sphi %s391, %s391
                $region81: #{cdam2_forward.3} parent=77 // loop_header_branch
                  %425 = sbr.rel (%p423) target = $region85
                $region82: #{cdam2_forward.3} parent=77 // loop_body
                  %v429 = vld [vmem:[%s427] sm:$0xff]
                  %430 = vst [vmem:[%s428] sm:$0xff] %v429
                  %v431 = vld [vmem:[%s427 + $0x400] sm:$0xff]
                  %432 = vst [vmem:[%s428 + $0x8] sm:$0xff] %v431
                $region83: #{cdam2_forward.3} parent=77 // loop_footer
                  %s426 = sadd.s32 1, %s422
                $region84: #{cdam2_forward.3} parent=77 // loop_footer_branch
                  %421 = sbr.rel target = $region80
                $region85: #{cdam2_forward.3} parent=77 // loop_exit
                  _
              $region78: #{cdam2_forward.3} parent=62 // pred_fallthru
                _
              // Predicated region
              $region86: #{cdam2_forward.3} parent=62 // pred_check
                _
              $region87: #{cdam2_forward.3} parent=62 // pred_check_branch
                %434 = sbr.rel target = $region89
              $region88: #{cdam2_forward.3} parent=62 // pred_region
                _
              $region89: #{cdam2_forward.3} parent=62 // pred_fallthru
                _
            $region63: #{cdam2_forward.3} parent=58 // pred_fallthru
              _
            // Predicated region
            $region64: #{cdam2_forward.3} parent=58 // pred_check
              _
            $region65: #{cdam2_forward.3} parent=58 // pred_check_branch
              %405 = sbr.rel target = $region67
            $region66: #{cdam2_forward.3} parent=58 // pred_region
              loop: start=0, step=1, limit=1
              $region68: #{cdam2_forward.3} parent=66 // loop_pre_header
                _
              $region69: #{cdam2_forward.3} parent=66 // loop_header
                %s408 = sphi 0, %s412
                %p409 = scmp.ge.s32.totalorder %s408, 1
                %s413 = sphi %s399, %s399
                %s414 = sphi %s391, %s391
              $region70: #{cdam2_forward.3} parent=66 // loop_header_branch
                %411 = sbr.rel (%p409) target = $region74
              $region71: #{cdam2_forward.3} parent=66 // loop_body
                %v415 = vld [vmem:[%s413] sm:$0xff]
                %416 = vst [vmem:[%s414] sm:$0xff] %v415
                %v417 = vld [vmem:[%s413 + $0x400] sm:$0xff]
                %418 = vst [vmem:[%s414 + $0x8] sm:$0xff] %v417
              $region72: #{cdam2_forward.3} parent=66 // loop_footer
                %s412 = sadd.s32 1, %s408
              $region73: #{cdam2_forward.3} parent=66 // loop_footer_branch
                %407 = sbr.rel target = $region69
              $region74: #{cdam2_forward.3} parent=66 // loop_exit
                _
            $region67: #{cdam2_forward.3} parent=58 // pred_fallthru
              _
          $region59: #{cdam2_forward.3} parent=54 // pred_fallthru
            _
          %435 = vnop
        $region55: #{cdam2_forward.3} parent=27 // pred_fallthru
          _
        // Predicated region
        $region90: #{cdam2_forward.3} parent=27 // pred_check
          %p436 = pneg %p121
        $region91: #{cdam2_forward.3} parent=27 // pred_check_branch
          %438 = sbr.rel (%p436) target = $region93
        $region92: #{cdam2_forward.3} parent=27 // pred_region
          %s439 = sand.u32 %s111, 1
          %s440 = sand.u32 %s111, 1
          %s441 = smul.addr %s440, 16
          %s442 = scalar_lea.vmem [#allocation4], %s441
          %s443 = sadd.s32 %s23, 1
          %s444 = smul.u32 %s443, 8
          %p445 = scmp.lt.s32.totalorder %s444, 127
          %s446 = scalar_select %p445, %s444, 127
          %s447 = smul.addr %s22, 256
          %s448 = sadd.s32 %s446, %s447
          %s449 = smul.addr %s448, 8
          %s450 = scalar_lea.vmem %s2, %s449
          // Predicated region
          $region94: #{cdam2_forward.3} parent=92 // pred_check
            _
          $region95: #{cdam2_forward.3} parent=92 // pred_check_branch
            %452 = sbr.rel (0) target = $region97
          $region96: #{cdam2_forward.3} parent=92 // pred_region
            // Predicated region
            $region98: #{cdam2_forward.3} parent=96 // pred_check
              _
            $region99: #{cdam2_forward.3} parent=96 // pred_check_branch
              %454 = sbr.rel (0) target = $region101
            $region100: #{cdam2_forward.3} parent=96 // pred_region
              // Predicated region
              $region113: #{cdam2_forward.3} parent=100 // pred_check
                _
              $region114: #{cdam2_forward.3} parent=100 // pred_check_branch
                %471 = sbr.rel (0) target = $region116
              $region115: #{cdam2_forward.3} parent=100 // pred_region
                loop: start=0, step=1, limit=1
                $region117: #{cdam2_forward.3} parent=115 // loop_pre_header
                  _
                $region118: #{cdam2_forward.3} parent=115 // loop_header
                  %s473 = sphi 0, %s477
                  %p474 = scmp.ge.s32.totalorder %s473, 1
                  %s478 = sphi %s450, %s450
                  %s479 = sphi %s442, %s442
                $region119: #{cdam2_forward.3} parent=115 // loop_header_branch
                  %476 = sbr.rel (%p474) target = $region123
                $region120: #{cdam2_forward.3} parent=115 // loop_body
                  %v480 = vld [vmem:[%s478] sm:$0xff]
                  %481 = vst [vmem:[%s479] sm:$0xff] %v480
                  %v482 = vld [vmem:[%s478 + $0x400] sm:$0xff]
                  %483 = vst [vmem:[%s479 + $0x8] sm:$0xff] %v482
                $region121: #{cdam2_forward.3} parent=115 // loop_footer
                  %s477 = sadd.s32 1, %s473
                $region122: #{cdam2_forward.3} parent=115 // loop_footer_branch
                  %472 = sbr.rel target = $region118
                $region123: #{cdam2_forward.3} parent=115 // loop_exit
                  _
              $region116: #{cdam2_forward.3} parent=100 // pred_fallthru
                _
              // Predicated region
              $region124: #{cdam2_forward.3} parent=100 // pred_check
                _
              $region125: #{cdam2_forward.3} parent=100 // pred_check_branch
                %485 = sbr.rel target = $region127
              $region126: #{cdam2_forward.3} parent=100 // pred_region
                _
              $region127: #{cdam2_forward.3} parent=100 // pred_fallthru
                _
            $region101: #{cdam2_forward.3} parent=96 // pred_fallthru
              _
            // Predicated region
            $region102: #{cdam2_forward.3} parent=96 // pred_check
              _
            $region103: #{cdam2_forward.3} parent=96 // pred_check_branch
              %456 = sbr.rel target = $region105
            $region104: #{cdam2_forward.3} parent=96 // pred_region
              loop: start=0, step=1, limit=1
              $region106: #{cdam2_forward.3} parent=104 // loop_pre_header
                _
              $region107: #{cdam2_forward.3} parent=104 // loop_header
                %s459 = sphi 0, %s463
                %p460 = scmp.ge.s32.totalorder %s459, 1
                %s464 = sphi %s450, %s450
                %s465 = sphi %s442, %s442
              $region108: #{cdam2_forward.3} parent=104 // loop_header_branch
                %462 = sbr.rel (%p460) target = $region112
              $region109: #{cdam2_forward.3} parent=104 // loop_body
                %v466 = vld [vmem:[%s464] sm:$0xff]
                %467 = vst [vmem:[%s465] sm:$0xff] %v466
                %v468 = vld [vmem:[%s464 + $0x400] sm:$0xff]
                %469 = vst [vmem:[%s465 + $0x8] sm:$0xff] %v468
              $region110: #{cdam2_forward.3} parent=104 // loop_footer
                %s463 = sadd.s32 1, %s459
              $region111: #{cdam2_forward.3} parent=104 // loop_footer_branch
                %458 = sbr.rel target = $region107
              $region112: #{cdam2_forward.3} parent=104 // loop_exit
                _
            $region105: #{cdam2_forward.3} parent=96 // pred_fallthru
              _
          $region97: #{cdam2_forward.3} parent=92 // pred_fallthru
            _
          %486 = vnop
        $region93: #{cdam2_forward.3} parent=27 // pred_fallthru
          _
        // Predicated region
        $region128: #{cdam2_forward.3} parent=27 // pred_check
          %p487 = pneg %p147
        $region129: #{cdam2_forward.3} parent=27 // pred_check_branch
          %489 = sbr.rel (%p487) target = $region131
        $region130: #{cdam2_forward.3} parent=27 // pred_region
          %p490 = scmp.lt.s32.totalorder %s22, 1
          %s491 = scalar_select %p490, %s22, 1
          %s492 = smul.addr %s491, 10
          %s493 = scalar_lea.vmem %s3, %s492
        $region131: #{cdam2_forward.3} parent=27 // pred_fallthru
          _
        // Predicated region
        $region132: #{cdam2_forward.3} parent=27 // pred_check
          %p494 = pneg %p175
        $region133: #{cdam2_forward.3} parent=27 // pred_check_branch
          %496 = sbr.rel (%p494) target = $region135
        $region134: #{cdam2_forward.3} parent=27 // pred_region
          %p497 = scmp.lt.s32.totalorder %s22, 1
          %s498 = scalar_select %p497, %s22, 1
          %p499 = scmp.lt.s32.totalorder %s23, 15
          %s500 = scalar_select %p499, %s23, 15
          %s501 = smul.addr %s500, 10
          %s502 = smul.addr %s498, 160
          %s503 = sadd.s32 %s501, %s502
          %s504 = scalar_lea.vmem %s4, %s503
        $region135: #{cdam2_forward.3} parent=27 // pred_fallthru
          _
        // Predicated region
        $region136: #{cdam2_forward.3} parent=27 // pred_check
          %p505 = pneg %p201
        $region137: #{cdam2_forward.3} parent=27 // pred_check_branch
          %507 = sbr.rel (%p505) target = $region139
        $region138: #{cdam2_forward.3} parent=27 // pred_region
          %p508 = scmp.lt.s32.totalorder %s22, 1
          %s509 = scalar_select %p508, %s22, 1
          %s510 = smul.addr %s509, 4
          %s511 = smul.addr %s510, 4
          %s512 = scalar_lea.vmem %s5, %s511
        $region139: #{cdam2_forward.3} parent=27 // pred_fallthru
          _
      $region28: #{cdam2_forward.3} parent=5 // pred_fallthru
        _
      %p513 = scmp.le.s32.totalorder 1, %s15
      %p514 = scmp.lt.s32.totalorder %s15, 33
      %p515 = pnand %p513, %p514
      %p516 = pneg %p515
      // Predicated region
      $region140: #{cdam2_forward.3} parent=5 // pred_check
        _
      $region141: #{cdam2_forward.3} parent=5 // pred_check_branch
        %518 = sbr.rel (%p515) target = $region143
      $region142: #{cdam2_forward.3} parent=5 // pred_region
        %s519 = ssub.s32 %s15, 1
        %s520 = sand.u32 %s42, 1
        %s521 = sand.u32 %s42, 1
        %s522 = smul.addr %s521, 128
        %s523 = scalar_lea.vmem [#allocation2], %s522
        // Predicated region
        $region144: #{cdam2_forward.3} parent=142 // pred_check
          %p524 = pneg %p55
        $region145: #{cdam2_forward.3} parent=142 // pred_check_branch
          %526 = sbr.rel (%p524) target = $region147
        $region146: #{cdam2_forward.3} parent=142 // pred_region
          _
        $region147: #{cdam2_forward.3} parent=142 // pred_fallthru
          _
        %s527 = sand.u32 %s78, 1
        %s528 = sand.u32 %s78, 1
        %s529 = smul.addr %s528, 16
        %s530 = scalar_lea.vmem [#allocation3], %s529
        // Predicated region
        $region148: #{cdam2_forward.3} parent=142 // pred_check
          %p531 = pneg %p91
        $region149: #{cdam2_forward.3} parent=142 // pred_check_branch
          %533 = sbr.rel (%p531) target = $region151
        $region150: #{cdam2_forward.3} parent=142 // pred_region
          _
        $region151: #{cdam2_forward.3} parent=142 // pred_fallthru
          _
        %s534 = sand.u32 %s114, 1
        %s535 = sand.u32 %s114, 1
        %s536 = smul.addr %s535, 16
        %s537 = scalar_lea.vmem [#allocation4], %s536
        // Predicated region
        $region152: #{cdam2_forward.3} parent=142 // pred_check
          %p538 = pneg %p127
        $region153: #{cdam2_forward.3} parent=142 // pred_check_branch
          %540 = sbr.rel (%p538) target = $region155
        $region154: #{cdam2_forward.3} parent=142 // pred_region
          _
        $region155: #{cdam2_forward.3} parent=142 // pred_fallthru
          _
        %s541 = sand.u32 %s42, 1
        %s542 = sand.u32 %s42, 1
        %s543 = smul.addr %s542, 128
        %s544 = scalar_lea.vmem [#allocation2], %s543
        %p545 = pneg %p55
        %p546 = pneg %p52
        %s547 = sand.u32 %s78, 1
        %s548 = sand.u32 %s78, 1
        %s549 = smul.addr %s548, 16
        %s550 = scalar_lea.vmem [#allocation3], %s549
        %p551 = pneg %p91
        %p552 = pneg %p88
        %s553 = sand.u32 %s114, 1
        %s554 = sand.u32 %s114, 1
        %s555 = smul.addr %s554, 16
        %s556 = scalar_lea.vmem [#allocation4], %s555
        %p557 = pneg %p127
        %p558 = pneg %p124
        %p559 = scmp.lt.s32.totalorder %s24, 1
        %s560 = scalar_select %p559, %s24, 1
        %s561 = smul.addr %s560, 10
        %s562 = scalar_lea.vmem %s3, %s561
        %p563 = pneg %p153
        %p564 = pneg %p150
        %p565 = scmp.lt.s32.totalorder %s24, 1
        %s566 = scalar_select %p565, %s24, 1
        %p567 = scmp.lt.s32.totalorder %s25, 15
        %s568 = scalar_select %p567, %s25, 15
        %s569 = smul.addr %s568, 10
        %s570 = smul.addr %s566, 160
        %s571 = sadd.s32 %s569, %s570
        %s572 = scalar_lea.vmem %s4, %s571
        %p573 = pneg %p181
        %p574 = pneg %p178
        %p575 = scmp.lt.s32.totalorder %s24, 1
        %s576 = scalar_select %p575, %s24, 1
        %s577 = smul.addr %s576, 4
        %s578 = smul.addr %s577, 4
        %s579 = scalar_lea.vmem %s5, %s578
        %p580 = pneg %p207
        %p581 = pneg %p204
        %p582 = pneg %p228
        %p583 = pneg %p225
        %p584 = pneg %p249
        %p585 = pneg %p246
        %p586 = pneg %p270
        %p587 = pneg %p267
        %p588 = pneg %p298
        %p589 = pneg %p295
        %s590 = sand.u32 %s285, 1
        %s591 = sand.u32 %s285, 1
        %s592 = smul.addr %s591, 128
        %s593 = scalar_lea.vmem [#allocation5], %s592
        %s594 = smul.u32 8, %s25
        %s595 = smul.u32 %s25, 8
        %s596 = ssub.s32 %s595, 1
        %p597 = scmp.gt.s32.totalorder %s596, 0
        %s598 = scalar_select %p597, %s596, 0
        %s599 = sadd.s32 %s25, 1
        %s600 = smul.u32 %s599, 8
        %p601 = scmp.lt.s32.totalorder %s600, 127
        %s602 = scalar_select %p601, %s600, 127
        %p603 = scmp.lt.s32.totalorder %s24, 1
        %s604 = scalar_select %p603, %s24, 1
        %s605 = smul.addr %s604, 10
        %s606 = scalar_lea.vmem %s3, %s605
        %p607 = scmp.lt.s32.totalorder %s24, 1
        %s608 = scalar_select %p607, %s24, 1
        %p609 = scmp.lt.s32.totalorder %s25, 15
        %s610 = scalar_select %p609, %s25, 15
        %s611 = smul.addr %s610, 10
        %s612 = smul.addr %s608, 160
        %s613 = sadd.s32 %s611, %s612
        %s614 = scalar_lea.vmem %s4, %s613
        %p615 = scmp.lt.s32.totalorder %s24, 1
        %s616 = scalar_select %p615, %s24, 1
        %s617 = smul.addr %s616, 4
        %s618 = smul.addr %s617, 4
        %s619 = scalar_lea.vmem %s5, %s618
        %s620 = smul.u32 8, %s25
        %v622 = vld [vmem:[%s530] sm:$0xff]
        %v623 = vld [vmem:[%s530 + $0x8] sm:$0xff]
        %p624 = scmp.gt.s32.totalorder %s25, 0
        %s625 = scalar_select %p624, 1.0, 0.0
        %v626 = vstv %s625
        %v627 = vmul.f32 %v622, %v626
        %v628 = vmul.f32 %v623, %v626
        %v629 = vld [vmem:[%s537] sm:$0xff]
        %v630 = vld [vmem:[%s537 + $0x8] sm:$0xff]
        %p631 = scmp.lt.s32.totalorder %s25, 15
        %s632 = scalar_select %p631, 1.0, 0.0
        %v633 = vstv %s632
        %v634 = vmul.f32 %v629, %v633
        %v635 = vmul.f32 %v630, %v633
        %v636 = vld [vmem:[%s523] sm:$0xff]
        %v637 = vld [vmem:[%s523 + $0x8] sm:$0xff]
        %v638 = vld [vmem:[%s523 + $0x10] sm:$0xff]
        %v639 = vld [vmem:[%s523 + $0x18] sm:$0xff]
        %v640 = vld [vmem:[%s523 + $0x20] sm:$0xff]
        %v641 = vld [vmem:[%s523 + $0x28] sm:$0xff]
        %v642 = vld [vmem:[%s523 + $0x30] sm:$0xff]
        %v643 = vld [vmem:[%s523 + $0x38] sm:$0xff]
        %v644 = vld [vmem:[%s523 + $0x40] sm:$0xff]
        %v645 = vld [vmem:[%s523 + $0x48] sm:$0xff]
        %v646 = vld [vmem:[%s523 + $0x50] sm:$0xff]
        %v647 = vld [vmem:[%s523 + $0x58] sm:$0xff]
        %v648 = vld [vmem:[%s523 + $0x60] sm:$0xff]
        %v649 = vld [vmem:[%s523 + $0x68] sm:$0xff]
        %v650 = vld [vmem:[%s523 + $0x70] sm:$0xff]
        %v651 = vld [vmem:[%s523 + $0x78] sm:$0xff]
        %v652 = vld [vmem:[%s606] sm:$0xff]
        %v653 = vld [vmem:[%s606 + $0x8] sm:$0x3]
        %v654 = vld [vmem:[%s614] sm:$0xff]
        %v655 = vld [vmem:[%s614 + $0x8] sm:$0x3]
        %v656 = vpack.c.bf16 %v628, %v627
        %v657 = vpack.c.bf16 %v644, %v636
        %v658 = vpack.c.bf16 %v645, %v637
        %v659 = vpack.c.bf16 %v646, %v638
        %v660 = vpack.c.bf16 %v647, %v639
        %v661 = vpack.c.bf16 %v648, %v640
        %v662 = vpack.c.bf16 %v649, %v641
        %v663 = vpack.c.bf16 %v650, %v642
        %v664 = vpack.c.bf16 %v651, %v643
        %v665 = vpack.c.bf16 %v635, %v634
        %v668 = vlaneseq
        %v669 = vshrl.u32 %v668, 7
        %v670 = vsub.s32 0, %v669
        %v671 = vrot.slane %v652, %v670
        %v672 = vlaneseq
        %v673 = vshrl.u32 %v672, 7
        %v674 = vsub.s32 1, %v673
        %v675 = vrot.slane %v652, %v674
        %v676 = vlaneseq
        %v677 = vshrl.u32 %v676, 7
        %v678 = vsub.s32 2, %v677
        %v679 = vrot.slane %v652, %v678
        %v680 = vlaneseq
        %v681 = vshrl.u32 %v680, 7
        %v682 = vsub.s32 3, %v681
        %v683 = vrot.slane %v652, %v682
        %v684 = vlaneseq
        %v685 = vshrl.u32 %v684, 7
        %v686 = vsub.s32 4, %v685
        %v687 = vrot.slane %v652, %v686
        %v688 = vlaneseq
        %v689 = vshrl.u32 %v688, 7
        %v690 = vsub.s32 5, %v689
        %v691 = vrot.slane %v652, %v690
        %v692 = vlaneseq
        %v693 = vshrl.u32 %v692, 7
        %v694 = vsub.s32 6, %v693
        %v695 = vrot.slane %v652, %v694
        %v696 = vlaneseq
        %v697 = vshrl.u32 %v696, 7
        %v698 = vsub.s32 7, %v697
        %v699 = vrot.slane %v652, %v698
        %v700 = vlaneseq
        %v701 = vshrl.u32 %v700, 7
        %v702 = vsub.s32 0, %v701
        %v703 = vrot.slane %v653, %v702
        %v704 = vlaneseq
        %v705 = vshrl.u32 %v704, 7
        %v706 = vsub.s32 1, %v705
        %v707 = vrot.slane %v653, %v706
        %v718 = vmul.f32 %v627, %v671
        %v719 = vmul.f32 %v636, %v675
        %v720 = vmul.f32 %v637, %v679
        %v721 = vmul.f32 %v638, %v683
        %v722 = vmul.f32 %v639, %v687
        %v723 = vmul.f32 %v640, %v691
        %v724 = vmul.f32 %v641, %v695
        %v725 = vmul.f32 %v642, %v699
        %v726 = vmul.f32 %v643, %v703
        %v727 = vmul.f32 %v634, %v707
        %v728 = vmul.f32 %v628, %v671
        %v729 = vmul.f32 %v644, %v675
        %v730 = vmul.f32 %v645, %v679
        %v731 = vmul.f32 %v646, %v683
        %v732 = vmul.f32 %v647, %v687
        %v733 = vmul.f32 %v648, %v691
        %v734 = vmul.f32 %v649, %v695
        %v735 = vmul.f32 %v650, %v699
        %v736 = vmul.f32 %v651, %v703
        %v737 = vmul.f32 %v635, %v707
        %v738 = vpack.c.bf16 %v728, %v718
        %v739 = vpack.c.bf16 %v729, %v719
        %v740 = vpack.c.bf16 %v730, %v720
        %v741 = vpack.c.bf16 %v731, %v721
        %v742 = vpack.c.bf16 %v732, %v722
        %v743 = vpack.c.bf16 %v733, %v723
        %v744 = vpack.c.bf16 %v734, %v724
        %v745 = vpack.c.bf16 %v735, %v725
        %v746 = vpack.c.bf16 %v736, %v726
        %v747 = vpack.c.bf16 %v737, %v727
        %v750 = vlaneseq
        %v751 = vshrl.u32 %v750, 7
        %v752 = vsub.s32 0, %v751
        %v753 = vrot.slane %v654, %v752
        %v754 = vlaneseq
        %v755 = vshrl.u32 %v754, 7
        %v756 = vsub.s32 1, %v755
        %v757 = vrot.slane %v654, %v756
        %v758 = vlaneseq
        %v759 = vshrl.u32 %v758, 7
        %v760 = vsub.s32 2, %v759
        %v761 = vrot.slane %v654, %v760
        %v762 = vlaneseq
        %v763 = vshrl.u32 %v762, 7
        %v764 = vsub.s32 3, %v763
        %v765 = vrot.slane %v654, %v764
        %v766 = vlaneseq
        %v767 = vshrl.u32 %v766, 7
        %v768 = vsub.s32 4, %v767
        %v769 = vrot.slane %v654, %v768
        %v770 = vlaneseq
        %v771 = vshrl.u32 %v770, 7
        %v772 = vsub.s32 5, %v771
        %v773 = vrot.slane %v654, %v772
        %v774 = vlaneseq
        %v775 = vshrl.u32 %v774, 7
        %v776 = vsub.s32 6, %v775
        %v777 = vrot.slane %v654, %v776
        %v778 = vlaneseq
        %v779 = vshrl.u32 %v778, 7
        %v780 = vsub.s32 7, %v779
        %v781 = vrot.slane %v654, %v780
        %v782 = vlaneseq
        %v783 = vshrl.u32 %v782, 7
        %v784 = vsub.s32 0, %v783
        %v785 = vrot.slane %v655, %v784
        %v786 = vlaneseq
        %v787 = vshrl.u32 %v786, 7
        %v788 = vsub.s32 1, %v787
        %v789 = vrot.slane %v655, %v788
        %v800 = vmul.f32 %v627, %v753
        %v801 = vmul.f32 %v636, %v757
        %v802 = vmul.f32 %v637, %v761
        %v803 = vmul.f32 %v638, %v765
        %v804 = vmul.f32 %v639, %v769
        %v805 = vmul.f32 %v640, %v773
        %v806 = vmul.f32 %v641, %v777
        %v807 = vmul.f32 %v642, %v781
        %v808 = vmul.f32 %v643, %v785
        %v809 = vmul.f32 %v634, %v789
        %v810 = vmul.f32 %v628, %v753
        %v811 = vmul.f32 %v644, %v757
        %v812 = vmul.f32 %v645, %v761
        %v813 = vmul.f32 %v646, %v765
        %v814 = vmul.f32 %v647, %v769
        %v815 = vmul.f32 %v648, %v773
        %v816 = vmul.f32 %v649, %v777
        %v817 = vmul.f32 %v650, %v781
        %v818 = vmul.f32 %v651, %v785
        %v819 = vmul.f32 %v635, %v789
        %v820 = vpack.c.bf16 %v810, %v800
        %v821 = vpack.c.bf16 %v811, %v801
        %v822 = vpack.c.bf16 %v812, %v802
        %v823 = vpack.c.bf16 %v813, %v803
        %v824 = vpack.c.bf16 %v814, %v804
        %v825 = vpack.c.bf16 %v815, %v805
        %v826 = vpack.c.bf16 %v816, %v806
        %v827 = vpack.c.bf16 %v817, %v807
        %v828 = vpack.c.bf16 %v818, %v808
        %v829 = vpack.c.bf16 %v819, %v809
        %v830 = vld [vmem:[%s619] sm:$0xf]
        %v831 = vld [vmem:[%s619 + $0x4] sm:$0xf]
        %v832 = vld [vmem:[%s619 + $0x8] sm:$0xf]
        %v833 = vld [vmem:[%s619 + $0xc] sm:$0xf]
        %v838 = vunpack.c.l.b16 %v830
        %v839 = vunpack.c.l.b16 %v831
        %v840 = vunpack.c.l.b16 %v832
        %v841 = vunpack.c.l.b16 %v833
        %v842 = vpack.c.b16 %v839, %v838
        %v843 = vpack.c.b16 %v841, %v840
        %vm844 = vcmask 130048
        %v846 = vsel %vm844, %v842, 0
        %v849 = vsel %vm844, %v843, 0
        %851 = vmatprep.subr.bf16.mxu0 %v657
        %852 = vmatpush1.bf16.msra.mxu0 %v656
        %853 = vmatprep.subr.bf16.mxu0 0
        %854 = vmatpush1.bf16.msra.mxu0 0
        %855 = vmatprep.subr.bf16.mxu0 0
        %856 = vmatpush1.bf16.msra.mxu0 0
        %857 = vmatprep.subr.bf16.mxu0 0
        %858 = vmatpush1.bf16.msra.mxu0 0
        %859 = vmatprep.subr.bf16.mxu0 0
        %860 = vmatpush1.bf16.msra.mxu0 0
        %861 = vmatprep.subr.bf16.mxu0 0
        %862 = vmatpush1.bf16.msra.mxu0 0
        %863 = vmatprep.subr.bf16.mxu0 0
        %864 = vmatpush1.bf16.msra.mxu0 0
        %865 = vmatprep.subr.bf16.mxu0 0
        %866 = vmatpush1.bf16.msra.mxu0 0
        %867 = vmatprep.subr.bf16.mxu0 0
        %868 = vmatpush1.bf16.msra.mxu0 0
        %869 = vmatprep.subr.bf16.mxu0 0
        %870 = vmatpush1.bf16.msra.mxu0 0
        %871 = vmatprep.subr.bf16.mxu0 0
        %872 = vmatpush1.bf16.msra.mxu0 0
        %873 = vmatprep.subr.bf16.mxu0 0
        %874 = vmatpush1.bf16.msra.mxu0 0
        %875 = vmatprep.subr.bf16.mxu0 0
        %876 = vmatpush1.bf16.msra.mxu0 0
        %877 = vmatprep.subr.bf16.mxu0 0
        %878 = vmatpush1.bf16.msra.mxu0 0
        %879 = vmatprep.subr.bf16.mxu0 0
        %880 = vmatpush1.bf16.msra.mxu0 0
        %881 = vmatprep.subr.bf16.mxu0 0
        %882 = vmatpush1.bf16.msra.mxu0 0
        %883 = vmatprep.mubr.bf16.mxu0 0
        %884 = vmatmul.mubr.bf16.gmra.mrb[0].mxu0 %v846
        %v885 = vpop.f32.mrb[0].mxu0
        %v886 = vadd.f32 0.0, %v885
        %v887 = vpop.f32.mrb[0].mxu0
        %v888 = vadd.f32 0.0, %v887
        %v889 = vpop.f32.mrb[0].mxu0
        %v890 = vadd.f32 0.0, %v889
        %v891 = vpop.f32.mrb[0].mxu0
        %v892 = vadd.f32 0.0, %v891
        %893 = vmatprep.mubr.bf16.mxu0 0
        %894 = vmatmul.mubr.bf16.gmra.mrb[0].mxu0 %v849
        %v895 = vpop.f32.mrb[0].mxu0
        %v896 = vadd.f32 0.0, %v895
        %v897 = vpop.f32.mrb[0].mxu0
        %v898 = vadd.f32 0.0, %v897
        %v899 = vpop.f32.mrb[0].mxu0
        %v900 = vadd.f32 0.0, %v899
        %v901 = vpop.f32.mrb[0].mxu0
        %v902 = vadd.f32 0.0, %v901
        %903 = vdwg.mxu0
        %904 = vmatprep.subr.bf16.mxu0 %v659
        %905 = vmatpush1.bf16.msra.mxu0 %v658
        %906 = vmatprep.subr.bf16.mxu0 0
        %907 = vmatpush1.bf16.msra.mxu0 0
        %908 = vmatprep.subr.bf16.mxu0 0
        %909 = vmatpush1.bf16.msra.mxu0 0
        %910 = vmatprep.subr.bf16.mxu0 0
        %911 = vmatpush1.bf16.msra.mxu0 0
        %912 = vmatprep.subr.bf16.mxu0 0
        %913 = vmatpush1.bf16.msra.mxu0 0
        %914 = vmatprep.subr.bf16.mxu0 0
        %915 = vmatpush1.bf16.msra.mxu0 0
        %916 = vmatprep.subr.bf16.mxu0 0
        %917 = vmatpush1.bf16.msra.mxu0 0
        %918 = vmatprep.subr.bf16.mxu0 0
        %919 = vmatpush1.bf16.msra.mxu0 0
        %920 = vmatprep.subr.bf16.mxu0 0
        %921 = vmatpush1.bf16.msra.mxu0 0
        %922 = vmatprep.subr.bf16.mxu0 0
        %923 = vmatpush1.bf16.msra.mxu0 0
        %924 = vmatprep.subr.bf16.mxu0 0
        %925 = vmatpush1.bf16.msra.mxu0 0
        %926 = vmatprep.subr.bf16.mxu0 0
        %927 = vmatpush1.bf16.msra.mxu0 0
        %928 = vmatprep.subr.bf16.mxu0 0
        %929 = vmatpush1.bf16.msra.mxu0 0
        %930 = vmatprep.subr.bf16.mxu0 0
        %931 = vmatpush1.bf16.msra.mxu0 0
        %932 = vmatprep.subr.bf16.mxu0 0
        %933 = vmatpush1.bf16.msra.mxu0 0
        %934 = vmatprep.subr.bf16.mxu0 0
        %935 = vmatpush1.bf16.msra.mxu0 0
        %936 = vmatprep.mubr.bf16.mxu0 0
        %937 = vmatmul.mubr.bf16.gmra.mrb[0].mxu0 %v846
        %v938 = vpop.f32.mrb[0].mxu0
        %v939 = vadd.f32 0.0, %v938
        %v940 = vpop.f32.mrb[0].mxu0
        %v941 = vadd.f32 0.0, %v940
        %v942 = vpop.f32.mrb[0].mxu0
        %v943 = vadd.f32 0.0, %v942
        %v944 = vpop.f32.mrb[0].mxu0
        %v945 = vadd.f32 0.0, %v944
        %946 = vmatprep.mubr.bf16.mxu0 0
        %947 = vmatmul.mubr.bf16.gmra.mrb[0].mxu0 %v849
        %v948 = vpop.f32.mrb[0].mxu0
        %v949 = vadd.f32 0.0, %v948
        %v950 = vpop.f32.mrb[0].mxu0
        %v951 = vadd.f32 0.0, %v950
        %v952 = vpop.f32.mrb[0].mxu0
        %v953 = vadd.f32 0.0, %v952
        %v954 = vpop.f32.mrb[0].mxu0
        %v955 = vadd.f32 0.0, %v954
        %956 = vdwg.mxu0
        %957 = vmatprep.subr.bf16.mxu0 %v661
        %958 = vmatpush1.bf16.msra.mxu0 %v660
        %959 = vmatprep.subr.bf16.mxu0 0
        %960 = vmatpush1.bf16.msra.mxu0 0
        %961 = vmatprep.subr.bf16.mxu0 0
        %962 = vmatpush1.bf16.msra.mxu0 0
        %963 = vmatprep.subr.bf16.mxu0 0
        %964 = vmatpush1.bf16.msra.mxu0 0
        %965 = vmatprep.subr.bf16.mxu0 0
        %966 = vmatpush1.bf16.msra.mxu0 0
        %967 = vmatprep.subr.bf16.mxu0 0
        %968 = vmatpush1.bf16.msra.mxu0 0
        %969 = vmatprep.subr.bf16.mxu0 0
        %970 = vmatpush1.bf16.msra.mxu0 0
        %971 = vmatprep.subr.bf16.mxu0 0
        %972 = vmatpush1.bf16.msra.mxu0 0
        %973 = vmatprep.subr.bf16.mxu0 0
        %974 = vmatpush1.bf16.msra.mxu0 0
        %975 = vmatprep.subr.bf16.mxu0 0
        %976 = vmatpush1.bf16.msra.mxu0 0
        %977 = vmatprep.subr.bf16.mxu0 0
        %978 = vmatpush1.bf16.msra.mxu0 0
        %979 = vmatprep.subr.bf16.mxu0 0
        %980 = vmatpush1.bf16.msra.mxu0 0
        %981 = vmatprep.subr.bf16.mxu0 0
        %982 = vmatpush1.bf16.msra.mxu0 0
        %983 = vmatprep.subr.bf16.mxu0 0
        %984 = vmatpush1.bf16.msra.mxu0 0
        %985 = vmatprep.subr.bf16.mxu0 0
        %986 = vmatpush1.bf16.msra.mxu0 0
        %987 = vmatprep.subr.bf16.mxu0 0
        %988 = vmatpush1.bf16.msra.mxu0 0
        %989 = vmatprep.mubr.bf16.mxu0 0
        %990 = vmatmul.mubr.bf16.gmra.mrb[0].mxu0 %v846
        %v991 = vpop.f32.mrb[0].mxu0
        %v992 = vadd.f32 0.0, %v991
        %v993 = vpop.f32.mrb[0].mxu0
        %v994 = vadd.f32 0.0, %v993
        %v995 = vpop.f32.mrb[0].mxu0
        %v996 = vadd.f32 0.0, %v995
        %v997 = vpop.f32.mrb[0].mxu0
        %v998 = vadd.f32 0.0, %v997
        %999 = vmatprep.mubr.bf16.mxu0 0
        %1000 = vmatmul.mubr.bf16.gmra.mrb[0].mxu0 %v849
        %v1001 = vpop.f32.mrb[0].mxu0
        %v1002 = vadd.f32 0.0, %v1001
        %v1003 = vpop.f32.mrb[0].mxu0
        %v1004 = vadd.f32 0.0, %v1003
        %v1005 = vpop.f32.mrb[0].mxu0
        %v1006 = vadd.f32 0.0, %v1005
        %v1007 = vpop.f32.mrb[0].mxu0
        %v1008 = vadd.f32 0.0, %v1007
        %1009 = vdwg.mxu0
        %1010 = vmatprep.subr.bf16.mxu0 %v663
        %1011 = vmatpush1.bf16.msra.mxu0 %v662
        %1012 = vmatprep.subr.bf16.mxu0 0
        %1013 = vmatpush1.bf16.msra.mxu0 0
        %1014 = vmatprep.subr.bf16.mxu0 0
        %1015 = vmatpush1.bf16.msra.mxu0 0
        %1016 = vmatprep.subr.bf16.mxu0 0
        %1017 = vmatpush1.bf16.msra.mxu0 0
        %1018 = vmatprep.subr.bf16.mxu0 0
        %1019 = vmatpush1.bf16.msra.mxu0 0
        %1020 = vmatprep.subr.bf16.mxu0 0
        %1021 = vmatpush1.bf16.msra.mxu0 0
        %1022 = vmatprep.subr.bf16.mxu0 0
        %1023 = vmatpush1.bf16.msra.mxu0 0
        %1024 = vmatprep.subr.bf16.mxu0 0
        %1025 = vmatpush1.bf16.msra.mxu0 0
        %1026 = vmatprep.subr.bf16.mxu0 0
        %1027 = vmatpush1.bf16.msra.mxu0 0
        %1028 = vmatprep.subr.bf16.mxu0 0
        %1029 = vmatpush1.bf16.msra.mxu0 0
        %1030 = vmatprep.subr.bf16.mxu0 0
        %1031 = vmatpush1.bf16.msra.mxu0 0
        %1032 = vmatprep.subr.bf16.mxu0 0
        %1033 = vmatpush1.bf16.msra.mxu0 0
        %1034 = vmatprep.subr.bf16.mxu0 0
        %1035 = vmatpush1.bf16.msra.mxu0 0
        %1036 = vmatprep.subr.bf16.mxu0 0
        %1037 = vmatpush1.bf16.msra.mxu0 0
        %1038 = vmatprep.subr.bf16.mxu0 0
        %1039 = vmatpush1.bf16.msra.mxu0 0
        %1040 = vmatprep.subr.bf16.mxu0 0
        %1041 = vmatpush1.bf16.msra.mxu0 0
        %1042 = vmatprep.mubr.bf16.mxu0 0
        %1043 = vmatmul.mubr.bf16.gmra.mrb[0].mxu0 %v846
        %v1044 = vpop.f32.mrb[0].mxu0
        %v1045 = vadd.f32 0.0, %v1044
        %v1046 = vpop.f32.mrb[0].mxu0
        %v1047 = vadd.f32 0.0, %v1046
        %v1048 = vpop.f32.mrb[0].mxu0
        %v1049 = vadd.f32 0.0, %v1048
        %v1050 = vpop.f32.mrb[0].mxu0
        %v1051 = vadd.f32 0.0, %v1050
        %1052 = vmatprep.mubr.bf16.mxu0 0
        %1053 = vmatmul.mubr.bf16.gmra.mrb[0].mxu0 %v849
        %v1054 = vpop.f32.mrb[0].mxu0
        %v1055 = vadd.f32 0.0, %v1054
        %v1056 = vpop.f32.mrb[0].mxu0
        %v1057 = vadd.f32 0.0, %v1056
        %v1058 = vpop.f32.mrb[0].mxu0
        %v1059 = vadd.f32 0.0, %v1058
        %v1060 = vpop.f32.mrb[0].mxu0
        %v1061 = vadd.f32 0.0, %v1060
        %1062 = vdwg.mxu0
        %1063 = vmatprep.subr.bf16.mxu0 %v665
        %1064 = vmatpush1.bf16.msra.mxu0 %v664
        %1065 = vmatprep.subr.bf16.mxu0 0
        %1066 = vmatpush1.bf16.msra.mxu0 0
        %1067 = vmatprep.subr.bf16.mxu0 0
        %1068 = vmatpush1.bf16.msra.mxu0 0
        %1069 = vmatprep.subr.bf16.mxu0 0
        %1070 = vmatpush1.bf16.msra.mxu0 0
        %1071 = vmatprep.subr.bf16.mxu0 0
        %1072 = vmatpush1.bf16.msra.mxu0 0
        %1073 = vmatprep.subr.bf16.mxu0 0
        %1074 = vmatpush1.bf16.msra.mxu0 0
        %1075 = vmatprep.subr.bf16.mxu0 0
        %1076 = vmatpush1.bf16.msra.mxu0 0
        %1077 = vmatprep.subr.bf16.mxu0 0
        %1078 = vmatpush1.bf16.msra.mxu0 0
        %1079 = vmatprep.subr.bf16.mxu0 0
        %1080 = vmatpush1.bf16.msra.mxu0 0
        %1081 = vmatprep.subr.bf16.mxu0 0
        %1082 = vmatpush1.bf16.msra.mxu0 0
        %1083 = vmatprep.subr.bf16.mxu0 0
        %1084 = vmatpush1.bf16.msra.mxu0 0
        %1085 = vmatprep.subr.bf16.mxu0 0
        %1086 = vmatpush1.bf16.msra.mxu0 0
        %1087 = vmatprep.subr.bf16.mxu0 0
        %1088 = vmatpush1.bf16.msra.mxu0 0
        %1089 = vmatprep.subr.bf16.mxu0 0
        %1090 = vmatpush1.bf16.msra.mxu0 0
        %1091 = vmatprep.subr.bf16.mxu0 0
        %1092 = vmatpush1.bf16.msra.mxu0 0
        %1093 = vmatprep.subr.bf16.mxu0 0
        %1094 = vmatpush1.bf16.msra.mxu0 0
        %1095 = vmatprep.mubr.bf16.mxu0 0
        %1096 = vmatmul.mubr.bf16.gmra.mrb[0].mxu0 %v846
        %v1097 = vpop.f32.mrb[0].mxu0
        %v1098 = vadd.f32 0.0, %v1097
        %v1099 = vpop.f32.mrb[0].mxu0
        %v1100 = vadd.f32 0.0, %v1099
        %v1101 = vpop.f32.mrb[0].mxu0
        %v1102 = vadd.f32 0.0, %v1101
        %v1103 = vpop.f32.mrb[0].mxu0
        %v1104 = vadd.f32 0.0, %v1103
        %1105 = vmatprep.mubr.bf16.mxu0 0
        %1106 = vmatmul.mubr.bf16.gmra.mrb[0].mxu0 %v849
        %v1107 = vpop.f32.mrb[0].mxu0
        %v1108 = vadd.f32 0.0, %v1107
        %v1109 = vpop.f32.mrb[0].mxu0
        %v1110 = vadd.f32 0.0, %v1109
        %v1111 = vpop.f32.mrb[0].mxu0
        %v1112 = vadd.f32 0.0, %v1111
        %v1113 = vpop.f32.mrb[0].mxu0
        %v1114 = vadd.f32 0.0, %v1113
        %1115 = vdwg.mxu0
        %v1116 = vpack.c.bf16 %v890, %v886
        %v1117 = vpack.c.bf16 %v892, %v888
        %v1118 = vpack.c.bf16 %v943, %v939
        %v1119 = vpack.c.bf16 %v945, %v941
        %v1120 = vpack.c.bf16 %v996, %v992
        %v1121 = vpack.c.bf16 %v998, %v994
        %v1122 = vpack.c.bf16 %v1049, %v1045
        %v1123 = vpack.c.bf16 %v1051, %v1047
        %v1124 = vpack.c.bf16 %v1102, %v1098
        %v1125 = vpack.c.bf16 %v1104, %v1100
        %v1126 = vpack.c.bf16 %v900, %v896
        %v1127 = vpack.c.bf16 %v902, %v898
        %v1128 = vpack.c.bf16 %v953, %v949
        %v1129 = vpack.c.bf16 %v955, %v951
        %v1130 = vpack.c.bf16 %v1006, %v1002
        %v1131 = vpack.c.bf16 %v1008, %v1004
        %v1132 = vpack.c.bf16 %v1059, %v1055
        %v1133 = vpack.c.bf16 %v1061, %v1057
        %v1134 = vpack.c.bf16 %v1112, %v1108
        %v1135 = vpack.c.bf16 %v1114, %v1110
        %v1136 = vld [vmem:[%s6] sm:$0xf]
        %v1137 = vld [vmem:[%s6 + $0x4] sm:$0xf]
        %v1138 = vld [vmem:[%s6 + $0x8] sm:$0xf]
        %v1139 = vld [vmem:[%s6 + $0xc] sm:$0xf]
        %s1140 = scalar_lea.vmem %s6, 16
        %v1141 = vld [vmem:[%s1140] sm:$0xf]
        %v1142 = vld [vmem:[%s1140 + $0x4] sm:$0xf]
        %v1143 = vld [vmem:[%s1140 + $0x8] sm:$0xf]
        %v1144 = vld [vmem:[%s1140 + $0xc] sm:$0xf]
        %v1149 = vunpack.c.l.b16 %v1141
        %v1150 = vunpack.c.l.b16 %v1142
        %v1151 = vunpack.c.l.b16 %v1143
        %v1152 = vunpack.c.l.b16 %v1144
        %v1153 = vpack.c.b16 %v1150, %v1149
        %v1154 = vpack.c.b16 %v1152, %v1151
        %v1156 = vsel %vm844, %v1153, 0
        %v1159 = vsel %vm844, %v1154, 0
        %1161 = vmatprep.subr.bf16.mxu0 %v821
        %1162 = vmatpush1.bf16.msra.mxu0 %v820
        %1163 = vmatprep.subr.bf16.mxu0 0
        %1164 = vmatpush1.bf16.msra.mxu0 0
        %1165 = vmatprep.subr.bf16.mxu0 0
        %1166 = vmatpush1.bf16.msra.mxu0 0
        %1167 = vmatprep.subr.bf16.mxu0 0
        %1168 = vmatpush1.bf16.msra.mxu0 0
        %1169 = vmatprep.subr.bf16.mxu0 0
        %1170 = vmatpush1.bf16.msra.mxu0 0
        %1171 = vmatprep.subr.bf16.mxu0 0
        %1172 = vmatpush1.bf16.msra.mxu0 0
        %1173 = vmatprep.subr.bf16.mxu0 0
        %1174 = vmatpush1.bf16.msra.mxu0 0
        %1175 = vmatprep.subr.bf16.mxu0 0
        %1176 = vmatpush1.bf16.msra.mxu0 0
        %1177 = vmatprep.subr.bf16.mxu0 0
        %1178 = vmatpush1.bf16.msra.mxu0 0
        %1179 = vmatprep.subr.bf16.mxu0 0
        %1180 = vmatpush1.bf16.msra.mxu0 0
        %1181 = vmatprep.subr.bf16.mxu0 0
        %1182 = vmatpush1.bf16.msra.mxu0 0
        %1183 = vmatprep.subr.bf16.mxu0 0
        %1184 = vmatpush1.bf16.msra.mxu0 0
        %1185 = vmatprep.subr.bf16.mxu0 0
        %1186 = vmatpush1.bf16.msra.mxu0 0
        %1187 = vmatprep.subr.bf16.mxu0 0
        %1188 = vmatpush1.bf16.msra.mxu0 0
        %1189 = vmatprep.subr.bf16.mxu0 0
        %1190 = vmatpush1.bf16.msra.mxu0 0
        %1191 = vmatprep.subr.bf16.mxu0 0
        %1192 = vmatpush1.bf16.msra.mxu0 0
        %1193 = vmatprep.mubr.bf16.mxu0 0
        %1194 = vmatmul.mubr.bf16.gmra.mrb[0].mxu0 %v1156
        %v1195 = vpop.f32.mrb[0].mxu0
        %v1196 = vadd.f32 0.0, %v1195
        %v1197 = vpop.f32.mrb[0].mxu0
        %v1198 = vadd.f32 0.0, %v1197
        %v1199 = vpop.f32.mrb[0].mxu0
        %v1200 = vadd.f32 0.0, %v1199
        %v1201 = vpop.f32.mrb[0].mxu0
        %v1202 = vadd.f32 0.0, %v1201
        %1203 = vmatprep.mubr.bf16.mxu0 0
        %1204 = vmatmul.mubr.bf16.gmra.mrb[0].mxu0 %v1159
        %v1205 = vpop.f32.mrb[0].mxu0
        %v1206 = vadd.f32 0.0, %v1205
        %v1207 = vpop.f32.mrb[0].mxu0
        %v1208 = vadd.f32 0.0, %v1207
        %v1209 = vpop.f32.mrb[0].mxu0
        %v1210 = vadd.f32 0.0, %v1209
        %v1211 = vpop.f32.mrb[0].mxu0
        %v1212 = vadd.f32 0.0, %v1211
        %1213 = vdwg.mxu0
        %1214 = vmatprep.subr.bf16.mxu0 %v823
        %1215 = vmatpush1.bf16.msra.mxu0 %v822
        %1216 = vmatprep.subr.bf16.mxu0 0
        %1217 = vmatpush1.bf16.msra.mxu0 0
        %1218 = vmatprep.subr.bf16.mxu0 0
        %1219 = vmatpush1.bf16.msra.mxu0 0
        %1220 = vmatprep.subr.bf16.mxu0 0
        %1221 = vmatpush1.bf16.msra.mxu0 0
        %1222 = vmatprep.subr.bf16.mxu0 0
        %1223 = vmatpush1.bf16.msra.mxu0 0
        %1224 = vmatprep.subr.bf16.mxu0 0
        %1225 = vmatpush1.bf16.msra.mxu0 0
        %1226 = vmatprep.subr.bf16.mxu0 0
        %1227 = vmatpush1.bf16.msra.mxu0 0
        %1228 = vmatprep.subr.bf16.mxu0 0
        %1229 = vmatpush1.bf16.msra.mxu0 0
        %1230 = vmatprep.subr.bf16.mxu0 0
        %1231 = vmatpush1.bf16.msra.mxu0 0
        %1232 = vmatprep.subr.bf16.mxu0 0
        %1233 = vmatpush1.bf16.msra.mxu0 0
        %1234 = vmatprep.subr.bf16.mxu0 0
        %1235 = vmatpush1.bf16.msra.mxu0 0
        %1236 = vmatprep.subr.bf16.mxu0 0
        %1237 = vmatpush1.bf16.msra.mxu0 0
        %1238 = vmatprep.subr.bf16.mxu0 0
        %1239 = vmatpush1.bf16.msra.mxu0 0
        %1240 = vmatprep.subr.bf16.mxu0 0
        %1241 = vmatpush1.bf16.msra.mxu0 0
        %1242 = vmatprep.subr.bf16.mxu0 0
        %1243 = vmatpush1.bf16.msra.mxu0 0
        %1244 = vmatprep.subr.bf16.mxu0 0
        %1245 = vmatpush1.bf16.msra.mxu0 0
        %1246 = vmatprep.mubr.bf16.mxu0 0
        %1247 = vmatmul.mubr.bf16.gmra.mrb[0].mxu0 %v1156
        %v1248 = vpop.f32.mrb[0].mxu0
        %v1249 = vadd.f32 0.0, %v1248
        %v1250 = vpop.f32.mrb[0].mxu0
        %v1251 = vadd.f32 0.0, %v1250
        %v1252 = vpop.f32.mrb[0].mxu0
        %v1253 = vadd.f32 0.0, %v1252
        %v1254 = vpop.f32.mrb[0].mxu0
        %v1255 = vadd.f32 0.0, %v1254
        %1256 = vmatprep.mubr.bf16.mxu0 0
        %1257 = vmatmul.mubr.bf16.gmra.mrb[0].mxu0 %v1159
        %v1258 = vpop.f32.mrb[0].mxu0
        %v1259 = vadd.f32 0.0, %v1258
        %v1260 = vpop.f32.mrb[0].mxu0
        %v1261 = vadd.f32 0.0, %v1260
        %v1262 = vpop.f32.mrb[0].mxu0
        %v1263 = vadd.f32 0.0, %v1262
        %v1264 = vpop.f32.mrb[0].mxu0
        %v1265 = vadd.f32 0.0, %v1264
        %1266 = vdwg.mxu0
        %1267 = vmatprep.subr.bf16.mxu0 %v825
        %1268 = vmatpush1.bf16.msra.mxu0 %v824
        %1269 = vmatprep.subr.bf16.mxu0 0
        %1270 = vmatpush1.bf16.msra.mxu0 0
        %1271 = vmatprep.subr.bf16.mxu0 0
        %1272 = vmatpush1.bf16.msra.mxu0 0
        %1273 = vmatprep.subr.bf16.mxu0 0
        %1274 = vmatpush1.bf16.msra.mxu0 0
        %1275 = vmatprep.subr.bf16.mxu0 0
        %1276 = vmatpush1.bf16.msra.mxu0 0
        %1277 = vmatprep.subr.bf16.mxu0 0
        %1278 = vmatpush1.bf16.msra.mxu0 0
        %1279 = vmatprep.subr.bf16.mxu0 0
        %1280 = vmatpush1.bf16.msra.mxu0 0
        %1281 = vmatprep.subr.bf16.mxu0 0
        %1282 = vmatpush1.bf16.msra.mxu0 0
        %1283 = vmatprep.subr.bf16.mxu0 0
        %1284 = vmatpush1.bf16.msra.mxu0 0
        %1285 = vmatprep.subr.bf16.mxu0 0
        %1286 = vmatpush1.bf16.msra.mxu0 0
        %1287 = vmatprep.subr.bf16.mxu0 0
        %1288 = vmatpush1.bf16.msra.mxu0 0
        %1289 = vmatprep.subr.bf16.mxu0 0
        %1290 = vmatpush1.bf16.msra.mxu0 0
        %1291 = vmatprep.subr.bf16.mxu0 0
        %1292 = vmatpush1.bf16.msra.mxu0 0
        %1293 = vmatprep.subr.bf16.mxu0 0
        %1294 = vmatpush1.bf16.msra.mxu0 0
        %1295 = vmatprep.subr.bf16.mxu0 0
        %1296 = vmatpush1.bf16.msra.mxu0 0
        %1297 = vmatprep.subr.bf16.mxu0 0
        %1298 = vmatpush1.bf16.msra.mxu0 0
        %1299 = vmatprep.mubr.bf16.mxu0 0
        %1300 = vmatmul.mubr.bf16.gmra.mrb[0].mxu0 %v1156
        %v1301 = vpop.f32.mrb[0].mxu0
        %v1302 = vadd.f32 0.0, %v1301
        %v1303 = vpop.f32.mrb[0].mxu0
        %v1304 = vadd.f32 0.0, %v1303
        %v1305 = vpop.f32.mrb[0].mxu0
        %v1306 = vadd.f32 0.0, %v1305
        %v1307 = vpop.f32.mrb[0].mxu0
        %v1308 = vadd.f32 0.0, %v1307
        %1309 = vmatprep.mubr.bf16.mxu0 0
        %1310 = vmatmul.mubr.bf16.gmra.mrb[0].mxu0 %v1159
        %v1311 = vpop.f32.mrb[0].mxu0
        %v1312 = vadd.f32 0.0, %v1311
        %v1313 = vpop.f32.mrb[0].mxu0
        %v1314 = vadd.f32 0.0, %v1313
        %v1315 = vpop.f32.mrb[0].mxu0
        %v1316 = vadd.f32 0.0, %v1315
        %v1317 = vpop.f32.mrb[0].mxu0
        %v1318 = vadd.f32 0.0, %v1317
        %1319 = vdwg.mxu0
        %1320 = vmatprep.subr.bf16.mxu0 %v827
        %1321 = vmatpush1.bf16.msra.mxu0 %v826
        %1322 = vmatprep.subr.bf16.mxu0 0
        %1323 = vmatpush1.bf16.msra.mxu0 0
        %1324 = vmatprep.subr.bf16.mxu0 0
        %1325 = vmatpush1.bf16.msra.mxu0 0
        %1326 = vmatprep.subr.bf16.mxu0 0
        %1327 = vmatpush1.bf16.msra.mxu0 0
        %1328 = vmatprep.subr.bf16.mxu0 0
        %1329 = vmatpush1.bf16.msra.mxu0 0
        %1330 = vmatprep.subr.bf16.mxu0 0
        %1331 = vmatpush1.bf16.msra.mxu0 0
        %1332 = vmatprep.subr.bf16.mxu0 0
        %1333 = vmatpush1.bf16.msra.mxu0 0
        %1334 = vmatprep.subr.bf16.mxu0 0
        %1335 = vmatpush1.bf16.msra.mxu0 0
        %1336 = vmatprep.subr.bf16.mxu0 0
        %1337 = vmatpush1.bf16.msra.mxu0 0
        %1338 = vmatprep.subr.bf16.mxu0 0
        %1339 = vmatpush1.bf16.msra.mxu0 0
        %1340 = vmatprep.subr.bf16.mxu0 0
        %1341 = vmatpush1.bf16.msra.mxu0 0
        %1342 = vmatprep.subr.bf16.mxu0 0
        %1343 = vmatpush1.bf16.msra.mxu0 0
        %1344 = vmatprep.subr.bf16.mxu0 0
        %1345 = vmatpush1.bf16.msra.mxu0 0
        %1346 = vmatprep.subr.bf16.mxu0 0
        %1347 = vmatpush1.bf16.msra.mxu0 0
        %1348 = vmatprep.subr.bf16.mxu0 0
        %1349 = vmatpush1.bf16.msra.mxu0 0
        %1350 = vmatprep.subr.bf16.mxu0 0
        %1351 = vmatpush1.bf16.msra.mxu0 0
        %1352 = vmatprep.mubr.bf16.mxu0 0
        %1353 = vmatmul.mubr.bf16.gmra.mrb[0].mxu0 %v1156
        %v1354 = vpop.f32.mrb[0].mxu0
        %v1355 = vadd.f32 0.0, %v1354
        %v1356 = vpop.f32.mrb[0].mxu0
        %v1357 = vadd.f32 0.0, %v1356
        %v1358 = vpop.f32.mrb[0].mxu0
        %v1359 = vadd.f32 0.0, %v1358
        %v1360 = vpop.f32.mrb[0].mxu0
        %v1361 = vadd.f32 0.0, %v1360
        %1362 = vmatprep.mubr.bf16.mxu0 0
        %1363 = vmatmul.mubr.bf16.gmra.mrb[0].mxu0 %v1159
        %v1364 = vpop.f32.mrb[0].mxu0
        %v1365 = vadd.f32 0.0, %v1364
        %v1366 = vpop.f32.mrb[0].mxu0
        %v1367 = vadd.f32 0.0, %v1366
        %v1368 = vpop.f32.mrb[0].mxu0
        %v1369 = vadd.f32 0.0, %v1368
        %v1370 = vpop.f32.mrb[0].mxu0
        %v1371 = vadd.f32 0.0, %v1370
        %1372 = vdwg.mxu0
        %1373 = vmatprep.subr.bf16.mxu0 %v829
        %1374 = vmatpush1.bf16.msra.mxu0 %v828
        %1375 = vmatprep.subr.bf16.mxu0 0
        %1376 = vmatpush1.bf16.msra.mxu0 0
        %1377 = vmatprep.subr.bf16.mxu0 0
        %1378 = vmatpush1.bf16.msra.mxu0 0
        %1379 = vmatprep.subr.bf16.mxu0 0
        %1380 = vmatpush1.bf16.msra.mxu0 0
        %1381 = vmatprep.subr.bf16.mxu0 0
        %1382 = vmatpush1.bf16.msra.mxu0 0
        %1383 = vmatprep.subr.bf16.mxu0 0
        %1384 = vmatpush1.bf16.msra.mxu0 0
        %1385 = vmatprep.subr.bf16.mxu0 0
        %1386 = vmatpush1.bf16.msra.mxu0 0
        %1387 = vmatprep.subr.bf16.mxu0 0
        %1388 = vmatpush1.bf16.msra.mxu0 0
        %1389 = vmatprep.subr.bf16.mxu0 0
        %1390 = vmatpush1.bf16.msra.mxu0 0
        %1391 = vmatprep.subr.bf16.mxu0 0
        %1392 = vmatpush1.bf16.msra.mxu0 0
        %1393 = vmatprep.subr.bf16.mxu0 0
        %1394 = vmatpush1.bf16.msra.mxu0 0
        %1395 = vmatprep.subr.bf16.mxu0 0
        %1396 = vmatpush1.bf16.msra.mxu0 0
        %1397 = vmatprep.subr.bf16.mxu0 0
        %1398 = vmatpush1.bf16.msra.mxu0 0
        %1399 = vmatprep.subr.bf16.mxu0 0
        %1400 = vmatpush1.bf16.msra.mxu0 0
        %1401 = vmatprep.subr.bf16.mxu0 0
        %1402 = vmatpush1.bf16.msra.mxu0 0
        %1403 = vmatprep.subr.bf16.mxu0 0
        %1404 = vmatpush1.bf16.msra.mxu0 0
        %1405 = vmatprep.mubr.bf16.mxu0 0
        %1406 = vmatmul.mubr.bf16.gmra.mrb[0].mxu0 %v1156
        %v1407 = vpop.f32.mrb[0].mxu0
        %v1408 = vadd.f32 0.0, %v1407
        %v1409 = vpop.f32.mrb[0].mxu0
        %v1410 = vadd.f32 0.0, %v1409
        %v1411 = vpop.f32.mrb[0].mxu0
        %v1412 = vadd.f32 0.0, %v1411
        %v1413 = vpop.f32.mrb[0].mxu0
        %v1414 = vadd.f32 0.0, %v1413
        %1415 = vmatprep.mubr.bf16.mxu0 0
        %1416 = vmatmul.mubr.bf16.gmra.mrb[0].mxu0 %v1159
        %v1417 = vpop.f32.mrb[0].mxu0
        %v1418 = vadd.f32 0.0, %v1417
        %v1419 = vpop.f32.mrb[0].mxu0
        %v1420 = vadd.f32 0.0, %v1419
        %v1421 = vpop.f32.mrb[0].mxu0
        %v1422 = vadd.f32 0.0, %v1421
        %v1423 = vpop.f32.mrb[0].mxu0
        %v1424 = vadd.f32 0.0, %v1423
        %1425 = vdwg.mxu0
        %v1430 = vunpack.c.l.b16 %v1136
        %v1431 = vunpack.c.l.b16 %v1137
        %v1432 = vunpack.c.l.b16 %v1138
        %v1433 = vunpack.c.l.b16 %v1139
        %v1434 = vpack.c.b16 %v1431, %v1430
        %v1435 = vpack.c.b16 %v1433, %v1432
        %v1437 = vsel %vm844, %v1434, 0
        %v1440 = vsel %vm844, %v1435, 0
        %1442 = vmatprep.subr.bf16.mxu0 %v739
        %1443 = vmatpush1.bf16.msra.mxu0 %v738
        %1444 = vmatprep.subr.bf16.mxu0 0
        %1445 = vmatpush1.bf16.msra.mxu0 0
        %1446 = vmatprep.subr.bf16.mxu0 0
        %1447 = vmatpush1.bf16.msra.mxu0 0
        %1448 = vmatprep.subr.bf16.mxu0 0
        %1449 = vmatpush1.bf16.msra.mxu0 0
        %1450 = vmatprep.subr.bf16.mxu0 0
        %1451 = vmatpush1.bf16.msra.mxu0 0
        %1452 = vmatprep.subr.bf16.mxu0 0
        %1453 = vmatpush1.bf16.msra.mxu0 0
        %1454 = vmatprep.subr.bf16.mxu0 0
        %1455 = vmatpush1.bf16.msra.mxu0 0
        %1456 = vmatprep.subr.bf16.mxu0 0
        %1457 = vmatpush1.bf16.msra.mxu0 0
        %1458 = vmatprep.subr.bf16.mxu0 0
        %1459 = vmatpush1.bf16.msra.mxu0 0
        %1460 = vmatprep.subr.bf16.mxu0 0
        %1461 = vmatpush1.bf16.msra.mxu0 0
        %1462 = vmatprep.subr.bf16.mxu0 0
        %1463 = vmatpush1.bf16.msra.mxu0 0
        %1464 = vmatprep.subr.bf16.mxu0 0
        %1465 = vmatpush1.bf16.msra.mxu0 0
        %1466 = vmatprep.subr.bf16.mxu0 0
        %1467 = vmatpush1.bf16.msra.mxu0 0
        %1468 = vmatprep.subr.bf16.mxu0 0
        %1469 = vmatpush1.bf16.msra.mxu0 0
        %1470 = vmatprep.subr.bf16.mxu0 0
        %1471 = vmatpush1.bf16.msra.mxu0 0
        %1472 = vmatprep.subr.bf16.mxu0 0
        %1473 = vmatpush1.bf16.msra.mxu0 0
        %1474 = vmatprep.mubr.bf16.mxu0 0
        %1475 = vmatmul.mubr.bf16.gmra.mrb[0].mxu0 %v1437
        %v1476 = vpop.f32.mrb[0].mxu0
        %v1477 = vadd.f32 %v1196, %v1476
        %v1478 = vpop.f32.mrb[0].mxu0
        %v1479 = vadd.f32 %v1198, %v1478
        %v1480 = vpop.f32.mrb[0].mxu0
        %v1481 = vadd.f32 %v1200, %v1480
        %v1482 = vpop.f32.mrb[0].mxu0
        %v1483 = vadd.f32 %v1202, %v1482
        %1484 = vmatprep.mubr.bf16.mxu0 0
        %1485 = vmatmul.mubr.bf16.gmra.mrb[0].mxu0 %v1440
        %v1486 = vpop.f32.mrb[0].mxu0
        %v1487 = vadd.f32 %v1206, %v1486
        %v1488 = vpop.f32.mrb[0].mxu0
        %v1489 = vadd.f32 %v1208, %v1488
        %v1490 = vpop.f32.mrb[0].mxu0
        %v1491 = vadd.f32 %v1210, %v1490
        %v1492 = vpop.f32.mrb[0].mxu0
        %v1493 = vadd.f32 %v1212, %v1492
        %1494 = vdwg.mxu0
        %1495 = vmatprep.subr.bf16.mxu0 %v741
        %1496 = vmatpush1.bf16.msra.mxu0 %v740
        %1497 = vmatprep.subr.bf16.mxu0 0
        %1498 = vmatpush1.bf16.msra.mxu0 0
        %1499 = vmatprep.subr.bf16.mxu0 0
        %1500 = vmatpush1.bf16.msra.mxu0 0
        %1501 = vmatprep.subr.bf16.mxu0 0
        %1502 = vmatpush1.bf16.msra.mxu0 0
        %1503 = vmatprep.subr.bf16.mxu0 0
        %1504 = vmatpush1.bf16.msra.mxu0 0
        %1505 = vmatprep.subr.bf16.mxu0 0
        %1506 = vmatpush1.bf16.msra.mxu0 0
        %1507 = vmatprep.subr.bf16.mxu0 0
        %1508 = vmatpush1.bf16.msra.mxu0 0
        %1509 = vmatprep.subr.bf16.mxu0 0
        %1510 = vmatpush1.bf16.msra.mxu0 0
        %1511 = vmatprep.subr.bf16.mxu0 0
        %1512 = vmatpush1.bf16.msra.mxu0 0
        %1513 = vmatprep.subr.bf16.mxu0 0
        %1514 = vmatpush1.bf16.msra.mxu0 0
        %1515 = vmatprep.subr.bf16.mxu0 0
        %1516 = vmatpush1.bf16.msra.mxu0 0
        %1517 = vmatprep.subr.bf16.mxu0 0
        %1518 = vmatpush1.bf16.msra.mxu0 0
        %1519 = vmatprep.subr.bf16.mxu0 0
        %1520 = vmatpush1.bf16.msra.mxu0 0
        %1521 = vmatprep.subr.bf16.mxu0 0
        %1522 = vmatpush1.bf16.msra.mxu0 0
        %1523 = vmatprep.subr.bf16.mxu0 0
        %1524 = vmatpush1.bf16.msra.mxu0 0
        %1525 = vmatprep.subr.bf16.mxu0 0
        %1526 = vmatpush1.bf16.msra.mxu0 0
        %1527 = vmatprep.mubr.bf16.mxu0 0
        %1528 = vmatmul.mubr.bf16.gmra.mrb[0].mxu0 %v1437
        %v1529 = vpop.f32.mrb[0].mxu0
        %v1530 = vadd.f32 %v1249, %v1529
        %v1531 = vpop.f32.mrb[0].mxu0
        %v1532 = vadd.f32 %v1251, %v1531
        %v1533 = vpop.f32.mrb[0].mxu0
        %v1534 = vadd.f32 %v1253, %v1533
        %v1535 = vpop.f32.mrb[0].mxu0
        %v1536 = vadd.f32 %v1255, %v1535
        %1537 = vmatprep.mubr.bf16.mxu0 0
        %1538 = vmatmul.mubr.bf16.gmra.mrb[0].mxu0 %v1440
        %v1539 = vpop.f32.mrb[0].mxu0
        %v1540 = vadd.f32 %v1259, %v1539
        %v1541 = vpop.f32.mrb[0].mxu0
        %v1542 = vadd.f32 %v1261, %v1541
        %v1543 = vpop.f32.mrb[0].mxu0
        %v1544 = vadd.f32 %v1263, %v1543
        %v1545 = vpop.f32.mrb[0].mxu0
        %v1546 = vadd.f32 %v1265, %v1545
        %1547 = vdwg.mxu0
        %1548 = vmatprep.subr.bf16.mxu0 %v743
        %1549 = vmatpush1.bf16.msra.mxu0 %v742
        %1550 = vmatprep.subr.bf16.mxu0 0
        %1551 = vmatpush1.bf16.msra.mxu0 0
        %1552 = vmatprep.subr.bf16.mxu0 0
        %1553 = vmatpush1.bf16.msra.mxu0 0
        %1554 = vmatprep.subr.bf16.mxu0 0
        %1555 = vmatpush1.bf16.msra.mxu0 0
        %1556 = vmatprep.subr.bf16.mxu0 0
        %1557 = vmatpush1.bf16.msra.mxu0 0
        %1558 = vmatprep.subr.bf16.mxu0 0
        %1559 = vmatpush1.bf16.msra.mxu0 0
        %1560 = vmatprep.subr.bf16.mxu0 0
        %1561 = vmatpush1.bf16.msra.mxu0 0
        %1562 = vmatprep.subr.bf16.mxu0 0
        %1563 = vmatpush1.bf16.msra.mxu0 0
        %1564 = vmatprep.subr.bf16.mxu0 0
        %1565 = vmatpush1.bf16.msra.mxu0 0
        %1566 = vmatprep.subr.bf16.mxu0 0
        %1567 = vmatpush1.bf16.msra.mxu0 0
        %1568 = vmatprep.subr.bf16.mxu0 0
        %1569 = vmatpush1.bf16.msra.mxu0 0
        %1570 = vmatprep.subr.bf16.mxu0 0
        %1571 = vmatpush1.bf16.msra.mxu0 0
        %1572 = vmatprep.subr.bf16.mxu0 0
        %1573 = vmatpush1.bf16.msra.mxu0 0
        %1574 = vmatprep.subr.bf16.mxu0 0
        %1575 = vmatpush1.bf16.msra.mxu0 0
        %1576 = vmatprep.subr.bf16.mxu0 0
        %1577 = vmatpush1.bf16.msra.mxu0 0
        %1578 = vmatprep.subr.bf16.mxu0 0
        %1579 = vmatpush1.bf16.msra.mxu0 0
        %1580 = vmatprep.mubr.bf16.mxu0 0
        %1581 = vmatmul.mubr.bf16.gmra.mrb[0].mxu0 %v1437
        %v1582 = vpop.f32.mrb[0].mxu0
        %v1583 = vadd.f32 %v1302, %v1582
        %v1584 = vpop.f32.mrb[0].mxu0
        %v1585 = vadd.f32 %v1304, %v1584
        %v1586 = vpop.f32.mrb[0].mxu0
        %v1587 = vadd.f32 %v1306, %v1586
        %v1588 = vpop.f32.mrb[0].mxu0
        %v1589 = vadd.f32 %v1308, %v1588
        %1590 = vmatprep.mubr.bf16.mxu0 0
        %1591 = vmatmul.mubr.bf16.gmra.mrb[0].mxu0 %v1440
        %v1592 = vpop.f32.mrb[0].mxu0
        %v1593 = vadd.f32 %v1312, %v1592
        %v1594 = vpop.f32.mrb[0].mxu0
        %v1595 = vadd.f32 %v1314, %v1594
        %v1596 = vpop.f32.mrb[0].mxu0
        %v1597 = vadd.f32 %v1316, %v1596
        %v1598 = vpop.f32.mrb[0].mxu0
        %v1599 = vadd.f32 %v1318, %v1598
        %1600 = vdwg.mxu0
        %1601 = vmatprep.subr.bf16.mxu0 %v745
        %1602 = vmatpush1.bf16.msra.mxu0 %v744
        %1603 = vmatprep.subr.bf16.mxu0 0
        %1604 = vmatpush1.bf16.msra.mxu0 0
        %1605 = vmatprep.subr.bf16.mxu0 0
        %1606 = vmatpush1.bf16.msra.mxu0 0
        %1607 = vmatprep.subr.bf16.mxu0 0
        %1608 = vmatpush1.bf16.msra.mxu0 0
        %1609 = vmatprep.subr.bf16.mxu0 0
        %1610 = vmatpush1.bf16.msra.mxu0 0
        %1611 = vmatprep.subr.bf16.mxu0 0
        %1612 = vmatpush1.bf16.msra.mxu0 0
        %1613 = vmatprep.subr.bf16.mxu0 0
        %1614 = vmatpush1.bf16.msra.mxu0 0
        %1615 = vmatprep.subr.bf16.mxu0 0
        %1616 = vmatpush1.bf16.msra.mxu0 0
        %1617 = vmatprep.subr.bf16.mxu0 0
        %1618 = vmatpush1.bf16.msra.mxu0 0
        %1619 = vmatprep.subr.bf16.mxu0 0
        %1620 = vmatpush1.bf16.msra.mxu0 0
        %1621 = vmatprep.subr.bf16.mxu0 0
        %1622 = vmatpush1.bf16.msra.mxu0 0
        %1623 = vmatprep.subr.bf16.mxu0 0
        %1624 = vmatpush1.bf16.msra.mxu0 0
        %1625 = vmatprep.subr.bf16.mxu0 0
        %1626 = vmatpush1.bf16.msra.mxu0 0
        %1627 = vmatprep.subr.bf16.mxu0 0
        %1628 = vmatpush1.bf16.msra.mxu0 0
        %1629 = vmatprep.subr.bf16.mxu0 0
        %1630 = vmatpush1.bf16.msra.mxu0 0
        %1631 = vmatprep.subr.bf16.mxu0 0
        %1632 = vmatpush1.bf16.msra.mxu0 0
        %1633 = vmatprep.mubr.bf16.mxu0 0
        %1634 = vmatmul.mubr.bf16.gmra.mrb[0].mxu0 %v1437
        %v1635 = vpop.f32.mrb[0].mxu0
        %v1636 = vadd.f32 %v1355, %v1635
        %v1637 = vpop.f32.mrb[0].mxu0
        %v1638 = vadd.f32 %v1357, %v1637
        %v1639 = vpop.f32.mrb[0].mxu0
        %v1640 = vadd.f32 %v1359, %v1639
        %v1641 = vpop.f32.mrb[0].mxu0
        %v1642 = vadd.f32 %v1361, %v1641
        %1643 = vmatprep.mubr.bf16.mxu0 0
        %1644 = vmatmul.mubr.bf16.gmra.mrb[0].mxu0 %v1440
        %v1645 = vpop.f32.mrb[0].mxu0
        %v1646 = vadd.f32 %v1365, %v1645
        %v1647 = vpop.f32.mrb[0].mxu0
        %v1648 = vadd.f32 %v1367, %v1647
        %v1649 = vpop.f32.mrb[0].mxu0
        %v1650 = vadd.f32 %v1369, %v1649
        %v1651 = vpop.f32.mrb[0].mxu0
        %v1652 = vadd.f32 %v1371, %v1651
        %1653 = vdwg.mxu0
        %1654 = vmatprep.subr.bf16.mxu0 %v747
        %1655 = vmatpush1.bf16.msra.mxu0 %v746
        %1656 = vmatprep.subr.bf16.mxu0 0
        %1657 = vmatpush1.bf16.msra.mxu0 0
        %1658 = vmatprep.subr.bf16.mxu0 0
        %1659 = vmatpush1.bf16.msra.mxu0 0
        %1660 = vmatprep.subr.bf16.mxu0 0
        %1661 = vmatpush1.bf16.msra.mxu0 0
        %1662 = vmatprep.subr.bf16.mxu0 0
        %1663 = vmatpush1.bf16.msra.mxu0 0
        %1664 = vmatprep.subr.bf16.mxu0 0
        %1665 = vmatpush1.bf16.msra.mxu0 0
        %1666 = vmatprep.subr.bf16.mxu0 0
        %1667 = vmatpush1.bf16.msra.mxu0 0
        %1668 = vmatprep.subr.bf16.mxu0 0
        %1669 = vmatpush1.bf16.msra.mxu0 0
        %1670 = vmatprep.subr.bf16.mxu0 0
        %1671 = vmatpush1.bf16.msra.mxu0 0
        %1672 = vmatprep.subr.bf16.mxu0 0
        %1673 = vmatpush1.bf16.msra.mxu0 0
        %1674 = vmatprep.subr.bf16.mxu0 0
        %1675 = vmatpush1.bf16.msra.mxu0 0
        %1676 = vmatprep.subr.bf16.mxu0 0
        %1677 = vmatpush1.bf16.msra.mxu0 0
        %1678 = vmatprep.subr.bf16.mxu0 0
        %1679 = vmatpush1.bf16.msra.mxu0 0
        %1680 = vmatprep.subr.bf16.mxu0 0
        %1681 = vmatpush1.bf16.msra.mxu0 0
        %1682 = vmatprep.subr.bf16.mxu0 0
        %1683 = vmatpush1.bf16.msra.mxu0 0
        %1684 = vmatprep.subr.bf16.mxu0 0
        %1685 = vmatpush1.bf16.msra.mxu0 0
        %1686 = vmatprep.mubr.bf16.mxu0 0
        %1687 = vmatmul.mubr.bf16.gmra.mrb[0].mxu0 %v1437
        %v1688 = vpop.f32.mrb[0].mxu0
        %v1689 = vadd.f32 %v1408, %v1688
        %v1690 = vpop.f32.mrb[0].mxu0
        %v1691 = vadd.f32 %v1410, %v1690
        %v1692 = vpop.f32.mrb[0].mxu0
        %v1693 = vadd.f32 %v1412, %v1692
        %v1694 = vpop.f32.mrb[0].mxu0
        %v1695 = vadd.f32 %v1414, %v1694
        %1696 = vmatprep.mubr.bf16.mxu0 0
        %1697 = vmatmul.mubr.bf16.gmra.mrb[0].mxu0 %v1440
        %v1698 = vpop.f32.mrb[0].mxu0
        %v1699 = vadd.f32 %v1418, %v1698
        %v1700 = vpop.f32.mrb[0].mxu0
        %v1701 = vadd.f32 %v1420, %v1700
        %v1702 = vpop.f32.mrb[0].mxu0
        %v1703 = vadd.f32 %v1422, %v1702
        %v1704 = vpop.f32.mrb[0].mxu0
        %v1705 = vadd.f32 %v1424, %v1704
        %1706 = vdwg.mxu0
        %v1707 = vpack.c.bf16 %v1481, %v1477
        %v1708 = vpack.c.bf16 %v1483, %v1479
        %v1709 = vpack.c.bf16 %v1534, %v1530
        %v1710 = vpack.c.bf16 %v1536, %v1532
        %v1711 = vpack.c.bf16 %v1587, %v1583
        %v1712 = vpack.c.bf16 %v1589, %v1585
        %v1713 = vpack.c.bf16 %v1640, %v1636
        %v1714 = vpack.c.bf16 %v1642, %v1638
        %v1715 = vpack.c.bf16 %v1693, %v1689
        %v1716 = vpack.c.bf16 %v1695, %v1691
        %v1717 = vpack.c.bf16 %v1491, %v1487
        %v1718 = vpack.c.bf16 %v1493, %v1489
        %v1719 = vpack.c.bf16 %v1544, %v1540
        %v1720 = vpack.c.bf16 %v1546, %v1542
        %v1721 = vpack.c.bf16 %v1597, %v1593
        %v1722 = vpack.c.bf16 %v1599, %v1595
        %v1723 = vpack.c.bf16 %v1650, %v1646
        %v1724 = vpack.c.bf16 %v1652, %v1648
        %v1725 = vpack.c.bf16 %v1703, %v1699
        %v1726 = vpack.c.bf16 %v1705, %v1701
        %v1727 = vlaneseq
        %v1728 = vand.u32 %v1727, 127
        %v1729 = vadd.s32 %v1728, 128
        %v1730 = vadd.s32 %v1728, 256
        %v1731 = vadd.s32 %v1728, 384
        %v1732 = vadd.s32 %v1728, 512
        %v1733 = vadd.s32 %v1728, 640
        %v1734 = vadd.s32 %v1728, 768
        %v1735 = vadd.s32 %v1728, 896
        %vm1736 = vcmp.lt.s32.totalorder %v1728, 0
        %v1737 = vsub.s32 0, %v1728
        %v1738 = vsel %vm1736, %v1737, %v1728
        %v1739 = vshrl.u32 %v1738, 7
        %v1740 = vand.u32 %v1738, 127
        %v1741 = vsub.s32 0, %v1740
        %v1742 = vsel %vm1736, %v1741, %v1740
        %vm1743 = vcmp.lt.s32.totalorder %v1729, 0
        %v1744 = vsub.s32 0, %v1729
        %v1745 = vsel %vm1743, %v1744, %v1729
        %v1746 = vshrl.u32 %v1745, 7
        %v1747 = vand.u32 %v1745, 127
        %v1748 = vsub.s32 0, %v1747
        %v1749 = vsel %vm1743, %v1748, %v1747
        %vm1750 = vcmp.lt.s32.totalorder %v1730, 0
        %v1751 = vsub.s32 0, %v1730
        %v1752 = vsel %vm1750, %v1751, %v1730
        %v1753 = vshrl.u32 %v1752, 7
        %v1754 = vand.u32 %v1752, 127
        %v1755 = vsub.s32 0, %v1754
        %v1756 = vsel %vm1750, %v1755, %v1754
        %vm1757 = vcmp.lt.s32.totalorder %v1731, 0
        %v1758 = vsub.s32 0, %v1731
        %v1759 = vsel %vm1757, %v1758, %v1731
        %v1760 = vshrl.u32 %v1759, 7
        %v1761 = vand.u32 %v1759, 127
        %v1762 = vsub.s32 0, %v1761
        %v1763 = vsel %vm1757, %v1762, %v1761
        %vm1764 = vcmp.lt.s32.totalorder %v1732, 0
        %v1765 = vsub.s32 0, %v1732
        %v1766 = vsel %vm1764, %v1765, %v1732
        %v1767 = vshrl.u32 %v1766, 7
        %v1768 = vand.u32 %v1766, 127
        %v1769 = vsub.s32 0, %v1768
        %v1770 = vsel %vm1764, %v1769, %v1768
        %vm1771 = vcmp.lt.s32.totalorder %v1733, 0
        %v1772 = vsub.s32 0, %v1733
        %v1773 = vsel %vm1771, %v1772, %v1733
        %v1774 = vshrl.u32 %v1773, 7
        %v1775 = vand.u32 %v1773, 127
        %v1776 = vsub.s32 0, %v1775
        %v1777 = vsel %vm1771, %v1776, %v1775
        %vm1778 = vcmp.lt.s32.totalorder %v1734, 0
        %v1779 = vsub.s32 0, %v1734
        %v1780 = vsel %vm1778, %v1779, %v1734
        %v1781 = vshrl.u32 %v1780, 7
        %v1782 = vand.u32 %v1780, 127
        %v1783 = vsub.s32 0, %v1782
        %v1784 = vsel %vm1778, %v1783, %v1782
        %vm1785 = vcmp.lt.s32.totalorder %v1735, 0
        %v1786 = vsub.s32 0, %v1735
        %v1787 = vsel %vm1785, %v1786, %v1735
        %v1788 = vshrl.u32 %v1787, 7
        %v1789 = vand.u32 %v1787, 127
        %v1790 = vsub.s32 0, %v1789
        %v1791 = vsel %vm1785, %v1790, %v1789
        %vm1792 = vcmp.ne.s32.totalorder %v1742, 0
        %vm1793 = vcmp.ne.s32.totalorder %v1749, 0
        %vm1794 = vcmp.ne.s32.totalorder %v1756, 0
        %vm1795 = vcmp.ne.s32.totalorder %v1763, 0
        %vm1796 = vcmp.ne.s32.totalorder %v1770, 0
        %vm1797 = vcmp.ne.s32.totalorder %v1777, 0
        %vm1798 = vcmp.ne.s32.totalorder %v1784, 0
        %vm1799 = vcmp.ne.s32.totalorder %v1791, 0
        %vm1800 = vcmp.lt.s32.totalorder %v1742, 0
        %vm1801 = vcmp.lt.s32.totalorder %v1749, 0
        %vm1802 = vcmp.lt.s32.totalorder %v1756, 0
        %vm1803 = vcmp.lt.s32.totalorder %v1763, 0
        %vm1804 = vcmp.lt.s32.totalorder %v1770, 0
        %vm1805 = vcmp.lt.s32.totalorder %v1777, 0
        %vm1806 = vcmp.lt.s32.totalorder %v1784, 0
        %vm1807 = vcmp.lt.s32.totalorder %v1791, 0
        %vm1808 = vmand %vm1800, %vm1792
        %vm1809 = vmand %vm1801, %vm1793
        %vm1810 = vmand %vm1802, %vm1794
        %vm1811 = vmand %vm1803, %vm1795
        %vm1812 = vmand %vm1804, %vm1796
        %vm1813 = vmand %vm1805, %vm1797
        %vm1814 = vmand %vm1806, %vm1798
        %vm1815 = vmand %vm1807, %vm1799
        %v1816 = vadd.s32 %v1742, 128
        %v1817 = vadd.s32 %v1749, 128
        %v1818 = vadd.s32 %v1756, 128
        %v1819 = vadd.s32 %v1763, 128
        %v1820 = vadd.s32 %v1770, 128
        %v1821 = vadd.s32 %v1777, 128
        %v1822 = vadd.s32 %v1784, 128
        %v1823 = vadd.s32 %v1791, 128
        %v1824 = vsel %vm1808, %v1816, %v1742
        %v1825 = vsel %vm1809, %v1817, %v1749
        %v1826 = vsel %vm1810, %v1818, %v1756
        %v1827 = vsel %vm1811, %v1819, %v1763
        %v1828 = vsel %vm1812, %v1820, %v1770
        %v1829 = vsel %vm1813, %v1821, %v1777
        %v1830 = vsel %vm1814, %v1822, %v1784
        %v1831 = vsel %vm1815, %v1823, %v1791
        %s1832 = scalar_lea.vmem %s7, 8
        %v1833 = vld [vmem:[%s1832] sm:$0xf]
        %v1834 = vld [vmem:[%s1832 + $0x4] sm:$0xf]
        %s1835 = scalar_lea.vmem %s8, 8
        %v1836 = vld [vmem:[%s1835] sm:$0xf]
        %v1837 = vld [vmem:[%s1835 + $0x4] sm:$0xf]
        %v1840 = vunpack.c.l.b16 %v1836
        %v1841 = vunpack.c.l.b16 %v1837
        %v1842 = vpack.c.b16 %v1841, %v1840
        %vm1843 = vcmask 261120
        %v1845 = vsel %vm1843, %v1842, 0
        %1847 = vmatprep.subr.bf16.mxu0 %v1708
        %1848 = vmatpush1.bf16.msra.mxu0 %v1707
        %1849 = vmatprep.subr.bf16.mxu0 %v1718
        %1850 = vmatpush1.bf16.msra.mxu0 %v1717
        %1851 = vmatprep.subr.bf16.mxu0 0
        %1852 = vmatpush1.bf16.msra.mxu0 0
        %1853 = vmatprep.subr.bf16.mxu0 0
        %1854 = vmatpush1.bf16.msra.mxu0 0
        %1855 = vmatprep.subr.bf16.mxu0 0
        %1856 = vmatpush1.bf16.msra.mxu0 0
        %1857 = vmatprep.subr.bf16.mxu0 0
        %1858 = vmatpush1.bf16.msra.mxu0 0
        %1859 = vmatprep.subr.bf16.mxu0 0
        %1860 = vmatpush1.bf16.msra.mxu0 0
        %1861 = vmatprep.subr.bf16.mxu0 0
        %1862 = vmatpush1.bf16.msra.mxu0 0
        %1863 = vmatprep.subr.bf16.mxu0 0
        %1864 = vmatpush1.bf16.msra.mxu0 0
        %1865 = vmatprep.subr.bf16.mxu0 0
        %1866 = vmatpush1.bf16.msra.mxu0 0
        %1867 = vmatprep.subr.bf16.mxu0 0
        %1868 = vmatpush1.bf16.msra.mxu0 0
        %1869 = vmatprep.subr.bf16.mxu0 0
        %1870 = vmatpush1.bf16.msra.mxu0 0
        %1871 = vmatprep.subr.bf16.mxu0 0
        %1872 = vmatpush1.bf16.msra.mxu0 0
        %1873 = vmatprep.subr.bf16.mxu0 0
        %1874 = vmatpush1.bf16.msra.mxu0 0
        %1875 = vmatprep.subr.bf16.mxu0 0
        %1876 = vmatpush1.bf16.msra.mxu0 0
        %1877 = vmatprep.subr.bf16.mxu0 0
        %1878 = vmatpush1.bf16.msra.mxu0 0
        %1879 = vmatprep.mubr.bf16.mxu0 0
        %1880 = vmatmul.mubr.bf16.gmra.mrb[0].mxu0 %v1845
        %v1881 = vpop.f32.mrb[0].mxu0
        %v1882 = vadd.f32 0.0, %v1881
        %v1883 = vpop.f32.mrb[0].mxu0
        %v1884 = vadd.f32 0.0, %v1883
        %v1885 = vpop.f32.mrb[0].mxu0
        %v1886 = vadd.f32 0.0, %v1885
        %v1887 = vpop.f32.mrb[0].mxu0
        %v1888 = vadd.f32 0.0, %v1887
        %1889 = vdwg.mxu0
        %1890 = vmatprep.subr.bf16.mxu0 %v1710
        %1891 = vmatpush1.bf16.msra.mxu0 %v1709
        %1892 = vmatprep.subr.bf16.mxu0 %v1720
        %1893 = vmatpush1.bf16.msra.mxu0 %v1719
        %1894 = vmatprep.subr.bf16.mxu0 0
        %1895 = vmatpush1.bf16.msra.mxu0 0
        %1896 = vmatprep.subr.bf16.mxu0 0
        %1897 = vmatpush1.bf16.msra.mxu0 0
        %1898 = vmatprep.subr.bf16.mxu0 0
        %1899 = vmatpush1.bf16.msra.mxu0 0
        %1900 = vmatprep.subr.bf16.mxu0 0
        %1901 = vmatpush1.bf16.msra.mxu0 0
        %1902 = vmatprep.subr.bf16.mxu0 0
        %1903 = vmatpush1.bf16.msra.mxu0 0
        %1904 = vmatprep.subr.bf16.mxu0 0
        %1905 = vmatpush1.bf16.msra.mxu0 0
        %1906 = vmatprep.subr.bf16.mxu0 0
        %1907 = vmatpush1.bf16.msra.mxu0 0
        %1908 = vmatprep.subr.bf16.mxu0 0
        %1909 = vmatpush1.bf16.msra.mxu0 0
        %1910 = vmatprep.subr.bf16.mxu0 0
        %1911 = vmatpush1.bf16.msra.mxu0 0
        %1912 = vmatprep.subr.bf16.mxu0 0
        %1913 = vmatpush1.bf16.msra.mxu0 0
        %1914 = vmatprep.subr.bf16.mxu0 0
        %1915 = vmatpush1.bf16.msra.mxu0 0
        %1916 = vmatprep.subr.bf16.mxu0 0
        %1917 = vmatpush1.bf16.msra.mxu0 0
        %1918 = vmatprep.subr.bf16.mxu0 0
        %1919 = vmatpush1.bf16.msra.mxu0 0
        %1920 = vmatprep.subr.bf16.mxu0 0
        %1921 = vmatpush1.bf16.msra.mxu0 0
        %1922 = vmatprep.mubr.bf16.mxu0 0
        %1923 = vmatmul.mubr.bf16.gmra.mrb[0].mxu0 %v1845
        %v1924 = vpop.f32.mrb[0].mxu0
        %v1925 = vadd.f32 0.0, %v1924
        %v1926 = vpop.f32.mrb[0].mxu0
        %v1927 = vadd.f32 0.0, %v1926
        %v1928 = vpop.f32.mrb[0].mxu0
        %v1929 = vadd.f32 0.0, %v1928
        %v1930 = vpop.f32.mrb[0].mxu0
        %v1931 = vadd.f32 0.0, %v1930
        %1932 = vdwg.mxu0
        %1933 = vmatprep.subr.bf16.mxu0 %v1712
        %1934 = vmatpush1.bf16.msra.mxu0 %v1711
        %1935 = vmatprep.subr.bf16.mxu0 %v1722
        %1936 = vmatpush1.bf16.msra.mxu0 %v1721
        %1937 = vmatprep.subr.bf16.mxu0 0
        %1938 = vmatpush1.bf16.msra.mxu0 0
        %1939 = vmatprep.subr.bf16.mxu0 0
        %1940 = vmatpush1.bf16.msra.mxu0 0
        %1941 = vmatprep.subr.bf16.mxu0 0
        %1942 = vmatpush1.bf16.msra.mxu0 0
        %1943 = vmatprep.subr.bf16.mxu0 0
        %1944 = vmatpush1.bf16.msra.mxu0 0
        %1945 = vmatprep.subr.bf16.mxu0 0
        %1946 = vmatpush1.bf16.msra.mxu0 0
        %1947 = vmatprep.subr.bf16.mxu0 0
        %1948 = vmatpush1.bf16.msra.mxu0 0
        %1949 = vmatprep.subr.bf16.mxu0 0
        %1950 = vmatpush1.bf16.msra.mxu0 0
        %1951 = vmatprep.subr.bf16.mxu0 0
        %1952 = vmatpush1.bf16.msra.mxu0 0
        %1953 = vmatprep.subr.bf16.mxu0 0
        %1954 = vmatpush1.bf16.msra.mxu0 0
        %1955 = vmatprep.subr.bf16.mxu0 0
        %1956 = vmatpush1.bf16.msra.mxu0 0
        %1957 = vmatprep.subr.bf16.mxu0 0
        %1958 = vmatpush1.bf16.msra.mxu0 0
        %1959 = vmatprep.subr.bf16.mxu0 0
        %1960 = vmatpush1.bf16.msra.mxu0 0
        %1961 = vmatprep.subr.bf16.mxu0 0
        %1962 = vmatpush1.bf16.msra.mxu0 0
        %1963 = vmatprep.subr.bf16.mxu0 0
        %1964 = vmatpush1.bf16.msra.mxu0 0
        %1965 = vmatprep.mubr.bf16.mxu0 0
        %1966 = vmatmul.mubr.bf16.gmra.mrb[0].mxu0 %v1845
        %v1967 = vpop.f32.mrb[0].mxu0
        %v1968 = vadd.f32 0.0, %v1967
        %v1969 = vpop.f32.mrb[0].mxu0
        %v1970 = vadd.f32 0.0, %v1969
        %v1971 = vpop.f32.mrb[0].mxu0
        %v1972 = vadd.f32 0.0, %v1971
        %v1973 = vpop.f32.mrb[0].mxu0
        %v1974 = vadd.f32 0.0, %v1973
        %1975 = vdwg.mxu0
        %1976 = vmatprep.subr.bf16.mxu0 %v1714
        %1977 = vmatpush1.bf16.msra.mxu0 %v1713
        %1978 = vmatprep.subr.bf16.mxu0 %v1724
        %1979 = vmatpush1.bf16.msra.mxu0 %v1723
        %1980 = vmatprep.subr.bf16.mxu0 0
        %1981 = vmatpush1.bf16.msra.mxu0 0
        %1982 = vmatprep.subr.bf16.mxu0 0
        %1983 = vmatpush1.bf16.msra.mxu0 0
        %1984 = vmatprep.subr.bf16.mxu0 0
        %1985 = vmatpush1.bf16.msra.mxu0 0
        %1986 = vmatprep.subr.bf16.mxu0 0
        %1987 = vmatpush1.bf16.msra.mxu0 0
        %1988 = vmatprep.subr.bf16.mxu0 0
        %1989 = vmatpush1.bf16.msra.mxu0 0
        %1990 = vmatprep.subr.bf16.mxu0 0
        %1991 = vmatpush1.bf16.msra.mxu0 0
        %1992 = vmatprep.subr.bf16.mxu0 0
        %1993 = vmatpush1.bf16.msra.mxu0 0
        %1994 = vmatprep.subr.bf16.mxu0 0
        %1995 = vmatpush1.bf16.msra.mxu0 0
        %1996 = vmatprep.subr.bf16.mxu0 0
        %1997 = vmatpush1.bf16.msra.mxu0 0
        %1998 = vmatprep.subr.bf16.mxu0 0
        %1999 = vmatpush1.bf16.msra.mxu0 0
        %2000 = vmatprep.subr.bf16.mxu0 0
        %2001 = vmatpush1.bf16.msra.mxu0 0
        %2002 = vmatprep.subr.bf16.mxu0 0
        %2003 = vmatpush1.bf16.msra.mxu0 0
        %2004 = vmatprep.subr.bf16.mxu0 0
        %2005 = vmatpush1.bf16.msra.mxu0 0
        %2006 = vmatprep.subr.bf16.mxu0 0
        %2007 = vmatpush1.bf16.msra.mxu0 0
        %2008 = vmatprep.mubr.bf16.mxu0 0
        %2009 = vmatmul.mubr.bf16.gmra.mrb[0].mxu0 %v1845
        %v2010 = vpop.f32.mrb[0].mxu0
        %v2011 = vadd.f32 0.0, %v2010
        %v2012 = vpop.f32.mrb[0].mxu0
        %v2013 = vadd.f32 0.0, %v2012
        %v2014 = vpop.f32.mrb[0].mxu0
        %v2015 = vadd.f32 0.0, %v2014
        %v2016 = vpop.f32.mrb[0].mxu0
        %v2017 = vadd.f32 0.0, %v2016
        %2018 = vdwg.mxu0
        %v2021 = vunpack.c.l.b16 %v1833
        %v2022 = vunpack.c.l.b16 %v1834
        %v2023 = vpack.c.b16 %v2022, %v2021
        %v2025 = vsel %vm1843, %v2023, 0
        %2027 = vmatprep.subr.bf16.mxu0 %v1117
        %2028 = vmatpush1.bf16.msra.mxu0 %v1116
        %2029 = vmatprep.subr.bf16.mxu0 %v1127
        %2030 = vmatpush1.bf16.msra.mxu0 %v1126
        %2031 = vmatprep.subr.bf16.mxu0 0
        %2032 = vmatpush1.bf16.msra.mxu0 0
        %2033 = vmatprep.subr.bf16.mxu0 0
        %2034 = vmatpush1.bf16.msra.mxu0 0
        %2035 = vmatprep.subr.bf16.mxu0 0
        %2036 = vmatpush1.bf16.msra.mxu0 0
        %2037 = vmatprep.subr.bf16.mxu0 0
        %2038 = vmatpush1.bf16.msra.mxu0 0
        %2039 = vmatprep.subr.bf16.mxu0 0
        %2040 = vmatpush1.bf16.msra.mxu0 0
        %2041 = vmatprep.subr.bf16.mxu0 0
        %2042 = vmatpush1.bf16.msra.mxu0 0
        %2043 = vmatprep.subr.bf16.mxu0 0
        %2044 = vmatpush1.bf16.msra.mxu0 0
        %2045 = vmatprep.subr.bf16.mxu0 0
        %2046 = vmatpush1.bf16.msra.mxu0 0
        %2047 = vmatprep.subr.bf16.mxu0 0
        %2048 = vmatpush1.bf16.msra.mxu0 0
        %2049 = vmatprep.subr.bf16.mxu0 0
        %2050 = vmatpush1.bf16.msra.mxu0 0
        %2051 = vmatprep.subr.bf16.mxu0 0
        %2052 = vmatpush1.bf16.msra.mxu0 0
        %2053 = vmatprep.subr.bf16.mxu0 0
        %2054 = vmatpush1.bf16.msra.mxu0 0
        %2055 = vmatprep.subr.bf16.mxu0 0
        %2056 = vmatpush1.bf16.msra.mxu0 0
        %2057 = vmatprep.subr.bf16.mxu0 0
        %2058 = vmatpush1.bf16.msra.mxu0 0
        %2059 = vmatprep.mubr.bf16.mxu0 0
        %2060 = vmatmul.mubr.bf16.gmra.mrb[0].mxu0 %v2025
        %v2061 = vpop.f32.mrb[0].mxu0
        %v2062 = vadd.f32 %v1882, %v2061
        %v2063 = vpop.f32.mrb[0].mxu0
        %v2064 = vadd.f32 %v1884, %v2063
        %v2065 = vpop.f32.mrb[0].mxu0
        %v2066 = vadd.f32 %v1886, %v2065
        %v2067 = vpop.f32.mrb[0].mxu0
        %v2068 = vadd.f32 %v1888, %v2067
        %2069 = vdwg.mxu0
        %2070 = vmatprep.subr.bf16.mxu0 %v1119
        %2071 = vmatpush1.bf16.msra.mxu0 %v1118
        %2072 = vmatprep.subr.bf16.mxu0 %v1129
        %2073 = vmatpush1.bf16.msra.mxu0 %v1128
        %2074 = vmatprep.subr.bf16.mxu0 0
        %2075 = vmatpush1.bf16.msra.mxu0 0
        %2076 = vmatprep.subr.bf16.mxu0 0
        %2077 = vmatpush1.bf16.msra.mxu0 0
        %2078 = vmatprep.subr.bf16.mxu0 0
        %2079 = vmatpush1.bf16.msra.mxu0 0
        %2080 = vmatprep.subr.bf16.mxu0 0
        %2081 = vmatpush1.bf16.msra.mxu0 0
        %2082 = vmatprep.subr.bf16.mxu0 0
        %2083 = vmatpush1.bf16.msra.mxu0 0
        %2084 = vmatprep.subr.bf16.mxu0 0
        %2085 = vmatpush1.bf16.msra.mxu0 0
        %2086 = vmatprep.subr.bf16.mxu0 0
        %2087 = vmatpush1.bf16.msra.mxu0 0
        %2088 = vmatprep.subr.bf16.mxu0 0
        %2089 = vmatpush1.bf16.msra.mxu0 0
        %2090 = vmatprep.subr.bf16.mxu0 0
        %2091 = vmatpush1.bf16.msra.mxu0 0
        %2092 = vmatprep.subr.bf16.mxu0 0
        %2093 = vmatpush1.bf16.msra.mxu0 0
        %2094 = vmatprep.subr.bf16.mxu0 0
        %2095 = vmatpush1.bf16.msra.mxu0 0
        %2096 = vmatprep.subr.bf16.mxu0 0
        %2097 = vmatpush1.bf16.msra.mxu0 0
        %2098 = vmatprep.subr.bf16.mxu0 0
        %2099 = vmatpush1.bf16.msra.mxu0 0
        %2100 = vmatprep.subr.bf16.mxu0 0
        %2101 = vmatpush1.bf16.msra.mxu0 0
        %2102 = vmatprep.mubr.bf16.mxu0 0
        %2103 = vmatmul.mubr.bf16.gmra.mrb[0].mxu0 %v2025
        %v2104 = vpop.f32.mrb[0].mxu0
        %v2105 = vadd.f32 %v1925, %v2104
        %v2106 = vpop.f32.mrb[0].mxu0
        %v2107 = vadd.f32 %v1927, %v2106
        %v2108 = vpop.f32.mrb[0].mxu0
        %v2109 = vadd.f32 %v1929, %v2108
        %v2110 = vpop.f32.mrb[0].mxu0
        %v2111 = vadd.f32 %v1931, %v2110
        %2112 = vdwg.mxu0
        %2113 = vmatprep.subr.bf16.mxu0 %v1121
        %2114 = vmatpush1.bf16.msra.mxu0 %v1120
        %2115 = vmatprep.subr.bf16.mxu0 %v1131
        %2116 = vmatpush1.bf16.msra.mxu0 %v1130
        %2117 = vmatprep.subr.bf16.mxu0 0
        %2118 = vmatpush1.bf16.msra.mxu0 0
        %2119 = vmatprep.subr.bf16.mxu0 0
        %2120 = vmatpush1.bf16.msra.mxu0 0
        %2121 = vmatprep.subr.bf16.mxu0 0
        %2122 = vmatpush1.bf16.msra.mxu0 0
        %2123 = vmatprep.subr.bf16.mxu0 0
        %2124 = vmatpush1.bf16.msra.mxu0 0
        %2125 = vmatprep.subr.bf16.mxu0 0
        %2126 = vmatpush1.bf16.msra.mxu0 0
        %2127 = vmatprep.subr.bf16.mxu0 0
        %2128 = vmatpush1.bf16.msra.mxu0 0
        %2129 = vmatprep.subr.bf16.mxu0 0
        %2130 = vmatpush1.bf16.msra.mxu0 0
        %2131 = vmatprep.subr.bf16.mxu0 0
        %2132 = vmatpush1.bf16.msra.mxu0 0
        %2133 = vmatprep.subr.bf16.mxu0 0
        %2134 = vmatpush1.bf16.msra.mxu0 0
        %2135 = vmatprep.subr.bf16.mxu0 0
        %2136 = vmatpush1.bf16.msra.mxu0 0
        %2137 = vmatprep.subr.bf16.mxu0 0
        %2138 = vmatpush1.bf16.msra.mxu0 0
        %2139 = vmatprep.subr.bf16.mxu0 0
        %2140 = vmatpush1.bf16.msra.mxu0 0
        %2141 = vmatprep.subr.bf16.mxu0 0
        %2142 = vmatpush1.bf16.msra.mxu0 0
        %2143 = vmatprep.subr.bf16.mxu0 0
        %2144 = vmatpush1.bf16.msra.mxu0 0
        %2145 = vmatprep.mubr.bf16.mxu0 0
        %2146 = vmatmul.mubr.bf16.gmra.mrb[0].mxu0 %v2025
        %v2147 = vpop.f32.mrb[0].mxu0
        %v2148 = vadd.f32 %v1968, %v2147
        %v2149 = vpop.f32.mrb[0].mxu0
        %v2150 = vadd.f32 %v1970, %v2149
        %v2151 = vpop.f32.mrb[0].mxu0
        %v2152 = vadd.f32 %v1972, %v2151
        %v2153 = vpop.f32.mrb[0].mxu0
        %v2154 = vadd.f32 %v1974, %v2153
        %2155 = vdwg.mxu0
        %2156 = vmatprep.subr.bf16.mxu0 %v1123
        %2157 = vmatpush1.bf16.msra.mxu0 %v1122
        %2158 = vmatprep.subr.bf16.mxu0 %v1133
        %2159 = vmatpush1.bf16.msra.mxu0 %v1132
        %2160 = vmatprep.subr.bf16.mxu0 0
        %2161 = vmatpush1.bf16.msra.mxu0 0
        %2162 = vmatprep.subr.bf16.mxu0 0
        %2163 = vmatpush1.bf16.msra.mxu0 0
        %2164 = vmatprep.subr.bf16.mxu0 0
        %2165 = vmatpush1.bf16.msra.mxu0 0
        %2166 = vmatprep.subr.bf16.mxu0 0
        %2167 = vmatpush1.bf16.msra.mxu0 0
        %2168 = vmatprep.subr.bf16.mxu0 0
        %2169 = vmatpush1.bf16.msra.mxu0 0
        %2170 = vmatprep.subr.bf16.mxu0 0
        %2171 = vmatpush1.bf16.msra.mxu0 0
        %2172 = vmatprep.subr.bf16.mxu0 0
        %2173 = vmatpush1.bf16.msra.mxu0 0
        %2174 = vmatprep.subr.bf16.mxu0 0
        %2175 = vmatpush1.bf16.msra.mxu0 0
        %2176 = vmatprep.subr.bf16.mxu0 0
        %2177 = vmatpush1.bf16.msra.mxu0 0
        %2178 = vmatprep.subr.bf16.mxu0 0
        %2179 = vmatpush1.bf16.msra.mxu0 0
        %2180 = vmatprep.subr.bf16.mxu0 0
        %2181 = vmatpush1.bf16.msra.mxu0 0
        %2182 = vmatprep.subr.bf16.mxu0 0
        %2183 = vmatpush1.bf16.msra.mxu0 0
        %2184 = vmatprep.subr.bf16.mxu0 0
        %2185 = vmatpush1.bf16.msra.mxu0 0
        %2186 = vmatprep.subr.bf16.mxu0 0
        %2187 = vmatpush1.bf16.msra.mxu0 0
        %2188 = vmatprep.mubr.bf16.mxu0 0
        %2189 = vmatmul.mubr.bf16.gmra.mrb[0].mxu0 %v2025
        %v2190 = vpop.f32.mrb[0].mxu0
        %v2191 = vadd.f32 %v2011, %v2190
        %v2192 = vpop.f32.mrb[0].mxu0
        %v2193 = vadd.f32 %v2013, %v2192
        %v2194 = vpop.f32.mrb[0].mxu0
        %v2195 = vadd.f32 %v2015, %v2194
        %v2196 = vpop.f32.mrb[0].mxu0
        %v2197 = vadd.f32 %v2017, %v2196
        %2198 = vdwg.mxu0
        %s2199 = scalar_lea.vmem %s7, 32
        %v2200 = vld [vmem:[%s2199] sm:$0xf]
        %v2201 = vld [vmem:[%s2199 + $0x4] sm:$0xf]
        %v2204 = vunpack.c.l.b16 %v2200
        %v2205 = vunpack.c.l.b16 %v2201
        %v2206 = vpack.c.b16 %v2205, %v2204
        %v2208 = vsel %vm1843, %v2206, 0
        %2210 = vmatprep.subr.bf16.mxu0 %v1118
        %2211 = vmatpush1.bf16.msra.mxu0 %v1117
        %2212 = vmatprep.subr.bf16.mxu0 %v1128
        %2213 = vmatpush1.bf16.msra.mxu0 %v1127
        %2214 = vmatprep.subr.bf16.mxu0 0
        %2215 = vmatpush1.bf16.msra.mxu0 0
        %2216 = vmatprep.subr.bf16.mxu0 0
        %2217 = vmatpush1.bf16.msra.mxu0 0
        %2218 = vmatprep.subr.bf16.mxu0 0
        %2219 = vmatpush1.bf16.msra.mxu0 0
        %2220 = vmatprep.subr.bf16.mxu0 0
        %2221 = vmatpush1.bf16.msra.mxu0 0
        %2222 = vmatprep.subr.bf16.mxu0 0
        %2223 = vmatpush1.bf16.msra.mxu0 0
        %2224 = vmatprep.subr.bf16.mxu0 0
        %2225 = vmatpush1.bf16.msra.mxu0 0
        %2226 = vmatprep.subr.bf16.mxu0 0
        %2227 = vmatpush1.bf16.msra.mxu0 0
        %2228 = vmatprep.subr.bf16.mxu0 0
        %2229 = vmatpush1.bf16.msra.mxu0 0
        %2230 = vmatprep.subr.bf16.mxu0 0
        %2231 = vmatpush1.bf16.msra.mxu0 0
        %2232 = vmatprep.subr.bf16.mxu0 0
        %2233 = vmatpush1.bf16.msra.mxu0 0
        %2234 = vmatprep.subr.bf16.mxu0 0
        %2235 = vmatpush1.bf16.msra.mxu0 0
        %2236 = vmatprep.subr.bf16.mxu0 0
        %2237 = vmatpush1.bf16.msra.mxu0 0
        %2238 = vmatprep.subr.bf16.mxu0 0
        %2239 = vmatpush1.bf16.msra.mxu0 0
        %2240 = vmatprep.subr.bf16.mxu0 0
        %2241 = vmatpush1.bf16.msra.mxu0 0
        %2242 = vmatprep.mubr.bf16.mxu0 0
        %2243 = vmatmul.mubr.bf16.gmra.mrb[0].mxu0 %v2208
        %v2244 = vpop.f32.mrb[0].mxu0
        %v2245 = vadd.f32 0.0, %v2244
        %v2246 = vpop.f32.mrb[0].mxu0
        %v2247 = vadd.f32 0.0, %v2246
        %v2248 = vpop.f32.mrb[0].mxu0
        %v2249 = vadd.f32 0.0, %v2248
        %v2250 = vpop.f32.mrb[0].mxu0
        %v2251 = vadd.f32 0.0, %v2250
        %2252 = vdwg.mxu0
        %2253 = vmatprep.subr.bf16.mxu0 %v1120
        %2254 = vmatpush1.bf16.msra.mxu0 %v1119
        %2255 = vmatprep.subr.bf16.mxu0 %v1130
        %2256 = vmatpush1.bf16.msra.mxu0 %v1129
        %2257 = vmatprep.subr.bf16.mxu0 0
        %2258 = vmatpush1.bf16.msra.mxu0 0
        %2259 = vmatprep.subr.bf16.mxu0 0
        %2260 = vmatpush1.bf16.msra.mxu0 0
        %2261 = vmatprep.subr.bf16.mxu0 0
        %2262 = vmatpush1.bf16.msra.mxu0 0
        %2263 = vmatprep.subr.bf16.mxu0 0
        %2264 = vmatpush1.bf16.msra.mxu0 0
        %2265 = vmatprep.subr.bf16.mxu0 0
        %2266 = vmatpush1.bf16.msra.mxu0 0
        %2267 = vmatprep.subr.bf16.mxu0 0
        %2268 = vmatpush1.bf16.msra.mxu0 0
        %2269 = vmatprep.subr.bf16.mxu0 0
        %2270 = vmatpush1.bf16.msra.mxu0 0
        %2271 = vmatprep.subr.bf16.mxu0 0
        %2272 = vmatpush1.bf16.msra.mxu0 0
        %2273 = vmatprep.subr.bf16.mxu0 0
        %2274 = vmatpush1.bf16.msra.mxu0 0
        %2275 = vmatprep.subr.bf16.mxu0 0
        %2276 = vmatpush1.bf16.msra.mxu0 0
        %2277 = vmatprep.subr.bf16.mxu0 0
        %2278 = vmatpush1.bf16.msra.mxu0 0
        %2279 = vmatprep.subr.bf16.mxu0 0
        %2280 = vmatpush1.bf16.msra.mxu0 0
        %2281 = vmatprep.subr.bf16.mxu0 0
        %2282 = vmatpush1.bf16.msra.mxu0 0
        %2283 = vmatprep.subr.bf16.mxu0 0
        %2284 = vmatpush1.bf16.msra.mxu0 0
        %2285 = vmatprep.mubr.bf16.mxu0 0
        %2286 = vmatmul.mubr.bf16.gmra.mrb[0].mxu0 %v2208
        %v2287 = vpop.f32.mrb[0].mxu0
        %v2288 = vadd.f32 0.0, %v2287
        %v2289 = vpop.f32.mrb[0].mxu0
        %v2290 = vadd.f32 0.0, %v2289
        %v2291 = vpop.f32.mrb[0].mxu0
        %v2292 = vadd.f32 0.0, %v2291
        %v2293 = vpop.f32.mrb[0].mxu0
        %v2294 = vadd.f32 0.0, %v2293
        %2295 = vdwg.mxu0
        %2296 = vmatprep.subr.bf16.mxu0 %v1122
        %2297 = vmatpush1.bf16.msra.mxu0 %v1121
        %2298 = vmatprep.subr.bf16.mxu0 %v1132
        %2299 = vmatpush1.bf16.msra.mxu0 %v1131
        %2300 = vmatprep.subr.bf16.mxu0 0
        %2301 = vmatpush1.bf16.msra.mxu0 0
        %2302 = vmatprep.subr.bf16.mxu0 0
        %2303 = vmatpush1.bf16.msra.mxu0 0
        %2304 = vmatprep.subr.bf16.mxu0 0
        %2305 = vmatpush1.bf16.msra.mxu0 0
        %2306 = vmatprep.subr.bf16.mxu0 0
        %2307 = vmatpush1.bf16.msra.mxu0 0
        %2308 = vmatprep.subr.bf16.mxu0 0
        %2309 = vmatpush1.bf16.msra.mxu0 0
        %2310 = vmatprep.subr.bf16.mxu0 0
        %2311 = vmatpush1.bf16.msra.mxu0 0
        %2312 = vmatprep.subr.bf16.mxu0 0
        %2313 = vmatpush1.bf16.msra.mxu0 0
        %2314 = vmatprep.subr.bf16.mxu0 0
        %2315 = vmatpush1.bf16.msra.mxu0 0
        %2316 = vmatprep.subr.bf16.mxu0 0
        %2317 = vmatpush1.bf16.msra.mxu0 0
        %2318 = vmatprep.subr.bf16.mxu0 0
        %2319 = vmatpush1.bf16.msra.mxu0 0
        %2320 = vmatprep.subr.bf16.mxu0 0
        %2321 = vmatpush1.bf16.msra.mxu0 0
        %2322 = vmatprep.subr.bf16.mxu0 0
        %2323 = vmatpush1.bf16.msra.mxu0 0
        %2324 = vmatprep.subr.bf16.mxu0 0
        %2325 = vmatpush1.bf16.msra.mxu0 0
        %2326 = vmatprep.subr.bf16.mxu0 0
        %2327 = vmatpush1.bf16.msra.mxu0 0
        %2328 = vmatprep.mubr.bf16.mxu0 0
        %2329 = vmatmul.mubr.bf16.gmra.mrb[0].mxu0 %v2208
        %v2330 = vpop.f32.mrb[0].mxu0
        %v2331 = vadd.f32 0.0, %v2330
        %v2332 = vpop.f32.mrb[0].mxu0
        %v2333 = vadd.f32 0.0, %v2332
        %v2334 = vpop.f32.mrb[0].mxu0
        %v2335 = vadd.f32 0.0, %v2334
        %v2336 = vpop.f32.mrb[0].mxu0
        %v2337 = vadd.f32 0.0, %v2336
        %2338 = vdwg.mxu0
        %2339 = vmatprep.subr.bf16.mxu0 %v1124
        %2340 = vmatpush1.bf16.msra.mxu0 %v1123
        %2341 = vmatprep.subr.bf16.mxu0 %v1134
        %2342 = vmatpush1.bf16.msra.mxu0 %v1133
        %2343 = vmatprep.subr.bf16.mxu0 0
        %2344 = vmatpush1.bf16.msra.mxu0 0
        %2345 = vmatprep.subr.bf16.mxu0 0
        %2346 = vmatpush1.bf16.msra.mxu0 0
        %2347 = vmatprep.subr.bf16.mxu0 0
        %2348 = vmatpush1.bf16.msra.mxu0 0
        %2349 = vmatprep.subr.bf16.mxu0 0
        %2350 = vmatpush1.bf16.msra.mxu0 0
        %2351 = vmatprep.subr.bf16.mxu0 0
        %2352 = vmatpush1.bf16.msra.mxu0 0
        %2353 = vmatprep.subr.bf16.mxu0 0
        %2354 = vmatpush1.bf16.msra.mxu0 0
        %2355 = vmatprep.subr.bf16.mxu0 0
        %2356 = vmatpush1.bf16.msra.mxu0 0
        %2357 = vmatprep.subr.bf16.mxu0 0
        %2358 = vmatpush1.bf16.msra.mxu0 0
        %2359 = vmatprep.subr.bf16.mxu0 0
        %2360 = vmatpush1.bf16.msra.mxu0 0
        %2361 = vmatprep.subr.bf16.mxu0 0
        %2362 = vmatpush1.bf16.msra.mxu0 0
        %2363 = vmatprep.subr.bf16.mxu0 0
        %2364 = vmatpush1.bf16.msra.mxu0 0
        %2365 = vmatprep.subr.bf16.mxu0 0
        %2366 = vmatpush1.bf16.msra.mxu0 0
        %2367 = vmatprep.subr.bf16.mxu0 0
        %2368 = vmatpush1.bf16.msra.mxu0 0
        %2369 = vmatprep.subr.bf16.mxu0 0
        %2370 = vmatpush1.bf16.msra.mxu0 0
        %2371 = vmatprep.mubr.bf16.mxu0 0
        %2372 = vmatmul.mubr.bf16.gmra.mrb[0].mxu0 %v2208
        %v2373 = vpop.f32.mrb[0].mxu0
        %v2374 = vadd.f32 0.0, %v2373
        %v2375 = vpop.f32.mrb[0].mxu0
        %v2376 = vadd.f32 0.0, %v2375
        %v2377 = vpop.f32.mrb[0].mxu0
        %v2378 = vadd.f32 0.0, %v2377
        %v2379 = vpop.f32.mrb[0].mxu0
        %v2380 = vadd.f32 0.0, %v2379
        %2381 = vdwg.mxu0
        %v2382 = vadd.f32 %v2062, %v2245
        %v2383 = vadd.f32 %v2064, %v2247
        %v2384 = vadd.f32 %v2105, %v2288
        %v2385 = vadd.f32 %v2107, %v2290
        %v2386 = vadd.f32 %v2148, %v2331
        %v2387 = vadd.f32 %v2150, %v2333
        %v2388 = vadd.f32 %v2191, %v2374
        %v2389 = vadd.f32 %v2193, %v2376
        %v2390 = vadd.f32 %v2066, %v2249
        %v2391 = vadd.f32 %v2068, %v2251
        %v2392 = vadd.f32 %v2109, %v2292
        %v2393 = vadd.f32 %v2111, %v2294
        %v2394 = vadd.f32 %v2152, %v2335
        %v2395 = vadd.f32 %v2154, %v2337
        %v2396 = vadd.f32 %v2195, %v2378
        %v2397 = vadd.f32 %v2197, %v2380
        %s2398 = scalar_lea.vmem %s8, 32
        %v2399 = vld [vmem:[%s2398] sm:$0xf]
        %v2400 = vld [vmem:[%s2398 + $0x4] sm:$0xf]
        %v2403 = vunpack.c.l.b16 %v2399
        %v2404 = vunpack.c.l.b16 %v2400
        %v2405 = vpack.c.b16 %v2404, %v2403
        %v2407 = vsel %vm1843, %v2405, 0
        %2409 = vmatprep.subr.bf16.mxu0 %v1709
        %2410 = vmatpush1.bf16.msra.mxu0 %v1708
        %2411 = vmatprep.subr.bf16.mxu0 %v1719
        %2412 = vmatpush1.bf16.msra.mxu0 %v1718
        %2413 = vmatprep.subr.bf16.mxu0 0
        %2414 = vmatpush1.bf16.msra.mxu0 0
        %2415 = vmatprep.subr.bf16.mxu0 0
        %2416 = vmatpush1.bf16.msra.mxu0 0
        %2417 = vmatprep.subr.bf16.mxu0 0
        %2418 = vmatpush1.bf16.msra.mxu0 0
        %2419 = vmatprep.subr.bf16.mxu0 0
        %2420 = vmatpush1.bf16.msra.mxu0 0
        %2421 = vmatprep.subr.bf16.mxu0 0
        %2422 = vmatpush1.bf16.msra.mxu0 0
        %2423 = vmatprep.subr.bf16.mxu0 0
        %2424 = vmatpush1.bf16.msra.mxu0 0
        %2425 = vmatprep.subr.bf16.mxu0 0
        %2426 = vmatpush1.bf16.msra.mxu0 0
        %2427 = vmatprep.subr.bf16.mxu0 0
        %2428 = vmatpush1.bf16.msra.mxu0 0
        %2429 = vmatprep.subr.bf16.mxu0 0
        %2430 = vmatpush1.bf16.msra.mxu0 0
        %2431 = vmatprep.subr.bf16.mxu0 0
        %2432 = vmatpush1.bf16.msra.mxu0 0
        %2433 = vmatprep.subr.bf16.mxu0 0
        %2434 = vmatpush1.bf16.msra.mxu0 0
        %2435 = vmatprep.subr.bf16.mxu0 0
        %2436 = vmatpush1.bf16.msra.mxu0 0
        %2437 = vmatprep.subr.bf16.mxu0 0
        %2438 = vmatpush1.bf16.msra.mxu0 0
        %2439 = vmatprep.subr.bf16.mxu0 0
        %2440 = vmatpush1.bf16.msra.mxu0 0
        %2441 = vmatprep.mubr.bf16.mxu0 0
        %2442 = vmatmul.mubr.bf16.gmra.mrb[0].mxu0 %v2407
        %v2443 = vpop.f32.mrb[0].mxu0
        %v2444 = vadd.f32 0.0, %v2443
        %v2445 = vpop.f32.mrb[0].mxu0
        %v2446 = vadd.f32 0.0, %v2445
        %v2447 = vpop.f32.mrb[0].mxu0
        %v2448 = vadd.f32 0.0, %v2447
        %v2449 = vpop.f32.mrb[0].mxu0
        %v2450 = vadd.f32 0.0, %v2449
        %2451 = vdwg.mxu0
        %2452 = vmatprep.subr.bf16.mxu0 %v1711
        %2453 = vmatpush1.bf16.msra.mxu0 %v1710
        %2454 = vmatprep.subr.bf16.mxu0 %v1721
        %2455 = vmatpush1.bf16.msra.mxu0 %v1720
        %2456 = vmatprep.subr.bf16.mxu0 0
        %2457 = vmatpush1.bf16.msra.mxu0 0
        %2458 = vmatprep.subr.bf16.mxu0 0
        %2459 = vmatpush1.bf16.msra.mxu0 0
        %2460 = vmatprep.subr.bf16.mxu0 0
        %2461 = vmatpush1.bf16.msra.mxu0 0
        %2462 = vmatprep.subr.bf16.mxu0 0
        %2463 = vmatpush1.bf16.msra.mxu0 0
        %2464 = vmatprep.subr.bf16.mxu0 0
        %2465 = vmatpush1.bf16.msra.mxu0 0
        %2466 = vmatprep.subr.bf16.mxu0 0
        %2467 = vmatpush1.bf16.msra.mxu0 0
        %2468 = vmatprep.subr.bf16.mxu0 0
        %2469 = vmatpush1.bf16.msra.mxu0 0
        %2470 = vmatprep.subr.bf16.mxu0 0
        %2471 = vmatpush1.bf16.msra.mxu0 0
        %2472 = vmatprep.subr.bf16.mxu0 0
        %2473 = vmatpush1.bf16.msra.mxu0 0
        %2474 = vmatprep.subr.bf16.mxu0 0
        %2475 = vmatpush1.bf16.msra.mxu0 0
        %2476 = vmatprep.subr.bf16.mxu0 0
        %2477 = vmatpush1.bf16.msra.mxu0 0
        %2478 = vmatprep.subr.bf16.mxu0 0
        %2479 = vmatpush1.bf16.msra.mxu0 0
        %2480 = vmatprep.subr.bf16.mxu0 0
        %2481 = vmatpush1.bf16.msra.mxu0 0
        %2482 = vmatprep.subr.bf16.mxu0 0
        %2483 = vmatpush1.bf16.msra.mxu0 0
        %2484 = vmatprep.mubr.bf16.mxu0 0
        %2485 = vmatmul.mubr.bf16.gmra.mrb[0].mxu0 %v2407
        %v2486 = vpop.f32.mrb[0].mxu0
        %v2487 = vadd.f32 0.0, %v2486
        %v2488 = vpop.f32.mrb[0].mxu0
        %v2489 = vadd.f32 0.0, %v2488
        %v2490 = vpop.f32.mrb[0].mxu0
        %v2491 = vadd.f32 0.0, %v2490
        %v2492 = vpop.f32.mrb[0].mxu0
        %v2493 = vadd.f32 0.0, %v2492
        %2494 = vdwg.mxu0
        %2495 = vmatprep.subr.bf16.mxu0 %v1713
        %2496 = vmatpush1.bf16.msra.mxu0 %v1712
        %2497 = vmatprep.subr.bf16.mxu0 %v1723
        %2498 = vmatpush1.bf16.msra.mxu0 %v1722
        %2499 = vmatprep.subr.bf16.mxu0 0
        %2500 = vmatpush1.bf16.msra.mxu0 0
        %2501 = vmatprep.subr.bf16.mxu0 0
        %2502 = vmatpush1.bf16.msra.mxu0 0
        %2503 = vmatprep.subr.bf16.mxu0 0
        %2504 = vmatpush1.bf16.msra.mxu0 0
        %2505 = vmatprep.subr.bf16.mxu0 0
        %2506 = vmatpush1.bf16.msra.mxu0 0
        %2507 = vmatprep.subr.bf16.mxu0 0
        %2508 = vmatpush1.bf16.msra.mxu0 0
        %2509 = vmatprep.subr.bf16.mxu0 0
        %2510 = vmatpush1.bf16.msra.mxu0 0
        %2511 = vmatprep.subr.bf16.mxu0 0
        %2512 = vmatpush1.bf16.msra.mxu0 0
        %2513 = vmatprep.subr.bf16.mxu0 0
        %2514 = vmatpush1.bf16.msra.mxu0 0
        %2515 = vmatprep.subr.bf16.mxu0 0
        %2516 = vmatpush1.bf16.msra.mxu0 0
        %2517 = vmatprep.subr.bf16.mxu0 0
        %2518 = vmatpush1.bf16.msra.mxu0 0
        %2519 = vmatprep.subr.bf16.mxu0 0
        %2520 = vmatpush1.bf16.msra.mxu0 0
        %2521 = vmatprep.subr.bf16.mxu0 0
        %2522 = vmatpush1.bf16.msra.mxu0 0
        %2523 = vmatprep.subr.bf16.mxu0 0
        %2524 = vmatpush1.bf16.msra.mxu0 0
        %2525 = vmatprep.subr.bf16.mxu0 0
        %2526 = vmatpush1.bf16.msra.mxu0 0
        %2527 = vmatprep.mubr.bf16.mxu0 0
        %2528 = vmatmul.mubr.bf16.gmra.mrb[0].mxu0 %v2407
        %v2529 = vpop.f32.mrb[0].mxu0
        %v2530 = vadd.f32 0.0, %v2529
        %v2531 = vpop.f32.mrb[0].mxu0
        %v2532 = vadd.f32 0.0, %v2531
        %v2533 = vpop.f32.mrb[0].mxu0
        %v2534 = vadd.f32 0.0, %v2533
        %v2535 = vpop.f32.mrb[0].mxu0
        %v2536 = vadd.f32 0.0, %v2535
        %2537 = vdwg.mxu0
        %2538 = vmatprep.subr.bf16.mxu0 %v1715
        %2539 = vmatpush1.bf16.msra.mxu0 %v1714
        %2540 = vmatprep.subr.bf16.mxu0 %v1725
        %2541 = vmatpush1.bf16.msra.mxu0 %v1724
        %2542 = vmatprep.subr.bf16.mxu0 0
        %2543 = vmatpush1.bf16.msra.mxu0 0
        %2544 = vmatprep.subr.bf16.mxu0 0
        %2545 = vmatpush1.bf16.msra.mxu0 0
        %2546 = vmatprep.subr.bf16.mxu0 0
        %2547 = vmatpush1.bf16.msra.mxu0 0
        %2548 = vmatprep.subr.bf16.mxu0 0
        %2549 = vmatpush1.bf16.msra.mxu0 0
        %2550 = vmatprep.subr.bf16.mxu0 0
        %2551 = vmatpush1.bf16.msra.mxu0 0
        %2552 = vmatprep.subr.bf16.mxu0 0
        %2553 = vmatpush1.bf16.msra.mxu0 0
        %2554 = vmatprep.subr.bf16.mxu0 0
        %2555 = vmatpush1.bf16.msra.mxu0 0
        %2556 = vmatprep.subr.bf16.mxu0 0
        %2557 = vmatpush1.bf16.msra.mxu0 0
        %2558 = vmatprep.subr.bf16.mxu0 0
        %2559 = vmatpush1.bf16.msra.mxu0 0
        %2560 = vmatprep.subr.bf16.mxu0 0
        %2561 = vmatpush1.bf16.msra.mxu0 0
        %2562 = vmatprep.subr.bf16.mxu0 0
        %2563 = vmatpush1.bf16.msra.mxu0 0
        %2564 = vmatprep.subr.bf16.mxu0 0
        %2565 = vmatpush1.bf16.msra.mxu0 0
        %2566 = vmatprep.subr.bf16.mxu0 0
        %2567 = vmatpush1.bf16.msra.mxu0 0
        %2568 = vmatprep.subr.bf16.mxu0 0
        %2569 = vmatpush1.bf16.msra.mxu0 0
        %2570 = vmatprep.mubr.bf16.mxu0 0
        %2571 = vmatmul.mubr.bf16.gmra.mrb[0].mxu0 %v2407
        %v2572 = vpop.f32.mrb[0].mxu0
        %v2573 = vadd.f32 0.0, %v2572
        %v2574 = vpop.f32.mrb[0].mxu0
        %v2575 = vadd.f32 0.0, %v2574
        %v2576 = vpop.f32.mrb[0].mxu0
        %v2577 = vadd.f32 0.0, %v2576
        %v2578 = vpop.f32.mrb[0].mxu0
        %v2579 = vadd.f32 0.0, %v2578
        %2580 = vdwg.mxu0
        %v2581 = vadd.f32 %v2382, %v2444
        %v2582 = vadd.f32 %v2383, %v2446
        %v2583 = vadd.f32 %v2384, %v2487
        %v2584 = vadd.f32 %v2385, %v2489
        %v2585 = vadd.f32 %v2386, %v2530
        %v2586 = vadd.f32 %v2387, %v2532
        %v2587 = vadd.f32 %v2388, %v2573
        %v2588 = vadd.f32 %v2389, %v2575
        %v2589 = vadd.f32 %v2390, %v2448
        %v2590 = vadd.f32 %v2391, %v2450
        %v2591 = vadd.f32 %v2392, %v2491
        %v2592 = vadd.f32 %v2393, %v2493
        %v2593 = vadd.f32 %v2394, %v2534
        %v2594 = vadd.f32 %v2395, %v2536
        %v2595 = vadd.f32 %v2396, %v2577
        %v2596 = vadd.f32 %v2397, %v2579
        %s2597 = scalar_lea.vmem %s7, 56
        %v2598 = vld [vmem:[%s2597] sm:$0xf]
        %v2599 = vld [vmem:[%s2597 + $0x4] sm:$0xf]
        %v2602 = vunpack.c.l.b16 %v2598
        %v2603 = vunpack.c.l.b16 %v2599
        %v2604 = vpack.c.b16 %v2603, %v2602
        %v2606 = vsel %vm1843, %v2604, 0
        %2608 = vmatprep.subr.bf16.mxu0 %v1119
        %2609 = vmatpush1.bf16.msra.mxu0 %v1118
        %2610 = vmatprep.subr.bf16.mxu0 %v1129
        %2611 = vmatpush1.bf16.msra.mxu0 %v1128
        %2612 = vmatprep.subr.bf16.mxu0 0
        %2613 = vmatpush1.bf16.msra.mxu0 0
        %2614 = vmatprep.subr.bf16.mxu0 0
        %2615 = vmatpush1.bf16.msra.mxu0 0
        %2616 = vmatprep.subr.bf16.mxu0 0
        %2617 = vmatpush1.bf16.msra.mxu0 0
        %2618 = vmatprep.subr.bf16.mxu0 0
        %2619 = vmatpush1.bf16.msra.mxu0 0
        %2620 = vmatprep.subr.bf16.mxu0 0
        %2621 = vmatpush1.bf16.msra.mxu0 0
        %2622 = vmatprep.subr.bf16.mxu0 0
        %2623 = vmatpush1.bf16.msra.mxu0 0
        %2624 = vmatprep.subr.bf16.mxu0 0
        %2625 = vmatpush1.bf16.msra.mxu0 0
        %2626 = vmatprep.subr.bf16.mxu0 0
        %2627 = vmatpush1.bf16.msra.mxu0 0
        %2628 = vmatprep.subr.bf16.mxu0 0
        %2629 = vmatpush1.bf16.msra.mxu0 0
        %2630 = vmatprep.subr.bf16.mxu0 0
        %2631 = vmatpush1.bf16.msra.mxu0 0
        %2632 = vmatprep.subr.bf16.mxu0 0
        %2633 = vmatpush1.bf16.msra.mxu0 0
        %2634 = vmatprep.subr.bf16.mxu0 0
        %2635 = vmatpush1.bf16.msra.mxu0 0
        %2636 = vmatprep.subr.bf16.mxu0 0
        %2637 = vmatpush1.bf16.msra.mxu0 0
        %2638 = vmatprep.subr.bf16.mxu0 0
        %2639 = vmatpush1.bf16.msra.mxu0 0
        %2640 = vmatprep.mubr.bf16.mxu0 0
        %2641 = vmatmul.mubr.bf16.gmra.mrb[0].mxu0 %v2606
        %v2642 = vpop.f32.mrb[0].mxu0
        %v2643 = vadd.f32 0.0, %v2642
        %v2644 = vpop.f32.mrb[0].mxu0
        %v2645 = vadd.f32 0.0, %v2644
        %v2646 = vpop.f32.mrb[0].mxu0
        %v2647 = vadd.f32 0.0, %v2646
        %v2648 = vpop.f32.mrb[0].mxu0
        %v2649 = vadd.f32 0.0, %v2648
        %2650 = vdwg.mxu0
        %2651 = vmatprep.subr.bf16.mxu0 %v1121
        %2652 = vmatpush1.bf16.msra.mxu0 %v1120
        %2653 = vmatprep.subr.bf16.mxu0 %v1131
        %2654 = vmatpush1.bf16.msra.mxu0 %v1130
        %2655 = vmatprep.subr.bf16.mxu0 0
        %2656 = vmatpush1.bf16.msra.mxu0 0
        %2657 = vmatprep.subr.bf16.mxu0 0
        %2658 = vmatpush1.bf16.msra.mxu0 0
        %2659 = vmatprep.subr.bf16.mxu0 0
        %2660 = vmatpush1.bf16.msra.mxu0 0
        %2661 = vmatprep.subr.bf16.mxu0 0
        %2662 = vmatpush1.bf16.msra.mxu0 0
        %2663 = vmatprep.subr.bf16.mxu0 0
        %2664 = vmatpush1.bf16.msra.mxu0 0
        %2665 = vmatprep.subr.bf16.mxu0 0
        %2666 = vmatpush1.bf16.msra.mxu0 0
        %2667 = vmatprep.subr.bf16.mxu0 0
        %2668 = vmatpush1.bf16.msra.mxu0 0
        %2669 = vmatprep.subr.bf16.mxu0 0
        %2670 = vmatpush1.bf16.msra.mxu0 0
        %2671 = vmatprep.subr.bf16.mxu0 0
        %2672 = vmatpush1.bf16.msra.mxu0 0
        %2673 = vmatprep.subr.bf16.mxu0 0
        %2674 = vmatpush1.bf16.msra.mxu0 0
        %2675 = vmatprep.subr.bf16.mxu0 0
        %2676 = vmatpush1.bf16.msra.mxu0 0
        %2677 = vmatprep.subr.bf16.mxu0 0
        %2678 = vmatpush1.bf16.msra.mxu0 0
        %2679 = vmatprep.subr.bf16.mxu0 0
        %2680 = vmatpush1.bf16.msra.mxu0 0
        %2681 = vmatprep.subr.bf16.mxu0 0
        %2682 = vmatpush1.bf16.msra.mxu0 0
        %2683 = vmatprep.mubr.bf16.mxu0 0
        %2684 = vmatmul.mubr.bf16.gmra.mrb[0].mxu0 %v2606
        %v2685 = vpop.f32.mrb[0].mxu0
        %v2686 = vadd.f32 0.0, %v2685
        %v2687 = vpop.f32.mrb[0].mxu0
        %v2688 = vadd.f32 0.0, %v2687
        %v2689 = vpop.f32.mrb[0].mxu0
        %v2690 = vadd.f32 0.0, %v2689
        %v2691 = vpop.f32.mrb[0].mxu0
        %v2692 = vadd.f32 0.0, %v2691
        %2693 = vdwg.mxu0
        %2694 = vmatprep.subr.bf16.mxu0 %v1123
        %2695 = vmatpush1.bf16.msra.mxu0 %v1122
        %2696 = vmatprep.subr.bf16.mxu0 %v1133
        %2697 = vmatpush1.bf16.msra.mxu0 %v1132
        %2698 = vmatprep.subr.bf16.mxu0 0
        %2699 = vmatpush1.bf16.msra.mxu0 0
        %2700 = vmatprep.subr.bf16.mxu0 0
        %2701 = vmatpush1.bf16.msra.mxu0 0
        %2702 = vmatprep.subr.bf16.mxu0 0
        %2703 = vmatpush1.bf16.msra.mxu0 0
        %2704 = vmatprep.subr.bf16.mxu0 0
        %2705 = vmatpush1.bf16.msra.mxu0 0
        %2706 = vmatprep.subr.bf16.mxu0 0
        %2707 = vmatpush1.bf16.msra.mxu0 0
        %2708 = vmatprep.subr.bf16.mxu0 0
        %2709 = vmatpush1.bf16.msra.mxu0 0
        %2710 = vmatprep.subr.bf16.mxu0 0
        %2711 = vmatpush1.bf16.msra.mxu0 0
        %2712 = vmatprep.subr.bf16.mxu0 0
        %2713 = vmatpush1.bf16.msra.mxu0 0
        %2714 = vmatprep.subr.bf16.mxu0 0
        %2715 = vmatpush1.bf16.msra.mxu0 0
        %2716 = vmatprep.subr.bf16.mxu0 0
        %2717 = vmatpush1.bf16.msra.mxu0 0
        %2718 = vmatprep.subr.bf16.mxu0 0
        %2719 = vmatpush1.bf16.msra.mxu0 0
        %2720 = vmatprep.subr.bf16.mxu0 0
        %2721 = vmatpush1.bf16.msra.mxu0 0
        %2722 = vmatprep.subr.bf16.mxu0 0
        %2723 = vmatpush1.bf16.msra.mxu0 0
        %2724 = vmatprep.subr.bf16.mxu0 0
        %2725 = vmatpush1.bf16.msra.mxu0 0
        %2726 = vmatprep.mubr.bf16.mxu0 0
        %2727 = vmatmul.mubr.bf16.gmra.mrb[0].mxu0 %v2606
        %v2728 = vpop.f32.mrb[0].mxu0
        %v2729 = vadd.f32 0.0, %v2728
        %v2730 = vpop.f32.mrb[0].mxu0
        %v2731 = vadd.f32 0.0, %v2730
        %v2732 = vpop.f32.mrb[0].mxu0
        %v2733 = vadd.f32 0.0, %v2732
        %v2734 = vpop.f32.mrb[0].mxu0
        %v2735 = vadd.f32 0.0, %v2734
        %2736 = vdwg.mxu0
        %2737 = vmatprep.subr.bf16.mxu0 %v1125
        %2738 = vmatpush1.bf16.msra.mxu0 %v1124
        %2739 = vmatprep.subr.bf16.mxu0 %v1135
        %2740 = vmatpush1.bf16.msra.mxu0 %v1134
        %2741 = vmatprep.subr.bf16.mxu0 0
        %2742 = vmatpush1.bf16.msra.mxu0 0
        %2743 = vmatprep.subr.bf16.mxu0 0
        %2744 = vmatpush1.bf16.msra.mxu0 0
        %2745 = vmatprep.subr.bf16.mxu0 0
        %2746 = vmatpush1.bf16.msra.mxu0 0
        %2747 = vmatprep.subr.bf16.mxu0 0
        %2748 = vmatpush1.bf16.msra.mxu0 0
        %2749 = vmatprep.subr.bf16.mxu0 0
        %2750 = vmatpush1.bf16.msra.mxu0 0
        %2751 = vmatprep.subr.bf16.mxu0 0
        %2752 = vmatpush1.bf16.msra.mxu0 0
        %2753 = vmatprep.subr.bf16.mxu0 0
        %2754 = vmatpush1.bf16.msra.mxu0 0
        %2755 = vmatprep.subr.bf16.mxu0 0
        %2756 = vmatpush1.bf16.msra.mxu0 0
        %2757 = vmatprep.subr.bf16.mxu0 0
        %2758 = vmatpush1.bf16.msra.mxu0 0
        %2759 = vmatprep.subr.bf16.mxu0 0
        %2760 = vmatpush1.bf16.msra.mxu0 0
        %2761 = vmatprep.subr.bf16.mxu0 0
        %2762 = vmatpush1.bf16.msra.mxu0 0
        %2763 = vmatprep.subr.bf16.mxu0 0
        %2764 = vmatpush1.bf16.msra.mxu0 0
        %2765 = vmatprep.subr.bf16.mxu0 0
        %2766 = vmatpush1.bf16.msra.mxu0 0
        %2767 = vmatprep.subr.bf16.mxu0 0
        %2768 = vmatpush1.bf16.msra.mxu0 0
        %2769 = vmatprep.mubr.bf16.mxu0 0
        %2770 = vmatmul.mubr.bf16.gmra.mrb[0].mxu0 %v2606
        %v2771 = vpop.f32.mrb[0].mxu0
        %v2772 = vadd.f32 0.0, %v2771
        %v2773 = vpop.f32.mrb[0].mxu0
        %v2774 = vadd.f32 0.0, %v2773
        %v2775 = vpop.f32.mrb[0].mxu0
        %v2776 = vadd.f32 0.0, %v2775
        %v2777 = vpop.f32.mrb[0].mxu0
        %v2778 = vadd.f32 0.0, %v2777
        %2779 = vdwg.mxu0
        %v2780 = vadd.f32 %v2581, %v2643
        %v2781 = vadd.f32 %v2582, %v2645
        %v2782 = vadd.f32 %v2583, %v2686
        %v2783 = vadd.f32 %v2584, %v2688
        %v2784 = vadd.f32 %v2585, %v2729
        %v2785 = vadd.f32 %v2586, %v2731
        %v2786 = vadd.f32 %v2587, %v2772
        %v2787 = vadd.f32 %v2588, %v2774
        %v2788 = vadd.f32 %v2589, %v2647
        %v2789 = vadd.f32 %v2590, %v2649
        %v2790 = vadd.f32 %v2591, %v2690
        %v2791 = vadd.f32 %v2592, %v2692
        %v2792 = vadd.f32 %v2593, %v2733
        %v2793 = vadd.f32 %v2594, %v2735
        %v2794 = vadd.f32 %v2595, %v2776
        %v2795 = vadd.f32 %v2596, %v2778
        %s2796 = scalar_lea.vmem %s8, 56
        %v2797 = vld [vmem:[%s2796] sm:$0xf]
        %v2798 = vld [vmem:[%s2796 + $0x4] sm:$0xf]
        %v2801 = vunpack.c.l.b16 %v2797
        %v2802 = vunpack.c.l.b16 %v2798
        %v2803 = vpack.c.b16 %v2802, %v2801
        %v2805 = vsel %vm1843, %v2803, 0
        %2807 = vmatprep.subr.bf16.mxu0 %v1710
        %2808 = vmatpush1.bf16.msra.mxu0 %v1709
        %2809 = vmatprep.subr.bf16.mxu0 %v1720
        %2810 = vmatpush1.bf16.msra.mxu0 %v1719
        %2811 = vmatprep.subr.bf16.mxu0 0
        %2812 = vmatpush1.bf16.msra.mxu0 0
        %2813 = vmatprep.subr.bf16.mxu0 0
        %2814 = vmatpush1.bf16.msra.mxu0 0
        %2815 = vmatprep.subr.bf16.mxu0 0
        %2816 = vmatpush1.bf16.msra.mxu0 0
        %2817 = vmatprep.subr.bf16.mxu0 0
        %2818 = vmatpush1.bf16.msra.mxu0 0
        %2819 = vmatprep.subr.bf16.mxu0 0
        %2820 = vmatpush1.bf16.msra.mxu0 0
        %2821 = vmatprep.subr.bf16.mxu0 0
        %2822 = vmatpush1.bf16.msra.mxu0 0
        %2823 = vmatprep.subr.bf16.mxu0 0
        %2824 = vmatpush1.bf16.msra.mxu0 0
        %2825 = vmatprep.subr.bf16.mxu0 0
        %2826 = vmatpush1.bf16.msra.mxu0 0
        %2827 = vmatprep.subr.bf16.mxu0 0
        %2828 = vmatpush1.bf16.msra.mxu0 0
        %2829 = vmatprep.subr.bf16.mxu0 0
        %2830 = vmatpush1.bf16.msra.mxu0 0
        %2831 = vmatprep.subr.bf16.mxu0 0
        %2832 = vmatpush1.bf16.msra.mxu0 0
        %2833 = vmatprep.subr.bf16.mxu0 0
        %2834 = vmatpush1.bf16.msra.mxu0 0
        %2835 = vmatprep.subr.bf16.mxu0 0
        %2836 = vmatpush1.bf16.msra.mxu0 0
        %2837 = vmatprep.subr.bf16.mxu0 0
        %2838 = vmatpush1.bf16.msra.mxu0 0
        %2839 = vmatprep.mubr.bf16.mxu0 0
        %2840 = vmatmul.mubr.bf16.gmra.mrb[0].mxu0 %v2805
        %v2841 = vpop.f32.mrb[0].mxu0
        %v2842 = vadd.f32 0.0, %v2841
        %v2843 = vpop.f32.mrb[0].mxu0
        %v2844 = vadd.f32 0.0, %v2843
        %v2845 = vpop.f32.mrb[0].mxu0
        %v2846 = vadd.f32 0.0, %v2845
        %v2847 = vpop.f32.mrb[0].mxu0
        %v2848 = vadd.f32 0.0, %v2847
        %2849 = vdwg.mxu0
        %2850 = vmatprep.subr.bf16.mxu0 %v1712
        %2851 = vmatpush1.bf16.msra.mxu0 %v1711
        %2852 = vmatprep.subr.bf16.mxu0 %v1722
        %2853 = vmatpush1.bf16.msra.mxu0 %v1721
        %2854 = vmatprep.subr.bf16.mxu0 0
        %2855 = vmatpush1.bf16.msra.mxu0 0
        %2856 = vmatprep.subr.bf16.mxu0 0
        %2857 = vmatpush1.bf16.msra.mxu0 0
        %2858 = vmatprep.subr.bf16.mxu0 0
        %2859 = vmatpush1.bf16.msra.mxu0 0
        %2860 = vmatprep.subr.bf16.mxu0 0
        %2861 = vmatpush1.bf16.msra.mxu0 0
        %2862 = vmatprep.subr.bf16.mxu0 0
        %2863 = vmatpush1.bf16.msra.mxu0 0
        %2864 = vmatprep.subr.bf16.mxu0 0
        %2865 = vmatpush1.bf16.msra.mxu0 0
        %2866 = vmatprep.subr.bf16.mxu0 0
        %2867 = vmatpush1.bf16.msra.mxu0 0
        %2868 = vmatprep.subr.bf16.mxu0 0
        %2869 = vmatpush1.bf16.msra.mxu0 0
        %2870 = vmatprep.subr.bf16.mxu0 0
        %2871 = vmatpush1.bf16.msra.mxu0 0
        %2872 = vmatprep.subr.bf16.mxu0 0
        %2873 = vmatpush1.bf16.msra.mxu0 0
        %2874 = vmatprep.subr.bf16.mxu0 0
        %2875 = vmatpush1.bf16.msra.mxu0 0
        %2876 = vmatprep.subr.bf16.mxu0 0
        %2877 = vmatpush1.bf16.msra.mxu0 0
        %2878 = vmatprep.subr.bf16.mxu0 0
        %2879 = vmatpush1.bf16.msra.mxu0 0
        %2880 = vmatprep.subr.bf16.mxu0 0
        %2881 = vmatpush1.bf16.msra.mxu0 0
        %2882 = vmatprep.mubr.bf16.mxu0 0
        %2883 = vmatmul.mubr.bf16.gmra.mrb[0].mxu0 %v2805
        %v2884 = vpop.f32.mrb[0].mxu0
        %v2885 = vadd.f32 0.0, %v2884
        %v2886 = vpop.f32.mrb[0].mxu0
        %v2887 = vadd.f32 0.0, %v2886
        %v2888 = vpop.f32.mrb[0].mxu0
        %v2889 = vadd.f32 0.0, %v2888
        %v2890 = vpop.f32.mrb[0].mxu0
        %v2891 = vadd.f32 0.0, %v2890
        %2892 = vdwg.mxu0
        %2893 = vmatprep.subr.bf16.mxu0 %v1714
        %2894 = vmatpush1.bf16.msra.mxu0 %v1713
        %2895 = vmatprep.subr.bf16.mxu0 %v1724
        %2896 = vmatpush1.bf16.msra.mxu0 %v1723
        %2897 = vmatprep.subr.bf16.mxu0 0
        %2898 = vmatpush1.bf16.msra.mxu0 0
        %2899 = vmatprep.subr.bf16.mxu0 0
        %2900 = vmatpush1.bf16.msra.mxu0 0
        %2901 = vmatprep.subr.bf16.mxu0 0
        %2902 = vmatpush1.bf16.msra.mxu0 0
        %2903 = vmatprep.subr.bf16.mxu0 0
        %2904 = vmatpush1.bf16.msra.mxu0 0
        %2905 = vmatprep.subr.bf16.mxu0 0
        %2906 = vmatpush1.bf16.msra.mxu0 0
        %2907 = vmatprep.subr.bf16.mxu0 0
        %2908 = vmatpush1.bf16.msra.mxu0 0
        %2909 = vmatprep.subr.bf16.mxu0 0
        %2910 = vmatpush1.bf16.msra.mxu0 0
        %2911 = vmatprep.subr.bf16.mxu0 0
        %2912 = vmatpush1.bf16.msra.mxu0 0
        %2913 = vmatprep.subr.bf16.mxu0 0
        %2914 = vmatpush1.bf16.msra.mxu0 0
        %2915 = vmatprep.subr.bf16.mxu0 0
        %2916 = vmatpush1.bf16.msra.mxu0 0
        %2917 = vmatprep.subr.bf16.mxu0 0
        %2918 = vmatpush1.bf16.msra.mxu0 0
        %2919 = vmatprep.subr.bf16.mxu0 0
        %2920 = vmatpush1.bf16.msra.mxu0 0
        %2921 = vmatprep.subr.bf16.mxu0 0
        %2922 = vmatpush1.bf16.msra.mxu0 0
        %2923 = vmatprep.subr.bf16.mxu0 0
        %2924 = vmatpush1.bf16.msra.mxu0 0
        %2925 = vmatprep.mubr.bf16.mxu0 0
        %2926 = vmatmul.mubr.bf16.gmra.mrb[0].mxu0 %v2805
        %v2927 = vpop.f32.mrb[0].mxu0
        %v2928 = vadd.f32 0.0, %v2927
        %v2929 = vpop.f32.mrb[0].mxu0
        %v2930 = vadd.f32 0.0, %v2929
        %v2931 = vpop.f32.mrb[0].mxu0
        %v2932 = vadd.f32 0.0, %v2931
        %v2933 = vpop.f32.mrb[0].mxu0
        %v2934 = vadd.f32 0.0, %v2933
        %2935 = vdwg.mxu0
        %2936 = vmatprep.subr.bf16.mxu0 %v1716
        %2937 = vmatpush1.bf16.msra.mxu0 %v1715
        %2938 = vmatprep.subr.bf16.mxu0 %v1726
        %2939 = vmatpush1.bf16.msra.mxu0 %v1725
        %2940 = vmatprep.subr.bf16.mxu0 0
        %2941 = vmatpush1.bf16.msra.mxu0 0
        %2942 = vmatprep.subr.bf16.mxu0 0
        %2943 = vmatpush1.bf16.msra.mxu0 0
        %2944 = vmatprep.subr.bf16.mxu0 0
        %2945 = vmatpush1.bf16.msra.mxu0 0
        %2946 = vmatprep.subr.bf16.mxu0 0
        %2947 = vmatpush1.bf16.msra.mxu0 0
        %2948 = vmatprep.subr.bf16.mxu0 0
        %2949 = vmatpush1.bf16.msra.mxu0 0
        %2950 = vmatprep.subr.bf16.mxu0 0
        %2951 = vmatpush1.bf16.msra.mxu0 0
        %2952 = vmatprep.subr.bf16.mxu0 0
        %2953 = vmatpush1.bf16.msra.mxu0 0
        %2954 = vmatprep.subr.bf16.mxu0 0
        %2955 = vmatpush1.bf16.msra.mxu0 0
        %2956 = vmatprep.subr.bf16.mxu0 0
        %2957 = vmatpush1.bf16.msra.mxu0 0
        %2958 = vmatprep.subr.bf16.mxu0 0
        %2959 = vmatpush1.bf16.msra.mxu0 0
        %2960 = vmatprep.subr.bf16.mxu0 0
        %2961 = vmatpush1.bf16.msra.mxu0 0
        %2962 = vmatprep.subr.bf16.mxu0 0
        %2963 = vmatpush1.bf16.msra.mxu0 0
        %2964 = vmatprep.subr.bf16.mxu0 0
        %2965 = vmatpush1.bf16.msra.mxu0 0
        %2966 = vmatprep.subr.bf16.mxu0 0
        %2967 = vmatpush1.bf16.msra.mxu0 0
        %2968 = vmatprep.mubr.bf16.mxu0 0
        %2969 = vmatmul.mubr.bf16.gmra.mrb[0].mxu0 %v2805
        %v2970 = vpop.f32.mrb[0].mxu0
        %v2971 = vadd.f32 0.0, %v2970
        %v2972 = vpop.f32.mrb[0].mxu0
        %v2973 = vadd.f32 0.0, %v2972
        %v2974 = vpop.f32.mrb[0].mxu0
        %v2975 = vadd.f32 0.0, %v2974
        %v2976 = vpop.f32.mrb[0].mxu0
        %v2977 = vadd.f32 0.0, %v2976
        %2978 = vdwg.mxu0
        %v2979 = vadd.f32 %v2780, %v2842
        %v2980 = vadd.f32 %v2781, %v2844
        %v2981 = vadd.f32 %v2782, %v2885
        %v2982 = vadd.f32 %v2783, %v2887
        %v2983 = vadd.f32 %v2784, %v2928
        %v2984 = vadd.f32 %v2785, %v2930
        %v2985 = vadd.f32 %v2786, %v2971
        %v2986 = vadd.f32 %v2787, %v2973
        %v2987 = vadd.f32 %v2788, %v2846
        %v2988 = vadd.f32 %v2789, %v2848
        %v2989 = vadd.f32 %v2790, %v2889
        %v2990 = vadd.f32 %v2791, %v2891
        %v2991 = vadd.f32 %v2792, %v2932
        %v2992 = vadd.f32 %v2793, %v2934
        %v2993 = vadd.f32 %v2794, %v2975
        %v2994 = vadd.f32 %v2795, %v2977
        %vm2995 = vcmp.gt.s32.totalorder %v1824, 0
        %vm2996 = vcmp.gt.s32.totalorder %v1825, 0
        %vm2997 = vcmp.gt.s32.totalorder %v1826, 0
        %vm2998 = vcmp.gt.s32.totalorder %v1827, 0
        %vm2999 = vcmp.gt.s32.totalorder %v1828, 0
        %vm3000 = vcmp.gt.s32.totalorder %v1829, 0
        %vm3001 = vcmp.gt.s32.totalorder %v1830, 0
        %vm3002 = vcmp.gt.s32.totalorder %v1831, 0
        %v3003 = vld [vmem:[%s7] sm:$0xf]
        %v3004 = vld [vmem:[%s7 + $0x4] sm:$0xf]
        %v3005 = vld [vmem:[%s8] sm:$0xf]
        %v3006 = vld [vmem:[%s8 + $0x4] sm:$0xf]
        %v3009 = vunpack.c.l.b16 %v3005
        %v3010 = vunpack.c.l.b16 %v3006
        %v3011 = vpack.c.b16 %v3010, %v3009
        %v3013 = vsel %vm1843, %v3011, 0
        %3015 = vmatprep.subr.bf16.mxu0 %v1708
        %3016 = vmatpush1.bf16.msra.mxu0 %v1707
        %3017 = vmatprep.subr.bf16.mxu0 %v1718
        %3018 = vmatpush1.bf16.msra.mxu0 %v1717
        %3019 = vmatprep.subr.bf16.mxu0 0
        %3020 = vmatpush1.bf16.msra.mxu0 0
        %3021 = vmatprep.subr.bf16.mxu0 0
        %3022 = vmatpush1.bf16.msra.mxu0 0
        %3023 = vmatprep.subr.bf16.mxu0 0
        %3024 = vmatpush1.bf16.msra.mxu0 0
        %3025 = vmatprep.subr.bf16.mxu0 0
        %3026 = vmatpush1.bf16.msra.mxu0 0
        %3027 = vmatprep.subr.bf16.mxu0 0
        %3028 = vmatpush1.bf16.msra.mxu0 0
        %3029 = vmatprep.subr.bf16.mxu0 0
        %3030 = vmatpush1.bf16.msra.mxu0 0
        %3031 = vmatprep.subr.bf16.mxu0 0
        %3032 = vmatpush1.bf16.msra.mxu0 0
        %3033 = vmatprep.subr.bf16.mxu0 0
        %3034 = vmatpush1.bf16.msra.mxu0 0
        %3035 = vmatprep.subr.bf16.mxu0 0
        %3036 = vmatpush1.bf16.msra.mxu0 0
        %3037 = vmatprep.subr.bf16.mxu0 0
        %3038 = vmatpush1.bf16.msra.mxu0 0
        %3039 = vmatprep.subr.bf16.mxu0 0
        %3040 = vmatpush1.bf16.msra.mxu0 0
        %3041 = vmatprep.subr.bf16.mxu0 0
        %3042 = vmatpush1.bf16.msra.mxu0 0
        %3043 = vmatprep.subr.bf16.mxu0 0
        %3044 = vmatpush1.bf16.msra.mxu0 0
        %3045 = vmatprep.subr.bf16.mxu0 0
        %3046 = vmatpush1.bf16.msra.mxu0 0
        %3047 = vmatprep.mubr.bf16.mxu0 0
        %3048 = vmatmul.mubr.bf16.gmra.mrb[0].mxu0 %v3013
        %v3049 = vpop.f32.mrb[0].mxu0
        %v3050 = vadd.f32 0.0, %v3049
        %v3051 = vpop.f32.mrb[0].mxu0
        %v3052 = vadd.f32 0.0, %v3051
        %v3053 = vpop.f32.mrb[0].mxu0
        %v3054 = vadd.f32 0.0, %v3053
        %v3055 = vpop.f32.mrb[0].mxu0
        %v3056 = vadd.f32 0.0, %v3055
        %3057 = vdwg.mxu0
        %3058 = vmatprep.subr.bf16.mxu0 %v1710
        %3059 = vmatpush1.bf16.msra.mxu0 %v1709
        %3060 = vmatprep.subr.bf16.mxu0 %v1720
        %3061 = vmatpush1.bf16.msra.mxu0 %v1719
        %3062 = vmatprep.subr.bf16.mxu0 0
        %3063 = vmatpush1.bf16.msra.mxu0 0
        %3064 = vmatprep.subr.bf16.mxu0 0
        %3065 = vmatpush1.bf16.msra.mxu0 0
        %3066 = vmatprep.subr.bf16.mxu0 0
        %3067 = vmatpush1.bf16.msra.mxu0 0
        %3068 = vmatprep.subr.bf16.mxu0 0
        %3069 = vmatpush1.bf16.msra.mxu0 0
        %3070 = vmatprep.subr.bf16.mxu0 0
        %3071 = vmatpush1.bf16.msra.mxu0 0
        %3072 = vmatprep.subr.bf16.mxu0 0
        %3073 = vmatpush1.bf16.msra.mxu0 0
        %3074 = vmatprep.subr.bf16.mxu0 0
        %3075 = vmatpush1.bf16.msra.mxu0 0
        %3076 = vmatprep.subr.bf16.mxu0 0
        %3077 = vmatpush1.bf16.msra.mxu0 0
        %3078 = vmatprep.subr.bf16.mxu0 0
        %3079 = vmatpush1.bf16.msra.mxu0 0
        %3080 = vmatprep.subr.bf16.mxu0 0
        %3081 = vmatpush1.bf16.msra.mxu0 0
        %3082 = vmatprep.subr.bf16.mxu0 0
        %3083 = vmatpush1.bf16.msra.mxu0 0
        %3084 = vmatprep.subr.bf16.mxu0 0
        %3085 = vmatpush1.bf16.msra.mxu0 0
        %3086 = vmatprep.subr.bf16.mxu0 0
        %3087 = vmatpush1.bf16.msra.mxu0 0
        %3088 = vmatprep.subr.bf16.mxu0 0
        %3089 = vmatpush1.bf16.msra.mxu0 0
        %3090 = vmatprep.mubr.bf16.mxu0 0
        %3091 = vmatmul.mubr.bf16.gmra.mrb[0].mxu0 %v3013
        %v3092 = vpop.f32.mrb[0].mxu0
        %v3093 = vadd.f32 0.0, %v3092
        %v3094 = vpop.f32.mrb[0].mxu0
        %v3095 = vadd.f32 0.0, %v3094
        %v3096 = vpop.f32.mrb[0].mxu0
        %v3097 = vadd.f32 0.0, %v3096
        %v3098 = vpop.f32.mrb[0].mxu0
        %v3099 = vadd.f32 0.0, %v3098
        %3100 = vdwg.mxu0
        %3101 = vmatprep.subr.bf16.mxu0 %v1712
        %3102 = vmatpush1.bf16.msra.mxu0 %v1711
        %3103 = vmatprep.subr.bf16.mxu0 %v1722
        %3104 = vmatpush1.bf16.msra.mxu0 %v1721
        %3105 = vmatprep.subr.bf16.mxu0 0
        %3106 = vmatpush1.bf16.msra.mxu0 0
        %3107 = vmatprep.subr.bf16.mxu0 0
        %3108 = vmatpush1.bf16.msra.mxu0 0
        %3109 = vmatprep.subr.bf16.mxu0 0
        %3110 = vmatpush1.bf16.msra.mxu0 0
        %3111 = vmatprep.subr.bf16.mxu0 0
        %3112 = vmatpush1.bf16.msra.mxu0 0
        %3113 = vmatprep.subr.bf16.mxu0 0
        %3114 = vmatpush1.bf16.msra.mxu0 0
        %3115 = vmatprep.subr.bf16.mxu0 0
        %3116 = vmatpush1.bf16.msra.mxu0 0
        %3117 = vmatprep.subr.bf16.mxu0 0
        %3118 = vmatpush1.bf16.msra.mxu0 0
        %3119 = vmatprep.subr.bf16.mxu0 0
        %3120 = vmatpush1.bf16.msra.mxu0 0
        %3121 = vmatprep.subr.bf16.mxu0 0
        %3122 = vmatpush1.bf16.msra.mxu0 0
        %3123 = vmatprep.subr.bf16.mxu0 0
        %3124 = vmatpush1.bf16.msra.mxu0 0
        %3125 = vmatprep.subr.bf16.mxu0 0
        %3126 = vmatpush1.bf16.msra.mxu0 0
        %3127 = vmatprep.subr.bf16.mxu0 0
        %3128 = vmatpush1.bf16.msra.mxu0 0
        %3129 = vmatprep.subr.bf16.mxu0 0
        %3130 = vmatpush1.bf16.msra.mxu0 0
        %3131 = vmatprep.subr.bf16.mxu0 0
        %3132 = vmatpush1.bf16.msra.mxu0 0
        %3133 = vmatprep.mubr.bf16.mxu0 0
        %3134 = vmatmul.mubr.bf16.gmra.mrb[0].mxu0 %v3013
        %v3135 = vpop.f32.mrb[0].mxu0
        %v3136 = vadd.f32 0.0, %v3135
        %v3137 = vpop.f32.mrb[0].mxu0
        %v3138 = vadd.f32 0.0, %v3137
        %v3139 = vpop.f32.mrb[0].mxu0
        %v3140 = vadd.f32 0.0, %v3139
        %v3141 = vpop.f32.mrb[0].mxu0
        %v3142 = vadd.f32 0.0, %v3141
        %3143 = vdwg.mxu0
        %3144 = vmatprep.subr.bf16.mxu0 %v1714
        %3145 = vmatpush1.bf16.msra.mxu0 %v1713
        %3146 = vmatprep.subr.bf16.mxu0 %v1724
        %3147 = vmatpush1.bf16.msra.mxu0 %v1723
        %3148 = vmatprep.subr.bf16.mxu0 0
        %3149 = vmatpush1.bf16.msra.mxu0 0
        %3150 = vmatprep.subr.bf16.mxu0 0
        %3151 = vmatpush1.bf16.msra.mxu0 0
        %3152 = vmatprep.subr.bf16.mxu0 0
        %3153 = vmatpush1.bf16.msra.mxu0 0
        %3154 = vmatprep.subr.bf16.mxu0 0
        %3155 = vmatpush1.bf16.msra.mxu0 0
        %3156 = vmatprep.subr.bf16.mxu0 0
        %3157 = vmatpush1.bf16.msra.mxu0 0
        %3158 = vmatprep.subr.bf16.mxu0 0
        %3159 = vmatpush1.bf16.msra.mxu0 0
        %3160 = vmatprep.subr.bf16.mxu0 0
        %3161 = vmatpush1.bf16.msra.mxu0 0
        %3162 = vmatprep.subr.bf16.mxu0 0
        %3163 = vmatpush1.bf16.msra.mxu0 0
        %3164 = vmatprep.subr.bf16.mxu0 0
        %3165 = vmatpush1.bf16.msra.mxu0 0
        %3166 = vmatprep.subr.bf16.mxu0 0
        %3167 = vmatpush1.bf16.msra.mxu0 0
        %3168 = vmatprep.subr.bf16.mxu0 0
        %3169 = vmatpush1.bf16.msra.mxu0 0
        %3170 = vmatprep.subr.bf16.mxu0 0
        %3171 = vmatpush1.bf16.msra.mxu0 0
        %3172 = vmatprep.subr.bf16.mxu0 0
        %3173 = vmatpush1.bf16.msra.mxu0 0
        %3174 = vmatprep.subr.bf16.mxu0 0
        %3175 = vmatpush1.bf16.msra.mxu0 0
        %3176 = vmatprep.mubr.bf16.mxu0 0
        %3177 = vmatmul.mubr.bf16.gmra.mrb[0].mxu0 %v3013
        %v3178 = vpop.f32.mrb[0].mxu0
        %v3179 = vadd.f32 0.0, %v3178
        %v3180 = vpop.f32.mrb[0].mxu0
        %v3181 = vadd.f32 0.0, %v3180
        %v3182 = vpop.f32.mrb[0].mxu0
        %v3183 = vadd.f32 0.0, %v3182
        %v3184 = vpop.f32.mrb[0].mxu0
        %v3185 = vadd.f32 0.0, %v3184
        %3186 = vdwg.mxu0
        %v3189 = vunpack.c.l.b16 %v3003
        %v3190 = vunpack.c.l.b16 %v3004
        %v3191 = vpack.c.b16 %v3190, %v3189
        %v3193 = vsel %vm1843, %v3191, 0
        %3195 = vmatprep.subr.bf16.mxu0 %v1117
        %3196 = vmatpush1.bf16.msra.mxu0 %v1116
        %3197 = vmatprep.subr.bf16.mxu0 %v1127
        %3198 = vmatpush1.bf16.msra.mxu0 %v1126
        %3199 = vmatprep.subr.bf16.mxu0 0
        %3200 = vmatpush1.bf16.msra.mxu0 0
        %3201 = vmatprep.subr.bf16.mxu0 0
        %3202 = vmatpush1.bf16.msra.mxu0 0
        %3203 = vmatprep.subr.bf16.mxu0 0
        %3204 = vmatpush1.bf16.msra.mxu0 0
        %3205 = vmatprep.subr.bf16.mxu0 0
        %3206 = vmatpush1.bf16.msra.mxu0 0
        %3207 = vmatprep.subr.bf16.mxu0 0
        %3208 = vmatpush1.bf16.msra.mxu0 0
        %3209 = vmatprep.subr.bf16.mxu0 0
        %3210 = vmatpush1.bf16.msra.mxu0 0
        %3211 = vmatprep.subr.bf16.mxu0 0
        %3212 = vmatpush1.bf16.msra.mxu0 0
        %3213 = vmatprep.subr.bf16.mxu0 0
        %3214 = vmatpush1.bf16.msra.mxu0 0
        %3215 = vmatprep.subr.bf16.mxu0 0
        %3216 = vmatpush1.bf16.msra.mxu0 0
        %3217 = vmatprep.subr.bf16.mxu0 0
        %3218 = vmatpush1.bf16.msra.mxu0 0
        %3219 = vmatprep.subr.bf16.mxu0 0
        %3220 = vmatpush1.bf16.msra.mxu0 0
        %3221 = vmatprep.subr.bf16.mxu0 0
        %3222 = vmatpush1.bf16.msra.mxu0 0
        %3223 = vmatprep.subr.bf16.mxu0 0
        %3224 = vmatpush1.bf16.msra.mxu0 0
        %3225 = vmatprep.subr.bf16.mxu0 0
        %3226 = vmatpush1.bf16.msra.mxu0 0
        %3227 = vmatprep.mubr.bf16.mxu0 0
        %3228 = vmatmul.mubr.bf16.gmra.mrb[0].mxu0 %v3193
        %v3229 = vpop.f32.mrb[0].mxu0
        %v3230 = vadd.f32 %v3050, %v3229
        %v3231 = vpop.f32.mrb[0].mxu0
        %v3232 = vadd.f32 %v3052, %v3231
        %v3233 = vpop.f32.mrb[0].mxu0
        %v3234 = vadd.f32 %v3054, %v3233
        %v3235 = vpop.f32.mrb[0].mxu0
        %v3236 = vadd.f32 %v3056, %v3235
        %3237 = vdwg.mxu0
        %3238 = vmatprep.subr.bf16.mxu0 %v1119
        %3239 = vmatpush1.bf16.msra.mxu0 %v1118
        %3240 = vmatprep.subr.bf16.mxu0 %v1129
        %3241 = vmatpush1.bf16.msra.mxu0 %v1128
        %3242 = vmatprep.subr.bf16.mxu0 0
        %3243 = vmatpush1.bf16.msra.mxu0 0
        %3244 = vmatprep.subr.bf16.mxu0 0
        %3245 = vmatpush1.bf16.msra.mxu0 0
        %3246 = vmatprep.subr.bf16.mxu0 0
        %3247 = vmatpush1.bf16.msra.mxu0 0
        %3248 = vmatprep.subr.bf16.mxu0 0
        %3249 = vmatpush1.bf16.msra.mxu0 0
        %3250 = vmatprep.subr.bf16.mxu0 0
        %3251 = vmatpush1.bf16.msra.mxu0 0
        %3252 = vmatprep.subr.bf16.mxu0 0
        %3253 = vmatpush1.bf16.msra.mxu0 0
        %3254 = vmatprep.subr.bf16.mxu0 0
        %3255 = vmatpush1.bf16.msra.mxu0 0
        %3256 = vmatprep.subr.bf16.mxu0 0
        %3257 = vmatpush1.bf16.msra.mxu0 0
        %3258 = vmatprep.subr.bf16.mxu0 0
        %3259 = vmatpush1.bf16.msra.mxu0 0
        %3260 = vmatprep.subr.bf16.mxu0 0
        %3261 = vmatpush1.bf16.msra.mxu0 0
        %3262 = vmatprep.subr.bf16.mxu0 0
        %3263 = vmatpush1.bf16.msra.mxu0 0
        %3264 = vmatprep.subr.bf16.mxu0 0
        %3265 = vmatpush1.bf16.msra.mxu0 0
        %3266 = vmatprep.subr.bf16.mxu0 0
        %3267 = vmatpush1.bf16.msra.mxu0 0
        %3268 = vmatprep.subr.bf16.mxu0 0
        %3269 = vmatpush1.bf16.msra.mxu0 0
        %3270 = vmatprep.mubr.bf16.mxu0 0
        %3271 = vmatmul.mubr.bf16.gmra.mrb[0].mxu0 %v3193
        %v3272 = vpop.f32.mrb[0].mxu0
        %v3273 = vadd.f32 %v3093, %v3272
        %v3274 = vpop.f32.mrb[0].mxu0
        %v3275 = vadd.f32 %v3095, %v3274
        %v3276 = vpop.f32.mrb[0].mxu0
        %v3277 = vadd.f32 %v3097, %v3276
        %v3278 = vpop.f32.mrb[0].mxu0
        %v3279 = vadd.f32 %v3099, %v3278
        %3280 = vdwg.mxu0
        %3281 = vmatprep.subr.bf16.mxu0 %v1121
        %3282 = vmatpush1.bf16.msra.mxu0 %v1120
        %3283 = vmatprep.subr.bf16.mxu0 %v1131
        %3284 = vmatpush1.bf16.msra.mxu0 %v1130
        %3285 = vmatprep.subr.bf16.mxu0 0
        %3286 = vmatpush1.bf16.msra.mxu0 0
        %3287 = vmatprep.subr.bf16.mxu0 0
        %3288 = vmatpush1.bf16.msra.mxu0 0
        %3289 = vmatprep.subr.bf16.mxu0 0
        %3290 = vmatpush1.bf16.msra.mxu0 0
        %3291 = vmatprep.subr.bf16.mxu0 0
        %3292 = vmatpush1.bf16.msra.mxu0 0
        %3293 = vmatprep.subr.bf16.mxu0 0
        %3294 = vmatpush1.bf16.msra.mxu0 0
        %3295 = vmatprep.subr.bf16.mxu0 0
        %3296 = vmatpush1.bf16.msra.mxu0 0
        %3297 = vmatprep.subr.bf16.mxu0 0
        %3298 = vmatpush1.bf16.msra.mxu0 0
        %3299 = vmatprep.subr.bf16.mxu0 0
        %3300 = vmatpush1.bf16.msra.mxu0 0
        %3301 = vmatprep.subr.bf16.mxu0 0
        %3302 = vmatpush1.bf16.msra.mxu0 0
        %3303 = vmatprep.subr.bf16.mxu0 0
        %3304 = vmatpush1.bf16.msra.mxu0 0
        %3305 = vmatprep.subr.bf16.mxu0 0
        %3306 = vmatpush1.bf16.msra.mxu0 0
        %3307 = vmatprep.subr.bf16.mxu0 0
        %3308 = vmatpush1.bf16.msra.mxu0 0
        %3309 = vmatprep.subr.bf16.mxu0 0
        %3310 = vmatpush1.bf16.msra.mxu0 0
        %3311 = vmatprep.subr.bf16.mxu0 0
        %3312 = vmatpush1.bf16.msra.mxu0 0
        %3313 = vmatprep.mubr.bf16.mxu0 0
        %3314 = vmatmul.mubr.bf16.gmra.mrb[0].mxu0 %v3193
        %v3315 = vpop.f32.mrb[0].mxu0
        %v3316 = vadd.f32 %v3136, %v3315
        %v3317 = vpop.f32.mrb[0].mxu0
        %v3318 = vadd.f32 %v3138, %v3317
        %v3319 = vpop.f32.mrb[0].mxu0
        %v3320 = vadd.f32 %v3140, %v3319
        %v3321 = vpop.f32.mrb[0].mxu0
        %v3322 = vadd.f32 %v3142, %v3321
        %3323 = vdwg.mxu0
        %3324 = vmatprep.subr.bf16.mxu0 %v1123
        %3325 = vmatpush1.bf16.msra.mxu0 %v1122
        %3326 = vmatprep.subr.bf16.mxu0 %v1133
        %3327 = vmatpush1.bf16.msra.mxu0 %v1132
        %3328 = vmatprep.subr.bf16.mxu0 0
        %3329 = vmatpush1.bf16.msra.mxu0 0
        %3330 = vmatprep.subr.bf16.mxu0 0
        %3331 = vmatpush1.bf16.msra.mxu0 0
        %3332 = vmatprep.subr.bf16.mxu0 0
        %3333 = vmatpush1.bf16.msra.mxu0 0
        %3334 = vmatprep.subr.bf16.mxu0 0
        %3335 = vmatpush1.bf16.msra.mxu0 0
        %3336 = vmatprep.subr.bf16.mxu0 0
        %3337 = vmatpush1.bf16.msra.mxu0 0
        %3338 = vmatprep.subr.bf16.mxu0 0
        %3339 = vmatpush1.bf16.msra.mxu0 0
        %3340 = vmatprep.subr.bf16.mxu0 0
        %3341 = vmatpush1.bf16.msra.mxu0 0
        %3342 = vmatprep.subr.bf16.mxu0 0
        %3343 = vmatpush1.bf16.msra.mxu0 0
        %3344 = vmatprep.subr.bf16.mxu0 0
        %3345 = vmatpush1.bf16.msra.mxu0 0
        %3346 = vmatprep.subr.bf16.mxu0 0
        %3347 = vmatpush1.bf16.msra.mxu0 0
        %3348 = vmatprep.subr.bf16.mxu0 0
        %3349 = vmatpush1.bf16.msra.mxu0 0
        %3350 = vmatprep.subr.bf16.mxu0 0
        %3351 = vmatpush1.bf16.msra.mxu0 0
        %3352 = vmatprep.subr.bf16.mxu0 0
        %3353 = vmatpush1.bf16.msra.mxu0 0
        %3354 = vmatprep.subr.bf16.mxu0 0
        %3355 = vmatpush1.bf16.msra.mxu0 0
        %3356 = vmatprep.mubr.bf16.mxu0 0
        %3357 = vmatmul.mubr.bf16.gmra.mrb[0].mxu0 %v3193
        %v3358 = vpop.f32.mrb[0].mxu0
        %v3359 = vadd.f32 %v3179, %v3358
        %v3360 = vpop.f32.mrb[0].mxu0
        %v3361 = vadd.f32 %v3181, %v3360
        %v3362 = vpop.f32.mrb[0].mxu0
        %v3363 = vadd.f32 %v3183, %v3362
        %v3364 = vpop.f32.mrb[0].mxu0
        %v3365 = vadd.f32 %v3185, %v3364
        %3366 = vdwg.mxu0
        %s3367 = scalar_lea.vmem %s7, 24
        %v3368 = vld [vmem:[%s3367] sm:$0xf]
        %v3369 = vld [vmem:[%s3367 + $0x4] sm:$0xf]
        %v3372 = vunpack.c.l.b16 %v3368
        %v3373 = vunpack.c.l.b16 %v3369
        %v3374 = vpack.c.b16 %v3373, %v3372
        %v3376 = vsel %vm1843, %v3374, 0
        %3378 = vmatprep.subr.bf16.mxu0 %v1118
        %3379 = vmatpush1.bf16.msra.mxu0 %v1117
        %3380 = vmatprep.subr.bf16.mxu0 %v1128
        %3381 = vmatpush1.bf16.msra.mxu0 %v1127
        %3382 = vmatprep.subr.bf16.mxu0 0
        %3383 = vmatpush1.bf16.msra.mxu0 0
        %3384 = vmatprep.subr.bf16.mxu0 0
        %3385 = vmatpush1.bf16.msra.mxu0 0
        %3386 = vmatprep.subr.bf16.mxu0 0
        %3387 = vmatpush1.bf16.msra.mxu0 0
        %3388 = vmatprep.subr.bf16.mxu0 0
        %3389 = vmatpush1.bf16.msra.mxu0 0
        %3390 = vmatprep.subr.bf16.mxu0 0
        %3391 = vmatpush1.bf16.msra.mxu0 0
        %3392 = vmatprep.subr.bf16.mxu0 0
        %3393 = vmatpush1.bf16.msra.mxu0 0
        %3394 = vmatprep.subr.bf16.mxu0 0
        %3395 = vmatpush1.bf16.msra.mxu0 0
        %3396 = vmatprep.subr.bf16.mxu0 0
        %3397 = vmatpush1.bf16.msra.mxu0 0
        %3398 = vmatprep.subr.bf16.mxu0 0
        %3399 = vmatpush1.bf16.msra.mxu0 0
        %3400 = vmatprep.subr.bf16.mxu0 0
        %3401 = vmatpush1.bf16.msra.mxu0 0
        %3402 = vmatprep.subr.bf16.mxu0 0
        %3403 = vmatpush1.bf16.msra.mxu0 0
        %3404 = vmatprep.subr.bf16.mxu0 0
        %3405 = vmatpush1.bf16.msra.mxu0 0
        %3406 = vmatprep.subr.bf16.mxu0 0
        %3407 = vmatpush1.bf16.msra.mxu0 0
        %3408 = vmatprep.subr.bf16.mxu0 0
        %3409 = vmatpush1.bf16.msra.mxu0 0
        %3410 = vmatprep.mubr.bf16.mxu0 0
        %3411 = vmatmul.mubr.bf16.gmra.mrb[0].mxu0 %v3376
        %v3412 = vpop.f32.mrb[0].mxu0
        %v3413 = vadd.f32 0.0, %v3412
        %v3414 = vpop.f32.mrb[0].mxu0
        %v3415 = vadd.f32 0.0, %v3414
        %v3416 = vpop.f32.mrb[0].mxu0
        %v3417 = vadd.f32 0.0, %v3416
        %v3418 = vpop.f32.mrb[0].mxu0
        %v3419 = vadd.f32 0.0, %v3418
        %3420 = vdwg.mxu0
        %3421 = vmatprep.subr.bf16.mxu0 %v1120
        %3422 = vmatpush1.bf16.msra.mxu0 %v1119
        %3423 = vmatprep.subr.bf16.mxu0 %v1130
        %3424 = vmatpush1.bf16.msra.mxu0 %v1129
        %3425 = vmatprep.subr.bf16.mxu0 0
        %3426 = vmatpush1.bf16.msra.mxu0 0
        %3427 = vmatprep.subr.bf16.mxu0 0
        %3428 = vmatpush1.bf16.msra.mxu0 0
        %3429 = vmatprep.subr.bf16.mxu0 0
        %3430 = vmatpush1.bf16.msra.mxu0 0
        %3431 = vmatprep.subr.bf16.mxu0 0
        %3432 = vmatpush1.bf16.msra.mxu0 0
        %3433 = vmatprep.subr.bf16.mxu0 0
        %3434 = vmatpush1.bf16.msra.mxu0 0
        %3435 = vmatprep.subr.bf16.mxu0 0
        %3436 = vmatpush1.bf16.msra.mxu0 0
        %3437 = vmatprep.subr.bf16.mxu0 0
        %3438 = vmatpush1.bf16.msra.mxu0 0
        %3439 = vmatprep.subr.bf16.mxu0 0
        %3440 = vmatpush1.bf16.msra.mxu0 0
        %3441 = vmatprep.subr.bf16.mxu0 0
        %3442 = vmatpush1.bf16.msra.mxu0 0
        %3443 = vmatprep.subr.bf16.mxu0 0
        %3444 = vmatpush1.bf16.msra.mxu0 0
        %3445 = vmatprep.subr.bf16.mxu0 0
        %3446 = vmatpush1.bf16.msra.mxu0 0
        %3447 = vmatprep.subr.bf16.mxu0 0
        %3448 = vmatpush1.bf16.msra.mxu0 0
        %3449 = vmatprep.subr.bf16.mxu0 0
        %3450 = vmatpush1.bf16.msra.mxu0 0
        %3451 = vmatprep.subr.bf16.mxu0 0
        %3452 = vmatpush1.bf16.msra.mxu0 0
        %3453 = vmatprep.mubr.bf16.mxu0 0
        %3454 = vmatmul.mubr.bf16.gmra.mrb[0].mxu0 %v3376
        %v3455 = vpop.f32.mrb[0].mxu0
        %v3456 = vadd.f32 0.0, %v3455
        %v3457 = vpop.f32.mrb[0].mxu0
        %v3458 = vadd.f32 0.0, %v3457
        %v3459 = vpop.f32.mrb[0].mxu0
        %v3460 = vadd.f32 0.0, %v3459
        %v3461 = vpop.f32.mrb[0].mxu0
        %v3462 = vadd.f32 0.0, %v3461
        %3463 = vdwg.mxu0
        %3464 = vmatprep.subr.bf16.mxu0 %v1122
        %3465 = vmatpush1.bf16.msra.mxu0 %v1121
        %3466 = vmatprep.subr.bf16.mxu0 %v1132
        %3467 = vmatpush1.bf16.msra.mxu0 %v1131
        %3468 = vmatprep.subr.bf16.mxu0 0
        %3469 = vmatpush1.bf16.msra.mxu0 0
        %3470 = vmatprep.subr.bf16.mxu0 0
        %3471 = vmatpush1.bf16.msra.mxu0 0
        %3472 = vmatprep.subr.bf16.mxu0 0
        %3473 = vmatpush1.bf16.msra.mxu0 0
        %3474 = vmatprep.subr.bf16.mxu0 0
        %3475 = vmatpush1.bf16.msra.mxu0 0
        %3476 = vmatprep.subr.bf16.mxu0 0
        %3477 = vmatpush1.bf16.msra.mxu0 0
        %3478 = vmatprep.subr.bf16.mxu0 0
        %3479 = vmatpush1.bf16.msra.mxu0 0
        %3480 = vmatprep.subr.bf16.mxu0 0
        %3481 = vmatpush1.bf16.msra.mxu0 0
        %3482 = vmatprep.subr.bf16.mxu0 0
        %3483 = vmatpush1.bf16.msra.mxu0 0
        %3484 = vmatprep.subr.bf16.mxu0 0
        %3485 = vmatpush1.bf16.msra.mxu0 0
        %3486 = vmatprep.subr.bf16.mxu0 0
        %3487 = vmatpush1.bf16.msra.mxu0 0
        %3488 = vmatprep.subr.bf16.mxu0 0
        %3489 = vmatpush1.bf16.msra.mxu0 0
        %3490 = vmatprep.subr.bf16.mxu0 0
        %3491 = vmatpush1.bf16.msra.mxu0 0
        %3492 = vmatprep.subr.bf16.mxu0 0
        %3493 = vmatpush1.bf16.msra.mxu0 0
        %3494 = vmatprep.subr.bf16.mxu0 0
        %3495 = vmatpush1.bf16.msra.mxu0 0
        %3496 = vmatprep.mubr.bf16.mxu0 0
        %3497 = vmatmul.mubr.bf16.gmra.mrb[0].mxu0 %v3376
        %v3498 = vpop.f32.mrb[0].mxu0
        %v3499 = vadd.f32 0.0, %v3498
        %v3500 = vpop.f32.mrb[0].mxu0
        %v3501 = vadd.f32 0.0, %v3500
        %v3502 = vpop.f32.mrb[0].mxu0
        %v3503 = vadd.f32 0.0, %v3502
        %v3504 = vpop.f32.mrb[0].mxu0
        %v3505 = vadd.f32 0.0, %v3504
        %3506 = vdwg.mxu0
        %3507 = vmatprep.subr.bf16.mxu0 %v1124
        %3508 = vmatpush1.bf16.msra.mxu0 %v1123
        %3509 = vmatprep.subr.bf16.mxu0 %v1134
        %3510 = vmatpush1.bf16.msra.mxu0 %v1133
        %3511 = vmatprep.subr.bf16.mxu0 0
        %3512 = vmatpush1.bf16.msra.mxu0 0
        %3513 = vmatprep.subr.bf16.mxu0 0
        %3514 = vmatpush1.bf16.msra.mxu0 0
        %3515 = vmatprep.subr.bf16.mxu0 0
        %3516 = vmatpush1.bf16.msra.mxu0 0
        %3517 = vmatprep.subr.bf16.mxu0 0
        %3518 = vmatpush1.bf16.msra.mxu0 0
        %3519 = vmatprep.subr.bf16.mxu0 0
        %3520 = vmatpush1.bf16.msra.mxu0 0
        %3521 = vmatprep.subr.bf16.mxu0 0
        %3522 = vmatpush1.bf16.msra.mxu0 0
        %3523 = vmatprep.subr.bf16.mxu0 0
        %3524 = vmatpush1.bf16.msra.mxu0 0
        %3525 = vmatprep.subr.bf16.mxu0 0
        %3526 = vmatpush1.bf16.msra.mxu0 0
        %3527 = vmatprep.subr.bf16.mxu0 0
        %3528 = vmatpush1.bf16.msra.mxu0 0
        %3529 = vmatprep.subr.bf16.mxu0 0
        %3530 = vmatpush1.bf16.msra.mxu0 0
        %3531 = vmatprep.subr.bf16.mxu0 0
        %3532 = vmatpush1.bf16.msra.mxu0 0
        %3533 = vmatprep.subr.bf16.mxu0 0
        %3534 = vmatpush1.bf16.msra.mxu0 0
        %3535 = vmatprep.subr.bf16.mxu0 0
        %3536 = vmatpush1.bf16.msra.mxu0 0
        %3537 = vmatprep.subr.bf16.mxu0 0
        %3538 = vmatpush1.bf16.msra.mxu0 0
        %3539 = vmatprep.mubr.bf16.mxu0 0
        %3540 = vmatmul.mubr.bf16.gmra.mrb[0].mxu0 %v3376
        %v3541 = vpop.f32.mrb[0].mxu0
        %v3542 = vadd.f32 0.0, %v3541
        %v3543 = vpop.f32.mrb[0].mxu0
        %v3544 = vadd.f32 0.0, %v3543
        %v3545 = vpop.f32.mrb[0].mxu0
        %v3546 = vadd.f32 0.0, %v3545
        %v3547 = vpop.f32.mrb[0].mxu0
        %v3548 = vadd.f32 0.0, %v3547
        %3549 = vdwg.mxu0
        %v3550 = vadd.f32 %v3230, %v3413
        %v3551 = vadd.f32 %v3232, %v3415
        %v3552 = vadd.f32 %v3273, %v3456
        %v3553 = vadd.f32 %v3275, %v3458
        %v3554 = vadd.f32 %v3316, %v3499
        %v3555 = vadd.f32 %v3318, %v3501
        %v3556 = vadd.f32 %v3359, %v3542
        %v3557 = vadd.f32 %v3361, %v3544
        %v3558 = vadd.f32 %v3234, %v3417
        %v3559 = vadd.f32 %v3236, %v3419
        %v3560 = vadd.f32 %v3277, %v3460
        %v3561 = vadd.f32 %v3279, %v3462
        %v3562 = vadd.f32 %v3320, %v3503
        %v3563 = vadd.f32 %v3322, %v3505
        %v3564 = vadd.f32 %v3363, %v3546
        %v3565 = vadd.f32 %v3365, %v3548
        %s3566 = scalar_lea.vmem %s8, 24
        %v3567 = vld [vmem:[%s3566] sm:$0xf]
        %v3568 = vld [vmem:[%s3566 + $0x4] sm:$0xf]
        %v3571 = vunpack.c.l.b16 %v3567
        %v3572 = vunpack.c.l.b16 %v3568
        %v3573 = vpack.c.b16 %v3572, %v3571
        %v3575 = vsel %vm1843, %v3573, 0
        %3577 = vmatprep.subr.bf16.mxu0 %v1709
        %3578 = vmatpush1.bf16.msra.mxu0 %v1708
        %3579 = vmatprep.subr.bf16.mxu0 %v1719
        %3580 = vmatpush1.bf16.msra.mxu0 %v1718
        %3581 = vmatprep.subr.bf16.mxu0 0
        %3582 = vmatpush1.bf16.msra.mxu0 0
        %3583 = vmatprep.subr.bf16.mxu0 0
        %3584 = vmatpush1.bf16.msra.mxu0 0
        %3585 = vmatprep.subr.bf16.mxu0 0
        %3586 = vmatpush1.bf16.msra.mxu0 0
        %3587 = vmatprep.subr.bf16.mxu0 0
        %3588 = vmatpush1.bf16.msra.mxu0 0
        %3589 = vmatprep.subr.bf16.mxu0 0
        %3590 = vmatpush1.bf16.msra.mxu0 0
        %3591 = vmatprep.subr.bf16.mxu0 0
        %3592 = vmatpush1.bf16.msra.mxu0 0
        %3593 = vmatprep.subr.bf16.mxu0 0
        %3594 = vmatpush1.bf16.msra.mxu0 0
        %3595 = vmatprep.subr.bf16.mxu0 0
        %3596 = vmatpush1.bf16.msra.mxu0 0
        %3597 = vmatprep.subr.bf16.mxu0 0
        %3598 = vmatpush1.bf16.msra.mxu0 0
        %3599 = vmatprep.subr.bf16.mxu0 0
        %3600 = vmatpush1.bf16.msra.mxu0 0
        %3601 = vmatprep.subr.bf16.mxu0 0
        %3602 = vmatpush1.bf16.msra.mxu0 0
        %3603 = vmatprep.subr.bf16.mxu0 0
        %3604 = vmatpush1.bf16.msra.mxu0 0
        %3605 = vmatprep.subr.bf16.mxu0 0
        %3606 = vmatpush1.bf16.msra.mxu0 0
        %3607 = vmatprep.subr.bf16.mxu0 0
        %3608 = vmatpush1.bf16.msra.mxu0 0
        %3609 = vmatprep.mubr.bf16.mxu0 0
        %3610 = vmatmul.mubr.bf16.gmra.mrb[0].mxu0 %v3575
        %v3611 = vpop.f32.mrb[0].mxu0
        %v3612 = vadd.f32 0.0, %v3611
        %v3613 = vpop.f32.mrb[0].mxu0
        %v3614 = vadd.f32 0.0, %v3613
        %v3615 = vpop.f32.mrb[0].mxu0
        %v3616 = vadd.f32 0.0, %v3615
        %v3617 = vpop.f32.mrb[0].mxu0
        %v3618 = vadd.f32 0.0, %v3617
        %3619 = vdwg.mxu0
        %3620 = vmatprep.subr.bf16.mxu0 %v1711
        %3621 = vmatpush1.bf16.msra.mxu0 %v1710
        %3622 = vmatprep.subr.bf16.mxu0 %v1721
        %3623 = vmatpush1.bf16.msra.mxu0 %v1720
        %3624 = vmatprep.subr.bf16.mxu0 0
        %3625 = vmatpush1.bf16.msra.mxu0 0
        %3626 = vmatprep.subr.bf16.mxu0 0
        %3627 = vmatpush1.bf16.msra.mxu0 0
        %3628 = vmatprep.subr.bf16.mxu0 0
        %3629 = vmatpush1.bf16.msra.mxu0 0
        %3630 = vmatprep.subr.bf16.mxu0 0
        %3631 = vmatpush1.bf16.msra.mxu0 0
        %3632 = vmatprep.subr.bf16.mxu0 0
        %3633 = vmatpush1.bf16.msra.mxu0 0
        %3634 = vmatprep.subr.bf16.mxu0 0
        %3635 = vmatpush1.bf16.msra.mxu0 0
        %3636 = vmatprep.subr.bf16.mxu0 0
        %3637 = vmatpush1.bf16.msra.mxu0 0
        %3638 = vmatprep.subr.bf16.mxu0 0
        %3639 = vmatpush1.bf16.msra.mxu0 0
        %3640 = vmatprep.subr.bf16.mxu0 0
        %3641 = vmatpush1.bf16.msra.mxu0 0
        %3642 = vmatprep.subr.bf16.mxu0 0
        %3643 = vmatpush1.bf16.msra.mxu0 0
        %3644 = vmatprep.subr.bf16.mxu0 0
        %3645 = vmatpush1.bf16.msra.mxu0 0
        %3646 = vmatprep.subr.bf16.mxu0 0
        %3647 = vmatpush1.bf16.msra.mxu0 0
        %3648 = vmatprep.subr.bf16.mxu0 0
        %3649 = vmatpush1.bf16.msra.mxu0 0
        %3650 = vmatprep.subr.bf16.mxu0 0
        %3651 = vmatpush1.bf16.msra.mxu0 0
        %3652 = vmatprep.mubr.bf16.mxu0 0
        %3653 = vmatmul.mubr.bf16.gmra.mrb[0].mxu0 %v3575
        %v3654 = vpop.f32.mrb[0].mxu0
        %v3655 = vadd.f32 0.0, %v3654
        %v3656 = vpop.f32.mrb[0].mxu0
        %v3657 = vadd.f32 0.0, %v3656
        %v3658 = vpop.f32.mrb[0].mxu0
        %v3659 = vadd.f32 0.0, %v3658
        %v3660 = vpop.f32.mrb[0].mxu0
        %v3661 = vadd.f32 0.0, %v3660
        %3662 = vdwg.mxu0
        %3663 = vmatprep.subr.bf16.mxu0 %v1713
        %3664 = vmatpush1.bf16.msra.mxu0 %v1712
        %3665 = vmatprep.subr.bf16.mxu0 %v1723
        %3666 = vmatpush1.bf16.msra.mxu0 %v1722
        %3667 = vmatprep.subr.bf16.mxu0 0
        %3668 = vmatpush1.bf16.msra.mxu0 0
        %3669 = vmatprep.subr.bf16.mxu0 0
        %3670 = vmatpush1.bf16.msra.mxu0 0
        %3671 = vmatprep.subr.bf16.mxu0 0
        %3672 = vmatpush1.bf16.msra.mxu0 0
        %3673 = vmatprep.subr.bf16.mxu0 0
        %3674 = vmatpush1.bf16.msra.mxu0 0
        %3675 = vmatprep.subr.bf16.mxu0 0
        %3676 = vmatpush1.bf16.msra.mxu0 0
        %3677 = vmatprep.subr.bf16.mxu0 0
        %3678 = vmatpush1.bf16.msra.mxu0 0
        %3679 = vmatprep.subr.bf16.mxu0 0
        %3680 = vmatpush1.bf16.msra.mxu0 0
        %3681 = vmatprep.subr.bf16.mxu0 0
        %3682 = vmatpush1.bf16.msra.mxu0 0
        %3683 = vmatprep.subr.bf16.mxu0 0
        %3684 = vmatpush1.bf16.msra.mxu0 0
        %3685 = vmatprep.subr.bf16.mxu0 0
        %3686 = vmatpush1.bf16.msra.mxu0 0
        %3687 = vmatprep.subr.bf16.mxu0 0
        %3688 = vmatpush1.bf16.msra.mxu0 0
        %3689 = vmatprep.subr.bf16.mxu0 0
        %3690 = vmatpush1.bf16.msra.mxu0 0
        %3691 = vmatprep.subr.bf16.mxu0 0
        %3692 = vmatpush1.bf16.msra.mxu0 0
        %3693 = vmatprep.subr.bf16.mxu0 0
        %3694 = vmatpush1.bf16.msra.mxu0 0
        %3695 = vmatprep.mubr.bf16.mxu0 0
        %3696 = vmatmul.mubr.bf16.gmra.mrb[0].mxu0 %v3575
        %v3697 = vpop.f32.mrb[0].mxu0
        %v3698 = vadd.f32 0.0, %v3697
        %v3699 = vpop.f32.mrb[0].mxu0
        %v3700 = vadd.f32 0.0, %v3699
        %v3701 = vpop.f32.mrb[0].mxu0
        %v3702 = vadd.f32 0.0, %v3701
        %v3703 = vpop.f32.mrb[0].mxu0
        %v3704 = vadd.f32 0.0, %v3703
        %3705 = vdwg.mxu0
        %3706 = vmatprep.subr.bf16.mxu0 %v1715
        %3707 = vmatpush1.bf16.msra.mxu0 %v1714
        %3708 = vmatprep.subr.bf16.mxu0 %v1725
        %3709 = vmatpush1.bf16.msra.mxu0 %v1724
        %3710 = vmatprep.subr.bf16.mxu0 0
        %3711 = vmatpush1.bf16.msra.mxu0 0
        %3712 = vmatprep.subr.bf16.mxu0 0
        %3713 = vmatpush1.bf16.msra.mxu0 0
        %3714 = vmatprep.subr.bf16.mxu0 0
        %3715 = vmatpush1.bf16.msra.mxu0 0
        %3716 = vmatprep.subr.bf16.mxu0 0
        %3717 = vmatpush1.bf16.msra.mxu0 0
        %3718 = vmatprep.subr.bf16.mxu0 0
        %3719 = vmatpush1.bf16.msra.mxu0 0
        %3720 = vmatprep.subr.bf16.mxu0 0
        %3721 = vmatpush1.bf16.msra.mxu0 0
        %3722 = vmatprep.subr.bf16.mxu0 0
        %3723 = vmatpush1.bf16.msra.mxu0 0
        %3724 = vmatprep.subr.bf16.mxu0 0
        %3725 = vmatpush1.bf16.msra.mxu0 0
        %3726 = vmatprep.subr.bf16.mxu0 0
        %3727 = vmatpush1.bf16.msra.mxu0 0
        %3728 = vmatprep.subr.bf16.mxu0 0
        %3729 = vmatpush1.bf16.msra.mxu0 0
        %3730 = vmatprep.subr.bf16.mxu0 0
        %3731 = vmatpush1.bf16.msra.mxu0 0
        %3732 = vmatprep.subr.bf16.mxu0 0
        %3733 = vmatpush1.bf16.msra.mxu0 0
        %3734 = vmatprep.subr.bf16.mxu0 0
        %3735 = vmatpush1.bf16.msra.mxu0 0
        %3736 = vmatprep.subr.bf16.mxu0 0
        %3737 = vmatpush1.bf16.msra.mxu0 0
        %3738 = vmatprep.mubr.bf16.mxu0 0
        %3739 = vmatmul.mubr.bf16.gmra.mrb[0].mxu0 %v3575
        %v3740 = vpop.f32.mrb[0].mxu0
        %v3741 = vadd.f32 0.0, %v3740
        %v3742 = vpop.f32.mrb[0].mxu0
        %v3743 = vadd.f32 0.0, %v3742
        %v3744 = vpop.f32.mrb[0].mxu0
        %v3745 = vadd.f32 0.0, %v3744
        %v3746 = vpop.f32.mrb[0].mxu0
        %v3747 = vadd.f32 0.0, %v3746
        %3748 = vdwg.mxu0
        %v3749 = vadd.f32 %v3550, %v3612
        %v3750 = vadd.f32 %v3551, %v3614
        %v3751 = vadd.f32 %v3552, %v3655
        %v3752 = vadd.f32 %v3553, %v3657
        %v3753 = vadd.f32 %v3554, %v3698
        %v3754 = vadd.f32 %v3555, %v3700
        %v3755 = vadd.f32 %v3556, %v3741
        %v3756 = vadd.f32 %v3557, %v3743
        %v3757 = vadd.f32 %v3558, %v3616
        %v3758 = vadd.f32 %v3559, %v3618
        %v3759 = vadd.f32 %v3560, %v3659
        %v3760 = vadd.f32 %v3561, %v3661
        %v3761 = vadd.f32 %v3562, %v3702
        %v3762 = vadd.f32 %v3563, %v3704
        %v3763 = vadd.f32 %v3564, %v3745
        %v3764 = vadd.f32 %v3565, %v3747
        %s3765 = scalar_lea.vmem %s7, 48
        %v3766 = vld [vmem:[%s3765] sm:$0xf]
        %v3767 = vld [vmem:[%s3765 + $0x4] sm:$0xf]
        %v3770 = vunpack.c.l.b16 %v3766
        %v3771 = vunpack.c.l.b16 %v3767
        %v3772 = vpack.c.b16 %v3771, %v3770
        %v3774 = vsel %vm1843, %v3772, 0
        %3776 = vmatprep.subr.bf16.mxu0 %v1119
        %3777 = vmatpush1.bf16.msra.mxu0 %v1118
        %3778 = vmatprep.subr.bf16.mxu0 %v1129
        %3779 = vmatpush1.bf16.msra.mxu0 %v1128
        %3780 = vmatprep.subr.bf16.mxu0 0
        %3781 = vmatpush1.bf16.msra.mxu0 0
        %3782 = vmatprep.subr.bf16.mxu0 0
        %3783 = vmatpush1.bf16.msra.mxu0 0
        %3784 = vmatprep.subr.bf16.mxu0 0
        %3785 = vmatpush1.bf16.msra.mxu0 0
        %3786 = vmatprep.subr.bf16.mxu0 0
        %3787 = vmatpush1.bf16.msra.mxu0 0
        %3788 = vmatprep.subr.bf16.mxu0 0
        %3789 = vmatpush1.bf16.msra.mxu0 0
        %3790 = vmatprep.subr.bf16.mxu0 0
        %3791 = vmatpush1.bf16.msra.mxu0 0
        %3792 = vmatprep.subr.bf16.mxu0 0
        %3793 = vmatpush1.bf16.msra.mxu0 0
        %3794 = vmatprep.subr.bf16.mxu0 0
        %3795 = vmatpush1.bf16.msra.mxu0 0
        %3796 = vmatprep.subr.bf16.mxu0 0
        %3797 = vmatpush1.bf16.msra.mxu0 0
        %3798 = vmatprep.subr.bf16.mxu0 0
        %3799 = vmatpush1.bf16.msra.mxu0 0
        %3800 = vmatprep.subr.bf16.mxu0 0
        %3801 = vmatpush1.bf16.msra.mxu0 0
        %3802 = vmatprep.subr.bf16.mxu0 0
        %3803 = vmatpush1.bf16.msra.mxu0 0
        %3804 = vmatprep.subr.bf16.mxu0 0
        %3805 = vmatpush1.bf16.msra.mxu0 0
        %3806 = vmatprep.subr.bf16.mxu0 0
        %3807 = vmatpush1.bf16.msra.mxu0 0
        %3808 = vmatprep.mubr.bf16.mxu0 0
        %3809 = vmatmul.mubr.bf16.gmra.mrb[0].mxu0 %v3774
        %v3810 = vpop.f32.mrb[0].mxu0
        %v3811 = vadd.f32 0.0, %v3810
        %v3812 = vpop.f32.mrb[0].mxu0
        %v3813 = vadd.f32 0.0, %v3812
        %v3814 = vpop.f32.mrb[0].mxu0
        %v3815 = vadd.f32 0.0, %v3814
        %v3816 = vpop.f32.mrb[0].mxu0
        %v3817 = vadd.f32 0.0, %v3816
        %3818 = vdwg.mxu0
        %3819 = vmatprep.subr.bf16.mxu0 %v1121
        %3820 = vmatpush1.bf16.msra.mxu0 %v1120
        %3821 = vmatprep.subr.bf16.mxu0 %v1131
        %3822 = vmatpush1.bf16.msra.mxu0 %v1130
        %3823 = vmatprep.subr.bf16.mxu0 0
        %3824 = vmatpush1.bf16.msra.mxu0 0
        %3825 = vmatprep.subr.bf16.mxu0 0
        %3826 = vmatpush1.bf16.msra.mxu0 0
        %3827 = vmatprep.subr.bf16.mxu0 0
        %3828 = vmatpush1.bf16.msra.mxu0 0
        %3829 = vmatprep.subr.bf16.mxu0 0
        %3830 = vmatpush1.bf16.msra.mxu0 0
        %3831 = vmatprep.subr.bf16.mxu0 0
        %3832 = vmatpush1.bf16.msra.mxu0 0
        %3833 = vmatprep.subr.bf16.mxu0 0
        %3834 = vmatpush1.bf16.msra.mxu0 0
        %3835 = vmatprep.subr.bf16.mxu0 0
        %3836 = vmatpush1.bf16.msra.mxu0 0
        %3837 = vmatprep.subr.bf16.mxu0 0
        %3838 = vmatpush1.bf16.msra.mxu0 0
        %3839 = vmatprep.subr.bf16.mxu0 0
        %3840 = vmatpush1.bf16.msra.mxu0 0
        %3841 = vmatprep.subr.bf16.mxu0 0
        %3842 = vmatpush1.bf16.msra.mxu0 0
        %3843 = vmatprep.subr.bf16.mxu0 0
        %3844 = vmatpush1.bf16.msra.mxu0 0
        %3845 = vmatprep.subr.bf16.mxu0 0
        %3846 = vmatpush1.bf16.msra.mxu0 0
        %3847 = vmatprep.subr.bf16.mxu0 0
        %3848 = vmatpush1.bf16.msra.mxu0 0
        %3849 = vmatprep.subr.bf16.mxu0 0
        %3850 = vmatpush1.bf16.msra.mxu0 0
        %3851 = vmatprep.mubr.bf16.mxu0 0
        %3852 = vmatmul.mubr.bf16.gmra.mrb[0].mxu0 %v3774
        %v3853 = vpop.f32.mrb[0].mxu0
        %v3854 = vadd.f32 0.0, %v3853
        %v3855 = vpop.f32.mrb[0].mxu0
        %v3856 = vadd.f32 0.0, %v3855
        %v3857 = vpop.f32.mrb[0].mxu0
        %v3858 = vadd.f32 0.0, %v3857
        %v3859 = vpop.f32.mrb[0].mxu0
        %v3860 = vadd.f32 0.0, %v3859
        %3861 = vdwg.mxu0
        %3862 = vmatprep.subr.bf16.mxu0 %v1123
        %3863 = vmatpush1.bf16.msra.mxu0 %v1122
        %3864 = vmatprep.subr.bf16.mxu0 %v1133
        %3865 = vmatpush1.bf16.msra.mxu0 %v1132
        %3866 = vmatprep.subr.bf16.mxu0 0
        %3867 = vmatpush1.bf16.msra.mxu0 0
        %3868 = vmatprep.subr.bf16.mxu0 0
        %3869 = vmatpush1.bf16.msra.mxu0 0
        %3870 = vmatprep.subr.bf16.mxu0 0
        %3871 = vmatpush1.bf16.msra.mxu0 0
        %3872 = vmatprep.subr.bf16.mxu0 0
        %3873 = vmatpush1.bf16.msra.mxu0 0
        %3874 = vmatprep.subr.bf16.mxu0 0
        %3875 = vmatpush1.bf16.msra.mxu0 0
        %3876 = vmatprep.subr.bf16.mxu0 0
        %3877 = vmatpush1.bf16.msra.mxu0 0
        %3878 = vmatprep.subr.bf16.mxu0 0
        %3879 = vmatpush1.bf16.msra.mxu0 0
        %3880 = vmatprep.subr.bf16.mxu0 0
        %3881 = vmatpush1.bf16.msra.mxu0 0
        %3882 = vmatprep.subr.bf16.mxu0 0
        %3883 = vmatpush1.bf16.msra.mxu0 0
        %3884 = vmatprep.subr.bf16.mxu0 0
        %3885 = vmatpush1.bf16.msra.mxu0 0
        %3886 = vmatprep.subr.bf16.mxu0 0
        %3887 = vmatpush1.bf16.msra.mxu0 0
        %3888 = vmatprep.subr.bf16.mxu0 0
        %3889 = vmatpush1.bf16.msra.mxu0 0
        %3890 = vmatprep.subr.bf16.mxu0 0
        %3891 = vmatpush1.bf16.msra.mxu0 0
        %3892 = vmatprep.subr.bf16.mxu0 0
        %3893 = vmatpush1.bf16.msra.mxu0 0
        %3894 = vmatprep.mubr.bf16.mxu0 0
        %3895 = vmatmul.mubr.bf16.gmra.mrb[0].mxu0 %v3774
        %v3896 = vpop.f32.mrb[0].mxu0
        %v3897 = vadd.f32 0.0, %v3896
        %v3898 = vpop.f32.mrb[0].mxu0
        %v3899 = vadd.f32 0.0, %v3898
        %v3900 = vpop.f32.mrb[0].mxu0
        %v3901 = vadd.f32 0.0, %v3900
        %v3902 = vpop.f32.mrb[0].mxu0
        %v3903 = vadd.f32 0.0, %v3902
        %3904 = vdwg.mxu0
        %3905 = vmatprep.subr.bf16.mxu0 %v1125
        %3906 = vmatpush1.bf16.msra.mxu0 %v1124
        %3907 = vmatprep.subr.bf16.mxu0 %v1135
        %3908 = vmatpush1.bf16.msra.mxu0 %v1134
        %3909 = vmatprep.subr.bf16.mxu0 0
        %3910 = vmatpush1.bf16.msra.mxu0 0
        %3911 = vmatprep.subr.bf16.mxu0 0
        %3912 = vmatpush1.bf16.msra.mxu0 0
        %3913 = vmatprep.subr.bf16.mxu0 0
        %3914 = vmatpush1.bf16.msra.mxu0 0
        %3915 = vmatprep.subr.bf16.mxu0 0
        %3916 = vmatpush1.bf16.msra.mxu0 0
        %3917 = vmatprep.subr.bf16.mxu0 0
        %3918 = vmatpush1.bf16.msra.mxu0 0
        %3919 = vmatprep.subr.bf16.mxu0 0
        %3920 = vmatpush1.bf16.msra.mxu0 0
        %3921 = vmatprep.subr.bf16.mxu0 0
        %3922 = vmatpush1.bf16.msra.mxu0 0
        %3923 = vmatprep.subr.bf16.mxu0 0
        %3924 = vmatpush1.bf16.msra.mxu0 0
        %3925 = vmatprep.subr.bf16.mxu0 0
        %3926 = vmatpush1.bf16.msra.mxu0 0
        %3927 = vmatprep.subr.bf16.mxu0 0
        %3928 = vmatpush1.bf16.msra.mxu0 0
        %3929 = vmatprep.subr.bf16.mxu0 0
        %3930 = vmatpush1.bf16.msra.mxu0 0
        %3931 = vmatprep.subr.bf16.mxu0 0
        %3932 = vmatpush1.bf16.msra.mxu0 0
        %3933 = vmatprep.subr.bf16.mxu0 0
        %3934 = vmatpush1.bf16.msra.mxu0 0
        %3935 = vmatprep.subr.bf16.mxu0 0
        %3936 = vmatpush1.bf16.msra.mxu0 0
        %3937 = vmatprep.mubr.bf16.mxu0 0
        %3938 = vmatmul.mubr.bf16.gmra.mrb[0].mxu0 %v3774
        %v3939 = vpop.f32.mrb[0].mxu0
        %v3940 = vadd.f32 0.0, %v3939
        %v3941 = vpop.f32.mrb[0].mxu0
        %v3942 = vadd.f32 0.0, %v3941
        %v3943 = vpop.f32.mrb[0].mxu0
        %v3944 = vadd.f32 0.0, %v3943
        %v3945 = vpop.f32.mrb[0].mxu0
        %v3946 = vadd.f32 0.0, %v3945
        %3947 = vdwg.mxu0
        %v3948 = vadd.f32 %v3749, %v3811
        %v3949 = vadd.f32 %v3750, %v3813
        %v3950 = vadd.f32 %v3751, %v3854
        %v3951 = vadd.f32 %v3752, %v3856
        %v3952 = vadd.f32 %v3753, %v3897
        %v3953 = vadd.f32 %v3754, %v3899
        %v3954 = vadd.f32 %v3755, %v3940
        %v3955 = vadd.f32 %v3756, %v3942
        %v3956 = vadd.f32 %v3757, %v3815
        %v3957 = vadd.f32 %v3758, %v3817
        %v3958 = vadd.f32 %v3759, %v3858
        %v3959 = vadd.f32 %v3760, %v3860
        %v3960 = vadd.f32 %v3761, %v3901
        %v3961 = vadd.f32 %v3762, %v3903
        %v3962 = vadd.f32 %v3763, %v3944
        %v3963 = vadd.f32 %v3764, %v3946
        %s3964 = scalar_lea.vmem %s8, 48
        %v3965 = vld [vmem:[%s3964] sm:$0xf]
        %v3966 = vld [vmem:[%s3964 + $0x4] sm:$0xf]
        %v3969 = vunpack.c.l.b16 %v3965
        %v3970 = vunpack.c.l.b16 %v3966
        %v3971 = vpack.c.b16 %v3970, %v3969
        %v3973 = vsel %vm1843, %v3971, 0
        %3975 = vmatprep.subr.bf16.mxu0 %v1710
        %3976 = vmatpush1.bf16.msra.mxu0 %v1709
        %3977 = vmatprep.subr.bf16.mxu0 %v1720
        %3978 = vmatpush1.bf16.msra.mxu0 %v1719
        %3979 = vmatprep.subr.bf16.mxu0 0
        %3980 = vmatpush1.bf16.msra.mxu0 0
        %3981 = vmatprep.subr.bf16.mxu0 0
        %3982 = vmatpush1.bf16.msra.mxu0 0
        %3983 = vmatprep.subr.bf16.mxu0 0
        %3984 = vmatpush1.bf16.msra.mxu0 0
        %3985 = vmatprep.subr.bf16.mxu0 0
        %3986 = vmatpush1.bf16.msra.mxu0 0
        %3987 = vmatprep.subr.bf16.mxu0 0
        %3988 = vmatpush1.bf16.msra.mxu0 0
        %3989 = vmatprep.subr.bf16.mxu0 0
        %3990 = vmatpush1.bf16.msra.mxu0 0
        %3991 = vmatprep.subr.bf16.mxu0 0
        %3992 = vmatpush1.bf16.msra.mxu0 0
        %3993 = vmatprep.subr.bf16.mxu0 0
        %3994 = vmatpush1.bf16.msra.mxu0 0
        %3995 = vmatprep.subr.bf16.mxu0 0
        %3996 = vmatpush1.bf16.msra.mxu0 0
        %3997 = vmatprep.subr.bf16.mxu0 0
        %3998 = vmatpush1.bf16.msra.mxu0 0
        %3999 = vmatprep.subr.bf16.mxu0 0
        %4000 = vmatpush1.bf16.msra.mxu0 0
        %4001 = vmatprep.subr.bf16.mxu0 0
        %4002 = vmatpush1.bf16.msra.mxu0 0
        %4003 = vmatprep.subr.bf16.mxu0 0
        %4004 = vmatpush1.bf16.msra.mxu0 0
        %4005 = vmatprep.subr.bf16.mxu0 0
        %4006 = vmatpush1.bf16.msra.mxu0 0
        %4007 = vmatprep.mubr.bf16.mxu0 0
        %4008 = vmatmul.mubr.bf16.gmra.mrb[0].mxu0 %v3973
        %v4009 = vpop.f32.mrb[0].mxu0
        %v4010 = vadd.f32 0.0, %v4009
        %v4011 = vpop.f32.mrb[0].mxu0
        %v4012 = vadd.f32 0.0, %v4011
        %v4013 = vpop.f32.mrb[0].mxu0
        %v4014 = vadd.f32 0.0, %v4013
        %v4015 = vpop.f32.mrb[0].mxu0
        %v4016 = vadd.f32 0.0, %v4015
        %4017 = vdwg.mxu0
        %4018 = vmatprep.subr.bf16.mxu0 %v1712
        %4019 = vmatpush1.bf16.msra.mxu0 %v1711
        %4020 = vmatprep.subr.bf16.mxu0 %v1722
        %4021 = vmatpush1.bf16.msra.mxu0 %v1721
        %4022 = vmatprep.subr.bf16.mxu0 0
        %4023 = vmatpush1.bf16.msra.mxu0 0
        %4024 = vmatprep.subr.bf16.mxu0 0
        %4025 = vmatpush1.bf16.msra.mxu0 0
        %4026 = vmatprep.subr.bf16.mxu0 0
        %4027 = vmatpush1.bf16.msra.mxu0 0
        %4028 = vmatprep.subr.bf16.mxu0 0
        %4029 = vmatpush1.bf16.msra.mxu0 0
        %4030 = vmatprep.subr.bf16.mxu0 0
        %4031 = vmatpush1.bf16.msra.mxu0 0
        %4032 = vmatprep.subr.bf16.mxu0 0
        %4033 = vmatpush1.bf16.msra.mxu0 0
        %4034 = vmatprep.subr.bf16.mxu0 0
        %4035 = vmatpush1.bf16.msra.mxu0 0
        %4036 = vmatprep.subr.bf16.mxu0 0
        %4037 = vmatpush1.bf16.msra.mxu0 0
        %4038 = vmatprep.subr.bf16.mxu0 0
        %4039 = vmatpush1.bf16.msra.mxu0 0
        %4040 = vmatprep.subr.bf16.mxu0 0
        %4041 = vmatpush1.bf16.msra.mxu0 0
        %4042 = vmatprep.subr.bf16.mxu0 0
        %4043 = vmatpush1.bf16.msra.mxu0 0
        %4044 = vmatprep.subr.bf16.mxu0 0
        %4045 = vmatpush1.bf16.msra.mxu0 0
        %4046 = vmatprep.subr.bf16.mxu0 0
        %4047 = vmatpush1.bf16.msra.mxu0 0
        %4048 = vmatprep.subr.bf16.mxu0 0
        %4049 = vmatpush1.bf16.msra.mxu0 0
        %4050 = vmatprep.mubr.bf16.mxu0 0
        %4051 = vmatmul.mubr.bf16.gmra.mrb[0].mxu0 %v3973
        %v4052 = vpop.f32.mrb[0].mxu0
        %v4053 = vadd.f32 0.0, %v4052
        %v4054 = vpop.f32.mrb[0].mxu0
        %v4055 = vadd.f32 0.0, %v4054
        %v4056 = vpop.f32.mrb[0].mxu0
        %v4057 = vadd.f32 0.0, %v4056
        %v4058 = vpop.f32.mrb[0].mxu0
        %v4059 = vadd.f32 0.0, %v4058
        %4060 = vdwg.mxu0
        %4061 = vmatprep.subr.bf16.mxu0 %v1714
        %4062 = vmatpush1.bf16.msra.mxu0 %v1713
        %4063 = vmatprep.subr.bf16.mxu0 %v1724
        %4064 = vmatpush1.bf16.msra.mxu0 %v1723
        %4065 = vmatprep.subr.bf16.mxu0 0
        %4066 = vmatpush1.bf16.msra.mxu0 0
        %4067 = vmatprep.subr.bf16.mxu0 0
        %4068 = vmatpush1.bf16.msra.mxu0 0
        %4069 = vmatprep.subr.bf16.mxu0 0
        %4070 = vmatpush1.bf16.msra.mxu0 0
        %4071 = vmatprep.subr.bf16.mxu0 0
        %4072 = vmatpush1.bf16.msra.mxu0 0
        %4073 = vmatprep.subr.bf16.mxu0 0
        %4074 = vmatpush1.bf16.msra.mxu0 0
        %4075 = vmatprep.subr.bf16.mxu0 0
        %4076 = vmatpush1.bf16.msra.mxu0 0
        %4077 = vmatprep.subr.bf16.mxu0 0
        %4078 = vmatpush1.bf16.msra.mxu0 0
        %4079 = vmatprep.subr.bf16.mxu0 0
        %4080 = vmatpush1.bf16.msra.mxu0 0
        %4081 = vmatprep.subr.bf16.mxu0 0
        %4082 = vmatpush1.bf16.msra.mxu0 0
        %4083 = vmatprep.subr.bf16.mxu0 0
        %4084 = vmatpush1.bf16.msra.mxu0 0
        %4085 = vmatprep.subr.bf16.mxu0 0
        %4086 = vmatpush1.bf16.msra.mxu0 0
        %4087 = vmatprep.subr.bf16.mxu0 0
        %4088 = vmatpush1.bf16.msra.mxu0 0
        %4089 = vmatprep.subr.bf16.mxu0 0
        %4090 = vmatpush1.bf16.msra.mxu0 0
        %4091 = vmatprep.subr.bf16.mxu0 0
        %4092 = vmatpush1.bf16.msra.mxu0 0
        %4093 = vmatprep.mubr.bf16.mxu0 0
        %4094 = vmatmul.mubr.bf16.gmra.mrb[0].mxu0 %v3973
        %v4095 = vpop.f32.mrb[0].mxu0
        %v4096 = vadd.f32 0.0, %v4095
        %v4097 = vpop.f32.mrb[0].mxu0
        %v4098 = vadd.f32 0.0, %v4097
        %v4099 = vpop.f32.mrb[0].mxu0
        %v4100 = vadd.f32 0.0, %v4099
        %v4101 = vpop.f32.mrb[0].mxu0
        %v4102 = vadd.f32 0.0, %v4101
        %4103 = vdwg.mxu0
        %4104 = vmatprep.subr.bf16.mxu0 %v1716
        %4105 = vmatpush1.bf16.msra.mxu0 %v1715
        %4106 = vmatprep.subr.bf16.mxu0 %v1726
        %4107 = vmatpush1.bf16.msra.mxu0 %v1725
        %4108 = vmatprep.subr.bf16.mxu0 0
        %4109 = vmatpush1.bf16.msra.mxu0 0
        %4110 = vmatprep.subr.bf16.mxu0 0
        %4111 = vmatpush1.bf16.msra.mxu0 0
        %4112 = vmatprep.subr.bf16.mxu0 0
        %4113 = vmatpush1.bf16.msra.mxu0 0
        %4114 = vmatprep.subr.bf16.mxu0 0
        %4115 = vmatpush1.bf16.msra.mxu0 0
        %4116 = vmatprep.subr.bf16.mxu0 0
        %4117 = vmatpush1.bf16.msra.mxu0 0
        %4118 = vmatprep.subr.bf16.mxu0 0
        %4119 = vmatpush1.bf16.msra.mxu0 0
        %4120 = vmatprep.subr.bf16.mxu0 0
        %4121 = vmatpush1.bf16.msra.mxu0 0
        %4122 = vmatprep.subr.bf16.mxu0 0
        %4123 = vmatpush1.bf16.msra.mxu0 0
        %4124 = vmatprep.subr.bf16.mxu0 0
        %4125 = vmatpush1.bf16.msra.mxu0 0
        %4126 = vmatprep.subr.bf16.mxu0 0
        %4127 = vmatpush1.bf16.msra.mxu0 0
        %4128 = vmatprep.subr.bf16.mxu0 0
        %4129 = vmatpush1.bf16.msra.mxu0 0
        %4130 = vmatprep.subr.bf16.mxu0 0
        %4131 = vmatpush1.bf16.msra.mxu0 0
        %4132 = vmatprep.subr.bf16.mxu0 0
        %4133 = vmatpush1.bf16.msra.mxu0 0
        %4134 = vmatprep.subr.bf16.mxu0 0
        %4135 = vmatpush1.bf16.msra.mxu0 0
        %4136 = vmatprep.mubr.bf16.mxu0 0
        %4137 = vmatmul.mubr.bf16.gmra.mrb[0].mxu0 %v3973
        %v4138 = vpop.f32.mrb[0].mxu0
        %v4139 = vadd.f32 0.0, %v4138
        %v4140 = vpop.f32.mrb[0].mxu0
        %v4141 = vadd.f32 0.0, %v4140
        %v4142 = vpop.f32.mrb[0].mxu0
        %v4143 = vadd.f32 0.0, %v4142
        %v4144 = vpop.f32.mrb[0].mxu0
        %v4145 = vadd.f32 0.0, %v4144
        %4146 = vdwg.mxu0
        %v4147 = vadd.f32 %v3948, %v4010
        %v4148 = vadd.f32 %v3949, %v4012
        %v4149 = vadd.f32 %v3950, %v4053
        %v4150 = vadd.f32 %v3951, %v4055
        %v4151 = vadd.f32 %v3952, %v4096
        %v4152 = vadd.f32 %v3953, %v4098
        %v4153 = vadd.f32 %v3954, %v4139
        %v4154 = vadd.f32 %v3955, %v4141
        %v4155 = vadd.f32 %v3956, %v4014
        %v4156 = vadd.f32 %v3957, %v4016
        %v4157 = vadd.f32 %v3958, %v4057
        %v4158 = vadd.f32 %v3959, %v4059
        %v4159 = vadd.f32 %v3960, %v4100
        %v4160 = vadd.f32 %v3961, %v4102
        %v4161 = vadd.f32 %v3962, %v4143
        %v4162 = vadd.f32 %v3963, %v4145
        %4163 = vrot.lane.b32.xlu0 %v4147, 1
        %v4164 = vpop.permute.xlu0 %4163
        %4165 = vrot.lane.b32.xlu0 %v4155, 1
        %v4166 = vpop.permute.xlu0 %4165
        %4167 = vrot.lane.b32.xlu0 %v4148, 1
        %v4168 = vpop.permute.xlu0 %4167
        %4169 = vrot.lane.b32.xlu0 %v4156, 1
        %v4170 = vpop.permute.xlu0 %4169
        %4171 = vrot.lane.b32.xlu0 %v4149, 1
        %v4172 = vpop.permute.xlu0 %4171
        %4173 = vrot.lane.b32.xlu0 %v4157, 1
        %v4174 = vpop.permute.xlu0 %4173
        %4175 = vrot.lane.b32.xlu0 %v4150, 1
        %v4176 = vpop.permute.xlu0 %4175
        %4177 = vrot.lane.b32.xlu0 %v4158, 1
        %v4178 = vpop.permute.xlu0 %4177
        %4179 = vrot.lane.b32.xlu0 %v4151, 1
        %v4180 = vpop.permute.xlu0 %4179
        %4181 = vrot.lane.b32.xlu0 %v4159, 1
        %v4182 = vpop.permute.xlu0 %4181
        %4183 = vrot.lane.b32.xlu0 %v4152, 1
        %v4184 = vpop.permute.xlu0 %4183
        %4185 = vrot.lane.b32.xlu0 %v4160, 1
        %v4186 = vpop.permute.xlu0 %4185
        %4187 = vrot.lane.b32.xlu0 %v4153, 1
        %v4188 = vpop.permute.xlu0 %4187
        %4189 = vrot.lane.b32.xlu0 %v4161, 1
        %v4190 = vpop.permute.xlu0 %4189
        %4191 = vrot.lane.b32.xlu0 %v4154, 1
        %v4192 = vpop.permute.xlu0 %4191
        %4193 = vrot.lane.b32.xlu0 %v4162, 1
        %v4194 = vpop.permute.xlu0 %4193
        %vm4195 = vcmp.lt.s32.totalorder %v1728, 1
        %v4196 = vsel %vm4195, %v4188, %v4192
        %v4197 = vsel %vm4195, %v4190, %v4194
        %v4198 = vsel %vm4195, %v4184, %v4188
        %v4199 = vsel %vm4195, %v4186, %v4190
        %v4200 = vsel %vm4195, %v4180, %v4184
        %v4201 = vsel %vm4195, %v4182, %v4186
        %v4202 = vsel %vm4195, %v4176, %v4180
        %v4203 = vsel %vm4195, %v4178, %v4182
        %v4204 = vsel %vm4195, %v4172, %v4176
        %v4205 = vsel %vm4195, %v4174, %v4178
        %v4206 = vsel %vm4195, %v4168, %v4172
        %v4207 = vsel %vm4195, %v4170, %v4174
        %v4208 = vsel %vm4195, %v4164, %v4168
        %v4209 = vsel %vm4195, %v4166, %v4170
        %v4210 = vsel %vm4195, %v4192, %v4164
        %v4211 = vsel %vm4195, %v4194, %v4166
        %v4212 = vsel %vm2995, 1, 0
        %v4213 = vsel %vm2996, 1, 0
        %v4214 = vsel %vm2997, 1, 0
        %v4215 = vsel %vm2998, 1, 0
        %v4216 = vsel %vm2999, 1, 0
        %v4217 = vsel %vm3000, 1, 0
        %v4218 = vsel %vm3001, 1, 0
        %v4219 = vsel %vm3002, 1, 0
        %vm4220 = vcmp.eq.s32.totalorder %v4212, 1
        %vm4221 = vcmp.eq.s32.totalorder %v4213, 1
        %vm4222 = vcmp.eq.s32.totalorder %v4214, 1
        %vm4223 = vcmp.eq.s32.totalorder %v4215, 1
        %vm4224 = vcmp.eq.s32.totalorder %v4216, 1
        %vm4225 = vcmp.eq.s32.totalorder %v4217, 1
        %vm4226 = vcmp.eq.s32.totalorder %v4218, 1
        %vm4227 = vcmp.eq.s32.totalorder %v4219, 1
        %v4228 = vsel %vm4220, %v4210, 0.0
        %v4229 = vsel %vm4221, %v4208, 0.0
        %v4230 = vsel %vm4222, %v4206, 0.0
        %v4231 = vsel %vm4223, %v4204, 0.0
        %v4232 = vsel %vm4224, %v4202, 0.0
        %v4233 = vsel %vm4225, %v4200, 0.0
        %v4234 = vsel %vm4226, %v4198, 0.0
        %v4235 = vsel %vm4227, %v4196, 0.0
        %v4236 = vsel %vm4220, %v4211, 0.0
        %v4237 = vsel %vm4221, %v4209, 0.0
        %v4238 = vsel %vm4222, %v4207, 0.0
        %v4239 = vsel %vm4223, %v4205, 0.0
        %v4240 = vsel %vm4224, %v4203, 0.0
        %v4241 = vsel %vm4225, %v4201, 0.0
        %v4242 = vsel %vm4226, %v4199, 0.0
        %v4243 = vsel %vm4227, %v4197, 0.0
        %v4244 = vadd.f32 %v2979, %v4228
        %v4245 = vadd.f32 %v2980, %v4229
        %v4246 = vadd.f32 %v2981, %v4230
        %v4247 = vadd.f32 %v2982, %v4231
        %v4248 = vadd.f32 %v2983, %v4232
        %v4249 = vadd.f32 %v2984, %v4233
        %v4250 = vadd.f32 %v2985, %v4234
        %v4251 = vadd.f32 %v2986, %v4235
        %v4252 = vadd.f32 %v2987, %v4236
        %v4253 = vadd.f32 %v2988, %v4237
        %v4254 = vadd.f32 %v2989, %v4238
        %v4255 = vadd.f32 %v2990, %v4239
        %v4256 = vadd.f32 %v2991, %v4240
        %v4257 = vadd.f32 %v2992, %v4241
        %v4258 = vadd.f32 %v2993, %v4242
        %v4259 = vadd.f32 %v2994, %v4243
        %vm4260 = vcmp.lt.s32.totalorder %v1824, 127
        %vm4261 = vcmp.lt.s32.totalorder %v1825, 127
        %vm4262 = vcmp.lt.s32.totalorder %v1826, 127
        %vm4263 = vcmp.lt.s32.totalorder %v1827, 127
        %vm4264 = vcmp.lt.s32.totalorder %v1828, 127
        %vm4265 = vcmp.lt.s32.totalorder %v1829, 127
        %vm4266 = vcmp.lt.s32.totalorder %v1830, 127
        %vm4267 = vcmp.lt.s32.totalorder %v1831, 127
        %s4268 = scalar_lea.vmem %s7, 16
        %v4269 = vld [vmem:[%s4268] sm:$0xf]
        %v4270 = vld [vmem:[%s4268 + $0x4] sm:$0xf]
        %s4271 = scalar_lea.vmem %s8, 16
        %v4272 = vld [vmem:[%s4271] sm:$0xf]
        %v4273 = vld [vmem:[%s4271 + $0x4] sm:$0xf]
        %v4276 = vunpack.c.l.b16 %v4272
        %v4277 = vunpack.c.l.b16 %v4273
        %v4278 = vpack.c.b16 %v4277, %v4276
        %v4280 = vsel %vm1843, %v4278, 0
        %4282 = vmatprep.subr.bf16.mxu0 %v1708
        %4283 = vmatpush1.bf16.msra.mxu0 %v1707
        %4284 = vmatprep.subr.bf16.mxu0 %v1718
        %4285 = vmatpush1.bf16.msra.mxu0 %v1717
        %4286 = vmatprep.subr.bf16.mxu0 0
        %4287 = vmatpush1.bf16.msra.mxu0 0
        %4288 = vmatprep.subr.bf16.mxu0 0
        %4289 = vmatpush1.bf16.msra.mxu0 0
        %4290 = vmatprep.subr.bf16.mxu0 0
        %4291 = vmatpush1.bf16.msra.mxu0 0
        %4292 = vmatprep.subr.bf16.mxu0 0
        %4293 = vmatpush1.bf16.msra.mxu0 0
        %4294 = vmatprep.subr.bf16.mxu0 0
        %4295 = vmatpush1.bf16.msra.mxu0 0
        %4296 = vmatprep.subr.bf16.mxu0 0
        %4297 = vmatpush1.bf16.msra.mxu0 0
        %4298 = vmatprep.subr.bf16.mxu0 0
        %4299 = vmatpush1.bf16.msra.mxu0 0
        %4300 = vmatprep.subr.bf16.mxu0 0
        %4301 = vmatpush1.bf16.msra.mxu0 0
        %4302 = vmatprep.subr.bf16.mxu0 0
        %4303 = vmatpush1.bf16.msra.mxu0 0
        %4304 = vmatprep.subr.bf16.mxu0 0
        %4305 = vmatpush1.bf16.msra.mxu0 0
        %4306 = vmatprep.subr.bf16.mxu0 0
        %4307 = vmatpush1.bf16.msra.mxu0 0
        %4308 = vmatprep.subr.bf16.mxu0 0
        %4309 = vmatpush1.bf16.msra.mxu0 0
        %4310 = vmatprep.subr.bf16.mxu0 0
        %4311 = vmatpush1.bf16.msra.mxu0 0
        %4312 = vmatprep.subr.bf16.mxu0 0
        %4313 = vmatpush1.bf16.msra.mxu0 0
        %4314 = vmatprep.mubr.bf16.mxu0 0
        %4315 = vmatmul.mubr.bf16.gmra.mrb[0].mxu0 %v4280
        %v4316 = vpop.f32.mrb[0].mxu0
        %v4317 = vadd.f32 0.0, %v4316
        %v4318 = vpop.f32.mrb[0].mxu0
        %v4319 = vadd.f32 0.0, %v4318
        %v4320 = vpop.f32.mrb[0].mxu0
        %v4321 = vadd.f32 0.0, %v4320
        %v4322 = vpop.f32.mrb[0].mxu0
        %v4323 = vadd.f32 0.0, %v4322
        %4324 = vdwg.mxu0
        %4325 = vmatprep.subr.bf16.mxu0 %v1710
        %4326 = vmatpush1.bf16.msra.mxu0 %v1709
        %4327 = vmatprep.subr.bf16.mxu0 %v1720
        %4328 = vmatpush1.bf16.msra.mxu0 %v1719
        %4329 = vmatprep.subr.bf16.mxu0 0
        %4330 = vmatpush1.bf16.msra.mxu0 0
        %4331 = vmatprep.subr.bf16.mxu0 0
        %4332 = vmatpush1.bf16.msra.mxu0 0
        %4333 = vmatprep.subr.bf16.mxu0 0
        %4334 = vmatpush1.bf16.msra.mxu0 0
        %4335 = vmatprep.subr.bf16.mxu0 0
        %4336 = vmatpush1.bf16.msra.mxu0 0
        %4337 = vmatprep.subr.bf16.mxu0 0
        %4338 = vmatpush1.bf16.msra.mxu0 0
        %4339 = vmatprep.subr.bf16.mxu0 0
        %4340 = vmatpush1.bf16.msra.mxu0 0
        %4341 = vmatprep.subr.bf16.mxu0 0
        %4342 = vmatpush1.bf16.msra.mxu0 0
        %4343 = vmatprep.subr.bf16.mxu0 0
        %4344 = vmatpush1.bf16.msra.mxu0 0
        %4345 = vmatprep.subr.bf16.mxu0 0
        %4346 = vmatpush1.bf16.msra.mxu0 0
        %4347 = vmatprep.subr.bf16.mxu0 0
        %4348 = vmatpush1.bf16.msra.mxu0 0
        %4349 = vmatprep.subr.bf16.mxu0 0
        %4350 = vmatpush1.bf16.msra.mxu0 0
        %4351 = vmatprep.subr.bf16.mxu0 0
        %4352 = vmatpush1.bf16.msra.mxu0 0
        %4353 = vmatprep.subr.bf16.mxu0 0
        %4354 = vmatpush1.bf16.msra.mxu0 0
        %4355 = vmatprep.subr.bf16.mxu0 0
        %4356 = vmatpush1.bf16.msra.mxu0 0
        %4357 = vmatprep.mubr.bf16.mxu0 0
        %4358 = vmatmul.mubr.bf16.gmra.mrb[0].mxu0 %v4280
        %v4359 = vpop.f32.mrb[0].mxu0
        %v4360 = vadd.f32 0.0, %v4359
        %v4361 = vpop.f32.mrb[0].mxu0
        %v4362 = vadd.f32 0.0, %v4361
        %v4363 = vpop.f32.mrb[0].mxu0
        %v4364 = vadd.f32 0.0, %v4363
        %v4365 = vpop.f32.mrb[0].mxu0
        %v4366 = vadd.f32 0.0, %v4365
        %4367 = vdwg.mxu0
        %4368 = vmatprep.subr.bf16.mxu0 %v1712
        %4369 = vmatpush1.bf16.msra.mxu0 %v1711
        %4370 = vmatprep.subr.bf16.mxu0 %v1722
        %4371 = vmatpush1.bf16.msra.mxu0 %v1721
        %4372 = vmatprep.subr.bf16.mxu0 0
        %4373 = vmatpush1.bf16.msra.mxu0 0
        %4374 = vmatprep.subr.bf16.mxu0 0
        %4375 = vmatpush1.bf16.msra.mxu0 0
        %4376 = vmatprep.subr.bf16.mxu0 0
        %4377 = vmatpush1.bf16.msra.mxu0 0
        %4378 = vmatprep.subr.bf16.mxu0 0
        %4379 = vmatpush1.bf16.msra.mxu0 0
        %4380 = vmatprep.subr.bf16.mxu0 0
        %4381 = vmatpush1.bf16.msra.mxu0 0
        %4382 = vmatprep.subr.bf16.mxu0 0
        %4383 = vmatpush1.bf16.msra.mxu0 0
        %4384 = vmatprep.subr.bf16.mxu0 0
        %4385 = vmatpush1.bf16.msra.mxu0 0
        %4386 = vmatprep.subr.bf16.mxu0 0
        %4387 = vmatpush1.bf16.msra.mxu0 0
        %4388 = vmatprep.subr.bf16.mxu0 0
        %4389 = vmatpush1.bf16.msra.mxu0 0
        %4390 = vmatprep.subr.bf16.mxu0 0
        %4391 = vmatpush1.bf16.msra.mxu0 0
        %4392 = vmatprep.subr.bf16.mxu0 0
        %4393 = vmatpush1.bf16.msra.mxu0 0
        %4394 = vmatprep.subr.bf16.mxu0 0
        %4395 = vmatpush1.bf16.msra.mxu0 0
        %4396 = vmatprep.subr.bf16.mxu0 0
        %4397 = vmatpush1.bf16.msra.mxu0 0
        %4398 = vmatprep.subr.bf16.mxu0 0
        %4399 = vmatpush1.bf16.msra.mxu0 0
        %4400 = vmatprep.mubr.bf16.mxu0 0
        %4401 = vmatmul.mubr.bf16.gmra.mrb[0].mxu0 %v4280
        %v4402 = vpop.f32.mrb[0].mxu0
        %v4403 = vadd.f32 0.0, %v4402
        %v4404 = vpop.f32.mrb[0].mxu0
        %v4405 = vadd.f32 0.0, %v4404
        %v4406 = vpop.f32.mrb[0].mxu0
        %v4407 = vadd.f32 0.0, %v4406
        %v4408 = vpop.f32.mrb[0].mxu0
        %v4409 = vadd.f32 0.0, %v4408
        %4410 = vdwg.mxu0
        %4411 = vmatprep.subr.bf16.mxu0 %v1714
        %4412 = vmatpush1.bf16.msra.mxu0 %v1713
        %4413 = vmatprep.subr.bf16.mxu0 %v1724
        %4414 = vmatpush1.bf16.msra.mxu0 %v1723
        %4415 = vmatprep.subr.bf16.mxu0 0
        %4416 = vmatpush1.bf16.msra.mxu0 0
        %4417 = vmatprep.subr.bf16.mxu0 0
        %4418 = vmatpush1.bf16.msra.mxu0 0
        %4419 = vmatprep.subr.bf16.mxu0 0
        %4420 = vmatpush1.bf16.msra.mxu0 0
        %4421 = vmatprep.subr.bf16.mxu0 0
        %4422 = vmatpush1.bf16.msra.mxu0 0
        %4423 = vmatprep.subr.bf16.mxu0 0
        %4424 = vmatpush1.bf16.msra.mxu0 0
        %4425 = vmatprep.subr.bf16.mxu0 0
        %4426 = vmatpush1.bf16.msra.mxu0 0
        %4427 = vmatprep.subr.bf16.mxu0 0
        %4428 = vmatpush1.bf16.msra.mxu0 0
        %4429 = vmatprep.subr.bf16.mxu0 0
        %4430 = vmatpush1.bf16.msra.mxu0 0
        %4431 = vmatprep.subr.bf16.mxu0 0
        %4432 = vmatpush1.bf16.msra.mxu0 0
        %4433 = vmatprep.subr.bf16.mxu0 0
        %4434 = vmatpush1.bf16.msra.mxu0 0
        %4435 = vmatprep.subr.bf16.mxu0 0
        %4436 = vmatpush1.bf16.msra.mxu0 0
        %4437 = vmatprep.subr.bf16.mxu0 0
        %4438 = vmatpush1.bf16.msra.mxu0 0
        %4439 = vmatprep.subr.bf16.mxu0 0
        %4440 = vmatpush1.bf16.msra.mxu0 0
        %4441 = vmatprep.subr.bf16.mxu0 0
        %4442 = vmatpush1.bf16.msra.mxu0 0
        %4443 = vmatprep.mubr.bf16.mxu0 0
        %4444 = vmatmul.mubr.bf16.gmra.mrb[0].mxu0 %v4280
        %v4445 = vpop.f32.mrb[0].mxu0
        %v4446 = vadd.f32 0.0, %v4445
        %v4447 = vpop.f32.mrb[0].mxu0
        %v4448 = vadd.f32 0.0, %v4447
        %v4449 = vpop.f32.mrb[0].mxu0
        %v4450 = vadd.f32 0.0, %v4449
        %v4451 = vpop.f32.mrb[0].mxu0
        %v4452 = vadd.f32 0.0, %v4451
        %4453 = vdwg.mxu0
        %v4456 = vunpack.c.l.b16 %v4269
        %v4457 = vunpack.c.l.b16 %v4270
        %v4458 = vpack.c.b16 %v4457, %v4456
        %v4460 = vsel %vm1843, %v4458, 0
        %4462 = vmatprep.subr.bf16.mxu0 %v1117
        %4463 = vmatpush1.bf16.msra.mxu0 %v1116
        %4464 = vmatprep.subr.bf16.mxu0 %v1127
        %4465 = vmatpush1.bf16.msra.mxu0 %v1126
        %4466 = vmatprep.subr.bf16.mxu0 0
        %4467 = vmatpush1.bf16.msra.mxu0 0
        %4468 = vmatprep.subr.bf16.mxu0 0
        %4469 = vmatpush1.bf16.msra.mxu0 0
        %4470 = vmatprep.subr.bf16.mxu0 0
        %4471 = vmatpush1.bf16.msra.mxu0 0
        %4472 = vmatprep.subr.bf16.mxu0 0
        %4473 = vmatpush1.bf16.msra.mxu0 0
        %4474 = vmatprep.subr.bf16.mxu0 0
        %4475 = vmatpush1.bf16.msra.mxu0 0
        %4476 = vmatprep.subr.bf16.mxu0 0
        %4477 = vmatpush1.bf16.msra.mxu0 0
        %4478 = vmatprep.subr.bf16.mxu0 0
        %4479 = vmatpush1.bf16.msra.mxu0 0
        %4480 = vmatprep.subr.bf16.mxu0 0
        %4481 = vmatpush1.bf16.msra.mxu0 0
        %4482 = vmatprep.subr.bf16.mxu0 0
        %4483 = vmatpush1.bf16.msra.mxu0 0
        %4484 = vmatprep.subr.bf16.mxu0 0
        %4485 = vmatpush1.bf16.msra.mxu0 0
        %4486 = vmatprep.subr.bf16.mxu0 0
        %4487 = vmatpush1.bf16.msra.mxu0 0
        %4488 = vmatprep.subr.bf16.mxu0 0
        %4489 = vmatpush1.bf16.msra.mxu0 0
        %4490 = vmatprep.subr.bf16.mxu0 0
        %4491 = vmatpush1.bf16.msra.mxu0 0
        %4492 = vmatprep.subr.bf16.mxu0 0
        %4493 = vmatpush1.bf16.msra.mxu0 0
        %4494 = vmatprep.mubr.bf16.mxu0 0
        %4495 = vmatmul.mubr.bf16.gmra.mrb[0].mxu0 %v4460
        %v4496 = vpop.f32.mrb[0].mxu0
        %v4497 = vadd.f32 %v4317, %v4496
        %v4498 = vpop.f32.mrb[0].mxu0
        %v4499 = vadd.f32 %v4319, %v4498
        %v4500 = vpop.f32.mrb[0].mxu0
        %v4501 = vadd.f32 %v4321, %v4500
        %v4502 = vpop.f32.mrb[0].mxu0
        %v4503 = vadd.f32 %v4323, %v4502
        %4504 = vdwg.mxu0
        %4505 = vmatprep.subr.bf16.mxu0 %v1119
        %4506 = vmatpush1.bf16.msra.mxu0 %v1118
        %4507 = vmatprep.subr.bf16.mxu0 %v1129
        %4508 = vmatpush1.bf16.msra.mxu0 %v1128
        %4509 = vmatprep.subr.bf16.mxu0 0
        %4510 = vmatpush1.bf16.msra.mxu0 0
        %4511 = vmatprep.subr.bf16.mxu0 0
        %4512 = vmatpush1.bf16.msra.mxu0 0
        %4513 = vmatprep.subr.bf16.mxu0 0
        %4514 = vmatpush1.bf16.msra.mxu0 0
        %4515 = vmatprep.subr.bf16.mxu0 0
        %4516 = vmatpush1.bf16.msra.mxu0 0
        %4517 = vmatprep.subr.bf16.mxu0 0
        %4518 = vmatpush1.bf16.msra.mxu0 0
        %4519 = vmatprep.subr.bf16.mxu0 0
        %4520 = vmatpush1.bf16.msra.mxu0 0
        %4521 = vmatprep.subr.bf16.mxu0 0
        %4522 = vmatpush1.bf16.msra.mxu0 0
        %4523 = vmatprep.subr.bf16.mxu0 0
        %4524 = vmatpush1.bf16.msra.mxu0 0
        %4525 = vmatprep.subr.bf16.mxu0 0
        %4526 = vmatpush1.bf16.msra.mxu0 0
        %4527 = vmatprep.subr.bf16.mxu0 0
        %4528 = vmatpush1.bf16.msra.mxu0 0
        %4529 = vmatprep.subr.bf16.mxu0 0
        %4530 = vmatpush1.bf16.msra.mxu0 0
        %4531 = vmatprep.subr.bf16.mxu0 0
        %4532 = vmatpush1.bf16.msra.mxu0 0
        %4533 = vmatprep.subr.bf16.mxu0 0
        %4534 = vmatpush1.bf16.msra.mxu0 0
        %4535 = vmatprep.subr.bf16.mxu0 0
        %4536 = vmatpush1.bf16.msra.mxu0 0
        %4537 = vmatprep.mubr.bf16.mxu0 0
        %4538 = vmatmul.mubr.bf16.gmra.mrb[0].mxu0 %v4460
        %v4539 = vpop.f32.mrb[0].mxu0
        %v4540 = vadd.f32 %v4360, %v4539
        %v4541 = vpop.f32.mrb[0].mxu0
        %v4542 = vadd.f32 %v4362, %v4541
        %v4543 = vpop.f32.mrb[0].mxu0
        %v4544 = vadd.f32 %v4364, %v4543
        %v4545 = vpop.f32.mrb[0].mxu0
        %v4546 = vadd.f32 %v4366, %v4545
        %4547 = vdwg.mxu0
        %4548 = vmatprep.subr.bf16.mxu0 %v1121
        %4549 = vmatpush1.bf16.msra.mxu0 %v1120
        %4550 = vmatprep.subr.bf16.mxu0 %v1131
        %4551 = vmatpush1.bf16.msra.mxu0 %v1130
        %4552 = vmatprep.subr.bf16.mxu0 0
        %4553 = vmatpush1.bf16.msra.mxu0 0
        %4554 = vmatprep.subr.bf16.mxu0 0
        %4555 = vmatpush1.bf16.msra.mxu0 0
        %4556 = vmatprep.subr.bf16.mxu0 0
        %4557 = vmatpush1.bf16.msra.mxu0 0
        %4558 = vmatprep.subr.bf16.mxu0 0
        %4559 = vmatpush1.bf16.msra.mxu0 0
        %4560 = vmatprep.subr.bf16.mxu0 0
        %4561 = vmatpush1.bf16.msra.mxu0 0
        %4562 = vmatprep.subr.bf16.mxu0 0
        %4563 = vmatpush1.bf16.msra.mxu0 0
        %4564 = vmatprep.subr.bf16.mxu0 0
        %4565 = vmatpush1.bf16.msra.mxu0 0
        %4566 = vmatprep.subr.bf16.mxu0 0
        %4567 = vmatpush1.bf16.msra.mxu0 0
        %4568 = vmatprep.subr.bf16.mxu0 0
        %4569 = vmatpush1.bf16.msra.mxu0 0
        %4570 = vmatprep.subr.bf16.mxu0 0
        %4571 = vmatpush1.bf16.msra.mxu0 0
        %4572 = vmatprep.subr.bf16.mxu0 0
        %4573 = vmatpush1.bf16.msra.mxu0 0
        %4574 = vmatprep.subr.bf16.mxu0 0
        %4575 = vmatpush1.bf16.msra.mxu0 0
        %4576 = vmatprep.subr.bf16.mxu0 0
        %4577 = vmatpush1.bf16.msra.mxu0 0
        %4578 = vmatprep.subr.bf16.mxu0 0
        %4579 = vmatpush1.bf16.msra.mxu0 0
        %4580 = vmatprep.mubr.bf16.mxu0 0
        %4581 = vmatmul.mubr.bf16.gmra.mrb[0].mxu0 %v4460
        %v4582 = vpop.f32.mrb[0].mxu0
        %v4583 = vadd.f32 %v4403, %v4582
        %v4584 = vpop.f32.mrb[0].mxu0
        %v4585 = vadd.f32 %v4405, %v4584
        %v4586 = vpop.f32.mrb[0].mxu0
        %v4587 = vadd.f32 %v4407, %v4586
        %v4588 = vpop.f32.mrb[0].mxu0
        %v4589 = vadd.f32 %v4409, %v4588
        %4590 = vdwg.mxu0
        %4591 = vmatprep.subr.bf16.mxu0 %v1123
        %4592 = vmatpush1.bf16.msra.mxu0 %v1122
        %4593 = vmatprep.subr.bf16.mxu0 %v1133
        %4594 = vmatpush1.bf16.msra.mxu0 %v1132
        %4595 = vmatprep.subr.bf16.mxu0 0
        %4596 = vmatpush1.bf16.msra.mxu0 0
        %4597 = vmatprep.subr.bf16.mxu0 0
        %4598 = vmatpush1.bf16.msra.mxu0 0
        %4599 = vmatprep.subr.bf16.mxu0 0
        %4600 = vmatpush1.bf16.msra.mxu0 0
        %4601 = vmatprep.subr.bf16.mxu0 0
        %4602 = vmatpush1.bf16.msra.mxu0 0
        %4603 = vmatprep.subr.bf16.mxu0 0
        %4604 = vmatpush1.bf16.msra.mxu0 0
        %4605 = vmatprep.subr.bf16.mxu0 0
        %4606 = vmatpush1.bf16.msra.mxu0 0
        %4607 = vmatprep.subr.bf16.mxu0 0
        %4608 = vmatpush1.bf16.msra.mxu0 0
        %4609 = vmatprep.subr.bf16.mxu0 0
        %4610 = vmatpush1.bf16.msra.mxu0 0
        %4611 = vmatprep.subr.bf16.mxu0 0
        %4612 = vmatpush1.bf16.msra.mxu0 0
        %4613 = vmatprep.subr.bf16.mxu0 0
        %4614 = vmatpush1.bf16.msra.mxu0 0
        %4615 = vmatprep.subr.bf16.mxu0 0
        %4616 = vmatpush1.bf16.msra.mxu0 0
        %4617 = vmatprep.subr.bf16.mxu0 0
        %4618 = vmatpush1.bf16.msra.mxu0 0
        %4619 = vmatprep.subr.bf16.mxu0 0
        %4620 = vmatpush1.bf16.msra.mxu0 0
        %4621 = vmatprep.subr.bf16.mxu0 0
        %4622 = vmatpush1.bf16.msra.mxu0 0
        %4623 = vmatprep.mubr.bf16.mxu0 0
        %4624 = vmatmul.mubr.bf16.gmra.mrb[0].mxu0 %v4460
        %v4625 = vpop.f32.mrb[0].mxu0
        %v4626 = vadd.f32 %v4446, %v4625
        %v4627 = vpop.f32.mrb[0].mxu0
        %v4628 = vadd.f32 %v4448, %v4627
        %v4629 = vpop.f32.mrb[0].mxu0
        %v4630 = vadd.f32 %v4450, %v4629
        %v4631 = vpop.f32.mrb[0].mxu0
        %v4632 = vadd.f32 %v4452, %v4631
        %4633 = vdwg.mxu0
        %s4634 = scalar_lea.vmem %s7, 40
        %v4635 = vld [vmem:[%s4634] sm:$0xf]
        %v4636 = vld [vmem:[%s4634 + $0x4] sm:$0xf]
        %v4639 = vunpack.c.l.b16 %v4635
        %v4640 = vunpack.c.l.b16 %v4636
        %v4641 = vpack.c.b16 %v4640, %v4639
        %v4643 = vsel %vm1843, %v4641, 0
        %4645 = vmatprep.subr.bf16.mxu0 %v1118
        %4646 = vmatpush1.bf16.msra.mxu0 %v1117
        %4647 = vmatprep.subr.bf16.mxu0 %v1128
        %4648 = vmatpush1.bf16.msra.mxu0 %v1127
        %4649 = vmatprep.subr.bf16.mxu0 0
        %4650 = vmatpush1.bf16.msra.mxu0 0
        %4651 = vmatprep.subr.bf16.mxu0 0
        %4652 = vmatpush1.bf16.msra.mxu0 0
        %4653 = vmatprep.subr.bf16.mxu0 0
        %4654 = vmatpush1.bf16.msra.mxu0 0
        %4655 = vmatprep.subr.bf16.mxu0 0
        %4656 = vmatpush1.bf16.msra.mxu0 0
        %4657 = vmatprep.subr.bf16.mxu0 0
        %4658 = vmatpush1.bf16.msra.mxu0 0
        %4659 = vmatprep.subr.bf16.mxu0 0
        %4660 = vmatpush1.bf16.msra.mxu0 0
        %4661 = vmatprep.subr.bf16.mxu0 0
        %4662 = vmatpush1.bf16.msra.mxu0 0
        %4663 = vmatprep.subr.bf16.mxu0 0
        %4664 = vmatpush1.bf16.msra.mxu0 0
        %4665 = vmatprep.subr.bf16.mxu0 0
        %4666 = vmatpush1.bf16.msra.mxu0 0
        %4667 = vmatprep.subr.bf16.mxu0 0
        %4668 = vmatpush1.bf16.msra.mxu0 0
        %4669 = vmatprep.subr.bf16.mxu0 0
        %4670 = vmatpush1.bf16.msra.mxu0 0
        %4671 = vmatprep.subr.bf16.mxu0 0
        %4672 = vmatpush1.bf16.msra.mxu0 0
        %4673 = vmatprep.subr.bf16.mxu0 0
        %4674 = vmatpush1.bf16.msra.mxu0 0
        %4675 = vmatprep.subr.bf16.mxu0 0
        %4676 = vmatpush1.bf16.msra.mxu0 0
        %4677 = vmatprep.mubr.bf16.mxu0 0
        %4678 = vmatmul.mubr.bf16.gmra.mrb[0].mxu0 %v4643
        %v4679 = vpop.f32.mrb[0].mxu0
        %v4680 = vadd.f32 0.0, %v4679
        %v4681 = vpop.f32.mrb[0].mxu0
        %v4682 = vadd.f32 0.0, %v4681
        %v4683 = vpop.f32.mrb[0].mxu0
        %v4684 = vadd.f32 0.0, %v4683
        %v4685 = vpop.f32.mrb[0].mxu0
        %v4686 = vadd.f32 0.0, %v4685
        %4687 = vdwg.mxu0
        %4688 = vmatprep.subr.bf16.mxu0 %v1120
        %4689 = vmatpush1.bf16.msra.mxu0 %v1119
        %4690 = vmatprep.subr.bf16.mxu0 %v1130
        %4691 = vmatpush1.bf16.msra.mxu0 %v1129
        %4692 = vmatprep.subr.bf16.mxu0 0
        %4693 = vmatpush1.bf16.msra.mxu0 0
        %4694 = vmatprep.subr.bf16.mxu0 0
        %4695 = vmatpush1.bf16.msra.mxu0 0
        %4696 = vmatprep.subr.bf16.mxu0 0
        %4697 = vmatpush1.bf16.msra.mxu0 0
        %4698 = vmatprep.subr.bf16.mxu0 0
        %4699 = vmatpush1.bf16.msra.mxu0 0
        %4700 = vmatprep.subr.bf16.mxu0 0
        %4701 = vmatpush1.bf16.msra.mxu0 0
        %4702 = vmatprep.subr.bf16.mxu0 0
        %4703 = vmatpush1.bf16.msra.mxu0 0
        %4704 = vmatprep.subr.bf16.mxu0 0
        %4705 = vmatpush1.bf16.msra.mxu0 0
        %4706 = vmatprep.subr.bf16.mxu0 0
        %4707 = vmatpush1.bf16.msra.mxu0 0
        %4708 = vmatprep.subr.bf16.mxu0 0
        %4709 = vmatpush1.bf16.msra.mxu0 0
        %4710 = vmatprep.subr.bf16.mxu0 0
        %4711 = vmatpush1.bf16.msra.mxu0 0
        %4712 = vmatprep.subr.bf16.mxu0 0
        %4713 = vmatpush1.bf16.msra.mxu0 0
        %4714 = vmatprep.subr.bf16.mxu0 0
        %4715 = vmatpush1.bf16.msra.mxu0 0
        %4716 = vmatprep.subr.bf16.mxu0 0
        %4717 = vmatpush1.bf16.msra.mxu0 0
        %4718 = vmatprep.subr.bf16.mxu0 0
        %4719 = vmatpush1.bf16.msra.mxu0 0
        %4720 = vmatprep.mubr.bf16.mxu0 0
        %4721 = vmatmul.mubr.bf16.gmra.mrb[0].mxu0 %v4643
        %v4722 = vpop.f32.mrb[0].mxu0
        %v4723 = vadd.f32 0.0, %v4722
        %v4724 = vpop.f32.mrb[0].mxu0
        %v4725 = vadd.f32 0.0, %v4724
        %v4726 = vpop.f32.mrb[0].mxu0
        %v4727 = vadd.f32 0.0, %v4726
        %v4728 = vpop.f32.mrb[0].mxu0
        %v4729 = vadd.f32 0.0, %v4728
        %4730 = vdwg.mxu0
        %4731 = vmatprep.subr.bf16.mxu0 %v1122
        %4732 = vmatpush1.bf16.msra.mxu0 %v1121
        %4733 = vmatprep.subr.bf16.mxu0 %v1132
        %4734 = vmatpush1.bf16.msra.mxu0 %v1131
        %4735 = vmatprep.subr.bf16.mxu0 0
        %4736 = vmatpush1.bf16.msra.mxu0 0
        %4737 = vmatprep.subr.bf16.mxu0 0
        %4738 = vmatpush1.bf16.msra.mxu0 0
        %4739 = vmatprep.subr.bf16.mxu0 0
        %4740 = vmatpush1.bf16.msra.mxu0 0
        %4741 = vmatprep.subr.bf16.mxu0 0
        %4742 = vmatpush1.bf16.msra.mxu0 0
        %4743 = vmatprep.subr.bf16.mxu0 0
        %4744 = vmatpush1.bf16.msra.mxu0 0
        %4745 = vmatprep.subr.bf16.mxu0 0
        %4746 = vmatpush1.bf16.msra.mxu0 0
        %4747 = vmatprep.subr.bf16.mxu0 0
        %4748 = vmatpush1.bf16.msra.mxu0 0
        %4749 = vmatprep.subr.bf16.mxu0 0
        %4750 = vmatpush1.bf16.msra.mxu0 0
        %4751 = vmatprep.subr.bf16.mxu0 0
        %4752 = vmatpush1.bf16.msra.mxu0 0
        %4753 = vmatprep.subr.bf16.mxu0 0
        %4754 = vmatpush1.bf16.msra.mxu0 0
        %4755 = vmatprep.subr.bf16.mxu0 0
        %4756 = vmatpush1.bf16.msra.mxu0 0
        %4757 = vmatprep.subr.bf16.mxu0 0
        %4758 = vmatpush1.bf16.msra.mxu0 0
        %4759 = vmatprep.subr.bf16.mxu0 0
        %4760 = vmatpush1.bf16.msra.mxu0 0
        %4761 = vmatprep.subr.bf16.mxu0 0
        %4762 = vmatpush1.bf16.msra.mxu0 0
        %4763 = vmatprep.mubr.bf16.mxu0 0
        %4764 = vmatmul.mubr.bf16.gmra.mrb[0].mxu0 %v4643
        %v4765 = vpop.f32.mrb[0].mxu0
        %v4766 = vadd.f32 0.0, %v4765
        %v4767 = vpop.f32.mrb[0].mxu0
        %v4768 = vadd.f32 0.0, %v4767
        %v4769 = vpop.f32.mrb[0].mxu0
        %v4770 = vadd.f32 0.0, %v4769
        %v4771 = vpop.f32.mrb[0].mxu0
        %v4772 = vadd.f32 0.0, %v4771
        %4773 = vdwg.mxu0
        %4774 = vmatprep.subr.bf16.mxu0 %v1124
        %4775 = vmatpush1.bf16.msra.mxu0 %v1123
        %4776 = vmatprep.subr.bf16.mxu0 %v1134
        %4777 = vmatpush1.bf16.msra.mxu0 %v1133
        %4778 = vmatprep.subr.bf16.mxu0 0
        %4779 = vmatpush1.bf16.msra.mxu0 0
        %4780 = vmatprep.subr.bf16.mxu0 0
        %4781 = vmatpush1.bf16.msra.mxu0 0
        %4782 = vmatprep.subr.bf16.mxu0 0
        %4783 = vmatpush1.bf16.msra.mxu0 0
        %4784 = vmatprep.subr.bf16.mxu0 0
        %4785 = vmatpush1.bf16.msra.mxu0 0
        %4786 = vmatprep.subr.bf16.mxu0 0
        %4787 = vmatpush1.bf16.msra.mxu0 0
        %4788 = vmatprep.subr.bf16.mxu0 0
        %4789 = vmatpush1.bf16.msra.mxu0 0
        %4790 = vmatprep.subr.bf16.mxu0 0
        %4791 = vmatpush1.bf16.msra.mxu0 0
        %4792 = vmatprep.subr.bf16.mxu0 0
        %4793 = vmatpush1.bf16.msra.mxu0 0
        %4794 = vmatprep.subr.bf16.mxu0 0
        %4795 = vmatpush1.bf16.msra.mxu0 0
        %4796 = vmatprep.subr.bf16.mxu0 0
        %4797 = vmatpush1.bf16.msra.mxu0 0
        %4798 = vmatprep.subr.bf16.mxu0 0
        %4799 = vmatpush1.bf16.msra.mxu0 0
        %4800 = vmatprep.subr.bf16.mxu0 0
        %4801 = vmatpush1.bf16.msra.mxu0 0
        %4802 = vmatprep.subr.bf16.mxu0 0
        %4803 = vmatpush1.bf16.msra.mxu0 0
        %4804 = vmatprep.subr.bf16.mxu0 0
        %4805 = vmatpush1.bf16.msra.mxu0 0
        %4806 = vmatprep.mubr.bf16.mxu0 0
        %4807 = vmatmul.mubr.bf16.gmra.mrb[0].mxu0 %v4643
        %v4808 = vpop.f32.mrb[0].mxu0
        %v4809 = vadd.f32 0.0, %v4808
        %v4810 = vpop.f32.mrb[0].mxu0
        %v4811 = vadd.f32 0.0, %v4810
        %v4812 = vpop.f32.mrb[0].mxu0
        %v4813 = vadd.f32 0.0, %v4812
        %v4814 = vpop.f32.mrb[0].mxu0
        %v4815 = vadd.f32 0.0, %v4814
        %4816 = vdwg.mxu0
        %v4817 = vadd.f32 %v4497, %v4680
        %v4818 = vadd.f32 %v4499, %v4682
        %v4819 = vadd.f32 %v4540, %v4723
        %v4820 = vadd.f32 %v4542, %v4725
        %v4821 = vadd.f32 %v4583, %v4766
        %v4822 = vadd.f32 %v4585, %v4768
        %v4823 = vadd.f32 %v4626, %v4809
        %v4824 = vadd.f32 %v4628, %v4811
        %v4825 = vadd.f32 %v4501, %v4684
        %v4826 = vadd.f32 %v4503, %v4686
        %v4827 = vadd.f32 %v4544, %v4727
        %v4828 = vadd.f32 %v4546, %v4729
        %v4829 = vadd.f32 %v4587, %v4770
        %v4830 = vadd.f32 %v4589, %v4772
        %v4831 = vadd.f32 %v4630, %v4813
        %v4832 = vadd.f32 %v4632, %v4815
        %s4833 = scalar_lea.vmem %s8, 40
        %v4834 = vld [vmem:[%s4833] sm:$0xf]
        %v4835 = vld [vmem:[%s4833 + $0x4] sm:$0xf]
        %v4838 = vunpack.c.l.b16 %v4834
        %v4839 = vunpack.c.l.b16 %v4835
        %v4840 = vpack.c.b16 %v4839, %v4838
        %v4842 = vsel %vm1843, %v4840, 0
        %4844 = vmatprep.subr.bf16.mxu0 %v1709
        %4845 = vmatpush1.bf16.msra.mxu0 %v1708
        %4846 = vmatprep.subr.bf16.mxu0 %v1719
        %4847 = vmatpush1.bf16.msra.mxu0 %v1718
        %4848 = vmatprep.subr.bf16.mxu0 0
        %4849 = vmatpush1.bf16.msra.mxu0 0
        %4850 = vmatprep.subr.bf16.mxu0 0
        %4851 = vmatpush1.bf16.msra.mxu0 0
        %4852 = vmatprep.subr.bf16.mxu0 0
        %4853 = vmatpush1.bf16.msra.mxu0 0
        %4854 = vmatprep.subr.bf16.mxu0 0
        %4855 = vmatpush1.bf16.msra.mxu0 0
        %4856 = vmatprep.subr.bf16.mxu0 0
        %4857 = vmatpush1.bf16.msra.mxu0 0
        %4858 = vmatprep.subr.bf16.mxu0 0
        %4859 = vmatpush1.bf16.msra.mxu0 0
        %4860 = vmatprep.subr.bf16.mxu0 0
        %4861 = vmatpush1.bf16.msra.mxu0 0
        %4862 = vmatprep.subr.bf16.mxu0 0
        %4863 = vmatpush1.bf16.msra.mxu0 0
        %4864 = vmatprep.subr.bf16.mxu0 0
        %4865 = vmatpush1.bf16.msra.mxu0 0
        %4866 = vmatprep.subr.bf16.mxu0 0
        %4867 = vmatpush1.bf16.msra.mxu0 0
        %4868 = vmatprep.subr.bf16.mxu0 0
        %4869 = vmatpush1.bf16.msra.mxu0 0
        %4870 = vmatprep.subr.bf16.mxu0 0
        %4871 = vmatpush1.bf16.msra.mxu0 0
        %4872 = vmatprep.subr.bf16.mxu0 0
        %4873 = vmatpush1.bf16.msra.mxu0 0
        %4874 = vmatprep.subr.bf16.mxu0 0
        %4875 = vmatpush1.bf16.msra.mxu0 0
        %4876 = vmatprep.mubr.bf16.mxu0 0
        %4877 = vmatmul.mubr.bf16.gmra.mrb[0].mxu0 %v4842
        %v4878 = vpop.f32.mrb[0].mxu0
        %v4879 = vadd.f32 0.0, %v4878
        %v4880 = vpop.f32.mrb[0].mxu0
        %v4881 = vadd.f32 0.0, %v4880
        %v4882 = vpop.f32.mrb[0].mxu0
        %v4883 = vadd.f32 0.0, %v4882
        %v4884 = vpop.f32.mrb[0].mxu0
        %v4885 = vadd.f32 0.0, %v4884
        %4886 = vdwg.mxu0
        %4887 = vmatprep.subr.bf16.mxu0 %v1711
        %4888 = vmatpush1.bf16.msra.mxu0 %v1710
        %4889 = vmatprep.subr.bf16.mxu0 %v1721
        %4890 = vmatpush1.bf16.msra.mxu0 %v1720
        %4891 = vmatprep.subr.bf16.mxu0 0
        %4892 = vmatpush1.bf16.msra.mxu0 0
        %4893 = vmatprep.subr.bf16.mxu0 0
        %4894 = vmatpush1.bf16.msra.mxu0 0
        %4895 = vmatprep.subr.bf16.mxu0 0
        %4896 = vmatpush1.bf16.msra.mxu0 0
        %4897 = vmatprep.subr.bf16.mxu0 0
        %4898 = vmatpush1.bf16.msra.mxu0 0
        %4899 = vmatprep.subr.bf16.mxu0 0
        %4900 = vmatpush1.bf16.msra.mxu0 0
        %4901 = vmatprep.subr.bf16.mxu0 0
        %4902 = vmatpush1.bf16.msra.mxu0 0
        %4903 = vmatprep.subr.bf16.mxu0 0
        %4904 = vmatpush1.bf16.msra.mxu0 0
        %4905 = vmatprep.subr.bf16.mxu0 0
        %4906 = vmatpush1.bf16.msra.mxu0 0
        %4907 = vmatprep.subr.bf16.mxu0 0
        %4908 = vmatpush1.bf16.msra.mxu0 0
        %4909 = vmatprep.subr.bf16.mxu0 0
        %4910 = vmatpush1.bf16.msra.mxu0 0
        %4911 = vmatprep.subr.bf16.mxu0 0
        %4912 = vmatpush1.bf16.msra.mxu0 0
        %4913 = vmatprep.subr.bf16.mxu0 0
        %4914 = vmatpush1.bf16.msra.mxu0 0
        %4915 = vmatprep.subr.bf16.mxu0 0
        %4916 = vmatpush1.bf16.msra.mxu0 0
        %4917 = vmatprep.subr.bf16.mxu0 0
        %4918 = vmatpush1.bf16.msra.mxu0 0
        %4919 = vmatprep.mubr.bf16.mxu0 0
        %4920 = vmatmul.mubr.bf16.gmra.mrb[0].mxu0 %v4842
        %v4921 = vpop.f32.mrb[0].mxu0
        %v4922 = vadd.f32 0.0, %v4921
        %v4923 = vpop.f32.mrb[0].mxu0
        %v4924 = vadd.f32 0.0, %v4923
        %v4925 = vpop.f32.mrb[0].mxu0
        %v4926 = vadd.f32 0.0, %v4925
        %v4927 = vpop.f32.mrb[0].mxu0
        %v4928 = vadd.f32 0.0, %v4927
        %4929 = vdwg.mxu0
        %4930 = vmatprep.subr.bf16.mxu0 %v1713
        %4931 = vmatpush1.bf16.msra.mxu0 %v1712
        %4932 = vmatprep.subr.bf16.mxu0 %v1723
        %4933 = vmatpush1.bf16.msra.mxu0 %v1722
        %4934 = vmatprep.subr.bf16.mxu0 0
        %4935 = vmatpush1.bf16.msra.mxu0 0
        %4936 = vmatprep.subr.bf16.mxu0 0
        %4937 = vmatpush1.bf16.msra.mxu0 0
        %4938 = vmatprep.subr.bf16.mxu0 0
        %4939 = vmatpush1.bf16.msra.mxu0 0
        %4940 = vmatprep.subr.bf16.mxu0 0
        %4941 = vmatpush1.bf16.msra.mxu0 0
        %4942 = vmatprep.subr.bf16.mxu0 0
        %4943 = vmatpush1.bf16.msra.mxu0 0
        %4944 = vmatprep.subr.bf16.mxu0 0
        %4945 = vmatpush1.bf16.msra.mxu0 0
        %4946 = vmatprep.subr.bf16.mxu0 0
        %4947 = vmatpush1.bf16.msra.mxu0 0
        %4948 = vmatprep.subr.bf16.mxu0 0
        %4949 = vmatpush1.bf16.msra.mxu0 0
        %4950 = vmatprep.subr.bf16.mxu0 0
        %4951 = vmatpush1.bf16.msra.mxu0 0
        %4952 = vmatprep.subr.bf16.mxu0 0
        %4953 = vmatpush1.bf16.msra.mxu0 0
        %4954 = vmatprep.subr.bf16.mxu0 0
        %4955 = vmatpush1.bf16.msra.mxu0 0
        %4956 = vmatprep.subr.bf16.mxu0 0
        %4957 = vmatpush1.bf16.msra.mxu0 0
        %4958 = vmatprep.subr.bf16.mxu0 0
        %4959 = vmatpush1.bf16.msra.mxu0 0
        %4960 = vmatprep.subr.bf16.mxu0 0
        %4961 = vmatpush1.bf16.msra.mxu0 0
        %4962 = vmatprep.mubr.bf16.mxu0 0
        %4963 = vmatmul.mubr.bf16.gmra.mrb[0].mxu0 %v4842
        %v4964 = vpop.f32.mrb[0].mxu0
        %v4965 = vadd.f32 0.0, %v4964
        %v4966 = vpop.f32.mrb[0].mxu0
        %v4967 = vadd.f32 0.0, %v4966
        %v4968 = vpop.f32.mrb[0].mxu0
        %v4969 = vadd.f32 0.0, %v4968
        %v4970 = vpop.f32.mrb[0].mxu0
        %v4971 = vadd.f32 0.0, %v4970
        %4972 = vdwg.mxu0
        %4973 = vmatprep.subr.bf16.mxu0 %v1715
        %4974 = vmatpush1.bf16.msra.mxu0 %v1714
        %4975 = vmatprep.subr.bf16.mxu0 %v1725
        %4976 = vmatpush1.bf16.msra.mxu0 %v1724
        %4977 = vmatprep.subr.bf16.mxu0 0
        %4978 = vmatpush1.bf16.msra.mxu0 0
        %4979 = vmatprep.subr.bf16.mxu0 0
        %4980 = vmatpush1.bf16.msra.mxu0 0
        %4981 = vmatprep.subr.bf16.mxu0 0
        %4982 = vmatpush1.bf16.msra.mxu0 0
        %4983 = vmatprep.subr.bf16.mxu0 0
        %4984 = vmatpush1.bf16.msra.mxu0 0
        %4985 = vmatprep.subr.bf16.mxu0 0
        %4986 = vmatpush1.bf16.msra.mxu0 0
        %4987 = vmatprep.subr.bf16.mxu0 0
        %4988 = vmatpush1.bf16.msra.mxu0 0
        %4989 = vmatprep.subr.bf16.mxu0 0
        %4990 = vmatpush1.bf16.msra.mxu0 0
        %4991 = vmatprep.subr.bf16.mxu0 0
        %4992 = vmatpush1.bf16.msra.mxu0 0
        %4993 = vmatprep.subr.bf16.mxu0 0
        %4994 = vmatpush1.bf16.msra.mxu0 0
        %4995 = vmatprep.subr.bf16.mxu0 0
        %4996 = vmatpush1.bf16.msra.mxu0 0
        %4997 = vmatprep.subr.bf16.mxu0 0
        %4998 = vmatpush1.bf16.msra.mxu0 0
        %4999 = vmatprep.subr.bf16.mxu0 0
        %5000 = vmatpush1.bf16.msra.mxu0 0
        %5001 = vmatprep.subr.bf16.mxu0 0
        %5002 = vmatpush1.bf16.msra.mxu0 0
        %5003 = vmatprep.subr.bf16.mxu0 0
        %5004 = vmatpush1.bf16.msra.mxu0 0
        %5005 = vmatprep.mubr.bf16.mxu0 0
        %5006 = vmatmul.mubr.bf16.gmra.mrb[0].mxu0 %v4842
        %v5007 = vpop.f32.mrb[0].mxu0
        %v5008 = vadd.f32 0.0, %v5007
        %v5009 = vpop.f32.mrb[0].mxu0
        %v5010 = vadd.f32 0.0, %v5009
        %v5011 = vpop.f32.mrb[0].mxu0
        %v5012 = vadd.f32 0.0, %v5011
        %v5013 = vpop.f32.mrb[0].mxu0
        %v5014 = vadd.f32 0.0, %v5013
        %5015 = vdwg.mxu0
        %v5016 = vadd.f32 %v4817, %v4879
        %v5017 = vadd.f32 %v4818, %v4881
        %v5018 = vadd.f32 %v4819, %v4922
        %v5019 = vadd.f32 %v4820, %v4924
        %v5020 = vadd.f32 %v4821, %v4965
        %v5021 = vadd.f32 %v4822, %v4967
        %v5022 = vadd.f32 %v4823, %v5008
        %v5023 = vadd.f32 %v4824, %v5010
        %v5024 = vadd.f32 %v4825, %v4883
        %v5025 = vadd.f32 %v4826, %v4885
        %v5026 = vadd.f32 %v4827, %v4926
        %v5027 = vadd.f32 %v4828, %v4928
        %v5028 = vadd.f32 %v4829, %v4969
        %v5029 = vadd.f32 %v4830, %v4971
        %v5030 = vadd.f32 %v4831, %v5012
        %v5031 = vadd.f32 %v4832, %v5014
        %s5032 = scalar_lea.vmem %s7, 64
        %v5033 = vld [vmem:[%s5032] sm:$0xf]
        %v5034 = vld [vmem:[%s5032 + $0x4] sm:$0xf]
        %v5037 = vunpack.c.l.b16 %v5033
        %v5038 = vunpack.c.l.b16 %v5034
        %v5039 = vpack.c.b16 %v5038, %v5037
        %v5041 = vsel %vm1843, %v5039, 0
        %5043 = vmatprep.subr.bf16.mxu0 %v1119
        %5044 = vmatpush1.bf16.msra.mxu0 %v1118
        %5045 = vmatprep.subr.bf16.mxu0 %v1129
        %5046 = vmatpush1.bf16.msra.mxu0 %v1128
        %5047 = vmatprep.subr.bf16.mxu0 0
        %5048 = vmatpush1.bf16.msra.mxu0 0
        %5049 = vmatprep.subr.bf16.mxu0 0
        %5050 = vmatpush1.bf16.msra.mxu0 0
        %5051 = vmatprep.subr.bf16.mxu0 0
        %5052 = vmatpush1.bf16.msra.mxu0 0
        %5053 = vmatprep.subr.bf16.mxu0 0
        %5054 = vmatpush1.bf16.msra.mxu0 0
        %5055 = vmatprep.subr.bf16.mxu0 0
        %5056 = vmatpush1.bf16.msra.mxu0 0
        %5057 = vmatprep.subr.bf16.mxu0 0
        %5058 = vmatpush1.bf16.msra.mxu0 0
        %5059 = vmatprep.subr.bf16.mxu0 0
        %5060 = vmatpush1.bf16.msra.mxu0 0
        %5061 = vmatprep.subr.bf16.mxu0 0
        %5062 = vmatpush1.bf16.msra.mxu0 0
        %5063 = vmatprep.subr.bf16.mxu0 0
        %5064 = vmatpush1.bf16.msra.mxu0 0
        %5065 = vmatprep.subr.bf16.mxu0 0
        %5066 = vmatpush1.bf16.msra.mxu0 0
        %5067 = vmatprep.subr.bf16.mxu0 0
        %5068 = vmatpush1.bf16.msra.mxu0 0
        %5069 = vmatprep.subr.bf16.mxu0 0
        %5070 = vmatpush1.bf16.msra.mxu0 0
        %5071 = vmatprep.subr.bf16.mxu0 0
        %5072 = vmatpush1.bf16.msra.mxu0 0
        %5073 = vmatprep.subr.bf16.mxu0 0
        %5074 = vmatpush1.bf16.msra.mxu0 0
        %5075 = vmatprep.mubr.bf16.mxu0 0
        %5076 = vmatmul.mubr.bf16.gmra.mrb[0].mxu0 %v5041
        %v5077 = vpop.f32.mrb[0].mxu0
        %v5078 = vadd.f32 0.0, %v5077
        %v5079 = vpop.f32.mrb[0].mxu0
        %v5080 = vadd.f32 0.0, %v5079
        %v5081 = vpop.f32.mrb[0].mxu0
        %v5082 = vadd.f32 0.0, %v5081
        %v5083 = vpop.f32.mrb[0].mxu0
        %v5084 = vadd.f32 0.0, %v5083
        %5085 = vdwg.mxu0
        %5086 = vmatprep.subr.bf16.mxu0 %v1121
        %5087 = vmatpush1.bf16.msra.mxu0 %v1120
        %5088 = vmatprep.subr.bf16.mxu0 %v1131
        %5089 = vmatpush1.bf16.msra.mxu0 %v1130
        %5090 = vmatprep.subr.bf16.mxu0 0
        %5091 = vmatpush1.bf16.msra.mxu0 0
        %5092 = vmatprep.subr.bf16.mxu0 0
        %5093 = vmatpush1.bf16.msra.mxu0 0
        %5094 = vmatprep.subr.bf16.mxu0 0
        %5095 = vmatpush1.bf16.msra.mxu0 0
        %5096 = vmatprep.subr.bf16.mxu0 0
        %5097 = vmatpush1.bf16.msra.mxu0 0
        %5098 = vmatprep.subr.bf16.mxu0 0
        %5099 = vmatpush1.bf16.msra.mxu0 0
        %5100 = vmatprep.subr.bf16.mxu0 0
        %5101 = vmatpush1.bf16.msra.mxu0 0
        %5102 = vmatprep.subr.bf16.mxu0 0
        %5103 = vmatpush1.bf16.msra.mxu0 0
        %5104 = vmatprep.subr.bf16.mxu0 0
        %5105 = vmatpush1.bf16.msra.mxu0 0
        %5106 = vmatprep.subr.bf16.mxu0 0
        %5107 = vmatpush1.bf16.msra.mxu0 0
        %5108 = vmatprep.subr.bf16.mxu0 0
        %5109 = vmatpush1.bf16.msra.mxu0 0
        %5110 = vmatprep.subr.bf16.mxu0 0
        %5111 = vmatpush1.bf16.msra.mxu0 0
        %5112 = vmatprep.subr.bf16.mxu0 0
        %5113 = vmatpush1.bf16.msra.mxu0 0
        %5114 = vmatprep.subr.bf16.mxu0 0
        %5115 = vmatpush1.bf16.msra.mxu0 0
        %5116 = vmatprep.subr.bf16.mxu0 0
        %5117 = vmatpush1.bf16.msra.mxu0 0
        %5118 = vmatprep.mubr.bf16.mxu0 0
        %5119 = vmatmul.mubr.bf16.gmra.mrb[0].mxu0 %v5041
        %v5120 = vpop.f32.mrb[0].mxu0
        %v5121 = vadd.f32 0.0, %v5120
        %v5122 = vpop.f32.mrb[0].mxu0
        %v5123 = vadd.f32 0.0, %v5122
        %v5124 = vpop.f32.mrb[0].mxu0
        %v5125 = vadd.f32 0.0, %v5124
        %v5126 = vpop.f32.mrb[0].mxu0
        %v5127 = vadd.f32 0.0, %v5126
        %5128 = vdwg.mxu0
        %5129 = vmatprep.subr.bf16.mxu0 %v1123
        %5130 = vmatpush1.bf16.msra.mxu0 %v1122
        %5131 = vmatprep.subr.bf16.mxu0 %v1133
        %5132 = vmatpush1.bf16.msra.mxu0 %v1132
        %5133 = vmatprep.subr.bf16.mxu0 0
        %5134 = vmatpush1.bf16.msra.mxu0 0
        %5135 = vmatprep.subr.bf16.mxu0 0
        %5136 = vmatpush1.bf16.msra.mxu0 0
        %5137 = vmatprep.subr.bf16.mxu0 0
        %5138 = vmatpush1.bf16.msra.mxu0 0
        %5139 = vmatprep.subr.bf16.mxu0 0
        %5140 = vmatpush1.bf16.msra.mxu0 0
        %5141 = vmatprep.subr.bf16.mxu0 0
        %5142 = vmatpush1.bf16.msra.mxu0 0
        %5143 = vmatprep.subr.bf16.mxu0 0
        %5144 = vmatpush1.bf16.msra.mxu0 0
        %5145 = vmatprep.subr.bf16.mxu0 0
        %5146 = vmatpush1.bf16.msra.mxu0 0
        %5147 = vmatprep.subr.bf16.mxu0 0
        %5148 = vmatpush1.bf16.msra.mxu0 0
        %5149 = vmatprep.subr.bf16.mxu0 0
        %5150 = vmatpush1.bf16.msra.mxu0 0
        %5151 = vmatprep.subr.bf16.mxu0 0
        %5152 = vmatpush1.bf16.msra.mxu0 0
        %5153 = vmatprep.subr.bf16.mxu0 0
        %5154 = vmatpush1.bf16.msra.mxu0 0
        %5155 = vmatprep.subr.bf16.mxu0 0
        %5156 = vmatpush1.bf16.msra.mxu0 0
        %5157 = vmatprep.subr.bf16.mxu0 0
        %5158 = vmatpush1.bf16.msra.mxu0 0
        %5159 = vmatprep.subr.bf16.mxu0 0
        %5160 = vmatpush1.bf16.msra.mxu0 0
        %5161 = vmatprep.mubr.bf16.mxu0 0
        %5162 = vmatmul.mubr.bf16.gmra.mrb[0].mxu0 %v5041
        %v5163 = vpop.f32.mrb[0].mxu0
        %v5164 = vadd.f32 0.0, %v5163
        %v5165 = vpop.f32.mrb[0].mxu0
        %v5166 = vadd.f32 0.0, %v5165
        %v5167 = vpop.f32.mrb[0].mxu0
        %v5168 = vadd.f32 0.0, %v5167
        %v5169 = vpop.f32.mrb[0].mxu0
        %v5170 = vadd.f32 0.0, %v5169
        %5171 = vdwg.mxu0
        %5172 = vmatprep.subr.bf16.mxu0 %v1125
        %5173 = vmatpush1.bf16.msra.mxu0 %v1124
        %5174 = vmatprep.subr.bf16.mxu0 %v1135
        %5175 = vmatpush1.bf16.msra.mxu0 %v1134
        %5176 = vmatprep.subr.bf16.mxu0 0
        %5177 = vmatpush1.bf16.msra.mxu0 0
        %5178 = vmatprep.subr.bf16.mxu0 0
        %5179 = vmatpush1.bf16.msra.mxu0 0
        %5180 = vmatprep.subr.bf16.mxu0 0
        %5181 = vmatpush1.bf16.msra.mxu0 0
        %5182 = vmatprep.subr.bf16.mxu0 0
        %5183 = vmatpush1.bf16.msra.mxu0 0
        %5184 = vmatprep.subr.bf16.mxu0 0
        %5185 = vmatpush1.bf16.msra.mxu0 0
        %5186 = vmatprep.subr.bf16.mxu0 0
        %5187 = vmatpush1.bf16.msra.mxu0 0
        %5188 = vmatprep.subr.bf16.mxu0 0
        %5189 = vmatpush1.bf16.msra.mxu0 0
        %5190 = vmatprep.subr.bf16.mxu0 0
        %5191 = vmatpush1.bf16.msra.mxu0 0
        %5192 = vmatprep.subr.bf16.mxu0 0
        %5193 = vmatpush1.bf16.msra.mxu0 0
        %5194 = vmatprep.subr.bf16.mxu0 0
        %5195 = vmatpush1.bf16.msra.mxu0 0
        %5196 = vmatprep.subr.bf16.mxu0 0
        %5197 = vmatpush1.bf16.msra.mxu0 0
        %5198 = vmatprep.subr.bf16.mxu0 0
        %5199 = vmatpush1.bf16.msra.mxu0 0
        %5200 = vmatprep.subr.bf16.mxu0 0
        %5201 = vmatpush1.bf16.msra.mxu0 0
        %5202 = vmatprep.subr.bf16.mxu0 0
        %5203 = vmatpush1.bf16.msra.mxu0 0
        %5204 = vmatprep.mubr.bf16.mxu0 0
        %5205 = vmatmul.mubr.bf16.gmra.mrb[0].mxu0 %v5041
        %v5206 = vpop.f32.mrb[0].mxu0
        %v5207 = vadd.f32 0.0, %v5206
        %v5208 = vpop.f32.mrb[0].mxu0
        %v5209 = vadd.f32 0.0, %v5208
        %v5210 = vpop.f32.mrb[0].mxu0
        %v5211 = vadd.f32 0.0, %v5210
        %v5212 = vpop.f32.mrb[0].mxu0
        %v5213 = vadd.f32 0.0, %v5212
        %5214 = vdwg.mxu0
        %v5215 = vadd.f32 %v5016, %v5078
        %v5216 = vadd.f32 %v5017, %v5080
        %v5217 = vadd.f32 %v5018, %v5121
        %v5218 = vadd.f32 %v5019, %v5123
        %v5219 = vadd.f32 %v5020, %v5164
        %v5220 = vadd.f32 %v5021, %v5166
        %v5221 = vadd.f32 %v5022, %v5207
        %v5222 = vadd.f32 %v5023, %v5209
        %v5223 = vadd.f32 %v5024, %v5082
        %v5224 = vadd.f32 %v5025, %v5084
        %v5225 = vadd.f32 %v5026, %v5125
        %v5226 = vadd.f32 %v5027, %v5127
        %v5227 = vadd.f32 %v5028, %v5168
        %v5228 = vadd.f32 %v5029, %v5170
        %v5229 = vadd.f32 %v5030, %v5211
        %v5230 = vadd.f32 %v5031, %v5213
        %s5231 = scalar_lea.vmem %s8, 64
        %v5232 = vld [vmem:[%s5231] sm:$0xf]
        %v5233 = vld [vmem:[%s5231 + $0x4] sm:$0xf]
        %v5236 = vunpack.c.l.b16 %v5232
        %v5237 = vunpack.c.l.b16 %v5233
        %v5238 = vpack.c.b16 %v5237, %v5236
        %v5240 = vsel %vm1843, %v5238, 0
        %5242 = vmatprep.subr.bf16.mxu0 %v1710
        %5243 = vmatpush1.bf16.msra.mxu0 %v1709
        %5244 = vmatprep.subr.bf16.mxu0 %v1720
        %5245 = vmatpush1.bf16.msra.mxu0 %v1719
        %5246 = vmatprep.subr.bf16.mxu0 0
        %5247 = vmatpush1.bf16.msra.mxu0 0
        %5248 = vmatprep.subr.bf16.mxu0 0
        %5249 = vmatpush1.bf16.msra.mxu0 0
        %5250 = vmatprep.subr.bf16.mxu0 0
        %5251 = vmatpush1.bf16.msra.mxu0 0
        %5252 = vmatprep.subr.bf16.mxu0 0
        %5253 = vmatpush1.bf16.msra.mxu0 0
        %5254 = vmatprep.subr.bf16.mxu0 0
        %5255 = vmatpush1.bf16.msra.mxu0 0
        %5256 = vmatprep.subr.bf16.mxu0 0
        %5257 = vmatpush1.bf16.msra.mxu0 0
        %5258 = vmatprep.subr.bf16.mxu0 0
        %5259 = vmatpush1.bf16.msra.mxu0 0
        %5260 = vmatprep.subr.bf16.mxu0 0
        %5261 = vmatpush1.bf16.msra.mxu0 0
        %5262 = vmatprep.subr.bf16.mxu0 0
        %5263 = vmatpush1.bf16.msra.mxu0 0
        %5264 = vmatprep.subr.bf16.mxu0 0
        %5265 = vmatpush1.bf16.msra.mxu0 0
        %5266 = vmatprep.subr.bf16.mxu0 0
        %5267 = vmatpush1.bf16.msra.mxu0 0
        %5268 = vmatprep.subr.bf16.mxu0 0
        %5269 = vmatpush1.bf16.msra.mxu0 0
        %5270 = vmatprep.subr.bf16.mxu0 0
        %5271 = vmatpush1.bf16.msra.mxu0 0
        %5272 = vmatprep.subr.bf16.mxu0 0
        %5273 = vmatpush1.bf16.msra.mxu0 0
        %5274 = vmatprep.mubr.bf16.mxu0 0
        %5275 = vmatmul.mubr.bf16.gmra.mrb[0].mxu0 %v5240
        %v5276 = vpop.f32.mrb[0].mxu0
        %v5277 = vadd.f32 0.0, %v5276
        %v5278 = vpop.f32.mrb[0].mxu0
        %v5279 = vadd.f32 0.0, %v5278
        %v5280 = vpop.f32.mrb[0].mxu0
        %v5281 = vadd.f32 0.0, %v5280
        %v5282 = vpop.f32.mrb[0].mxu0
        %v5283 = vadd.f32 0.0, %v5282
        %5284 = vdwg.mxu0
        %5285 = vmatprep.subr.bf16.mxu0 %v1712
        %5286 = vmatpush1.bf16.msra.mxu0 %v1711
        %5287 = vmatprep.subr.bf16.mxu0 %v1722
        %5288 = vmatpush1.bf16.msra.mxu0 %v1721
        %5289 = vmatprep.subr.bf16.mxu0 0
        %5290 = vmatpush1.bf16.msra.mxu0 0
        %5291 = vmatprep.subr.bf16.mxu0 0
        %5292 = vmatpush1.bf16.msra.mxu0 0
        %5293 = vmatprep.subr.bf16.mxu0 0
        %5294 = vmatpush1.bf16.msra.mxu0 0
        %5295 = vmatprep.subr.bf16.mxu0 0
        %5296 = vmatpush1.bf16.msra.mxu0 0
        %5297 = vmatprep.subr.bf16.mxu0 0
        %5298 = vmatpush1.bf16.msra.mxu0 0
        %5299 = vmatprep.subr.bf16.mxu0 0
        %5300 = vmatpush1.bf16.msra.mxu0 0
        %5301 = vmatprep.subr.bf16.mxu0 0
        %5302 = vmatpush1.bf16.msra.mxu0 0
        %5303 = vmatprep.subr.bf16.mxu0 0
        %5304 = vmatpush1.bf16.msra.mxu0 0
        %5305 = vmatprep.subr.bf16.mxu0 0
        %5306 = vmatpush1.bf16.msra.mxu0 0
        %5307 = vmatprep.subr.bf16.mxu0 0
        %5308 = vmatpush1.bf16.msra.mxu0 0
        %5309 = vmatprep.subr.bf16.mxu0 0
        %5310 = vmatpush1.bf16.msra.mxu0 0
        %5311 = vmatprep.subr.bf16.mxu0 0
        %5312 = vmatpush1.bf16.msra.mxu0 0
        %5313 = vmatprep.subr.bf16.mxu0 0
        %5314 = vmatpush1.bf16.msra.mxu0 0
        %5315 = vmatprep.subr.bf16.mxu0 0
        %5316 = vmatpush1.bf16.msra.mxu0 0
        %5317 = vmatprep.mubr.bf16.mxu0 0
        %5318 = vmatmul.mubr.bf16.gmra.mrb[0].mxu0 %v5240
        %v5319 = vpop.f32.mrb[0].mxu0
        %v5320 = vadd.f32 0.0, %v5319
        %v5321 = vpop.f32.mrb[0].mxu0
        %v5322 = vadd.f32 0.0, %v5321
        %v5323 = vpop.f32.mrb[0].mxu0
        %v5324 = vadd.f32 0.0, %v5323
        %v5325 = vpop.f32.mrb[0].mxu0
        %v5326 = vadd.f32 0.0, %v5325
        %5327 = vdwg.mxu0
        %5328 = vmatprep.subr.bf16.mxu0 %v1714
        %5329 = vmatpush1.bf16.msra.mxu0 %v1713
        %5330 = vmatprep.subr.bf16.mxu0 %v1724
        %5331 = vmatpush1.bf16.msra.mxu0 %v1723
        %5332 = vmatprep.subr.bf16.mxu0 0
        %5333 = vmatpush1.bf16.msra.mxu0 0
        %5334 = vmatprep.subr.bf16.mxu0 0
        %5335 = vmatpush1.bf16.msra.mxu0 0
        %5336 = vmatprep.subr.bf16.mxu0 0
        %5337 = vmatpush1.bf16.msra.mxu0 0
        %5338 = vmatprep.subr.bf16.mxu0 0
        %5339 = vmatpush1.bf16.msra.mxu0 0
        %5340 = vmatprep.subr.bf16.mxu0 0
        %5341 = vmatpush1.bf16.msra.mxu0 0
        %5342 = vmatprep.subr.bf16.mxu0 0
        %5343 = vmatpush1.bf16.msra.mxu0 0
        %5344 = vmatprep.subr.bf16.mxu0 0
        %5345 = vmatpush1.bf16.msra.mxu0 0
        %5346 = vmatprep.subr.bf16.mxu0 0
        %5347 = vmatpush1.bf16.msra.mxu0 0
        %5348 = vmatprep.subr.bf16.mxu0 0
        %5349 = vmatpush1.bf16.msra.mxu0 0
        %5350 = vmatprep.subr.bf16.mxu0 0
        %5351 = vmatpush1.bf16.msra.mxu0 0
        %5352 = vmatprep.subr.bf16.mxu0 0
        %5353 = vmatpush1.bf16.msra.mxu0 0
        %5354 = vmatprep.subr.bf16.mxu0 0
        %5355 = vmatpush1.bf16.msra.mxu0 0
        %5356 = vmatprep.subr.bf16.mxu0 0
        %5357 = vmatpush1.bf16.msra.mxu0 0
        %5358 = vmatprep.subr.bf16.mxu0 0
        %5359 = vmatpush1.bf16.msra.mxu0 0
        %5360 = vmatprep.mubr.bf16.mxu0 0
        %5361 = vmatmul.mubr.bf16.gmra.mrb[0].mxu0 %v5240
        %v5362 = vpop.f32.mrb[0].mxu0
        %v5363 = vadd.f32 0.0, %v5362
        %v5364 = vpop.f32.mrb[0].mxu0
        %v5365 = vadd.f32 0.0, %v5364
        %v5366 = vpop.f32.mrb[0].mxu0
        %v5367 = vadd.f32 0.0, %v5366
        %v5368 = vpop.f32.mrb[0].mxu0
        %v5369 = vadd.f32 0.0, %v5368
        %5370 = vdwg.mxu0
        %5371 = vmatprep.subr.bf16.mxu0 %v1716
        %5372 = vmatpush1.bf16.msra.mxu0 %v1715
        %5373 = vmatprep.subr.bf16.mxu0 %v1726
        %5374 = vmatpush1.bf16.msra.mxu0 %v1725
        %5375 = vmatprep.subr.bf16.mxu0 0
        %5376 = vmatpush1.bf16.msra.mxu0 0
        %5377 = vmatprep.subr.bf16.mxu0 0
        %5378 = vmatpush1.bf16.msra.mxu0 0
        %5379 = vmatprep.subr.bf16.mxu0 0
        %5380 = vmatpush1.bf16.msra.mxu0 0
        %5381 = vmatprep.subr.bf16.mxu0 0
        %5382 = vmatpush1.bf16.msra.mxu0 0
        %5383 = vmatprep.subr.bf16.mxu0 0
        %5384 = vmatpush1.bf16.msra.mxu0 0
        %5385 = vmatprep.subr.bf16.mxu0 0
        %5386 = vmatpush1.bf16.msra.mxu0 0
        %5387 = vmatprep.subr.bf16.mxu0 0
        %5388 = vmatpush1.bf16.msra.mxu0 0
        %5389 = vmatprep.subr.bf16.mxu0 0
        %5390 = vmatpush1.bf16.msra.mxu0 0
        %5391 = vmatprep.subr.bf16.mxu0 0
        %5392 = vmatpush1.bf16.msra.mxu0 0
        %5393 = vmatprep.subr.bf16.mxu0 0
        %5394 = vmatpush1.bf16.msra.mxu0 0
        %5395 = vmatprep.subr.bf16.mxu0 0
        %5396 = vmatpush1.bf16.msra.mxu0 0
        %5397 = vmatprep.subr.bf16.mxu0 0
        %5398 = vmatpush1.bf16.msra.mxu0 0
        %5399 = vmatprep.subr.bf16.mxu0 0
        %5400 = vmatpush1.bf16.msra.mxu0 0
        %5401 = vmatprep.subr.bf16.mxu0 0
        %5402 = vmatpush1.bf16.msra.mxu0 0
        %5403 = vmatprep.mubr.bf16.mxu0 0
        %5404 = vmatmul.mubr.bf16.gmra.mrb[0].mxu0 %v5240
        %v5405 = vpop.f32.mrb[0].mxu0
        %v5406 = vadd.f32 0.0, %v5405
        %v5407 = vpop.f32.mrb[0].mxu0
        %v5408 = vadd.f32 0.0, %v5407
        %v5409 = vpop.f32.mrb[0].mxu0
        %v5410 = vadd.f32 0.0, %v5409
        %v5411 = vpop.f32.mrb[0].mxu0
        %v5412 = vadd.f32 0.0, %v5411
        %5413 = vdwg.mxu0
        %v5414 = vadd.f32 %v5215, %v5277
        %v5415 = vadd.f32 %v5216, %v5279
        %v5416 = vadd.f32 %v5217, %v5320
        %v5417 = vadd.f32 %v5218, %v5322
        %v5418 = vadd.f32 %v5219, %v5363
        %v5419 = vadd.f32 %v5220, %v5365
        %v5420 = vadd.f32 %v5221, %v5406
        %v5421 = vadd.f32 %v5222, %v5408
        %v5422 = vadd.f32 %v5223, %v5281
        %v5423 = vadd.f32 %v5224, %v5283
        %v5424 = vadd.f32 %v5225, %v5324
        %v5425 = vadd.f32 %v5226, %v5326
        %v5426 = vadd.f32 %v5227, %v5367
        %v5427 = vadd.f32 %v5228, %v5369
        %v5428 = vadd.f32 %v5229, %v5410
        %v5429 = vadd.f32 %v5230, %v5412
        %5430 = vrot.lane.b32.xlu0 %v5414, 127
        %v5431 = vpop.permute.xlu0 %5430
        %5432 = vrot.lane.b32.xlu0 %v5422, 127
        %v5433 = vpop.permute.xlu0 %5432
        %5434 = vrot.lane.b32.xlu0 %v5415, 127
        %v5435 = vpop.permute.xlu0 %5434
        %5436 = vrot.lane.b32.xlu0 %v5423, 127
        %v5437 = vpop.permute.xlu0 %5436
        %5438 = vrot.lane.b32.xlu0 %v5416, 127
        %v5439 = vpop.permute.xlu0 %5438
        %5440 = vrot.lane.b32.xlu0 %v5424, 127
        %v5441 = vpop.permute.xlu0 %5440
        %5442 = vrot.lane.b32.xlu0 %v5417, 127
        %v5443 = vpop.permute.xlu0 %5442
        %5444 = vrot.lane.b32.xlu0 %v5425, 127
        %v5445 = vpop.permute.xlu0 %5444
        %5446 = vrot.lane.b32.xlu0 %v5418, 127
        %v5447 = vpop.permute.xlu0 %5446
        %5448 = vrot.lane.b32.xlu0 %v5426, 127
        %v5449 = vpop.permute.xlu0 %5448
        %5450 = vrot.lane.b32.xlu0 %v5419, 127
        %v5451 = vpop.permute.xlu0 %5450
        %5452 = vrot.lane.b32.xlu0 %v5427, 127
        %v5453 = vpop.permute.xlu0 %5452
        %5454 = vrot.lane.b32.xlu0 %v5420, 127
        %v5455 = vpop.permute.xlu0 %5454
        %5456 = vrot.lane.b32.xlu0 %v5428, 127
        %v5457 = vpop.permute.xlu0 %5456
        %5458 = vrot.lane.b32.xlu0 %v5421, 127
        %v5459 = vpop.permute.xlu0 %5458
        %5460 = vrot.lane.b32.xlu0 %v5429, 127
        %v5461 = vpop.permute.xlu0 %5460
        %vm5462 = vcmp.lt.s32.totalorder %v1728, 127
        %v5463 = vsel %vm5462, %v5455, %v5459
        %v5464 = vsel %vm5462, %v5457, %v5461
        %v5465 = vsel %vm5462, %v5451, %v5455
        %v5466 = vsel %vm5462, %v5453, %v5457
        %v5467 = vsel %vm5462, %v5447, %v5451
        %v5468 = vsel %vm5462, %v5449, %v5453
        %v5469 = vsel %vm5462, %v5443, %v5447
        %v5470 = vsel %vm5462, %v5445, %v5449
        %v5471 = vsel %vm5462, %v5439, %v5443
        %v5472 = vsel %vm5462, %v5441, %v5445
        %v5473 = vsel %vm5462, %v5435, %v5439
        %v5474 = vsel %vm5462, %v5437, %v5441
        %v5475 = vsel %vm5462, %v5431, %v5435
        %v5476 = vsel %vm5462, %v5433, %v5437
        %v5477 = vsel %vm5462, %v5459, %v5431
        %v5478 = vsel %vm5462, %v5461, %v5433
        %v5479 = vsel %vm4260, 1, 0
        %v5480 = vsel %vm4261, 1, 0
        %v5481 = vsel %vm4262, 1, 0
        %v5482 = vsel %vm4263, 1, 0
        %v5483 = vsel %vm4264, 1, 0
        %v5484 = vsel %vm4265, 1, 0
        %v5485 = vsel %vm4266, 1, 0
        %v5486 = vsel %vm4267, 1, 0
        %vm5487 = vcmp.eq.s32.totalorder %v5479, 1
        %vm5488 = vcmp.eq.s32.totalorder %v5480, 1
        %vm5489 = vcmp.eq.s32.totalorder %v5481, 1
        %vm5490 = vcmp.eq.s32.totalorder %v5482, 1
        %vm5491 = vcmp.eq.s32.totalorder %v5483, 1
        %vm5492 = vcmp.eq.s32.totalorder %v5484, 1
        %vm5493 = vcmp.eq.s32.totalorder %v5485, 1
        %vm5494 = vcmp.eq.s32.totalorder %v5486, 1
        %v5495 = vsel %vm5487, %v5475, 0.0
        %v5496 = vsel %vm5488, %v5473, 0.0
        %v5497 = vsel %vm5489, %v5471, 0.0
        %v5498 = vsel %vm5490, %v5469, 0.0
        %v5499 = vsel %vm5491, %v5467, 0.0
        %v5500 = vsel %vm5492, %v5465, 0.0
        %v5501 = vsel %vm5493, %v5463, 0.0
        %v5502 = vsel %vm5494, %v5477, 0.0
        %v5503 = vsel %vm5487, %v5476, 0.0
        %v5504 = vsel %vm5488, %v5474, 0.0
        %v5505 = vsel %vm5489, %v5472, 0.0
        %v5506 = vsel %vm5490, %v5470, 0.0
        %v5507 = vsel %vm5491, %v5468, 0.0
        %v5508 = vsel %vm5492, %v5466, 0.0
        %v5509 = vsel %vm5493, %v5464, 0.0
        %v5510 = vsel %vm5494, %v5478, 0.0
        %v5511 = vadd.f32 %v4244, %v5495
        %v5512 = vadd.f32 %v4245, %v5496
        %v5513 = vadd.f32 %v4246, %v5497
        %v5514 = vadd.f32 %v4247, %v5498
        %v5515 = vadd.f32 %v4248, %v5499
        %v5516 = vadd.f32 %v4249, %v5500
        %v5517 = vadd.f32 %v4250, %v5501
        %v5518 = vadd.f32 %v4251, %v5502
        %v5519 = vadd.f32 %v4252, %v5503
        %v5520 = vadd.f32 %v4253, %v5504
        %v5521 = vadd.f32 %v4254, %v5505
        %v5522 = vadd.f32 %v4255, %v5506
        %v5523 = vadd.f32 %v4256, %v5507
        %v5524 = vadd.f32 %v4257, %v5508
        %v5525 = vadd.f32 %v4258, %v5509
        %v5526 = vadd.f32 %v4259, %v5510
        %5527 = vst [vmem:[%s593] sm:$0xff] %v5511
        %5528 = vst [vmem:[%s593 + $0x8] sm:$0xff] %v5512
        %5529 = vst [vmem:[%s593 + $0x10] sm:$0xff] %v5513
        %5530 = vst [vmem:[%s593 + $0x18] sm:$0xff] %v5514
        %5531 = vst [vmem:[%s593 + $0x20] sm:$0xff] %v5515
        %5532 = vst [vmem:[%s593 + $0x28] sm:$0xff] %v5516
        %5533 = vst [vmem:[%s593 + $0x30] sm:$0xff] %v5517
        %5534 = vst [vmem:[%s593 + $0x38] sm:$0xff] %v5518
        %5535 = vst [vmem:[%s593 + $0x40] sm:$0xff] %v5519
        %5536 = vst [vmem:[%s593 + $0x48] sm:$0xff] %v5520
        %5537 = vst [vmem:[%s593 + $0x50] sm:$0xff] %v5521
        %5538 = vst [vmem:[%s593 + $0x58] sm:$0xff] %v5522
        %5539 = vst [vmem:[%s593 + $0x60] sm:$0xff] %v5523
        %5540 = vst [vmem:[%s593 + $0x68] sm:$0xff] %v5524
        %5541 = vst [vmem:[%s593 + $0x70] sm:$0xff] %v5525
        %5542 = vst [vmem:[%s593 + $0x78] sm:$0xff] %v5526
        %s5543 = sand.u32 %s285, 1
        %s5544 = sand.u32 %s285, 1
        %s5545 = smul.addr %s5544, 128
        %s5546 = scalar_lea.vmem [#allocation5], %s5545
        // Predicated region
        $region156: #{cdam2_forward.3} parent=142 // pred_check
          %p5547 = pneg %p295
        $region157: #{cdam2_forward.3} parent=142 // pred_check_branch
          %5549 = sbr.rel (%p5547) target = $region159
        $region158: #{cdam2_forward.3} parent=142 // pred_region
          %s5550 = smul.u32 8, %s25
          %s5551 = smul.addr %s24, 256
          %s5552 = sadd.s32 %s5550, %s5551
          %s5553 = smul.addr %s5552, 8
          %s5554 = scalar_lea.vmem %s9, %s5553
          // Predicated region
          $region160: #{cdam2_forward.3} parent=158 // pred_check
            _
          $region161: #{cdam2_forward.3} parent=158 // pred_check_branch
            %5556 = sbr.rel (0) target = $region163
          $region162: #{cdam2_forward.3} parent=158 // pred_region
            // Predicated region
            $region164: #{cdam2_forward.3} parent=162 // pred_check
              _
            $region165: #{cdam2_forward.3} parent=162 // pred_check_branch
              %5558 = sbr.rel (0) target = $region167
            $region166: #{cdam2_forward.3} parent=162 // pred_region
              loop: start=0, step=1, limit=1
              $region168: #{cdam2_forward.3} parent=166 // loop_pre_header
                _
              $region169: #{cdam2_forward.3} parent=166 // loop_header
                %s5560 = sphi 0, %s5564
                %p5561 = scmp.ge.s32.totalorder %s5560, 1
                %s5565 = sphi %s5546, %s5546
                %s5566 = sphi %s5554, %s5554
              $region170: #{cdam2_forward.3} parent=166 // loop_header_branch
                %5563 = sbr.rel (%p5561) target = $region174
              $region171: #{cdam2_forward.3} parent=166 // loop_body
                %v5567 = vld [vmem:[%s5565] sm:$0xff]
                %5568 = vst [vmem:[%s5566] sm:$0xff] %v5567
                %v5569 = vld [vmem:[%s5565 + $0x8] sm:$0xff]
                %5570 = vst [vmem:[%s5566 + $0x8] sm:$0xff] %v5569
                %v5571 = vld [vmem:[%s5565 + $0x10] sm:$0xff]
                %5572 = vst [vmem:[%s5566 + $0x10] sm:$0xff] %v5571
                %v5573 = vld [vmem:[%s5565 + $0x18] sm:$0xff]
                %5574 = vst [vmem:[%s5566 + $0x18] sm:$0xff] %v5573
                %v5575 = vld [vmem:[%s5565 + $0x20] sm:$0xff]
                %5576 = vst [vmem:[%s5566 + $0x20] sm:$0xff] %v5575
                %v5577 = vld [vmem:[%s5565 + $0x28] sm:$0xff]
                %5578 = vst [vmem:[%s5566 + $0x28] sm:$0xff] %v5577
                %v5579 = vld [vmem:[%s5565 + $0x30] sm:$0xff]
                %5580 = vst [vmem:[%s5566 + $0x30] sm:$0xff] %v5579
                %v5581 = vld [vmem:[%s5565 + $0x38] sm:$0xff]
                %5582 = vst [vmem:[%s5566 + $0x38] sm:$0xff] %v5581
                %v5583 = vld [vmem:[%s5565 + $0x40] sm:$0xff]
                %5584 = vst [vmem:[%s5566 + $0x400] sm:$0xff] %v5583
                %v5585 = vld [vmem:[%s5565 + $0x48] sm:$0xff]
                %5586 = vst [vmem:[%s5566 + $0x408] sm:$0xff] %v5585
                %v5587 = vld [vmem:[%s5565 + $0x50] sm:$0xff]
                %5588 = vst [vmem:[%s5566 + $0x410] sm:$0xff] %v5587
                %v5589 = vld [vmem:[%s5565 + $0x58] sm:$0xff]
                %5590 = vst [vmem:[%s5566 + $0x418] sm:$0xff] %v5589
                %v5591 = vld [vmem:[%s5565 + $0x60] sm:$0xff]
                %5592 = vst [vmem:[%s5566 + $0x420] sm:$0xff] %v5591
                %v5593 = vld [vmem:[%s5565 + $0x68] sm:$0xff]
                %5594 = vst [vmem:[%s5566 + $0x428] sm:$0xff] %v5593
                %v5595 = vld [vmem:[%s5565 + $0x70] sm:$0xff]
                %5596 = vst [vmem:[%s5566 + $0x430] sm:$0xff] %v5595
                %v5597 = vld [vmem:[%s5565 + $0x78] sm:$0xff]
                %5598 = vst [vmem:[%s5566 + $0x438] sm:$0xff] %v5597
              $region172: #{cdam2_forward.3} parent=166 // loop_footer
                %s5564 = sadd.s32 1, %s5560
              $region173: #{cdam2_forward.3} parent=166 // loop_footer_branch
                %5559 = sbr.rel target = $region169
              $region174: #{cdam2_forward.3} parent=166 // loop_exit
                _
            $region167: #{cdam2_forward.3} parent=162 // pred_fallthru
              _
            // Predicated region
            $region175: #{cdam2_forward.3} parent=162 // pred_check
              _
            $region176: #{cdam2_forward.3} parent=162 // pred_check_branch
              %5600 = sbr.rel target = $region178
            $region177: #{cdam2_forward.3} parent=162 // pred_region
              _
            $region178: #{cdam2_forward.3} parent=162 // pred_fallthru
              _
          $region163: #{cdam2_forward.3} parent=158 // pred_fallthru
            _
          %5601 = vnop
        $region159: #{cdam2_forward.3} parent=142 // pred_fallthru
          _
      $region143: #{cdam2_forward.3} parent=5 // pred_fallthru
        _
      %p5602 = scmp.le.s32.totalorder 2, %s15
      // Predicated region
      $region179: #{cdam2_forward.3} parent=5 // pred_check
        %p5603 = pneg %p5602
      $region180: #{cdam2_forward.3} parent=5 // pred_check_branch
        %5605 = sbr.rel (%p5603) target = $region182
      $region181: #{cdam2_forward.3} parent=5 // pred_region
        %s5606 = ssub.s32 %s15, 2
        // Predicated region
        $region183: #{cdam2_forward.3} parent=181 // pred_check
          %p5607 = pneg %p301
        $region184: #{cdam2_forward.3} parent=181 // pred_check_branch
          %5609 = sbr.rel (%p5607) target = $region186
        $region185: #{cdam2_forward.3} parent=181 // pred_region
          %s5610 = sand.u32 %s286, 1
          %s5611 = sand.u32 %s286, 1
          %s5612 = smul.addr %s5611, 128
          %s5613 = scalar_lea.vmem [#allocation5], %s5612
        $region186: #{cdam2_forward.3} parent=181 // pred_fallthru
          _
      $region182: #{cdam2_forward.3} parent=5 // pred_fallthru
        _
    $region6: #{cdam2_forward.3} parent=1 // loop_footer
      %s19 = sadd.s32 1, %s15
    $region7: #{cdam2_forward.3} parent=1 // loop_footer_branch
      %14 = sbr.rel target = $region3
    $region8: #{cdam2_forward.3} parent=1 // loop_exit
      _

</llo_original>
